<compile_context>
chip_gen: v7x
topology: tpu7x:2x2x1
jax: 0.10.0
libtpu: 0.0.40
codegen_flags: <defaults>
</compile_context>

<pallas_src>
import jax
import jax.numpy as jnp
from jax.experimental import pallas as pl
from jax.experimental.pallas import tpu as pltpu


# ------------------------------- small helpers -------------------------------
def _bytes(shape, dtype):
    n = 1
    for d in shape:
        n *= int(d)
    return n * jnp.dtype(dtype).itemsize


def _vmem_limit(estimate_bytes):
    # Explicit scoped-VMEM budget: 50% + 4MiB headroom over the estimate,
    # floored at the 32 MiB default, capped at v7x's 64 MiB physical VMEM.
    need = int(estimate_bytes * 1.5) + (4 << 20)
    return max(32 << 20, min(need, 64 << 20))


def _choose_tile(S, bs, preferred=256):
    """Flash / projection row tile. 256 fills the v6e/v7x 256-wide MXU and cuts
    K/V re-streaming; drop to 128 only if that would leave a single (b, qi)
    chunk (keep both v7x TensorCores busy)."""
    tile = preferred
    if bs * pl.cdiv(S, tile) < 2 and S > 128:
        tile = 128
    return tile


# ----------------------- reference points kernel -----------------------------
def _ref_points_kernel(centers_ref, denom_ref, vrf_ref, out_ref):
    # centers: (2, S_pad)  pixel centers, row 0 = x, row 1 = y
    # denom  : (2, S_pad)  valid_ratio(own level) * (W, H) of own level
    # vrf    : (2L, 1)     valid ratios flattened as row l*2+c
    # out    : (2L, S_pad) row l*2+c, lane-dense along S_pad
    base = centers_ref[...] / denom_ref[...]                     # (2, S_pad)
    n_rows = out_ref.shape[0]
    base_rep = jnp.concatenate([base] * (n_rows // 2), axis=0)   # (2L, S_pad)
    out_ref[...] = base_rep * vrf_ref[...]                       # lane broadcast


def get_reference_points(spatial_shapes, valid_ratios):
    """spatial_shapes: tuple of (H, W) python ints; valid_ratios: [bs, L, 2].
    Returns reference_points of shape [bs, S, L, 2] (torch layout)."""
    bs, L, _ = valid_ratios.shape

    centers, wh, lvl_idx = [], [], []
    for lvl, (H, W) in enumerate(spatial_shapes):
        ys = jnp.arange(H, dtype=jnp.float32) + 0.5       # linspace(0.5, H-0.5, H)
        xs = jnp.arange(W, dtype=jnp.float32) + 0.5
        ref_y, ref_x = jnp.meshgrid(ys, xs, indexing="ij")
        centers.append(jnp.stack([ref_x.reshape(-1), ref_y.reshape(-1)], 0))
        wh.append(jnp.broadcast_to(jnp.array([[W], [H]], jnp.float32), (2, H * W)))
        lvl_idx.append(jnp.full((H * W,), lvl, jnp.int32))
    centers = jnp.concatenate(centers, 1)      # (2, S)
    wh = jnp.concatenate(wh, 1)                # (2, S)
    lvl_idx = jnp.concatenate(lvl_idx, 0)      # (S,)
    S = centers.shape[1]
    S_pad = ((S + 127) // 128) * 128           # lane-dense stores

    vr_t = jnp.transpose(valid_ratios, (0, 2, 1))             # (bs, 2, L)
    denom = jnp.take(vr_t, lvl_idx, axis=2) * wh[None]        # (bs, 2, S)

    if S_pad != S:
        centers = jnp.pad(centers, ((0, 0), (0, S_pad - S)))
        denom = jnp.pad(denom, ((0, 0), (0, 0), (0, S_pad - S)), constant_values=1.0)

    vr_flat = valid_ratios.reshape(bs, 2 * L, 1)

    out = pl.pallas_call(
        _ref_points_kernel,
        out_shape=jax.ShapeDtypeStruct((bs, 2 * L, S_pad), jnp.float32),
        grid=(bs,),
        in_specs=[
            pl.BlockSpec((2, S_pad), lambda b: (0, 0)),
            pl.BlockSpec((None, 2, S_pad), lambda b: (b, 0, 0)),
            pl.BlockSpec((None, 2 * L, 1), lambda b: (b, 0, 0)),
        ],
        out_specs=pl.BlockSpec((None, 2 * L, S_pad), lambda b: (b, 0, 0)),
        compiler_params=pltpu.CompilerParams(dimension_semantics=("parallel",)),
    )(centers, denom, vr_flat)

    out = out.reshape(bs, L, 2, S_pad)
    return jnp.transpose(out, (0, 3, 1, 2))[:, :S]


# --------------------------- K/V projection kernel ---------------------------
def _kv_kernel_pos(x_ref, pos_ref, wk_ref, bk_ref, wv_ref, bv_ref, k_ref, v_ref):
    x = x_ref[...].astype(jnp.float32)
    xk = (x + pos_ref[...].astype(jnp.float32)).astype(jnp.bfloat16)
    k = jnp.dot(xk, wk_ref[...], preferred_element_type=jnp.float32) + bk_ref[...]
    k_ref[...] = k.astype(k_ref.dtype)
    v = jnp.dot(x.astype(jnp.bfloat16), wv_ref[...],
                preferred_element_type=jnp.float32) + bv_ref[...]
    v_ref[...] = v.astype(v_ref.dtype)


def _kv_kernel_nopos(x_ref, wkv_ref, bkv_ref, k_ref, v_ref):
    D = k_ref.shape[-1]
    kv = jnp.dot(x_ref[...], wkv_ref[...],
                 preferred_element_type=jnp.float32) + bkv_ref[...]
    k_ref[...] = kv[:, :D].astype(k_ref.dtype)
    v_ref[...] = kv[:, D:].astype(v_ref.dtype)


def kv_project(x, pos, p, *, row_tile):
    """x, pos: (bs, S_pad, D) bf16. Returns bf16 K, V of the same shape."""
    bs, S_pad, D = x.shape
    TR = row_tile
    n_r = S_pad // TR

    row_spec = pl.BlockSpec((None, TR, D), lambda b, r: (b, r, 0))
    out_sds = jax.ShapeDtypeStruct((bs, S_pad, D), jnp.bfloat16)

    if pos is not None:
        kernel = _kv_kernel_pos
        in_specs = [row_spec, row_spec,
                    pl.BlockSpec((D, D), lambda b, r: (0, 0)),
                    pl.BlockSpec((1, D), lambda b, r: (0, 0)),
                    pl.BlockSpec((D, D), lambda b, r: (0, 0)),
                    pl.BlockSpec((1, D), lambda b, r: (0, 0))]
        args = (x, pos, p["wk"], p["bk"], p["wv"], p["bv"])
        n_rows_in = 2
    else:
        kernel = _kv_kernel_nopos
        in_specs = [row_spec,
                    pl.BlockSpec((D, 2 * D), lambda b, r: (0, 0)),
                    pl.BlockSpec((1, 2 * D), lambda b, r: (0, 0))]
        args = (x, p["wkv"], p["bkv"])
        n_rows_in = 1

    est = 2 * ((n_rows_in + 2) * _bytes((TR, D), jnp.bfloat16)
               + 2 * _bytes((D, 2 * D), jnp.bfloat16)
               + 2 * _bytes((1, 2 * D), jnp.float32))

    return pl.pallas_call(
        kernel,
        out_shape=(out_sds, out_sds),
        grid=(bs, n_r),
        in_specs=in_specs,
        out_specs=(row_spec, row_spec),
        compiler_params=pltpu.CompilerParams(
            dimension_semantics=("parallel", "parallel"),
            vmem_limit_bytes=_vmem_limit(est)),
    )(*args)


# ------------- flash-attention (fused Q-proj) + fused layer epilogue ---------
def _make_flash_kernel(S_valid, S_pad, has_pos):
    masked = S_pad != S_valid

    def kernel(*refs):
        if has_pos:
            (x_ref, pos_ref, k_ref, v_ref, wq_ref, bq_ref, wo_ref,
             w1_ref, w2_ref, vecs_ref, b1_ref, o_ref,
             q_sc, m_sc, l_sc, acc_sc) = refs
        else:
            (x_ref, k_ref, v_ref, wq_ref, bq_ref, wo_ref,
             w1_ref, w2_ref, vecs_ref, b1_ref, o_ref,
             q_sc, m_sc, l_sc, acc_sc) = refs
            pos_ref = None

        ki = pl.program_id(2)
        nk = pl.num_programs(2)

        @pl.when(ki == 0)
        def _():
            # Fused Q projection from the resident x(+pos) block; 1/sqrt(D) and
            # bias already folded into wq/bq.
            xq = x_ref[...].astype(jnp.float32)
            if pos_ref is not None:
                xq = xq + pos_ref[...].astype(jnp.float32)
            q = jnp.dot(xq.astype(jnp.bfloat16), wq_ref[...],
                        preferred_element_type=jnp.float32) + bq_ref[...]
            q_sc[...] = q.astype(jnp.bfloat16)
            m_sc[...] = jnp.full(m_sc.shape, -jnp.inf, jnp.float32)
            l_sc[...] = jnp.zeros(l_sc.shape, jnp.float32)
            acc_sc[...] = jnp.zeros(acc_sc.shape, jnp.float32)

        k = k_ref[...]                                       # (TK, D) bf16
        v = v_ref[...]                                       # (TK, D) bf16

        # Scores without materializing k.T (contract dim 1 of both operands).
        s = jax.lax.dot_general(q_sc[...], k, (((1,), (1,)), ((), ())),
                                preferred_element_type=jnp.float32)
        if masked:
            TK = k.shape[0]
            key_idx = ki * TK + jax.lax.broadcasted_iota(jnp.int32, s.shape, 1)
            s = jnp.where(key_idx < S_valid, s, -jnp.inf)

        # Online-softmax update (never materializes S x S scores).
        m_prev = m_sc[...]
        m_new = jnp.maximum(m_prev, s.max(axis=-1, keepdims=True))
        alpha = jnp.exp(m_prev - m_new)
        p = jnp.exp(s - m_new)
        l_sc[...] = alpha * l_sc[...] + p.sum(axis=-1, keepdims=True)
        acc_sc[...] = alpha * acc_sc[...] + jnp.dot(
            p.astype(v.dtype), v, preferred_element_type=jnp.float32)
        m_sc[...] = m_new

        @pl.when(ki == nk - 1)
        def _():
            eps = 1e-5
            vecs = vecs_ref[...]                             # (8, D) f32
            bo, b2 = vecs[0:1, :], vecs[1:2, :]
            g1, be1 = vecs[2:3, :], vecs[3:4, :]
            g2, be2 = vecs[4:5, :], vecs[5:6, :]

            x = x_ref[...].astype(jnp.float32)               # residual (bf16 in HBM)
            ctx = acc_sc[...] * pl.reciprocal(l_sc[...], approx=True)
            a = jnp.dot(ctx.astype(jnp.bfloat16), wo_ref[...],
                        preferred_element_type=jnp.float32) + bo

            def ln(y, g, b):                                 # LayerNorm in f32
                mu = jnp.mean(y, axis=-1, keepdims=True)
                var = jnp.mean((y - mu) ** 2, axis=-1, keepdims=True)
                return (y - mu) * jax.lax.rsqrt(var + eps) * g + b

            x1 = ln(x + a, g1, be1)
            h = jnp.maximum(
                jnp.dot(x1.astype(jnp.bfloat16), w1_ref[...],
                        preferred_element_type=jnp.float32) + b1_ref[...], 0.0)
            f = jnp.dot(h.astype(jnp.bfloat16), w2_ref[...],
                        preferred_element_type=jnp.float32) + b2
            o_ref[...] = ln(x1 + f, g2, be2).astype(o_ref.dtype)

    return kernel


def flash_attn_ffn(x, pos, k, v, p, *, S_valid, q_tile, k_tile):
    """x/pos/k/v: (bs, S_pad, D) bf16. Returns bf16 (bs, S_pad, D); the x
    activation buffer is reused for the output via input_output_aliases."""
    bs, S_pad, D = x.shape
    F = p["w1"].shape[1]
    TQ, TK = q_tile, k_tile
    n_q, n_k = S_pad // TQ, S_pad // TK
    has_pos = pos is not None

    q_spec = pl.BlockSpec((None, TQ, D), lambda b, qi, ki: (b, qi, 0))
    kv_spec = pl.BlockSpec((None, TK, D), lambda b, qi, ki: (b, ki, 0))
    w_spec = lambda shp: pl.BlockSpec(shp, lambda b, qi, ki: (0, 0))

    in_specs = ([q_spec] + ([q_spec] if has_pos else []) + [kv_spec, kv_spec,
                w_spec((D, D)), w_spec((1, D)), w_spec((D, D)),
                w_spec((D, F)), w_spec((F, D)), w_spec((8, D)), w_spec((1, F))])
    args = ([x] + ([pos] if has_pos else []) + [k, v, p["wq"], p["bq"], p["wo"],
            p["w1"], p["w2"], p["vecs"], p["b1"]])

    # VMEM budget: double-buffered activation/weight blocks + scratch.
    est = 2 * ((3 if has_pos else 2) * _bytes((TQ, D), jnp.bfloat16)   # x,(pos),out
               + 2 * _bytes((TK, D), jnp.bfloat16)                     # k, v
               + 2 * _bytes((D, D), jnp.bfloat16)                      # wq, wo
               + _bytes((D, F), jnp.bfloat16) + _bytes((F, D), jnp.bfloat16)
               + _bytes((8, D), jnp.float32) + _bytes((1, D), jnp.float32)
               + _bytes((1, F), jnp.float32))
    est += (_bytes((TQ, D), jnp.bfloat16) + _bytes((TQ, D), jnp.float32)
            + 2 * _bytes((TQ, 1), jnp.float32))

    kernel = _make_flash_kernel(S_valid, S_pad, has_pos)
    return pl.pallas_call(
        kernel,
        out_shape=jax.ShapeDtypeStruct((bs, S_pad, D), jnp.bfloat16),
        grid=(bs, n_q, n_k),
        in_specs=in_specs,
        out_specs=q_spec,
        scratch_shapes=[pltpu.VMEM((TQ, D), jnp.bfloat16),   # q
                        pltpu.VMEM((TQ, 1), jnp.float32),    # m
                        pltpu.VMEM((TQ, 1), jnp.float32),    # l
                        pltpu.VMEM((TQ, D), jnp.float32)],   # acc
        input_output_aliases={0: 0},                         # reuse activation buffer
        compiler_params=pltpu.CompilerParams(
            dimension_semantics=("parallel", "parallel", "arbitrary"),
            vmem_limit_bytes=_vmem_limit(est)),
    )(*args)


# ------------------------------ parameter prep -------------------------------
def _prep_params(params):
    """Fold 1/sqrt(D) into Wq/bq, cast matmul weights to bf16 (f32 accumulate),
    pack Wk|Wv for the no-pos path, and pack the six d_model-length vectors."""
    D = params["wq"].shape[0]
    scale = 1.0 / (D ** 0.5)
    zeros = jnp.zeros((1, D), jnp.float32)
    return dict(
        wq=(params["wq"] * scale).astype(jnp.bfloat16),
        bq=(params["bq"] * scale).astype(jnp.float32),
        wk=params["wk"].astype(jnp.bfloat16),
        bk=params["bk"].astype(jnp.float32),
        wv=params["wv"].astype(jnp.bfloat16),
        bv=params["bv"].astype(jnp.float32),
        wkv=jnp.concatenate([params["wk"], params["wv"]], 1).astype(jnp.bfloat16),
        bkv=jnp.concatenate([params["bk"], params["bv"]], 1).astype(jnp.float32),
        wo=params["wo"].astype(jnp.bfloat16),
        w1=params["w1"].astype(jnp.bfloat16),
        w2=params["w2"].astype(jnp.bfloat16),
        b1=params["b1"].astype(jnp.float32),
        vecs=jnp.concatenate([params["bo"], params["b2"], params["g1"],
                              params["be1"], params["g2"], params["be2"],
                              zeros, zeros], 0).astype(jnp.float32),
    )


# ------------------------------ _make_encoder --------------------------------
def make_encoder_forward(src, spatial_shapes, level_start_index, valid_ratios,
                         params, depth, pos=None, mask=None):
    """Mirrors _make_encoder.forward. level_start_index / mask accepted for
    signature fidelity; mask is None in this synthetic setup."""
    del level_start_index, mask
    bs, S, D = src.shape
    reference_points = get_reference_points(spatial_shapes, valid_ratios)
    prepped = _prep_params(params)                   # shared by all layers (deepcopies)

    tile = _choose_tile(S, bs)
    S_pad = pl.cdiv(S, tile) * tile
    pad = S_pad - S

    # Residual stream carried in bf16 (f32 math inside kernels); pad once.
    x = src.astype(jnp.bfloat16)
    pos_b = pos.astype(jnp.bfloat16) if pos is not None else None
    if pad:
        x = jnp.pad(x, ((0, 0), (0, pad), (0, 0)))
        if pos_b is not None:
            pos_b = jnp.pad(pos_b, ((0, 0), (0, pad), (0, 0)))

    for _ in range(depth):
        k, v = kv_project(x, pos_b, prepped, row_tile=tile)
        x = flash_attn_ffn(x, pos_b, k, v, prepped, S_valid=S,
                           q_tile=tile, k_tile=tile)
    output = x[:, :S].astype(src.dtype)
    return output, reference_points


def init_params(key, d_model, d_ffn):
    ks = jax.random.split(key, 6)
    w = lambda k, s: jax.random.normal(k, s, jnp.float32) * 0.02
    z = lambda n: jnp.zeros((1, n), jnp.float32)
    o = lambda n: jnp.ones((1, n), jnp.float32)
    return dict(
        wq=w(ks[0], (d_model, d_model)), bq=z(d_model),
        wk=w(ks[1], (d_model, d_model)), bk=z(d_model),
        wv=w(ks[2], (d_model, d_model)), bv=z(d_model),
        wo=w(ks[3], (d_model, d_model)), bo=z(d_model),
        w1=w(ks[4], (d_model, d_ffn)),   b1=z(d_ffn),
        w2=w(ks[5], (d_ffn, d_model)),   b2=z(d_model),
        g1=o(d_model), be1=z(d_model),
        g2=o(d_model), be2=z(d_model),
    )


# ------------------------- pure-JAX references (checks) ----------------------
def _reference_points_ref(spatial_shapes, valid_ratios):
    ref_list = []
    for lvl, (H, W) in enumerate(spatial_shapes):
        ys = jnp.arange(H, dtype=jnp.float32) + 0.5
        xs = jnp.arange(W, dtype=jnp.float32) + 0.5
        ref_y, ref_x = jnp.meshgrid(ys, xs, indexing="ij")
        ry = ref_y.reshape(-1)[None] / (valid_ratios[:, None, lvl, 1] * H)
        rx = ref_x.reshape(-1)[None] / (valid_ratios[:, None, lvl, 0] * W)
        ref_list.append(jnp.stack((rx, ry), -1))
    ref = jnp.concatenate(ref_list, 1)
    return ref[:, :, None] * valid_ratios[:, None]


def _encoder_ref(src, pos, params, depth):
    D = src.shape[-1]

    def ln(y, g, b):
        mu = jnp.mean(y, -1, keepdims=True)
        var = jnp.mean((y - mu) ** 2, -1, keepdims=True)
        return (y - mu) * jax.lax.rsqrt(var + 1e-5) * g + b

    x = src
    for _ in range(depth):
        xq = x + pos if pos is not None else x
        q = xq @ params["wq"] + params["bq"]
        k = xq @ params["wk"] + params["bk"]
        v = x @ params["wv"] + params["bv"]
        s = jnp.einsum("bqd,bkd->bqk", q, k) / (D ** 0.5)
        a = jax.nn.softmax(s, axis=-1) @ v
        a = a @ params["wo"] + params["bo"]
        x1 = ln(x + a, params["g1"], params["be1"])
        h = jax.nn.relu(x1 @ params["w1"] + params["b1"])
        x = ln(x1 + h @ params["w2"] + params["b2"], params["g2"], params["be2"])
    return x


if __name__ == "__main__":
    key = jax.random.PRNGKey(0)
    k1, k2, k3, k4 = jax.random.split(key, 4)

    # d_model=128 keeps matmul / store dims lane-dense; S = 256 + 128 = 384 is
    # NOT a multiple of 256, exercising the padding + key-mask path (S_pad=512).
    bs, d_model, d_ffn, depth = 2, 128, 256, 2
    spatial_shapes = ((16, 16), (16, 8))
    S = sum(h * w for h, w in spatial_shapes)            # 384
    level_start_index = jnp.array(
        [0, spatial_shapes[0][0] * spatial_shapes[0][1]], dtype=jnp.int32)

    src = jax.random.normal(k1, (bs, S, d_model), jnp.float32)
    pos = jax.random.normal(k2, (bs, S, d_model), jnp.float32)
    valid_ratios = jax.random.uniform(k3, (bs, len(spatial_shapes), 2),
                                      jnp.float32, minval=0.5, maxval=1.0)
    params = init_params(k4, d_model, d_ffn)

    fwd = jax.jit(make_encoder_forward,
                  static_argnames=("spatial_shapes", "depth"))
    out, ref_pts = fwd(src,
                       spatial_shapes=spatial_shapes,
                       level_start_index=level_start_index,
                       valid_ratios=valid_ratios,
                       params=params,
                       depth=depth,
                       pos=pos)
    jax.block_until_ready((out, ref_pts))

    # Correctness vs pure-JAX f32 references (bf16 carry => loose tolerance).
    ref_pts_ref = _reference_points_ref(spatial_shapes, valid_ratios)
    out_ref = _encoder_ref(src, pos, params, depth)

    assert out.shape == (bs, S, d_model)
    assert ref_pts.shape == (bs, S, len(spatial_shapes), 2)
    assert bool(jnp.all(jnp.isfinite(out)))
    rp_err = float(jnp.max(jnp.abs(ref_pts - ref_pts_ref)))
    assert rp_err < 1e-4, f"reference_points max abs err {rp_err}"
    enc_err = float(jnp.max(jnp.abs(out.astype(jnp.float32) - out_ref)))
    assert enc_err < 0.25, f"encoder output max abs err {enc_err}"
    print("KERNEL_OK")
</pallas_src>

<mosaic_0001>
module attributes {stable_mosaic.version = 11 : i64} {
  func.func @_kv_kernel_pos(%arg0: i32, %arg1: i32, %arg2: memref<1x256x128xbf16, #tpu.memory_space<vmem>>, %arg3: memref<1x256x128xbf16, #tpu.memory_space<vmem>>, %arg4: memref<128x128xbf16, #tpu.memory_space<vmem>>, %arg5: memref<1x128xf32, #tpu.memory_space<vmem>>, %arg6: memref<128x128xbf16, #tpu.memory_space<vmem>>, %arg7: memref<1x128xf32, #tpu.memory_space<vmem>>, %arg8: memref<1x256x128xbf16, #tpu.memory_space<vmem>>, %arg9: memref<1x256x128xbf16, #tpu.memory_space<vmem>>) attributes {dimension_semantics = [#tpu.dimension_semantics<parallel>, #tpu.dimension_semantics<parallel>], iteration_bounds = array<i64: 2, 2>, scalar_prefetch = 0 : i64, scratch_operands = 0 : i64, tpu.core_type = #tpu.core_type<tc>, window_params = [{transform_indices = @transform_0, window_bounds = array<i64: 1, 256, 128>}, {transform_indices = @transform_1, window_bounds = array<i64: 1, 256, 128>}, {pipeline_mode = #tpu.pipeline_mode<synchronous>, transform_indices = @transform_2, window_bounds = array<i64: 128, 128>}, {pipeline_mode = #tpu.pipeline_mode<synchronous>, transform_indices = @transform_3, window_bounds = array<i64: 1, 128>}, {pipeline_mode = #tpu.pipeline_mode<synchronous>, transform_indices = @transform_4, window_bounds = array<i64: 128, 128>}, {pipeline_mode = #tpu.pipeline_mode<synchronous>, transform_indices = @transform_5, window_bounds = array<i64: 1, 128>}, {transform_indices = @transform_6, window_bounds = array<i64: 1, 256, 128>}, {transform_indices = @transform_7, window_bounds = array<i64: 1, 256, 128>}]} {
    %c0 = arith.constant 0 : index
    %c0_0 = arith.constant 0 : index
    %c0_1 = arith.constant 0 : index
    %0 = vector.load %arg2[%c0, %c0_0, %c0_1] : memref<1x256x128xbf16, #tpu.memory_space<vmem>>, vector<1x256x128xbf16>
    %1 = vector.shape_cast %0 : vector<1x256x128xbf16> to vector<256x128xbf16>
    %2 = arith.extf %1 : vector<256x128xbf16> to vector<256x128xf32>
    %c0_2 = arith.constant 0 : index
    %c0_3 = arith.constant 0 : index
    %c0_4 = arith.constant 0 : index
    %3 = vector.load %arg3[%c0_2, %c0_3, %c0_4] : memref<1x256x128xbf16, #tpu.memory_space<vmem>>, vector<1x256x128xbf16>
    %4 = vector.shape_cast %3 : vector<1x256x128xbf16> to vector<256x128xbf16>
    %5 = arith.extf %4 : vector<256x128xbf16> to vector<256x128xf32>
    %6 = arith.addf %2, %5 : vector<256x128xf32>
    %7 = arith.truncf %6 : vector<256x128xf32> to vector<256x128xbf16>
    %c0_5 = arith.constant 0 : index
    %c0_6 = arith.constant 0 : index
    %8 = vector.load %arg4[%c0_5, %c0_6] : memref<128x128xbf16, #tpu.memory_space<vmem>>, vector<128x128xbf16>
    %cst = arith.constant dense<0.000000e+00> : vector<256x128xf32>
    %9 = tpu.matmul %7, %8, %cst {dimension_numbers = #tpu.dot_dimension_numbers<[1], [0], [0], [1], [0, 0, 1, 1], [], []>} : vector<256x128xbf16>, vector<128x128xbf16>, vector<256x128xf32> -> vector<256x128xf32>
    %c0_7 = arith.constant 0 : index
    %c0_8 = arith.constant 0 : index
    %10 = vector.load %arg5[%c0_7, %c0_8] : memref<1x128xf32, #tpu.memory_space<vmem>>, vector<1x128xf32>
    %11 = vector.broadcast %10 : vector<1x128xf32> to vector<256x128xf32>
    %12 = arith.addf %9, %11 : vector<256x128xf32>
    %13 = arith.truncf %12 : vector<256x128xf32> to vector<256x128xbf16>
    %c0_9 = arith.constant 0 : index
    %c0_10 = arith.constant 0 : index
    %c0_11 = arith.constant 0 : index
    %14 = vector.load %arg8[%c0_9, %c0_10, %c0_11] : memref<1x256x128xbf16, #tpu.memory_space<vmem>>, vector<1x256x128xbf16>
    %15 = vector.shape_cast %14 : vector<1x256x128xbf16> to vector<256x128xbf16>
    %16 = vector.shape_cast %13 : vector<256x128xbf16> to vector<1x256x128xbf16>
    tpu.vector_store %arg8[%c0_9, %c0_10, %c0_11], %16 {strides = array<i32>} : memref<1x256x128xbf16, #tpu.memory_space<vmem>>, vector<1x256x128xbf16>,
    %17 = arith.truncf %2 : vector<256x128xf32> to vector<256x128xbf16>
    %c0_12 = arith.constant 0 : index
    %c0_13 = arith.constant 0 : index
    %18 = vector.load %arg6[%c0_12, %c0_13] : memref<128x128xbf16, #tpu.memory_space<vmem>>, vector<128x128xbf16>
    %cst_14 = arith.constant dense<0.000000e+00> : vector<256x128xf32>
    %19 = tpu.matmul %17, %18, %cst_14 {dimension_numbers = #tpu.dot_dimension_numbers<[1], [0], [0], [1], [0, 0, 1, 1], [], []>} : vector<256x128xbf16>, vector<128x128xbf16>, vector<256x128xf32> -> vector<256x128xf32>
    %c0_15 = arith.constant 0 : index
    %c0_16 = arith.constant 0 : index
    %20 = vector.load %arg7[%c0_15, %c0_16] : memref<1x128xf32, #tpu.memory_space<vmem>>, vector<1x128xf32>
    %21 = vector.broadcast %20 : vector<1x128xf32> to vector<256x128xf32>
    %22 = arith.addf %19, %21 : vector<256x128xf32>
    %23 = arith.truncf %22 : vector<256x128xf32> to vector<256x128xbf16>
    %c0_17 = arith.constant 0 : index
    %c0_18 = arith.constant 0 : index
    %c0_19 = arith.constant 0 : index
    %24 = vector.load %arg9[%c0_17, %c0_18, %c0_19] : memref<1x256x128xbf16, #tpu.memory_space<vmem>>, vector<1x256x128xbf16>
    %25 = vector.shape_cast %24 : vector<1x256x128xbf16> to vector<256x128xbf16>
    %26 = vector.shape_cast %23 : vector<256x128xbf16> to vector<1x256x128xbf16>
    tpu.vector_store %arg9[%c0_17, %c0_18, %c0_19], %26 {strides = array<i32>} : memref<1x256x128xbf16, #tpu.memory_space<vmem>>, vector<1x256x128xbf16>,
    return
  }
  func.func @transform_0(%arg0: i32, %arg1: i32) -> (i32, i32, i32) {
    %c0_i32 = arith.constant 0 : i32
    %c0_i32_0 = arith.constant 0 : i32
    return %arg0, %arg1, %c0_i32 : i32, i32, i32
  }
  func.func @transform_1(%arg0: i32, %arg1: i32) -> (i32, i32, i32) {
    %c0_i32 = arith.constant 0 : i32
    %c0_i32_0 = arith.constant 0 : i32
    return %arg0, %arg1, %c0_i32 : i32, i32, i32
  }
  func.func @transform_2(%arg0: i32, %arg1: i32) -> (i32, i32) {
    %c0_i32 = arith.constant 0 : i32
    %c0_i32_0 = arith.constant 0 : i32
    %c0_i32_1 = arith.constant 0 : i32
    return %c0_i32, %c0_i32_0 : i32, i32
  }
  func.func @transform_3(%arg0: i32, %arg1: i32) -> (i32, i32) {
    %c0_i32 = arith.constant 0 : i32
    %c0_i32_0 = arith.constant 0 : i32
    %c0_i32_1 = arith.constant 0 : i32
    return %c0_i32, %c0_i32_0 : i32, i32
  }
  func.func @transform_4(%arg0: i32, %arg1: i32) -> (i32, i32) {
    %c0_i32 = arith.constant 0 : i32
    %c0_i32_0 = arith.constant 0 : i32
    %c0_i32_1 = arith.constant 0 : i32
    return %c0_i32, %c0_i32_0 : i32, i32
  }
  func.func @transform_5(%arg0: i32, %arg1: i32) -> (i32, i32) {
    %c0_i32 = arith.constant 0 : i32
    %c0_i32_0 = arith.constant 0 : i32
    %c0_i32_1 = arith.constant 0 : i32
    return %c0_i32, %c0_i32_0 : i32, i32
  }
  func.func @transform_6(%arg0: i32, %arg1: i32) -> (i32, i32, i32) {
    %c0_i32 = arith.constant 0 : i32
    %c0_i32_0 = arith.constant 0 : i32
    return %arg0, %arg1, %c0_i32 : i32, i32, i32
  }
  func.func @transform_7(%arg0: i32, %arg1: i32) -> (i32, i32, i32) {
    %c0_i32 = arith.constant 0 : i32
    %c0_i32_0 = arith.constant 0 : i32
    return %arg0, %arg1, %c0_i32 : i32, i32, i32
  }
}

module attributes {stable_mosaic.version = 11 : i64} {
  func.func @kernel(%arg0: i32, %arg1: i32, %arg2: i32, %arg3: memref<1x256x128xbf16, #tpu.memory_space<vmem>>, %arg4: memref<1x256x128xbf16, #tpu.memory_space<vmem>>, %arg5: memref<1x256x128xbf16, #tpu.memory_space<vmem>>, %arg6: memref<1x256x128xbf16, #tpu.memory_space<vmem>>, %arg7: memref<128x128xbf16, #tpu.memory_space<vmem>>, %arg8: memref<1x128xf32, #tpu.memory_space<vmem>>, %arg9: memref<128x128xbf16, #tpu.memory_space<vmem>>, %arg10: memref<128x256xbf16, #tpu.memory_space<vmem>>, %arg11: memref<256x128xbf16, #tpu.memory_space<vmem>>, %arg12: memref<8x128xf32, #tpu.memory_space<vmem>>, %arg13: memref<1x256xf32, #tpu.memory_space<vmem>>, %arg14: memref<1x256x128xbf16, #tpu.memory_space<vmem>>, %arg15: memref<256x128xbf16, #tpu.memory_space<vmem>>, %arg16: memref<256x1xf32, #tpu.memory_space<vmem>>, %arg17: memref<256x1xf32, #tpu.memory_space<vmem>>, %arg18: memref<256x128xf32, #tpu.memory_space<vmem>>) attributes {dimension_semantics = [#tpu.dimension_semantics<parallel>, #tpu.dimension_semantics<parallel>, #tpu.dimension_semantics<arbitrary>], iteration_bounds = array<i64: 2, 2, 2>, scalar_prefetch = 0 : i64, scratch_operands = 4 : i64, tpu.core_type = #tpu.core_type<tc>, window_params = [{transform_indices = @transform_0, window_bounds = array<i64: 1, 256, 128>}, {transform_indices = @transform_1, window_bounds = array<i64: 1, 256, 128>}, {transform_indices = @transform_2, window_bounds = array<i64: 1, 256, 128>}, {transform_indices = @transform_3, window_bounds = array<i64: 1, 256, 128>}, {pipeline_mode = #tpu.pipeline_mode<synchronous>, transform_indices = @transform_4, window_bounds = array<i64: 128, 128>}, {pipeline_mode = #tpu.pipeline_mode<synchronous>, transform_indices = @transform_5, window_bounds = array<i64: 1, 128>}, {pipeline_mode = #tpu.pipeline_mode<synchronous>, transform_indices = @transform_6, window_bounds = array<i64: 128, 128>}, {pipeline_mode = #tpu.pipeline_mode<synchronous>, transform_indices = @transform_7, window_bounds = array<i64: 128, 256>}, {pipeline_mode = #tpu.pipeline_mode<synchronous>, transform_indices = @transform_8, window_bounds = array<i64: 256, 128>}, {pipeline_mode = #tpu.pipeline_mode<synchronous>, transform_indices = @transform_9, window_bounds = array<i64: 8, 128>}, {pipeline_mode = #tpu.pipeline_mode<synchronous>, transform_indices = @transform_10, window_bounds = array<i64: 1, 256>}, {transform_indices = @transform_11, window_bounds = array<i64: 1, 256, 128>}]} {
    %c0_i32 = arith.constant 0 : i32
    %0 = arith.cmpi eq, %arg2, %c0_i32 : i32
    %1 = arith.extui %0 : i1 to i32
    %c0_i32_0 = arith.constant 0 : i32
    %2 = arith.cmpi ne, %1, %c0_i32_0 : i32
    scf.if %2 {
      %c0_25 = arith.constant 0 : index
      %c0_26 = arith.constant 0 : index
      %c0_27 = arith.constant 0 : index
      %43 = vector.load %arg3[%c0_25, %c0_26, %c0_27] : memref<1x256x128xbf16, #tpu.memory_space<vmem>>, vector<1x256x128xbf16>
      %44 = vector.shape_cast %43 : vector<1x256x128xbf16> to vector<256x128xbf16>
      %45 = arith.extf %44 : vector<256x128xbf16> to vector<256x128xf32>
      %c0_28 = arith.constant 0 : index
      %c0_29 = arith.constant 0 : index
      %c0_30 = arith.constant 0 : index
      %46 = vector.load %arg4[%c0_28, %c0_29, %c0_30] : memref<1x256x128xbf16, #tpu.memory_space<vmem>>, vector<1x256x128xbf16>
      %47 = vector.shape_cast %46 : vector<1x256x128xbf16> to vector<256x128xbf16>
      %48 = arith.extf %47 : vector<256x128xbf16> to vector<256x128xf32>
      %49 = arith.addf %45, %48 : vector<256x128xf32>
      %50 = arith.truncf %49 : vector<256x128xf32> to vector<256x128xbf16>
      %c0_31 = arith.constant 0 : index
      %c0_32 = arith.constant 0 : index
      %51 = vector.load %arg7[%c0_31, %c0_32] : memref<128x128xbf16, #tpu.memory_space<vmem>>, vector<128x128xbf16>
      %cst_33 = arith.constant dense<0.000000e+00> : vector<256x128xf32>
      %52 = tpu.matmul %50, %51, %cst_33 {dimension_numbers = #tpu.dot_dimension_numbers<[1], [0], [0], [1], [0, 0, 1, 1], [], []>} : vector<256x128xbf16>, vector<128x128xbf16>, vector<256x128xf32> -> vector<256x128xf32>
      %c0_34 = arith.constant 0 : index
      %c0_35 = arith.constant 0 : index
      %53 = vector.load %arg8[%c0_34, %c0_35] : memref<1x128xf32, #tpu.memory_space<vmem>>, vector<1x128xf32>
      %54 = vector.broadcast %53 : vector<1x128xf32> to vector<256x128xf32>
      %55 = arith.addf %52, %54 : vector<256x128xf32>
      %56 = arith.truncf %55 : vector<256x128xf32> to vector<256x128xbf16>
      %c0_36 = arith.constant 0 : index
      %c0_37 = arith.constant 0 : index
      %57 = vector.load %arg15[%c0_36, %c0_37] : memref<256x128xbf16, #tpu.memory_space<vmem>>, vector<256x128xbf16>
      tpu.vector_store %arg15[%c0_36, %c0_37], %56 {strides = array<i32>} : memref<256x128xbf16, #tpu.memory_space<vmem>>, vector<256x128xbf16>,
      %cst_38 = arith.constant 0xFF800000 : f32
      %58 = vector.broadcast %cst_38 : f32 to vector<256x1xf32>
      %c0_39 = arith.constant 0 : index
      %c0_40 = arith.constant 0 : index
      %59 = vector.load %arg16[%c0_39, %c0_40] : memref<256x1xf32, #tpu.memory_space<vmem>>, vector<256x1xf32>
      tpu.vector_store %arg16[%c0_39, %c0_40], %58 {strides = array<i32>} : memref<256x1xf32, #tpu.memory_space<vmem>>, vector<256x1xf32>,
      %cst_41 = arith.constant 0.000000e+00 : f32
      %60 = vector.broadcast %cst_41 : f32 to vector<256x1xf32>
      %c0_42 = arith.constant 0 : index
      %c0_43 = arith.constant 0 : index
      %61 = vector.load %arg17[%c0_42, %c0_43] : memref<256x1xf32, #tpu.memory_space<vmem>>, vector<256x1xf32>
      tpu.vector_store %arg17[%c0_42, %c0_43], %60 {strides = array<i32>} : memref<256x1xf32, #tpu.memory_space<vmem>>, vector<256x1xf32>,
      %cst_44 = arith.constant 0.000000e+00 : f32
      %62 = vector.broadcast %cst_44 : f32 to vector<256x128xf32>
      %c0_45 = arith.constant 0 : index
      %c0_46 = arith.constant 0 : index
      %63 = vector.load %arg18[%c0_45, %c0_46] : memref<256x128xf32, #tpu.memory_space<vmem>>, vector<256x128xf32>
      tpu.vector_store %arg18[%c0_45, %c0_46], %62 {strides = array<i32>} : memref<256x128xf32, #tpu.memory_space<vmem>>, vector<256x128xf32>,
    } else {
    }
    %c0 = arith.constant 0 : index
    %c0_1 = arith.constant 0 : index
    %c0_2 = arith.constant 0 : index
    %3 = vector.load %arg5[%c0, %c0_1, %c0_2] : memref<1x256x128xbf16, #tpu.memory_space<vmem>>, vector<1x256x128xbf16>
    %4 = vector.shape_cast %3 : vector<1x256x128xbf16> to vector<256x128xbf16>
    %c0_3 = arith.constant 0 : index
    %c0_4 = arith.constant 0 : index
    %c0_5 = arith.constant 0 : index
    %5 = vector.load %arg6[%c0_3, %c0_4, %c0_5] : memref<1x256x128xbf16, #tpu.memory_space<vmem>>, vector<1x256x128xbf16>
    %6 = vector.shape_cast %5 : vector<1x256x128xbf16> to vector<256x128xbf16>
    %c0_6 = arith.constant 0 : index
    %c0_7 = arith.constant 0 : index
    %7 = vector.load %arg15[%c0_6, %c0_7] : memref<256x128xbf16, #tpu.memory_space<vmem>>, vector<256x128xbf16>
    %cst = arith.constant dense<0.000000e+00> : vector<256x256xf32>
    %8 = tpu.matmul %7, %4, %cst {dimension_numbers = #tpu.dot_dimension_numbers<[1], [1], [0], [0], [0, 0, 1, 0], [], []>} : vector<256x128xbf16>, vector<256x128xbf16>, vector<256x256xf32> -> vector<256x256xf32>
    %c256_i32 = arith.constant 256 : i32
    %9 = arith.muli %arg2, %c256_i32 : i32
    %10 = tpu.iota {dimensions = array<i32: 1>} : vector<256x256xi32>
    %11 = vector.broadcast %9 : i32 to vector<256x256xi32>
    %12 = arith.addi %11, %10 : vector<256x256xi32>
    %c384_i32 = arith.constant 384 : i32
    %13 = vector.broadcast %c384_i32 : i32 to vector<256x256xi32>
    %14 = arith.cmpi slt, %12, %13 : vector<256x256xi32>
    %cst_8 = arith.constant 0xFF800000 : f32
    %15 = vector.broadcast %cst_8 : f32 to vector<256x256xf32>
    %16 = arith.select %14, %8, %15 : vector<256x256xi1>, vector<256x256xf32>
    %c0_9 = arith.constant 0 : index
    %c0_10 = arith.constant 0 : index
    %17 = vector.load %arg16[%c0_9, %c0_10] : memref<256x1xf32, #tpu.memory_space<vmem>>, vector<256x1xf32>
    %cst_11 = arith.constant dense<0xFF800000> : vector<256xf32>
    %18 = vector.multi_reduction <maximumf>, %16, %cst_11 [1] : vector<256x256xf32> to vector<256xf32>
    %19 = vector.shape_cast %18 : vector<256xf32> to vector<256x1xf32>
    %20 = arith.maximumf %17, %19 : vector<256x1xf32>
    %21 = arith.subf %17, %20 : vector<256x1xf32>
    %22 = math.exp %21 : vector<256x1xf32>
    %23 = vector.broadcast %20 : vector<256x1xf32> to vector<256x256xf32>
    %24 = arith.subf %16, %23 : vector<256x256xf32>
    %25 = math.exp %24 : vector<256x256xf32>
    %c0_12 = arith.constant 0 : index
    %c0_13 = arith.constant 0 : index
    %26 = vector.load %arg17[%c0_12, %c0_13] : memref<256x1xf32, #tpu.memory_space<vmem>>, vector<256x1xf32>
    %27 = arith.mulf %22, %26 : vector<256x1xf32>
    %cst_14 = arith.constant dense<0.000000e+00> : vector<256xf32>
    %28 = vector.multi_reduction <add>, %25, %cst_14 [1] : vector<256x256xf32> to vector<256xf32>
    %29 = vector.shape_cast %28 : vector<256xf32> to vector<256x1xf32>
    %30 = arith.addf %27, %29 : vector<256x1xf32>
    %c0_15 = arith.constant 0 : index
    %c0_16 = arith.constant 0 : index
    %31 = vector.load %arg17[%c0_15, %c0_16] : memref<256x1xf32, #tpu.memory_space<vmem>>, vector<256x1xf32>
    tpu.vector_store %arg17[%c0_15, %c0_16], %30 {strides = array<i32>} : memref<256x1xf32, #tpu.memory_space<vmem>>, vector<256x1xf32>,
    %c0_17 = arith.constant 0 : index
    %c0_18 = arith.constant 0 : index
    %32 = vector.load %arg18[%c0_17, %c0_18] : memref<256x128xf32, #tpu.memory_space<vmem>>, vector<256x128xf32>
    %33 = vector.broadcast %22 : vector<256x1xf32> to vector<256x128xf32>
    %34 = arith.mulf %33, %32 : vector<256x128xf32>
    %35 = arith.truncf %25 : vector<256x256xf32> to vector<256x256xbf16>
    %cst_19 = arith.constant dense<0.000000e+00> : vector<256x128xf32>
    %36 = tpu.matmul %35, %6, %cst_19 {dimension_numbers = #tpu.dot_dimension_numbers<[1], [0], [0], [1], [0, 0, 1, 1], [], []>} : vector<256x256xbf16>, vector<256x128xbf16>, vector<256x128xf32> -> vector<256x128xf32>
    %37 = arith.addf %34, %36 : vector<256x128xf32>
    %c0_20 = arith.constant 0 : index
    %c0_21 = arith.constant 0 : index
    %38 = vector.load %arg18[%c0_20, %c0_21] : memref<256x128xf32, #tpu.memory_space<vmem>>, vector<256x128xf32>
    tpu.vector_store %arg18[%c0_20, %c0_21], %37 {strides = array<i32>} : memref<256x128xf32, #tpu.memory_space<vmem>>, vector<256x128xf32>,
    %c0_22 = arith.constant 0 : index
    %c0_23 = arith.constant 0 : index
    %39 = vector.load %arg16[%c0_22, %c0_23] : memref<256x1xf32, #tpu.memory_space<vmem>>, vector<256x1xf32>
    tpu.vector_store %arg16[%c0_22, %c0_23], %20 {strides = array<i32>} : memref<256x1xf32, #tpu.memory_space<vmem>>, vector<256x1xf32>,
    %c1_i32 = arith.constant 1 : i32
    %40 = arith.cmpi eq, %arg2, %c1_i32 : i32
    %41 = arith.extui %40 : i1 to i32
    %c0_i32_24 = arith.constant 0 : i32
    %42 = arith.cmpi ne, %41, %c0_i32_24 : i32
    scf.if %42 {
      %c0_25 = arith.constant 0 : index
      %c0_26 = arith.constant 0 : index
      %43 = vector.load %arg12[%c0_25, %c0_26] : memref<8x128xf32, #tpu.memory_space<vmem>>, vector<8x128xf32>
      %44 = vector.extract_strided_slice %43 {offsets = [0, 0], sizes = [1, 128], strides = [1, 1]} : vector<8x128xf32> to vector<1x128xf32>
      %45 = vector.extract_strided_slice %43 {offsets = [1, 0], sizes = [1, 128], strides = [1, 1]} : vector<8x128xf32> to vector<1x128xf32>
      %46 = vector.extract_strided_slice %43 {offsets = [2, 0], sizes = [1, 128], strides = [1, 1]} : vector<8x128xf32> to vector<1x128xf32>
      %47 = vector.extract_strided_slice %43 {offsets = [3, 0], sizes = [1, 128], strides = [1, 1]} : vector<8x128xf32> to vector<1x128xf32>
      %48 = vector.extract_strided_slice %43 {offsets = [4, 0], sizes = [1, 128], strides = [1, 1]} : vector<8x128xf32> to vector<1x128xf32>
      %49 = vector.extract_strided_slice %43 {offsets = [5, 0], sizes = [1, 128], strides = [1, 1]} : vector<8x128xf32> to vector<1x128xf32>
      %c0_27 = arith.constant 0 : index
      %c0_28 = arith.constant 0 : index
      %c0_29 = arith.constant 0 : index
      %50 = vector.load %arg3[%c0_27, %c0_28, %c0_29] : memref<1x256x128xbf16, #tpu.memory_space<vmem>>, vector<1x256x128xbf16>
      %51 = vector.shape_cast %50 : vector<1x256x128xbf16> to vector<256x128xbf16>
      %52 = arith.extf %51 : vector<256x128xbf16> to vector<256x128xf32>
      %c0_30 = arith.constant 0 : index
      %c0_31 = arith.constant 0 : index
      %53 = vector.load %arg18[%c0_30, %c0_31] : memref<256x128xf32, #tpu.memory_space<vmem>>, vector<256x128xf32>
      %c0_32 = arith.constant 0 : index
      %c0_33 = arith.constant 0 : index
      %54 = vector.load %arg17[%c0_32, %c0_33] : memref<256x1xf32, #tpu.memory_space<vmem>>, vector<256x1xf32>
      %55 = tpu.reciprocal %54 {approx = true} : vector<256x1xf32> -> vector<256x1xf32>
      %56 = vector.broadcast %55 : vector<256x1xf32> to vector<256x128xf32>
      %57 = arith.mulf %53, %56 : vector<256x128xf32>
      %58 = arith.truncf %57 : vector<256x128xf32> to vector<256x128xbf16>
      %c0_34 = arith.constant 0 : index
      %c0_35 = arith.constant 0 : index
      %59 = vector.load %arg9[%c0_34, %c0_35] : memref<128x128xbf16, #tpu.memory_space<vmem>>, vector<128x128xbf16>
      %cst_36 = arith.constant dense<0.000000e+00> : vector<256x128xf32>
      %60 = tpu.matmul %58, %59, %cst_36 {dimension_numbers = #tpu.dot_dimension_numbers<[1], [0], [0], [1], [0, 0, 1, 1], [], []>} : vector<256x128xbf16>, vector<128x128xbf16>, vector<256x128xf32> -> vector<256x128xf32>
      %61 = vector.broadcast %44 : vector<1x128xf32> to vector<256x128xf32>
      %62 = arith.addf %60, %61 : vector<256x128xf32>
      %63 = arith.addf %52, %62 : vector<256x128xf32>
      %cst_37 = arith.constant dense<0.000000e+00> : vector<256xf32>
      %64 = vector.multi_reduction <add>, %63, %cst_37 [1] : vector<256x128xf32> to vector<256xf32>
      %65 = vector.shape_cast %64 : vector<256xf32> to vector<256x1xf32>
      %cst_38 = arith.constant 1.280000e+02 : f32
      %66 = vector.broadcast %cst_38 : f32 to vector<256x1xf32>
      %67 = arith.divf %65, %66 : vector<256x1xf32>
      %68 = vector.broadcast %67 : vector<256x1xf32> to vector<256x128xf32>
      %69 = arith.subf %63, %68 : vector<256x128xf32>
      %70 = arith.mulf %69, %69 : vector<256x128xf32>
      %cst_39 = arith.constant dense<0.000000e+00> : vector<256xf32>
      %71 = vector.multi_reduction <add>, %70, %cst_39 [1] : vector<256x128xf32> to vector<256xf32>
      %72 = vector.shape_cast %71 : vector<256xf32> to vector<256x1xf32>
      %cst_40 = arith.constant 1.280000e+02 : f32
      %73 = vector.broadcast %cst_40 : f32 to vector<256x1xf32>
      %74 = arith.divf %72, %73 : vector<256x1xf32>
      %75 = vector.broadcast %67 : vector<256x1xf32> to vector<256x128xf32>
      %76 = arith.subf %63, %75 : vector<256x128xf32>
      %cst_41 = arith.constant 9.99999974E-6 : f32
      %77 = vector.broadcast %cst_41 : f32 to vector<256x1xf32>
      %78 = arith.addf %74, %77 : vector<256x1xf32>
      %79 = math.rsqrt %78 : vector<256x1xf32>
      %80 = vector.broadcast %79 : vector<256x1xf32> to vector<256x128xf32>
      %81 = arith.mulf %76, %80 : vector<256x128xf32>
      %82 = vector.broadcast %46 : vector<1x128xf32> to vector<256x128xf32>
      %83 = arith.mulf %81, %82 : vector<256x128xf32>
      %84 = vector.broadcast %47 : vector<1x128xf32> to vector<256x128xf32>
      %85 = arith.addf %83, %84 : vector<256x128xf32>
      %86 = arith.truncf %85 : vector<256x128xf32> to vector<256x128xbf16>
      %c0_42 = arith.constant 0 : index
      %c0_43 = arith.constant 0 : index
      %87 = vector.load %arg10[%c0_42, %c0_43] : memref<128x256xbf16, #tpu.memory_space<vmem>>, vector<128x256xbf16>
      %cst_44 = arith.constant dense<0.000000e+00> : vector<256x256xf32>
      %88 = tpu.matmul %86, %87, %cst_44 {dimension_numbers = #tpu.dot_dimension_numbers<[1], [0], [0], [1], [0, 0, 1, 1], [], []>} : vector<256x128xbf16>, vector<128x256xbf16>, vector<256x256xf32> -> vector<256x256xf32>
      %c0_45 = arith.constant 0 : index
      %c0_46 = arith.constant 0 : index
      %89 = vector.load %arg13[%c0_45, %c0_46] : memref<1x256xf32, #tpu.memory_space<vmem>>, vector<1x256xf32>
      %90 = vector.broadcast %89 : vector<1x256xf32> to vector<256x256xf32>
      %91 = arith.addf %88, %90 : vector<256x256xf32>
      %cst_47 = arith.constant 0.000000e+00 : f32
      %92 = vector.broadcast %cst_47 : f32 to vector<256x256xf32>
      %93 = arith.maximumf %91, %92 : vector<256x256xf32>
      %94 = arith.truncf %93 : vector<256x256xf32> to vector<256x256xbf16>
      %c0_48 = arith.constant 0 : index
      %c0_49 = arith.constant 0 : index
      %95 = vector.load %arg11[%c0_48, %c0_49] : memref<256x128xbf16, #tpu.memory_space<vmem>>, vector<256x128xbf16>
      %cst_50 = arith.constant dense<0.000000e+00> : vector<256x128xf32>
      %96 = tpu.matmul %94, %95, %cst_50 {dimension_numbers = #tpu.dot_dimension_numbers<[1], [0], [0], [1], [0, 0, 1, 1], [], []>} : vector<256x256xbf16>, vector<256x128xbf16>, vector<256x128xf32> -> vector<256x128xf32>
      %97 = vector.broadcast %45 : vector<1x128xf32> to vector<256x128xf32>
      %98 = arith.addf %96, %97 : vector<256x128xf32>
      %99 = arith.addf %85, %98 : vector<256x128xf32>
      %cst_51 = arith.constant dense<0.000000e+00> : vector<256xf32>
      %100 = vector.multi_reduction <add>, %99, %cst_51 [1] : vector<256x128xf32> to vector<256xf32>
      %101 = vector.shape_cast %100 : vector<256xf32> to vector<256x1xf32>
      %cst_52 = arith.constant 1.280000e+02 : f32
      %102 = vector.broadcast %cst_52 : f32 to vector<256x1xf32>
      %103 = arith.divf %101, %102 : vector<256x1xf32>
      %104 = vector.broadcast %103 : vector<256x1xf32> to vector<256x128xf32>
      %105 = arith.subf %99, %104 : vector<256x128xf32>
      %106 = arith.mulf %105, %105 : vector<256x128xf32>
      %cst_53 = arith.constant dense<0.000000e+00> : vector<256xf32>
      %107 = vector.multi_reduction <add>, %106, %cst_53 [1] : vector<256x128xf32> to vector<256xf32>
      %108 = vector.shape_cast %107 : vector<256xf32> to vector<256x1xf32>
      %cst_54 = arith.constant 1.280000e+02 : f32
      %109 = vector.broadcast %cst_54 : f32 to vector<256x1xf32>
      %110 = arith.divf %108, %109 : vector<256x1xf32>
      %111 = vector.broadcast %103 : vector<256x1xf32> to vector<256x128xf32>
      %112 = arith.subf %99, %111 : vector<256x128xf32>
      %cst_55 = arith.constant 9.99999974E-6 : f32
      %113 = vector.broadcast %cst_55 : f32 to vector<256x1xf32>
      %114 = arith.addf %110, %113 : vector<256x1xf32>
      %115 = math.rsqrt %114 : vector<256x1xf32>
      %116 = vector.broadcast %115 : vector<256x1xf32> to vector<256x128xf32>
      %117 = arith.mulf %112, %116 : vector<256x128xf32>
      %118 = vector.broadcast %48 : vector<1x128xf32> to vector<256x128xf32>
      %119 = arith.mulf %117, %118 : vector<256x128xf32>
      %120 = vector.broadcast %49 : vector<1x128xf32> to vector<256x128xf32>
      %121 = arith.addf %119, %120 : vector<256x128xf32>
      %122 = arith.truncf %121 : vector<256x128xf32> to vector<256x128xbf16>
      %c0_56 = arith.constant 0 : index
      %c0_57 = arith.constant 0 : index
      %c0_58 = arith.constant 0 : index
      %123 = vector.load %arg14[%c0_56, %c0_57, %c0_58] : memref<1x256x128xbf16, #tpu.memory_space<vmem>>, vector<1x256x128xbf16>
      %124 = vector.shape_cast %123 : vector<1x256x128xbf16> to vector<256x128xbf16>
      %125 = vector.shape_cast %122 : vector<256x128xbf16> to vector<1x256x128xbf16>
      tpu.vector_store %arg14[%c0_56, %c0_57, %c0_58], %125 {strides = array<i32>} : memref<1x256x128xbf16, #tpu.memory_space<vmem>>, vector<1x256x128xbf16>,
    } else {
    }
    return
  }
  func.func @transform_0(%arg0: i32, %arg1: i32, %arg2: i32) -> (i32, i32, i32) {
    %c0_i32 = arith.constant 0 : i32
    %c0_i32_0 = arith.constant 0 : i32
    return %arg0, %arg1, %c0_i32 : i32, i32, i32
  }
  func.func @transform_1(%arg0: i32, %arg1: i32, %arg2: i32) -> (i32, i32, i32) {
    %c0_i32 = arith.constant 0 : i32
    %c0_i32_0 = arith.constant 0 : i32
    return %arg0, %arg1, %c0_i32 : i32, i32, i32
  }
  func.func @transform_2(%arg0: i32, %arg1: i32, %arg2: i32) -> (i32, i32, i32) {
    %c0_i32 = arith.constant 0 : i32
    %c0_i32_0 = arith.constant 0 : i32
    return %arg0, %arg2, %c0_i32 : i32, i32, i32
  }
  func.func @transform_3(%arg0: i32, %arg1: i32, %arg2: i32) -> (i32, i32, i32) {
    %c0_i32 = arith.constant 0 : i32
    %c0_i32_0 = arith.constant 0 : i32
    return %arg0, %arg2, %c0_i32 : i32, i32, i32
  }
  func.func @transform_4(%arg0: i32, %arg1: i32, %arg2: i32) -> (i32, i32) {
    %c0_i32 = arith.constant 0 : i32
    %c0_i32_0 = arith.constant 0 : i32
    %c0_i32_1 = arith.constant 0 : i32
    return %c0_i32, %c0_i32_0 : i32, i32
  }
  func.func @transform_5(%arg0: i32, %arg1: i32, %arg2: i32) -> (i32, i32) {
    %c0_i32 = arith.constant 0 : i32
    %c0_i32_0 = arith.constant 0 : i32
    %c0_i32_1 = arith.constant 0 : i32
    return %c0_i32, %c0_i32_0 : i32, i32
  }
  func.func @transform_6(%arg0: i32, %arg1: i32, %arg2: i32) -> (i32, i32) {
    %c0_i32 = arith.constant 0 : i32
    %c0_i32_0 = arith.constant 0 : i32
    %c0_i32_1 = arith.constant 0 : i32
    return %c0_i32, %c0_i32_0 : i32, i32
  }
  func.func @transform_7(%arg0: i32, %arg1: i32, %arg2: i32) -> (i32, i32) {
    %c0_i32 = arith.constant 0 : i32
    %c0_i32_0 = arith.constant 0 : i32
    %c0_i32_1 = arith.constant 0 : i32
    return %c0_i32, %c0_i32_0 : i32, i32
  }
  func.func @transform_8(%arg0: i32, %arg1: i32, %arg2: i32) -> (i32, i32) {
    %c0_i32 = arith.constant 0 : i32
    %c0_i32_0 = arith.constant 0 : i32
    %c0_i32_1 = arith.constant 0 : i32
    return %c0_i32, %c0_i32_0 : i32, i32
  }
  func.func @transform_9(%arg0: i32, %arg1: i32, %arg2: i32) -> (i32, i32) {
    %c0_i32 = arith.constant 0 : i32
    %c0_i32_0 = arith.constant 0 : i32
    %c0_i32_1 = arith.constant 0 : i32
    return %c0_i32, %c0_i32_0 : i32, i32
  }
  func.func @transform_10(%arg0: i32, %arg1: i32, %arg2: i32) -> (i32, i32) {
    %c0_i32 = arith.constant 0 : i32
    %c0_i32_0 = arith.constant 0 : i32
    %c0_i32_1 = arith.constant 0 : i32
    return %c0_i32, %c0_i32_0 : i32, i32
  }
  func.func @transform_11(%arg0: i32, %arg1: i32, %arg2: i32) -> (i32, i32, i32) {
    %c0_i32 = arith.constant 0 : i32
    %c0_i32_0 = arith.constant 0 : i32
    return %arg0, %arg1, %c0_i32 : i32, i32, i32
  }
}

module attributes {stable_mosaic.version = 11 : i64} {
  func.func @_ref_points_kernel(%arg0: i32, %arg1: memref<2x384xf32, #tpu.memory_space<vmem>>, %arg2: memref<1x2x384xf32, #tpu.memory_space<vmem>>, %arg3: memref<1x4x1xf32, #tpu.memory_space<vmem>>, %arg4: memref<1x4x384xf32, #tpu.memory_space<vmem>>) attributes {dimension_semantics = [#tpu.dimension_semantics<parallel>], iteration_bounds = array<i64: 2>, scalar_prefetch = 0 : i64, scratch_operands = 0 : i64, tpu.core_type = #tpu.core_type<tc>, window_params = [{pipeline_mode = #tpu.pipeline_mode<synchronous>, transform_indices = @transform_0, window_bounds = array<i64: 2, 384>}, {transform_indices = @transform_1, window_bounds = array<i64: 1, 2, 384>}, {transform_indices = @transform_2, window_bounds = array<i64: 1, 4, 1>}, {transform_indices = @transform_3, window_bounds = array<i64: 1, 4, 384>}]} {
    %c0 = arith.constant 0 : index
    %c0_0 = arith.constant 0 : index
    %0 = vector.load %arg1[%c0, %c0_0] : memref<2x384xf32, #tpu.memory_space<vmem>>, vector<2x384xf32>
    %c0_1 = arith.constant 0 : index
    %c0_2 = arith.constant 0 : index
    %c0_3 = arith.constant 0 : index
    %1 = vector.load %arg2[%c0_1, %c0_2, %c0_3] : memref<1x2x384xf32, #tpu.memory_space<vmem>>, vector<1x2x384xf32>
    %2 = vector.shape_cast %1 : vector<1x2x384xf32> to vector<2x384xf32>
    %3 = arith.divf %0, %2 : vector<2x384xf32>
    %4 = tpu.concatenate %3, %3 in 0 : vector<2x384xf32>, vector<2x384xf32> -> vector<4x384xf32>
    %c0_4 = arith.constant 0 : index
    %c0_5 = arith.constant 0 : index
    %c0_6 = arith.constant 0 : index
    %5 = vector.load %arg3[%c0_4, %c0_5, %c0_6] : memref<1x4x1xf32, #tpu.memory_space<vmem>>, vector<1x4x1xf32>
    %6 = vector.shape_cast %5 : vector<1x4x1xf32> to vector<4x1xf32>
    %7 = vector.broadcast %6 : vector<4x1xf32> to vector<4x384xf32>
    %8 = arith.mulf %4, %7 : vector<4x384xf32>
    %c0_7 = arith.constant 0 : index
    %c0_8 = arith.constant 0 : index
    %c0_9 = arith.constant 0 : index
    %9 = vector.load %arg4[%c0_7, %c0_8, %c0_9] : memref<1x4x384xf32, #tpu.memory_space<vmem>>, vector<1x4x384xf32>
    %10 = vector.shape_cast %9 : vector<1x4x384xf32> to vector<4x384xf32>
    %11 = vector.shape_cast %8 : vector<4x384xf32> to vector<1x4x384xf32>
    tpu.vector_store %arg4[%c0_7, %c0_8, %c0_9], %11 {strides = array<i32>} : memref<1x4x384xf32, #tpu.memory_space<vmem>>, vector<1x4x384xf32>,
    return
  }
  func.func @transform_0(%arg0: i32) -> (i32, i32) {
    %c0_i32 = arith.constant 0 : i32
    %c0_i32_0 = arith.constant 0 : i32
    %c0_i32_1 = arith.constant 0 : i32
    return %c0_i32, %c0_i32_0 : i32, i32
  }
  func.func @transform_1(%arg0: i32) -> (i32, i32, i32) {
    %c0_i32 = arith.constant 0 : i32
    %c0_i32_0 = arith.constant 0 : i32
    %c0_i32_1 = arith.constant 0 : i32
    return %arg0, %c0_i32, %c0_i32_0 : i32, i32, i32
  }
  func.func @transform_2(%arg0: i32) -> (i32, i32, i32) {
    %c0_i32 = arith.constant 0 : i32
    %c0_i32_0 = arith.constant 0 : i32
    %c0_i32_1 = arith.constant 0 : i32
    return %arg0, %c0_i32, %c0_i32_0 : i32, i32, i32
  }
  func.func @transform_3(%arg0: i32) -> (i32, i32, i32) {
    %c0_i32 = arith.constant 0 : i32
    %c0_i32_0 = arith.constant 0 : i32
    %c0_i32_1 = arith.constant 0 : i32
    return %arg0, %c0_i32, %c0_i32_0 : i32, i32, i32
  }
}

</mosaic_0001>

<llo_original>
// kernel: make_encoder_forward.6
$region0: #{make_encoder_forward.6}
  #allocation0 [shape = 'u32[]', space=smem, size = 0x4, offset = 0x4, fixed_abs, tag = 'smem constant byte address 0x4 - core index']
  #allocation1 [shape = 'u32[144,128]{1,0:T(1,128)}', space=vmem, size = 0x12000, scoped, tag = 'internal scratch']
  %s0 = inlined_call_operand.vmem [shape: bf16[2,512,128], index: 0, kind: input, shape index: {}]
  %s1 = inlined_call_operand.vmem [shape: bf16[2,512,128], index: 1, kind: input, shape index: {}]
  %s2 = inlined_call_operand.vmem [shape: bf16[128,128], index: 2, kind: input, shape index: {}]
  %s3 = inlined_call_operand.vmem [shape: f32[1,128], index: 3, kind: input, shape index: {}]
  %s4 = inlined_call_operand.vmem [shape: bf16[128,128], index: 4, kind: input, shape index: {}]
  %s5 = inlined_call_operand.vmem [shape: f32[1,128], index: 5, kind: input, shape index: {}]
  %s6 = inlined_call_operand.vmem [shape: bf16[2,512,128], index: 6, kind: output, shape index: {0}]
  %s7 = inlined_call_operand.vmem [shape: bf16[2,512,128], index: 7, kind: output, shape index: {1}]
  %8 = xla_tuple %s6, %s7
  %s9 = sld [smem:[#allocation0]]
  $region65: #{make_encoder_forward.6} parent=0
    _
  %s11 = ssub.s32 1, %s9
  %s12 = scalar_select 0, %s11, %s9
  loop: start=0, step=1, limit=6
  $region2: #{make_encoder_forward.6} parent=0 // loop_pre_header
    _
  $region3: #{make_encoder_forward.6} parent=0 // loop_header
    %s14 = sphi 0, %s18
    %p15 = scmp.ge.s32.totalorder %s14, 6
    %s21 = sphi 0, %s33
    %s22 = sphi 0, %s29
    %s23 = sphi 0, %s21
    %s24 = sphi 0, %s22
    %s25 = sphi 0, %s23
    %s26 = sphi 0, %s24
    %s38 = sphi 0, %s40
    %s41 = sphi 0, %s38
    %s42 = sphi 0, %s41
    %s58 = sphi 0, %s42
    %s66 = sphi 0, %s68
    %s69 = sphi 0, %s66
    %s70 = sphi 0, %s69
    %s86 = sphi 0, %s70
    %s90 = sphi 0, %s90
    %s92 = sphi 0, %s90
    %s93 = sphi 0, %s92
    %s107 = sphi 0, %s93
    %s111 = sphi 0, %s111
    %s113 = sphi 0, %s111
    %s114 = sphi 0, %s113
    %s128 = sphi 0, %s114
    %s132 = sphi 0, %s132
    %s134 = sphi 0, %s132
    %s135 = sphi 0, %s134
    %s149 = sphi 0, %s135
    %s153 = sphi 0, %s153
    %s155 = sphi 0, %s153
    %s156 = sphi 0, %s155
    %s170 = sphi 0, %s156
    %s178 = sphi 0, %s180
    %s181 = sphi 0, %s178
    %s182 = sphi 0, %s181
    %s198 = sphi 0, %s182
    %s206 = sphi 0, %s208
    %s209 = sphi 0, %s206
    %s210 = sphi 0, %s209
    %s226 = sphi 0, %s210
  $region4: #{make_encoder_forward.6} parent=0 // loop_header_branch
    %17 = sbr.rel (%p15) target = $region8
  $region5: #{make_encoder_forward.6} parent=0 // loop_body
    %s19 = ssub.s32 %s14, 1
    %s20 = ssub.s32 %s14, 2
    %s27 = sadd.s32 1, %s22
    %p28 = scmp.ge.s32.totalorder %s27, 2
    %s29 = scalar_select %p28, 0, %s27
    %s30 = sadd.s32 1, %s21
    %s31 = scalar_select %p28, %s30, %s21
    %p32 = scmp.ge.s32.totalorder %s31, 2
    %s33 = scalar_select %p32, 0, %s31
    %s34 = ssub.s32 %s21, %s33
    %s35 = ssub.s32 %s22, %s29
    %s36 = sor.u32 %s34, %s35
    %p37 = scmp.eq.s32.totalorder %s36, 0
    %s39 = sadd.s32 %s38, 1
    %s40 = scalar_select %p37, %s38, %s39
    %p43 = pneg %p37
    %p44 = scmp.eq.s32.totalorder %s14, 3
    %p45 = por %p43, %p44
    %p46 = scmp.ne.s32.totalorder %s38, %s41
    %p47 = scmp.eq.s32.totalorder %s14, 0
    %p48 = por %p46, %p47
    %p49 = scmp.ne.s32.totalorder %s38, %s41
    %p50 = scmp.eq.s32.totalorder %s19, 3
    %p51 = por %p49, %p50
    %p52 = scmp.ne.s32.totalorder %s41, %s42
    %p53 = scmp.eq.s32.totalorder %s19, 0
    %p54 = por %p52, %p53
    %p55 = scmp.ne.s32.totalorder %s41, %s42
    %p56 = scmp.eq.s32.totalorder %s20, 3
    %p57 = por %p55, %p56
    %p59 = scmp.ne.s32.totalorder %s42, %s58
    %p60 = scmp.eq.s32.totalorder %s20, 0
    %p61 = por %p59, %p60
    %s62 = ssub.s32 %s21, %s33
    %s63 = ssub.s32 %s22, %s29
    %s64 = sor.u32 %s62, %s63
    %p65 = scmp.eq.s32.totalorder %s64, 0
    %s67 = sadd.s32 %s66, 1
    %s68 = scalar_select %p65, %s66, %s67
    %p71 = pneg %p65
    %p72 = scmp.eq.s32.totalorder %s14, 3
    %p73 = por %p71, %p72
    %p74 = scmp.ne.s32.totalorder %s66, %s69
    %p75 = scmp.eq.s32.totalorder %s14, 0
    %p76 = por %p74, %p75
    %p77 = scmp.ne.s32.totalorder %s66, %s69
    %p78 = scmp.eq.s32.totalorder %s19, 3
    %p79 = por %p77, %p78
    %p80 = scmp.ne.s32.totalorder %s69, %s70
    %p81 = scmp.eq.s32.totalorder %s19, 0
    %p82 = por %p80, %p81
    %p83 = scmp.ne.s32.totalorder %s69, %s70
    %p84 = scmp.eq.s32.totalorder %s20, 3
    %p85 = por %p83, %p84
    %p87 = scmp.ne.s32.totalorder %s70, %s86
    %p88 = scmp.eq.s32.totalorder %s20, 0
    %p89 = por %p87, %p88
    %s91 = sadd.s32 %s90, 1
    %p94 = scmp.eq.s32.totalorder %s14, 3
    %p95 = scmp.ne.s32.totalorder %s90, %s92
    %p96 = scmp.eq.s32.totalorder %s14, 0
    %p97 = por %p95, %p96
    %p98 = scmp.ne.s32.totalorder %s90, %s92
    %p99 = scmp.eq.s32.totalorder %s19, 3
    %p100 = por %p98, %p99
    %p101 = scmp.ne.s32.totalorder %s92, %s93
    %p102 = scmp.eq.s32.totalorder %s19, 0
    %p103 = por %p101, %p102
    %p104 = scmp.ne.s32.totalorder %s92, %s93
    %p105 = scmp.eq.s32.totalorder %s20, 3
    %p106 = por %p104, %p105
    %p108 = scmp.ne.s32.totalorder %s93, %s107
    %p109 = scmp.eq.s32.totalorder %s20, 0
    %p110 = por %p108, %p109
    %s112 = sadd.s32 %s111, 1
    %p115 = scmp.eq.s32.totalorder %s14, 3
    %p116 = scmp.ne.s32.totalorder %s111, %s113
    %p117 = scmp.eq.s32.totalorder %s14, 0
    %p118 = por %p116, %p117
    %p119 = scmp.ne.s32.totalorder %s111, %s113
    %p120 = scmp.eq.s32.totalorder %s19, 3
    %p121 = por %p119, %p120
    %p122 = scmp.ne.s32.totalorder %s113, %s114
    %p123 = scmp.eq.s32.totalorder %s19, 0
    %p124 = por %p122, %p123
    %p125 = scmp.ne.s32.totalorder %s113, %s114
    %p126 = scmp.eq.s32.totalorder %s20, 3
    %p127 = por %p125, %p126
    %p129 = scmp.ne.s32.totalorder %s114, %s128
    %p130 = scmp.eq.s32.totalorder %s20, 0
    %p131 = por %p129, %p130
    %s133 = sadd.s32 %s132, 1
    %p136 = scmp.eq.s32.totalorder %s14, 3
    %p137 = scmp.ne.s32.totalorder %s132, %s134
    %p138 = scmp.eq.s32.totalorder %s14, 0
    %p139 = por %p137, %p138
    %p140 = scmp.ne.s32.totalorder %s132, %s134
    %p141 = scmp.eq.s32.totalorder %s19, 3
    %p142 = por %p140, %p141
    %p143 = scmp.ne.s32.totalorder %s134, %s135
    %p144 = scmp.eq.s32.totalorder %s19, 0
    %p145 = por %p143, %p144
    %p146 = scmp.ne.s32.totalorder %s134, %s135
    %p147 = scmp.eq.s32.totalorder %s20, 3
    %p148 = por %p146, %p147
    %p150 = scmp.ne.s32.totalorder %s135, %s149
    %p151 = scmp.eq.s32.totalorder %s20, 0
    %p152 = por %p150, %p151
    %s154 = sadd.s32 %s153, 1
    %p157 = scmp.eq.s32.totalorder %s14, 3
    %p158 = scmp.ne.s32.totalorder %s153, %s155
    %p159 = scmp.eq.s32.totalorder %s14, 0
    %p160 = por %p158, %p159
    %p161 = scmp.ne.s32.totalorder %s153, %s155
    %p162 = scmp.eq.s32.totalorder %s19, 3
    %p163 = por %p161, %p162
    %p164 = scmp.ne.s32.totalorder %s155, %s156
    %p165 = scmp.eq.s32.totalorder %s19, 0
    %p166 = por %p164, %p165
    %p167 = scmp.ne.s32.totalorder %s155, %s156
    %p168 = scmp.eq.s32.totalorder %s20, 3
    %p169 = por %p167, %p168
    %p171 = scmp.ne.s32.totalorder %s156, %s170
    %p172 = scmp.eq.s32.totalorder %s20, 0
    %p173 = por %p171, %p172
    %s174 = ssub.s32 %s21, %s33
    %s175 = ssub.s32 %s22, %s29
    %s176 = sor.u32 %s174, %s175
    %p177 = scmp.eq.s32.totalorder %s176, 0
    %s179 = sadd.s32 %s178, 1
    %s180 = scalar_select %p177, %s178, %s179
    %p183 = pneg %p177
    %p184 = scmp.eq.s32.totalorder %s14, 3
    %p185 = por %p183, %p184
    %p186 = scmp.ne.s32.totalorder %s178, %s181
    %p187 = scmp.eq.s32.totalorder %s14, 0
    %p188 = por %p186, %p187
    %p189 = scmp.ne.s32.totalorder %s178, %s181
    %p190 = scmp.eq.s32.totalorder %s19, 3
    %p191 = por %p189, %p190
    %p192 = scmp.ne.s32.totalorder %s181, %s182
    %p193 = scmp.eq.s32.totalorder %s19, 0
    %p194 = por %p192, %p193
    %p195 = scmp.ne.s32.totalorder %s181, %s182
    %p196 = scmp.eq.s32.totalorder %s20, 3
    %p197 = por %p195, %p196
    %p199 = scmp.ne.s32.totalorder %s182, %s198
    %p200 = scmp.eq.s32.totalorder %s20, 0
    %p201 = por %p199, %p200
    %s202 = ssub.s32 %s21, %s33
    %s203 = ssub.s32 %s22, %s29
    %s204 = sor.u32 %s202, %s203
    %p205 = scmp.eq.s32.totalorder %s204, 0
    %s207 = sadd.s32 %s206, 1
    %s208 = scalar_select %p205, %s206, %s207
    %p211 = pneg %p205
    %p212 = scmp.eq.s32.totalorder %s14, 3
    %p213 = por %p211, %p212
    %p214 = scmp.ne.s32.totalorder %s206, %s209
    %p215 = scmp.eq.s32.totalorder %s14, 0
    %p216 = por %p214, %p215
    %p217 = scmp.ne.s32.totalorder %s206, %s209
    %p218 = scmp.eq.s32.totalorder %s19, 3
    %p219 = por %p217, %p218
    %p220 = scmp.ne.s32.totalorder %s209, %s210
    %p221 = scmp.eq.s32.totalorder %s19, 0
    %p222 = por %p220, %p221
    %p223 = scmp.ne.s32.totalorder %s209, %s210
    %p224 = scmp.eq.s32.totalorder %s20, 3
    %p225 = por %p223, %p224
    %p227 = scmp.ne.s32.totalorder %s210, %s226
    %p228 = scmp.eq.s32.totalorder %s20, 0
    %p229 = por %p227, %p228
    %p230 = scmp.le.s32.totalorder 1, %s14
    %p231 = scmp.lt.s32.totalorder %s14, 5
    %p232 = pnand %p230, %p231
    %p233 = pneg %p232
    // Predicated region
    $region9: #{make_encoder_forward.6} parent=5 // pred_check
      _
    $region10: #{make_encoder_forward.6} parent=5 // pred_check_branch
      %235 = sbr.rel (%p232) target = $region12
    $region11: #{make_encoder_forward.6} parent=5 // pred_region
      %s236 = ssub.s32 %s14, 1
      // Predicated region
      $region13: #{make_encoder_forward.6} parent=11 // pred_check
        %p237 = pneg %p103
      $region14: #{make_encoder_forward.6} parent=11 // pred_check_branch
        %239 = sbr.rel (%p237) target = $region16
      $region15: #{make_encoder_forward.6} parent=11 // pred_region
        _
      $region16: #{make_encoder_forward.6} parent=11 // pred_fallthru
        _
      // Predicated region
      $region17: #{make_encoder_forward.6} parent=11 // pred_check
        %p240 = pneg %p124
      $region18: #{make_encoder_forward.6} parent=11 // pred_check_branch
        %242 = sbr.rel (%p240) target = $region20
      $region19: #{make_encoder_forward.6} parent=11 // pred_region
        _
      $region20: #{make_encoder_forward.6} parent=11 // pred_fallthru
        _
      // Predicated region
      $region21: #{make_encoder_forward.6} parent=11 // pred_check
        %p243 = pneg %p145
      $region22: #{make_encoder_forward.6} parent=11 // pred_check_branch
        %245 = sbr.rel (%p243) target = $region24
      $region23: #{make_encoder_forward.6} parent=11 // pred_region
        _
      $region24: #{make_encoder_forward.6} parent=11 // pred_fallthru
        _
      // Predicated region
      $region25: #{make_encoder_forward.6} parent=11 // pred_check
        %p246 = pneg %p166
      $region26: #{make_encoder_forward.6} parent=11 // pred_check_branch
        %248 = sbr.rel (%p246) target = $region28
      $region27: #{make_encoder_forward.6} parent=11 // pred_region
        _
      $region28: #{make_encoder_forward.6} parent=11 // pred_fallthru
        _
    $region12: #{make_encoder_forward.6} parent=5 // pred_fallthru
      _
    %p249 = scmp.lt.s32.totalorder %s14, 4
    // Predicated region
    $region29: #{make_encoder_forward.6} parent=5 // pred_check
      %p250 = pneg %p249
    $region30: #{make_encoder_forward.6} parent=5 // pred_check_branch
      %252 = sbr.rel (%p250) target = $region32
    $region31: #{make_encoder_forward.6} parent=5 // pred_region
      // Predicated region
      $region33: #{make_encoder_forward.6} parent=31 // pred_check
        %p253 = pneg %p48
      $region34: #{make_encoder_forward.6} parent=31 // pred_check_branch
        %255 = sbr.rel (%p253) target = $region36
      $region35: #{make_encoder_forward.6} parent=31 // pred_region
        %s256 = smul.u32 32, %s22
        %p257 = scmp.lt.s32.totalorder %s21, 1
        %s258 = scalar_select %p257, %s21, 1
        %p259 = scmp.lt.s32.totalorder %s256, 63
        %s260 = scalar_select %p259, %s256, 63
        %s261 = smul.addr %s258, 64
        %s262 = sadd.s32 %s260, %s261
        %s263 = smul.addr %s262, 4
        %s264 = scalar_lea.vmem %s0, %s263
        %s265 = smul.u32 32, %s22
      $region36: #{make_encoder_forward.6} parent=31 // pred_fallthru
        _
      // Predicated region
      $region37: #{make_encoder_forward.6} parent=31 // pred_check
        %p266 = pneg %p76
      $region38: #{make_encoder_forward.6} parent=31 // pred_check_branch
        %268 = sbr.rel (%p266) target = $region40
      $region39: #{make_encoder_forward.6} parent=31 // pred_region
        %s269 = smul.u32 32, %s22
        %p270 = scmp.lt.s32.totalorder %s21, 1
        %s271 = scalar_select %p270, %s21, 1
        %p272 = scmp.lt.s32.totalorder %s269, 63
        %s273 = scalar_select %p272, %s269, 63
        %s274 = smul.addr %s271, 64
        %s275 = sadd.s32 %s273, %s274
        %s276 = smul.addr %s275, 4
        %s277 = scalar_lea.vmem %s1, %s276
        %s278 = smul.u32 32, %s22
      $region40: #{make_encoder_forward.6} parent=31 // pred_fallthru
        _
    $region32: #{make_encoder_forward.6} parent=5 // pred_fallthru
      _
    %p279 = scmp.le.s32.totalorder 1, %s14
    %p280 = scmp.lt.s32.totalorder %s14, 5
    %p281 = pnand %p279, %p280
    %p282 = pneg %p281
    // Predicated region
    $region41: #{make_encoder_forward.6} parent=5 // pred_check
      _
    $region42: #{make_encoder_forward.6} parent=5 // pred_check_branch
      %284 = sbr.rel (%p281) target = $region44
    $region43: #{make_encoder_forward.6} parent=5 // pred_region
      %s285 = ssub.s32 %s14, 1
      %s286 = smul.u32 32, %s24
      %p287 = scmp.lt.s32.totalorder %s23, 1
      %s288 = scalar_select %p287, %s23, 1
      %p289 = scmp.lt.s32.totalorder %s286, 63
      %s290 = scalar_select %p289, %s286, 63
      %s291 = smul.addr %s288, 64
      %s292 = sadd.s32 %s290, %s291
      %s293 = smul.addr %s292, 4
      %s294 = scalar_lea.vmem %s0, %s293
      %p295 = pneg %p54
      %p296 = pneg %p51
      %s297 = smul.u32 32, %s24
      %p298 = scmp.lt.s32.totalorder %s23, 1
      %s299 = scalar_select %p298, %s23, 1
      %p300 = scmp.lt.s32.totalorder %s297, 63
      %s301 = scalar_select %p300, %s297, 63
      %s302 = smul.addr %s299, 64
      %s303 = sadd.s32 %s301, %s302
      %s304 = smul.addr %s303, 4
      %s305 = scalar_lea.vmem %s1, %s304
      %p306 = pneg %p82
      %p307 = pneg %p79
      %p308 = pneg %p103
      %p309 = pneg %p100
      %p310 = pneg %p124
      %p311 = pneg %p121
      %p312 = pneg %p145
      %p313 = pneg %p142
      %p314 = pneg %p166
      %p315 = pneg %p163
      %p316 = pneg %p194
      %p317 = pneg %p191
      %s318 = smul.u32 32, %s24
      %p319 = scmp.lt.s32.totalorder %s23, 1
      %s320 = scalar_select %p319, %s23, 1
      %p321 = scmp.lt.s32.totalorder %s318, 63
      %s322 = scalar_select %p321, %s318, 63
      %s323 = smul.addr %s320, 64
      %s324 = sadd.s32 %s322, %s323
      %s325 = smul.addr %s324, 4
      %s326 = scalar_lea.vmem %s6, %s325
      %p327 = pneg %p222
      %p328 = pneg %p219
      %s329 = smul.u32 32, %s24
      %p330 = scmp.lt.s32.totalorder %s23, 1
      %s331 = scalar_select %p330, %s23, 1
      %p332 = scmp.lt.s32.totalorder %s329, 63
      %s333 = scalar_select %p332, %s329, 63
      %s334 = smul.addr %s331, 64
      %s335 = sadd.s32 %s333, %s334
      %s336 = smul.addr %s335, 4
      %s337 = scalar_lea.vmem %s7, %s336
      %s338 = smul.u32 32, %s24
      %p339 = scmp.lt.s32.totalorder %s23, 1
      %s340 = scalar_select %p339, %s23, 1
      %p341 = scmp.lt.s32.totalorder %s338, 63
      %s342 = scalar_select %p341, %s338, 63
      %s343 = smul.addr %s340, 64
      %s344 = sadd.s32 %s342, %s343
      %s345 = smul.addr %s344, 4
      %s346 = scalar_lea.vmem %s0, %s345
      %s347 = smul.u32 32, %s24
      %s348 = smul.u32 32, %s24
      %p349 = scmp.lt.s32.totalorder %s23, 1
      %s350 = scalar_select %p349, %s23, 1
      %p351 = scmp.lt.s32.totalorder %s348, 63
      %s352 = scalar_select %p351, %s348, 63
      %s353 = smul.addr %s350, 64
      %s354 = sadd.s32 %s352, %s353
      %s355 = smul.addr %s354, 4
      %s356 = scalar_lea.vmem %s1, %s355
      %s357 = smul.u32 32, %s24
      %s358 = smul.u32 32, %s24
      %p359 = scmp.lt.s32.totalorder %s23, 1
      %s360 = scalar_select %p359, %s23, 1
      %p361 = scmp.lt.s32.totalorder %s358, 63
      %s362 = scalar_select %p361, %s358, 63
      %s363 = smul.addr %s360, 64
      %s364 = sadd.s32 %s362, %s363
      %s365 = smul.addr %s364, 4
      %s366 = scalar_lea.vmem %s6, %s365
      %s367 = smul.u32 32, %s24
      %s368 = smul.u32 32, %s24
      %p369 = scmp.lt.s32.totalorder %s23, 1
      %s370 = scalar_select %p369, %s23, 1
      %p371 = scmp.lt.s32.totalorder %s368, 63
      %s372 = scalar_select %p371, %s368, 63
      %s373 = smul.addr %s370, 64
      %s374 = sadd.s32 %s372, %s373
      %s375 = smul.addr %s374, 4
      %s376 = scalar_lea.vmem %s7, %s375
      %s377 = smul.u32 32, %s24
      %v379 = vld [vmem:[%s346] sm:$0xf]
      %v380 = vld [vmem:[%s346 + $0x4] sm:$0xf]
      %v381 = vld [vmem:[%s346 + $0x8] sm:$0xf]
      %v382 = vld [vmem:[%s346 + $0xc] sm:$0xf]
      %v383 = vld [vmem:[%s346 + $0x10] sm:$0xf]
      %v384 = vld [vmem:[%s346 + $0x14] sm:$0xf]
      %v385 = vld [vmem:[%s346 + $0x18] sm:$0xf]
      %v386 = vld [vmem:[%s346 + $0x1c] sm:$0xf]
      %v387 = vld [vmem:[%s346 + $0x20] sm:$0xf]
      %v388 = vld [vmem:[%s346 + $0x24] sm:$0xf]
      %v389 = vld [vmem:[%s346 + $0x28] sm:$0xf]
      %v390 = vld [vmem:[%s346 + $0x2c] sm:$0xf]
      %v391 = vld [vmem:[%s346 + $0x30] sm:$0xf]
      %v392 = vld [vmem:[%s346 + $0x34] sm:$0xf]
      %v393 = vld [vmem:[%s346 + $0x38] sm:$0xf]
      %v394 = vld [vmem:[%s346 + $0x3c] sm:$0xf]
      %v395 = vld [vmem:[%s346 + $0x40] sm:$0xf]
      %v396 = vld [vmem:[%s346 + $0x44] sm:$0xf]
      %v397 = vld [vmem:[%s346 + $0x48] sm:$0xf]
      %v398 = vld [vmem:[%s346 + $0x4c] sm:$0xf]
      %v399 = vld [vmem:[%s346 + $0x50] sm:$0xf]
      %v400 = vld [vmem:[%s346 + $0x54] sm:$0xf]
      %v401 = vld [vmem:[%s346 + $0x58] sm:$0xf]
      %v402 = vld [vmem:[%s346 + $0x5c] sm:$0xf]
      %v403 = vld [vmem:[%s346 + $0x60] sm:$0xf]
      %v404 = vld [vmem:[%s346 + $0x64] sm:$0xf]
      %v405 = vld [vmem:[%s346 + $0x68] sm:$0xf]
      %v406 = vld [vmem:[%s346 + $0x6c] sm:$0xf]
      %v407 = vld [vmem:[%s346 + $0x70] sm:$0xf]
      %v408 = vld [vmem:[%s346 + $0x74] sm:$0xf]
      %v409 = vld [vmem:[%s346 + $0x78] sm:$0xf]
      %v410 = vld [vmem:[%s346 + $0x7c] sm:$0xf]
      %v411 = vunpack.c.l.bf16 %v379
      %v412 = vunpack.c.l.bf16 %v380
      %v413 = vunpack.c.l.bf16 %v381
      %v414 = vunpack.c.l.bf16 %v382
      %v415 = vunpack.c.l.bf16 %v383
      %v416 = vunpack.c.l.bf16 %v384
      %v417 = vunpack.c.l.bf16 %v385
      %v418 = vunpack.c.l.bf16 %v386
      %v419 = vunpack.c.l.bf16 %v387
      %v420 = vunpack.c.l.bf16 %v388
      %v421 = vunpack.c.l.bf16 %v389
      %v422 = vunpack.c.l.bf16 %v390
      %v423 = vunpack.c.l.bf16 %v391
      %v424 = vunpack.c.l.bf16 %v392
      %v425 = vunpack.c.l.bf16 %v393
      %v426 = vunpack.c.l.bf16 %v394
      %v427 = vunpack.c.l.bf16 %v395
      %v428 = vunpack.c.l.bf16 %v396
      %v429 = vunpack.c.l.bf16 %v397
      %v430 = vunpack.c.l.bf16 %v398
      %v431 = vunpack.c.l.bf16 %v399
      %v432 = vunpack.c.l.bf16 %v400
      %v433 = vunpack.c.l.bf16 %v401
      %v434 = vunpack.c.l.bf16 %v402
      %v435 = vunpack.c.l.bf16 %v403
      %v436 = vunpack.c.l.bf16 %v404
      %v437 = vunpack.c.l.bf16 %v405
      %v438 = vunpack.c.l.bf16 %v406
      %v439 = vunpack.c.l.bf16 %v407
      %v440 = vunpack.c.l.bf16 %v408
      %v441 = vunpack.c.l.bf16 %v409
      %v442 = vunpack.c.l.bf16 %v410
      %v443 = vld [vmem:[%s356] sm:$0xf]
      %v444 = vld [vmem:[%s356 + $0x4] sm:$0xf]
      %v445 = vld [vmem:[%s356 + $0x8] sm:$0xf]
      %v446 = vld [vmem:[%s356 + $0xc] sm:$0xf]
      %v447 = vld [vmem:[%s356 + $0x10] sm:$0xf]
      %v448 = vld [vmem:[%s356 + $0x14] sm:$0xf]
      %v449 = vld [vmem:[%s356 + $0x18] sm:$0xf]
      %v450 = vld [vmem:[%s356 + $0x1c] sm:$0xf]
      %v451 = vld [vmem:[%s356 + $0x20] sm:$0xf]
      %v452 = vld [vmem:[%s356 + $0x24] sm:$0xf]
      %v453 = vld [vmem:[%s356 + $0x28] sm:$0xf]
      %v454 = vld [vmem:[%s356 + $0x2c] sm:$0xf]
      %v455 = vld [vmem:[%s356 + $0x30] sm:$0xf]
      %v456 = vld [vmem:[%s356 + $0x34] sm:$0xf]
      %v457 = vld [vmem:[%s356 + $0x38] sm:$0xf]
      %v458 = vld [vmem:[%s356 + $0x3c] sm:$0xf]
      %v459 = vld [vmem:[%s356 + $0x40] sm:$0xf]
      %v460 = vld [vmem:[%s356 + $0x44] sm:$0xf]
      %v461 = vld [vmem:[%s356 + $0x48] sm:$0xf]
      %v462 = vld [vmem:[%s356 + $0x4c] sm:$0xf]
      %v463 = vld [vmem:[%s356 + $0x50] sm:$0xf]
      %v464 = vld [vmem:[%s356 + $0x54] sm:$0xf]
      %v465 = vld [vmem:[%s356 + $0x58] sm:$0xf]
      %v466 = vld [vmem:[%s356 + $0x5c] sm:$0xf]
      %v467 = vld [vmem:[%s356 + $0x60] sm:$0xf]
      %v468 = vld [vmem:[%s356 + $0x64] sm:$0xf]
      %v469 = vld [vmem:[%s356 + $0x68] sm:$0xf]
      %v470 = vld [vmem:[%s356 + $0x6c] sm:$0xf]
      %v471 = vld [vmem:[%s356 + $0x70] sm:$0xf]
      %v472 = vld [vmem:[%s356 + $0x74] sm:$0xf]
      %v473 = vld [vmem:[%s356 + $0x78] sm:$0xf]
      %v474 = vld [vmem:[%s356 + $0x7c] sm:$0xf]
      %v475 = vunpack.c.l.bf16 %v443
      %v476 = vunpack.c.l.bf16 %v444
      %v477 = vunpack.c.l.bf16 %v445
      %v478 = vunpack.c.l.bf16 %v446
      %v479 = vunpack.c.l.bf16 %v447
      %v480 = vunpack.c.l.bf16 %v448
      %v481 = vunpack.c.l.bf16 %v449
      %v482 = vunpack.c.l.bf16 %v450
      %v483 = vunpack.c.l.bf16 %v451
      %v484 = vunpack.c.l.bf16 %v452
      %v485 = vunpack.c.l.bf16 %v453
      %v486 = vunpack.c.l.bf16 %v454
      %v487 = vunpack.c.l.bf16 %v455
      %v488 = vunpack.c.l.bf16 %v456
      %v489 = vunpack.c.l.bf16 %v457
      %v490 = vunpack.c.l.bf16 %v458
      %v491 = vunpack.c.l.bf16 %v459
      %v492 = vunpack.c.l.bf16 %v460
      %v493 = vunpack.c.l.bf16 %v461
      %v494 = vunpack.c.l.bf16 %v462
      %v495 = vunpack.c.l.bf16 %v463
      %v496 = vunpack.c.l.bf16 %v464
      %v497 = vunpack.c.l.bf16 %v465
      %v498 = vunpack.c.l.bf16 %v466
      %v499 = vunpack.c.l.bf16 %v467
      %v500 = vunpack.c.l.bf16 %v468
      %v501 = vunpack.c.l.bf16 %v469
      %v502 = vunpack.c.l.bf16 %v470
      %v503 = vunpack.c.l.bf16 %v471
      %v504 = vunpack.c.l.bf16 %v472
      %v505 = vunpack.c.l.bf16 %v473
      %v506 = vunpack.c.l.bf16 %v474
      %v507 = vadd.f32 %v411, %v475
      %v508 = vadd.f32 %v412, %v476
      %v509 = vadd.f32 %v413, %v477
      %v510 = vadd.f32 %v414, %v478
      %v511 = vadd.f32 %v415, %v479
      %v512 = vadd.f32 %v416, %v480
      %v513 = vadd.f32 %v417, %v481
      %v514 = vadd.f32 %v418, %v482
      %v515 = vadd.f32 %v419, %v483
      %v516 = vadd.f32 %v420, %v484
      %v517 = vadd.f32 %v421, %v485
      %v518 = vadd.f32 %v422, %v486
      %v519 = vadd.f32 %v423, %v487
      %v520 = vadd.f32 %v424, %v488
      %v521 = vadd.f32 %v425, %v489
      %v522 = vadd.f32 %v426, %v490
      %v523 = vadd.f32 %v427, %v491
      %v524 = vadd.f32 %v428, %v492
      %v525 = vadd.f32 %v429, %v493
      %v526 = vadd.f32 %v430, %v494
      %v527 = vadd.f32 %v431, %v495
      %v528 = vadd.f32 %v432, %v496
      %v529 = vadd.f32 %v433, %v497
      %v530 = vadd.f32 %v434, %v498
      %v531 = vadd.f32 %v435, %v499
      %v532 = vadd.f32 %v436, %v500
      %v533 = vadd.f32 %v437, %v501
      %v534 = vadd.f32 %v438, %v502
      %v535 = vadd.f32 %v439, %v503
      %v536 = vadd.f32 %v440, %v504
      %v537 = vadd.f32 %v441, %v505
      %v538 = vadd.f32 %v442, %v506
      %v539 = vpack.c.bf16 %v508, %v507
      %v540 = vpack.c.bf16 %v510, %v509
      %v541 = vpack.c.bf16 %v512, %v511
      %v542 = vpack.c.bf16 %v514, %v513
      %v543 = vpack.c.bf16 %v516, %v515
      %v544 = vpack.c.bf16 %v518, %v517
      %v545 = vpack.c.bf16 %v520, %v519
      %v546 = vpack.c.bf16 %v522, %v521
      %v547 = vpack.c.bf16 %v524, %v523
      %v548 = vpack.c.bf16 %v526, %v525
      %v549 = vpack.c.bf16 %v528, %v527
      %v550 = vpack.c.bf16 %v530, %v529
      %v551 = vpack.c.bf16 %v532, %v531
      %v552 = vpack.c.bf16 %v534, %v533
      %v553 = vpack.c.bf16 %v536, %v535
      %v554 = vpack.c.bf16 %v538, %v537
      %v555 = vld [vmem:[%s2] sm:$0xf]
      %v556 = vld [vmem:[%s2 + $0x4] sm:$0xf]
      %v557 = vld [vmem:[%s2 + $0x8] sm:$0xf]
      %v558 = vld [vmem:[%s2 + $0xc] sm:$0xf]
      %v559 = vld [vmem:[%s2 + $0x10] sm:$0xf]
      %v560 = vld [vmem:[%s2 + $0x14] sm:$0xf]
      %v561 = vld [vmem:[%s2 + $0x18] sm:$0xf]
      %v562 = vld [vmem:[%s2 + $0x1c] sm:$0xf]
      %v563 = vld [vmem:[%s2 + $0x20] sm:$0xf]
      %v564 = vld [vmem:[%s2 + $0x24] sm:$0xf]
      %v565 = vld [vmem:[%s2 + $0x28] sm:$0xf]
      %v566 = vld [vmem:[%s2 + $0x2c] sm:$0xf]
      %v567 = vld [vmem:[%s2 + $0x30] sm:$0xf]
      %v568 = vld [vmem:[%s2 + $0x34] sm:$0xf]
      %v569 = vld [vmem:[%s2 + $0x38] sm:$0xf]
      %v570 = vld [vmem:[%s2 + $0x3c] sm:$0xf]
      %v571 = vld [vmem:[%s3] sm:$0x1]
      %v573 = vlaneseq
      %v574 = vshrl.u32 %v573, 7
      %v575 = vsub.s32 0, %v574
      %v576 = vrot.slane %v571, %v575
      %v594 = vunpack.c.l.b16 %v555
      %v595 = vunpack.c.l.b16 %v556
      %v596 = vunpack.c.l.b16 %v557
      %v597 = vunpack.c.l.b16 %v558
      %v598 = vunpack.c.l.b16 %v559
      %v599 = vunpack.c.l.b16 %v560
      %v600 = vunpack.c.l.b16 %v561
      %v601 = vunpack.c.l.b16 %v562
      %v602 = vunpack.c.l.b16 %v563
      %v603 = vunpack.c.l.b16 %v564
      %v604 = vunpack.c.l.b16 %v565
      %v605 = vunpack.c.l.b16 %v566
      %v606 = vunpack.c.l.b16 %v567
      %v607 = vunpack.c.l.b16 %v568
      %v608 = vunpack.c.l.b16 %v569
      %v609 = vunpack.c.l.b16 %v570
      %v610 = vpack.c.b16 %v595, %v594
      %v611 = vpack.c.b16 %v597, %v596
      %v612 = vpack.c.b16 %v599, %v598
      %v613 = vpack.c.b16 %v601, %v600
      %v614 = vpack.c.b16 %v603, %v602
      %v615 = vpack.c.b16 %v605, %v604
      %v616 = vpack.c.b16 %v607, %v606
      %v617 = vpack.c.b16 %v609, %v608
      %626 = vmatprep.subr.bf16.mxu0 0
      %627 = vmatpush1.bf16.msra.mxu0 %v610
      %628 = vmatprep.subr.bf16.mxu0 0
      %629 = vmatpush1.bf16.msra.mxu0 %v611
      %630 = vmatprep.subr.bf16.mxu0 0
      %631 = vmatpush1.bf16.msra.mxu0 %v612
      %632 = vmatprep.subr.bf16.mxu0 0
      %633 = vmatpush1.bf16.msra.mxu0 %v613
      %634 = vmatprep.subr.bf16.mxu0 0
      %635 = vmatpush1.bf16.msra.mxu0 %v614
      %636 = vmatprep.subr.bf16.mxu0 0
      %637 = vmatpush1.bf16.msra.mxu0 %v615
      %638 = vmatprep.subr.bf16.mxu0 0
      %639 = vmatpush1.bf16.msra.mxu0 %v616
      %640 = vmatprep.subr.bf16.mxu0 0
      %641 = vmatpush1.bf16.msra.mxu0 %v617
      %642 = vmatprep.subr.bf16.mxu0 0
      %643 = vmatpush1.bf16.msra.mxu0 0
      %644 = vmatprep.subr.bf16.mxu0 0
      %645 = vmatpush1.bf16.msra.mxu0 0
      %646 = vmatprep.subr.bf16.mxu0 0
      %647 = vmatpush1.bf16.msra.mxu0 0
      %648 = vmatprep.subr.bf16.mxu0 0
      %649 = vmatpush1.bf16.msra.mxu0 0
      %650 = vmatprep.subr.bf16.mxu0 0
      %651 = vmatpush1.bf16.msra.mxu0 0
      %652 = vmatprep.subr.bf16.mxu0 0
      %653 = vmatpush1.bf16.msra.mxu0 0
      %654 = vmatprep.subr.bf16.mxu0 0
      %655 = vmatpush1.bf16.msra.mxu0 0
      %656 = vmatprep.subr.bf16.mxu0 0
      %657 = vmatpush1.bf16.msra.mxu0 0
      %658 = vmatprep.mubr.bf16.mxu0 0
      %659 = vmatmul.mubr.bf16.gmra.mrb[0].mxu0 %v539
      %v660 = vpop.f32.mrb[0].mxu0
      %v661 = vadd.f32 %v576, %v660
      %v662 = vpop.f32.mrb[0].mxu0
      %v663 = vpop.f32.mrb[0].mxu0
      %v664 = vadd.f32 %v576, %v663
      %v665 = vpop.f32.mrb[0].mxu0
      %666 = vmatprep.mubr.bf16.mxu0 0
      %667 = vmatmul.mubr.bf16.gmra.mrb[0].mxu0 %v540
      %v668 = vpop.f32.mrb[0].mxu0
      %v669 = vadd.f32 %v576, %v668
      %v670 = vpop.f32.mrb[0].mxu0
      %v671 = vpop.f32.mrb[0].mxu0
      %v672 = vadd.f32 %v576, %v671
      %v673 = vpop.f32.mrb[0].mxu0
      %674 = vmatprep.mubr.bf16.mxu0 0
      %675 = vmatmul.mubr.bf16.gmra.mrb[0].mxu0 %v541
      %v676 = vpop.f32.mrb[0].mxu0
      %v677 = vadd.f32 %v576, %v676
      %v678 = vpop.f32.mrb[0].mxu0
      %v679 = vpop.f32.mrb[0].mxu0
      %v680 = vadd.f32 %v576, %v679
      %v681 = vpop.f32.mrb[0].mxu0
      %682 = vmatprep.mubr.bf16.mxu0 0
      %683 = vmatmul.mubr.bf16.gmra.mrb[0].mxu0 %v542
      %v684 = vpop.f32.mrb[0].mxu0
      %v685 = vadd.f32 %v576, %v684
      %v686 = vpop.f32.mrb[0].mxu0
      %v687 = vpop.f32.mrb[0].mxu0
      %v688 = vadd.f32 %v576, %v687
      %v689 = vpop.f32.mrb[0].mxu0
      %690 = vmatprep.mubr.bf16.mxu0 0
      %691 = vmatmul.mubr.bf16.gmra.mrb[0].mxu0 %v543
      %v692 = vpop.f32.mrb[0].mxu0
      %v693 = vadd.f32 %v576, %v692
      %v694 = vpop.f32.mrb[0].mxu0
      %v695 = vpop.f32.mrb[0].mxu0
      %v696 = vadd.f32 %v576, %v695
      %v697 = vpop.f32.mrb[0].mxu0
      %698 = vmatprep.mubr.bf16.mxu0 0
      %699 = vmatmul.mubr.bf16.gmra.mrb[0].mxu0 %v544
      %v700 = vpop.f32.mrb[0].mxu0
      %v701 = vadd.f32 %v576, %v700
      %v702 = vpop.f32.mrb[0].mxu0
      %v703 = vpop.f32.mrb[0].mxu0
      %v704 = vadd.f32 %v576, %v703
      %v705 = vpop.f32.mrb[0].mxu0
      %706 = vmatprep.mubr.bf16.mxu0 0
      %707 = vmatmul.mubr.bf16.gmra.mrb[0].mxu0 %v545
      %v708 = vpop.f32.mrb[0].mxu0
      %v709 = vadd.f32 %v576, %v708
      %v710 = vpop.f32.mrb[0].mxu0
      %v711 = vpop.f32.mrb[0].mxu0
      %v712 = vadd.f32 %v576, %v711
      %v713 = vpop.f32.mrb[0].mxu0
      %714 = vmatprep.mubr.bf16.mxu0 0
      %715 = vmatmul.mubr.bf16.gmra.mrb[0].mxu0 %v546
      %v716 = vpop.f32.mrb[0].mxu0
      %v717 = vadd.f32 %v576, %v716
      %v718 = vpop.f32.mrb[0].mxu0
      %v719 = vpop.f32.mrb[0].mxu0
      %v720 = vadd.f32 %v576, %v719
      %v721 = vpop.f32.mrb[0].mxu0
      %722 = vmatprep.mubr.bf16.mxu0 0
      %723 = vmatmul.mubr.bf16.gmra.mrb[0].mxu0 %v547
      %v724 = vpop.f32.mrb[0].mxu0
      %v725 = vadd.f32 %v576, %v724
      %v726 = vpop.f32.mrb[0].mxu0
      %v727 = vpop.f32.mrb[0].mxu0
      %v728 = vadd.f32 %v576, %v727
      %v729 = vpop.f32.mrb[0].mxu0
      %730 = vmatprep.mubr.bf16.mxu0 0
      %731 = vmatmul.mubr.bf16.gmra.mrb[0].mxu0 %v548
      %v732 = vpop.f32.mrb[0].mxu0
      %v733 = vadd.f32 %v576, %v732
      %v734 = vpop.f32.mrb[0].mxu0
      %v735 = vpop.f32.mrb[0].mxu0
      %v736 = vadd.f32 %v576, %v735
      %v737 = vpop.f32.mrb[0].mxu0
      %738 = vmatprep.mubr.bf16.mxu0 0
      %739 = vmatmul.mubr.bf16.gmra.mrb[0].mxu0 %v549
      %v740 = vpop.f32.mrb[0].mxu0
      %v741 = vadd.f32 %v576, %v740
      %v742 = vpop.f32.mrb[0].mxu0
      %v743 = vpop.f32.mrb[0].mxu0
      %v744 = vadd.f32 %v576, %v743
      %v745 = vpop.f32.mrb[0].mxu0
      %746 = vmatprep.mubr.bf16.mxu0 0
      %747 = vmatmul.mubr.bf16.gmra.mrb[0].mxu0 %v550
      %v748 = vpop.f32.mrb[0].mxu0
      %v749 = vadd.f32 %v576, %v748
      %v750 = vpop.f32.mrb[0].mxu0
      %v751 = vpop.f32.mrb[0].mxu0
      %v752 = vadd.f32 %v576, %v751
      %v753 = vpop.f32.mrb[0].mxu0
      %754 = vmatprep.mubr.bf16.mxu0 0
      %755 = vmatmul.mubr.bf16.gmra.mrb[0].mxu0 %v551
      %v756 = vpop.f32.mrb[0].mxu0
      %v757 = vadd.f32 %v576, %v756
      %v758 = vpop.f32.mrb[0].mxu0
      %v759 = vpop.f32.mrb[0].mxu0
      %v760 = vadd.f32 %v576, %v759
      %v761 = vpop.f32.mrb[0].mxu0
      %762 = vmatprep.mubr.bf16.mxu0 0
      %763 = vmatmul.mubr.bf16.gmra.mrb[0].mxu0 %v552
      %v764 = vpop.f32.mrb[0].mxu0
      %v765 = vadd.f32 %v576, %v764
      %v766 = vpop.f32.mrb[0].mxu0
      %v767 = vpop.f32.mrb[0].mxu0
      %v768 = vadd.f32 %v576, %v767
      %v769 = vpop.f32.mrb[0].mxu0
      %770 = vmatprep.mubr.bf16.mxu0 0
      %771 = vmatmul.mubr.bf16.gmra.mrb[0].mxu0 %v553
      %v772 = vpop.f32.mrb[0].mxu0
      %v773 = vadd.f32 %v576, %v772
      %v774 = vpop.f32.mrb[0].mxu0
      %v775 = vpop.f32.mrb[0].mxu0
      %v776 = vadd.f32 %v576, %v775
      %v777 = vpop.f32.mrb[0].mxu0
      %778 = vmatprep.mubr.bf16.mxu0 0
      %779 = vmatmul.mubr.bf16.gmra.mrb[0].mxu0 %v554
      %v780 = vpop.f32.mrb[0].mxu0
      %v781 = vadd.f32 %v576, %v780
      %v782 = vpop.f32.mrb[0].mxu0
      %v783 = vpop.f32.mrb[0].mxu0
      %v784 = vadd.f32 %v576, %v783
      %v785 = vpop.f32.mrb[0].mxu0
      %786 = vdwg.mxu0
      %v787 = vpack.c.bf16 %v664, %v661
      %v788 = vpack.c.bf16 %v672, %v669
      %v789 = vpack.c.bf16 %v680, %v677
      %v790 = vpack.c.bf16 %v688, %v685
      %v791 = vpack.c.bf16 %v696, %v693
      %v792 = vpack.c.bf16 %v704, %v701
      %v793 = vpack.c.bf16 %v712, %v709
      %v794 = vpack.c.bf16 %v720, %v717
      %v795 = vpack.c.bf16 %v728, %v725
      %v796 = vpack.c.bf16 %v736, %v733
      %v797 = vpack.c.bf16 %v744, %v741
      %v798 = vpack.c.bf16 %v752, %v749
      %v799 = vpack.c.bf16 %v760, %v757
      %v800 = vpack.c.bf16 %v768, %v765
      %v801 = vpack.c.bf16 %v776, %v773
      %v802 = vpack.c.bf16 %v784, %v781
      %v819 = vunpack.c.l.b16 %v787
      %v820 = vunpack.c.h.b16 %v787
      %v821 = vunpack.c.l.b16 %v788
      %v822 = vunpack.c.h.b16 %v788
      %v823 = vunpack.c.l.b16 %v789
      %v824 = vunpack.c.h.b16 %v789
      %v825 = vunpack.c.l.b16 %v790
      %v826 = vunpack.c.h.b16 %v790
      %v827 = vunpack.c.l.b16 %v791
      %v828 = vunpack.c.h.b16 %v791
      %v829 = vunpack.c.l.b16 %v792
      %v830 = vunpack.c.h.b16 %v792
      %v831 = vunpack.c.l.b16 %v793
      %v832 = vunpack.c.h.b16 %v793
      %v833 = vunpack.c.l.b16 %v794
      %v834 = vunpack.c.h.b16 %v794
      %v835 = vunpack.c.l.b16 %v795
      %v836 = vunpack.c.h.b16 %v795
      %v837 = vunpack.c.l.b16 %v796
      %v838 = vunpack.c.h.b16 %v796
      %v839 = vunpack.c.l.b16 %v797
      %v840 = vunpack.c.h.b16 %v797
      %v841 = vunpack.c.l.b16 %v798
      %v842 = vunpack.c.h.b16 %v798
      %v843 = vunpack.c.l.b16 %v799
      %v844 = vunpack.c.h.b16 %v799
      %v845 = vunpack.c.l.b16 %v800
      %v846 = vunpack.c.h.b16 %v800
      %v847 = vunpack.c.l.b16 %v801
      %v848 = vunpack.c.h.b16 %v801
      %v849 = vunpack.c.l.b16 %v802
      %v850 = vunpack.c.h.b16 %v802
      %v851 = vpack.c.b16 %v819, %v819
      %v852 = vpack.c.b16 %v820, %v820
      %v853 = vpack.c.b16 %v821, %v821
      %v854 = vpack.c.b16 %v822, %v822
      %v855 = vpack.c.b16 %v823, %v823
      %v856 = vpack.c.b16 %v824, %v824
      %v857 = vpack.c.b16 %v825, %v825
      %v858 = vpack.c.b16 %v826, %v826
      %v859 = vpack.c.b16 %v827, %v827
      %v860 = vpack.c.b16 %v828, %v828
      %v861 = vpack.c.b16 %v829, %v829
      %v862 = vpack.c.b16 %v830, %v830
      %v863 = vpack.c.b16 %v831, %v831
      %v864 = vpack.c.b16 %v832, %v832
      %v865 = vpack.c.b16 %v833, %v833
      %v866 = vpack.c.b16 %v834, %v834
      %v867 = vpack.c.b16 %v835, %v835
      %v868 = vpack.c.b16 %v836, %v836
      %v869 = vpack.c.b16 %v837, %v837
      %v870 = vpack.c.b16 %v838, %v838
      %v871 = vpack.c.b16 %v839, %v839
      %v872 = vpack.c.b16 %v840, %v840
      %v873 = vpack.c.b16 %v841, %v841
      %v874 = vpack.c.b16 %v842, %v842
      %v875 = vpack.c.b16 %v843, %v843
      %v876 = vpack.c.b16 %v844, %v844
      %v877 = vpack.c.b16 %v845, %v845
      %v878 = vpack.c.b16 %v846, %v846
      %v879 = vpack.c.b16 %v847, %v847
      %v880 = vpack.c.b16 %v848, %v848
      %v881 = vpack.c.b16 %v849, %v849
      %v882 = vpack.c.b16 %v850, %v850
      %915 = vst [vmem:[%s366] sm:$0xf] %v851
      %916 = vst [vmem:[%s366 + $0x4] sm:$0xf] %v852
      %917 = vst [vmem:[%s366 + $0x8] sm:$0xf] %v853
      %918 = vst [vmem:[%s366 + $0xc] sm:$0xf] %v854
      %919 = vst [vmem:[%s366 + $0x10] sm:$0xf] %v855
      %920 = vst [vmem:[%s366 + $0x14] sm:$0xf] %v856
      %921 = vst [vmem:[%s366 + $0x18] sm:$0xf] %v857
      %922 = vst [vmem:[%s366 + $0x1c] sm:$0xf] %v858
      %923 = vst [vmem:[%s366 + $0x20] sm:$0xf] %v859
      %924 = vst [vmem:[%s366 + $0x24] sm:$0xf] %v860
      %925 = vst [vmem:[%s366 + $0x28] sm:$0xf] %v861
      %926 = vst [vmem:[%s366 + $0x2c] sm:$0xf] %v862
      %927 = vst [vmem:[%s366 + $0x30] sm:$0xf] %v863
      %928 = vst [vmem:[%s366 + $0x34] sm:$0xf] %v864
      %929 = vst [vmem:[%s366 + $0x38] sm:$0xf] %v865
      %930 = vst [vmem:[%s366 + $0x3c] sm:$0xf] %v866
      %931 = vst [vmem:[%s366 + $0x40] sm:$0xf] %v867
      %932 = vst [vmem:[%s366 + $0x44] sm:$0xf] %v868
      %933 = vst [vmem:[%s366 + $0x48] sm:$0xf] %v869
      %934 = vst [vmem:[%s366 + $0x4c] sm:$0xf] %v870
      %935 = vst [vmem:[%s366 + $0x50] sm:$0xf] %v871
      %936 = vst [vmem:[%s366 + $0x54] sm:$0xf] %v872
      %937 = vst [vmem:[%s366 + $0x58] sm:$0xf] %v873
      %938 = vst [vmem:[%s366 + $0x5c] sm:$0xf] %v874
      %939 = vst [vmem:[%s366 + $0x60] sm:$0xf] %v875
      %940 = vst [vmem:[%s366 + $0x64] sm:$0xf] %v876
      %941 = vst [vmem:[%s366 + $0x68] sm:$0xf] %v877
      %942 = vst [vmem:[%s366 + $0x6c] sm:$0xf] %v878
      %943 = vst [vmem:[%s366 + $0x70] sm:$0xf] %v879
      %944 = vst [vmem:[%s366 + $0x74] sm:$0xf] %v880
      %945 = vst [vmem:[%s366 + $0x78] sm:$0xf] %v881
      %946 = vst [vmem:[%s366 + $0x7c] sm:$0xf] %v882
      %v947 = vld [vmem:[%s4] sm:$0xf]
      %v948 = vld [vmem:[%s4 + $0x4] sm:$0xf]
      %v949 = vld [vmem:[%s4 + $0x8] sm:$0xf]
      %v950 = vld [vmem:[%s4 + $0xc] sm:$0xf]
      %v951 = vld [vmem:[%s4 + $0x10] sm:$0xf]
      %v952 = vld [vmem:[%s4 + $0x14] sm:$0xf]
      %v953 = vld [vmem:[%s4 + $0x18] sm:$0xf]
      %v954 = vld [vmem:[%s4 + $0x1c] sm:$0xf]
      %v955 = vld [vmem:[%s4 + $0x20] sm:$0xf]
      %v956 = vld [vmem:[%s4 + $0x24] sm:$0xf]
      %v957 = vld [vmem:[%s4 + $0x28] sm:$0xf]
      %v958 = vld [vmem:[%s4 + $0x2c] sm:$0xf]
      %v959 = vld [vmem:[%s4 + $0x30] sm:$0xf]
      %v960 = vld [vmem:[%s4 + $0x34] sm:$0xf]
      %v961 = vld [vmem:[%s4 + $0x38] sm:$0xf]
      %v962 = vld [vmem:[%s4 + $0x3c] sm:$0xf]
      %v963 = vld [vmem:[%s5] sm:$0x1]
      %v965 = vlaneseq
      %v966 = vshrl.u32 %v965, 7
      %v967 = vsub.s32 0, %v966
      %v968 = vrot.slane %v963, %v967
      %v1002 = vunpack.c.l.b16 %v379
      %v1003 = vunpack.c.l.b16 %v380
      %v1004 = vunpack.c.l.b16 %v381
      %v1005 = vunpack.c.l.b16 %v382
      %v1006 = vunpack.c.l.b16 %v383
      %v1007 = vunpack.c.l.b16 %v384
      %v1008 = vunpack.c.l.b16 %v385
      %v1009 = vunpack.c.l.b16 %v386
      %v1010 = vunpack.c.l.b16 %v387
      %v1011 = vunpack.c.l.b16 %v388
      %v1012 = vunpack.c.l.b16 %v389
      %v1013 = vunpack.c.l.b16 %v390
      %v1014 = vunpack.c.l.b16 %v391
      %v1015 = vunpack.c.l.b16 %v392
      %v1016 = vunpack.c.l.b16 %v393
      %v1017 = vunpack.c.l.b16 %v394
      %v1018 = vunpack.c.l.b16 %v395
      %v1019 = vunpack.c.l.b16 %v396
      %v1020 = vunpack.c.l.b16 %v397
      %v1021 = vunpack.c.l.b16 %v398
      %v1022 = vunpack.c.l.b16 %v399
      %v1023 = vunpack.c.l.b16 %v400
      %v1024 = vunpack.c.l.b16 %v401
      %v1025 = vunpack.c.l.b16 %v402
      %v1026 = vunpack.c.l.b16 %v403
      %v1027 = vunpack.c.l.b16 %v404
      %v1028 = vunpack.c.l.b16 %v405
      %v1029 = vunpack.c.l.b16 %v406
      %v1030 = vunpack.c.l.b16 %v407
      %v1031 = vunpack.c.l.b16 %v408
      %v1032 = vunpack.c.l.b16 %v409
      %v1033 = vunpack.c.l.b16 %v410
      %v1034 = vpack.c.b16 %v1003, %v1002
      %v1035 = vpack.c.b16 %v1005, %v1004
      %v1036 = vpack.c.b16 %v1007, %v1006
      %v1037 = vpack.c.b16 %v1009, %v1008
      %v1038 = vpack.c.b16 %v1011, %v1010
      %v1039 = vpack.c.b16 %v1013, %v1012
      %v1040 = vpack.c.b16 %v1015, %v1014
      %v1041 = vpack.c.b16 %v1017, %v1016
      %v1042 = vpack.c.b16 %v1019, %v1018
      %v1043 = vpack.c.b16 %v1021, %v1020
      %v1044 = vpack.c.b16 %v1023, %v1022
      %v1045 = vpack.c.b16 %v1025, %v1024
      %v1046 = vpack.c.b16 %v1027, %v1026
      %v1047 = vpack.c.b16 %v1029, %v1028
      %v1048 = vpack.c.b16 %v1031, %v1030
      %v1049 = vpack.c.b16 %v1033, %v1032
      %v1082 = vunpack.c.l.b16 %v947
      %v1083 = vunpack.c.l.b16 %v948
      %v1084 = vunpack.c.l.b16 %v949
      %v1085 = vunpack.c.l.b16 %v950
      %v1086 = vunpack.c.l.b16 %v951
      %v1087 = vunpack.c.l.b16 %v952
      %v1088 = vunpack.c.l.b16 %v953
      %v1089 = vunpack.c.l.b16 %v954
      %v1090 = vunpack.c.l.b16 %v955
      %v1091 = vunpack.c.l.b16 %v956
      %v1092 = vunpack.c.l.b16 %v957
      %v1093 = vunpack.c.l.b16 %v958
      %v1094 = vunpack.c.l.b16 %v959
      %v1095 = vunpack.c.l.b16 %v960
      %v1096 = vunpack.c.l.b16 %v961
      %v1097 = vunpack.c.l.b16 %v962
      %v1098 = vpack.c.b16 %v1083, %v1082
      %v1099 = vpack.c.b16 %v1085, %v1084
      %v1100 = vpack.c.b16 %v1087, %v1086
      %v1101 = vpack.c.b16 %v1089, %v1088
      %v1102 = vpack.c.b16 %v1091, %v1090
      %v1103 = vpack.c.b16 %v1093, %v1092
      %v1104 = vpack.c.b16 %v1095, %v1094
      %v1105 = vpack.c.b16 %v1097, %v1096
      %1114 = vmatprep.subr.bf16.mxu0 0
      %1115 = vmatpush1.bf16.msra.mxu0 %v1098
      %1116 = vmatprep.subr.bf16.mxu0 0
      %1117 = vmatpush1.bf16.msra.mxu0 %v1099
      %1118 = vmatprep.subr.bf16.mxu0 0
      %1119 = vmatpush1.bf16.msra.mxu0 %v1100
      %1120 = vmatprep.subr.bf16.mxu0 0
      %1121 = vmatpush1.bf16.msra.mxu0 %v1101
      %1122 = vmatprep.subr.bf16.mxu0 0
      %1123 = vmatpush1.bf16.msra.mxu0 %v1102
      %1124 = vmatprep.subr.bf16.mxu0 0
      %1125 = vmatpush1.bf16.msra.mxu0 %v1103
      %1126 = vmatprep.subr.bf16.mxu0 0
      %1127 = vmatpush1.bf16.msra.mxu0 %v1104
      %1128 = vmatprep.subr.bf16.mxu0 0
      %1129 = vmatpush1.bf16.msra.mxu0 %v1105
      %1130 = vmatprep.subr.bf16.mxu0 0
      %1131 = vmatpush1.bf16.msra.mxu0 0
      %1132 = vmatprep.subr.bf16.mxu0 0
      %1133 = vmatpush1.bf16.msra.mxu0 0
      %1134 = vmatprep.subr.bf16.mxu0 0
      %1135 = vmatpush1.bf16.msra.mxu0 0
      %1136 = vmatprep.subr.bf16.mxu0 0
      %1137 = vmatpush1.bf16.msra.mxu0 0
      %1138 = vmatprep.subr.bf16.mxu0 0
      %1139 = vmatpush1.bf16.msra.mxu0 0
      %1140 = vmatprep.subr.bf16.mxu0 0
      %1141 = vmatpush1.bf16.msra.mxu0 0
      %1142 = vmatprep.subr.bf16.mxu0 0
      %1143 = vmatpush1.bf16.msra.mxu0 0
      %1144 = vmatprep.subr.bf16.mxu0 0
      %1145 = vmatpush1.bf16.msra.mxu0 0
      %1146 = vmatprep.mubr.bf16.mxu0 0
      %1147 = vmatmul.mubr.bf16.gmra.mrb[0].mxu0 %v1034
      %v1148 = vpop.f32.mrb[0].mxu0
      %v1149 = vadd.f32 %v968, %v1148
      %v1150 = vpop.f32.mrb[0].mxu0
      %v1151 = vpop.f32.mrb[0].mxu0
      %v1152 = vadd.f32 %v968, %v1151
      %v1153 = vpop.f32.mrb[0].mxu0
      %1154 = vmatprep.mubr.bf16.mxu0 0
      %1155 = vmatmul.mubr.bf16.gmra.mrb[0].mxu0 %v1035
      %v1156 = vpop.f32.mrb[0].mxu0
      %v1157 = vadd.f32 %v968, %v1156
      %v1158 = vpop.f32.mrb[0].mxu0
      %v1159 = vpop.f32.mrb[0].mxu0
      %v1160 = vadd.f32 %v968, %v1159
      %v1161 = vpop.f32.mrb[0].mxu0
      %1162 = vmatprep.mubr.bf16.mxu0 0
      %1163 = vmatmul.mubr.bf16.gmra.mrb[0].mxu0 %v1036
      %v1164 = vpop.f32.mrb[0].mxu0
      %v1165 = vadd.f32 %v968, %v1164
      %v1166 = vpop.f32.mrb[0].mxu0
      %v1167 = vpop.f32.mrb[0].mxu0
      %v1168 = vadd.f32 %v968, %v1167
      %v1169 = vpop.f32.mrb[0].mxu0
      %1170 = vmatprep.mubr.bf16.mxu0 0
      %1171 = vmatmul.mubr.bf16.gmra.mrb[0].mxu0 %v1037
      %v1172 = vpop.f32.mrb[0].mxu0
      %v1173 = vadd.f32 %v968, %v1172
      %v1174 = vpop.f32.mrb[0].mxu0
      %v1175 = vpop.f32.mrb[0].mxu0
      %v1176 = vadd.f32 %v968, %v1175
      %v1177 = vpop.f32.mrb[0].mxu0
      %1178 = vmatprep.mubr.bf16.mxu0 0
      %1179 = vmatmul.mubr.bf16.gmra.mrb[0].mxu0 %v1038
      %v1180 = vpop.f32.mrb[0].mxu0
      %v1181 = vadd.f32 %v968, %v1180
      %v1182 = vpop.f32.mrb[0].mxu0
      %v1183 = vpop.f32.mrb[0].mxu0
      %v1184 = vadd.f32 %v968, %v1183
      %v1185 = vpop.f32.mrb[0].mxu0
      %1186 = vmatprep.mubr.bf16.mxu0 0
      %1187 = vmatmul.mubr.bf16.gmra.mrb[0].mxu0 %v1039
      %v1188 = vpop.f32.mrb[0].mxu0
      %v1189 = vadd.f32 %v968, %v1188
      %v1190 = vpop.f32.mrb[0].mxu0
      %v1191 = vpop.f32.mrb[0].mxu0
      %v1192 = vadd.f32 %v968, %v1191
      %v1193 = vpop.f32.mrb[0].mxu0
      %1194 = vmatprep.mubr.bf16.mxu0 0
      %1195 = vmatmul.mubr.bf16.gmra.mrb[0].mxu0 %v1040
      %v1196 = vpop.f32.mrb[0].mxu0
      %v1197 = vadd.f32 %v968, %v1196
      %v1198 = vpop.f32.mrb[0].mxu0
      %v1199 = vpop.f32.mrb[0].mxu0
      %v1200 = vadd.f32 %v968, %v1199
      %v1201 = vpop.f32.mrb[0].mxu0
      %1202 = vmatprep.mubr.bf16.mxu0 0
      %1203 = vmatmul.mubr.bf16.gmra.mrb[0].mxu0 %v1041
      %v1204 = vpop.f32.mrb[0].mxu0
      %v1205 = vadd.f32 %v968, %v1204
      %v1206 = vpop.f32.mrb[0].mxu0
      %v1207 = vpop.f32.mrb[0].mxu0
      %v1208 = vadd.f32 %v968, %v1207
      %v1209 = vpop.f32.mrb[0].mxu0
      %1210 = vmatprep.mubr.bf16.mxu0 0
      %1211 = vmatmul.mubr.bf16.gmra.mrb[0].mxu0 %v1042
      %v1212 = vpop.f32.mrb[0].mxu0
      %v1213 = vadd.f32 %v968, %v1212
      %v1214 = vpop.f32.mrb[0].mxu0
      %v1215 = vpop.f32.mrb[0].mxu0
      %v1216 = vadd.f32 %v968, %v1215
      %v1217 = vpop.f32.mrb[0].mxu0
      %1218 = vmatprep.mubr.bf16.mxu0 0
      %1219 = vmatmul.mubr.bf16.gmra.mrb[0].mxu0 %v1043
      %v1220 = vpop.f32.mrb[0].mxu0
      %v1221 = vadd.f32 %v968, %v1220
      %v1222 = vpop.f32.mrb[0].mxu0
      %v1223 = vpop.f32.mrb[0].mxu0
      %v1224 = vadd.f32 %v968, %v1223
      %v1225 = vpop.f32.mrb[0].mxu0
      %1226 = vmatprep.mubr.bf16.mxu0 0
      %1227 = vmatmul.mubr.bf16.gmra.mrb[0].mxu0 %v1044
      %v1228 = vpop.f32.mrb[0].mxu0
      %v1229 = vadd.f32 %v968, %v1228
      %v1230 = vpop.f32.mrb[0].mxu0
      %v1231 = vpop.f32.mrb[0].mxu0
      %v1232 = vadd.f32 %v968, %v1231
      %v1233 = vpop.f32.mrb[0].mxu0
      %1234 = vmatprep.mubr.bf16.mxu0 0
      %1235 = vmatmul.mubr.bf16.gmra.mrb[0].mxu0 %v1045
      %v1236 = vpop.f32.mrb[0].mxu0
      %v1237 = vadd.f32 %v968, %v1236
      %v1238 = vpop.f32.mrb[0].mxu0
      %v1239 = vpop.f32.mrb[0].mxu0
      %v1240 = vadd.f32 %v968, %v1239
      %v1241 = vpop.f32.mrb[0].mxu0
      %1242 = vmatprep.mubr.bf16.mxu0 0
      %1243 = vmatmul.mubr.bf16.gmra.mrb[0].mxu0 %v1046
      %v1244 = vpop.f32.mrb[0].mxu0
      %v1245 = vadd.f32 %v968, %v1244
      %v1246 = vpop.f32.mrb[0].mxu0
      %v1247 = vpop.f32.mrb[0].mxu0
      %v1248 = vadd.f32 %v968, %v1247
      %v1249 = vpop.f32.mrb[0].mxu0
      %1250 = vmatprep.mubr.bf16.mxu0 0
      %1251 = vmatmul.mubr.bf16.gmra.mrb[0].mxu0 %v1047
      %v1252 = vpop.f32.mrb[0].mxu0
      %v1253 = vadd.f32 %v968, %v1252
      %v1254 = vpop.f32.mrb[0].mxu0
      %v1255 = vpop.f32.mrb[0].mxu0
      %v1256 = vadd.f32 %v968, %v1255
      %v1257 = vpop.f32.mrb[0].mxu0
      %1258 = vmatprep.mubr.bf16.mxu0 0
      %1259 = vmatmul.mubr.bf16.gmra.mrb[0].mxu0 %v1048
      %v1260 = vpop.f32.mrb[0].mxu0
      %v1261 = vadd.f32 %v968, %v1260
      %v1262 = vpop.f32.mrb[0].mxu0
      %v1263 = vpop.f32.mrb[0].mxu0
      %v1264 = vadd.f32 %v968, %v1263
      %v1265 = vpop.f32.mrb[0].mxu0
      %1266 = vmatprep.mubr.bf16.mxu0 0
      %1267 = vmatmul.mubr.bf16.gmra.mrb[0].mxu0 %v1049
      %v1268 = vpop.f32.mrb[0].mxu0
      %v1269 = vadd.f32 %v968, %v1268
      %v1270 = vpop.f32.mrb[0].mxu0
      %v1271 = vpop.f32.mrb[0].mxu0
      %v1272 = vadd.f32 %v968, %v1271
      %v1273 = vpop.f32.mrb[0].mxu0
      %1274 = vdwg.mxu0
      %v1275 = vpack.c.bf16 %v1152, %v1149
      %v1276 = vpack.c.bf16 %v1160, %v1157
      %v1277 = vpack.c.bf16 %v1168, %v1165
      %v1278 = vpack.c.bf16 %v1176, %v1173
      %v1279 = vpack.c.bf16 %v1184, %v1181
      %v1280 = vpack.c.bf16 %v1192, %v1189
      %v1281 = vpack.c.bf16 %v1200, %v1197
      %v1282 = vpack.c.bf16 %v1208, %v1205
      %v1283 = vpack.c.bf16 %v1216, %v1213
      %v1284 = vpack.c.bf16 %v1224, %v1221
      %v1285 = vpack.c.bf16 %v1232, %v1229
      %v1286 = vpack.c.bf16 %v1240, %v1237
      %v1287 = vpack.c.bf16 %v1248, %v1245
      %v1288 = vpack.c.bf16 %v1256, %v1253
      %v1289 = vpack.c.bf16 %v1264, %v1261
      %v1290 = vpack.c.bf16 %v1272, %v1269
      %v1307 = vunpack.c.l.b16 %v1275
      %v1308 = vunpack.c.h.b16 %v1275
      %v1309 = vunpack.c.l.b16 %v1276
      %v1310 = vunpack.c.h.b16 %v1276
      %v1311 = vunpack.c.l.b16 %v1277
      %v1312 = vunpack.c.h.b16 %v1277
      %v1313 = vunpack.c.l.b16 %v1278
      %v1314 = vunpack.c.h.b16 %v1278
      %v1315 = vunpack.c.l.b16 %v1279
      %v1316 = vunpack.c.h.b16 %v1279
      %v1317 = vunpack.c.l.b16 %v1280
      %v1318 = vunpack.c.h.b16 %v1280
      %v1319 = vunpack.c.l.b16 %v1281
      %v1320 = vunpack.c.h.b16 %v1281
      %v1321 = vunpack.c.l.b16 %v1282
      %v1322 = vunpack.c.h.b16 %v1282
      %v1323 = vunpack.c.l.b16 %v1283
      %v1324 = vunpack.c.h.b16 %v1283
      %v1325 = vunpack.c.l.b16 %v1284
      %v1326 = vunpack.c.h.b16 %v1284
      %v1327 = vunpack.c.l.b16 %v1285
      %v1328 = vunpack.c.h.b16 %v1285
      %v1329 = vunpack.c.l.b16 %v1286
      %v1330 = vunpack.c.h.b16 %v1286
      %v1331 = vunpack.c.l.b16 %v1287
      %v1332 = vunpack.c.h.b16 %v1287
      %v1333 = vunpack.c.l.b16 %v1288
      %v1334 = vunpack.c.h.b16 %v1288
      %v1335 = vunpack.c.l.b16 %v1289
      %v1336 = vunpack.c.h.b16 %v1289
      %v1337 = vunpack.c.l.b16 %v1290
      %v1338 = vunpack.c.h.b16 %v1290
      %v1339 = vpack.c.b16 %v1307, %v1307
      %v1340 = vpack.c.b16 %v1308, %v1308
      %v1341 = vpack.c.b16 %v1309, %v1309
      %v1342 = vpack.c.b16 %v1310, %v1310
      %v1343 = vpack.c.b16 %v1311, %v1311
      %v1344 = vpack.c.b16 %v1312, %v1312
      %v1345 = vpack.c.b16 %v1313, %v1313
      %v1346 = vpack.c.b16 %v1314, %v1314
      %v1347 = vpack.c.b16 %v1315, %v1315
      %v1348 = vpack.c.b16 %v1316, %v1316
      %v1349 = vpack.c.b16 %v1317, %v1317
      %v1350 = vpack.c.b16 %v1318, %v1318
      %v1351 = vpack.c.b16 %v1319, %v1319
      %v1352 = vpack.c.b16 %v1320, %v1320
      %v1353 = vpack.c.b16 %v1321, %v1321
      %v1354 = vpack.c.b16 %v1322, %v1322
      %v1355 = vpack.c.b16 %v1323, %v1323
      %v1356 = vpack.c.b16 %v1324, %v1324
      %v1357 = vpack.c.b16 %v1325, %v1325
      %v1358 = vpack.c.b16 %v1326, %v1326
      %v1359 = vpack.c.b16 %v1327, %v1327
      %v1360 = vpack.c.b16 %v1328, %v1328
      %v1361 = vpack.c.b16 %v1329, %v1329
      %v1362 = vpack.c.b16 %v1330, %v1330
      %v1363 = vpack.c.b16 %v1331, %v1331
      %v1364 = vpack.c.b16 %v1332, %v1332
      %v1365 = vpack.c.b16 %v1333, %v1333
      %v1366 = vpack.c.b16 %v1334, %v1334
      %v1367 = vpack.c.b16 %v1335, %v1335
      %v1368 = vpack.c.b16 %v1336, %v1336
      %v1369 = vpack.c.b16 %v1337, %v1337
      %v1370 = vpack.c.b16 %v1338, %v1338
      %1403 = vst [vmem:[%s376] sm:$0xf] %v1339
      %1404 = vst [vmem:[%s376 + $0x4] sm:$0xf] %v1340
      %1405 = vst [vmem:[%s376 + $0x8] sm:$0xf] %v1341
      %1406 = vst [vmem:[%s376 + $0xc] sm:$0xf] %v1342
      %1407 = vst [vmem:[%s376 + $0x10] sm:$0xf] %v1343
      %1408 = vst [vmem:[%s376 + $0x14] sm:$0xf] %v1344
      %1409 = vst [vmem:[%s376 + $0x18] sm:$0xf] %v1345
      %1410 = vst [vmem:[%s376 + $0x1c] sm:$0xf] %v1346
      %1411 = vst [vmem:[%s376 + $0x20] sm:$0xf] %v1347
      %1412 = vst [vmem:[%s376 + $0x24] sm:$0xf] %v1348
      %1413 = vst [vmem:[%s376 + $0x28] sm:$0xf] %v1349
      %1414 = vst [vmem:[%s376 + $0x2c] sm:$0xf] %v1350
      %1415 = vst [vmem:[%s376 + $0x30] sm:$0xf] %v1351
      %1416 = vst [vmem:[%s376 + $0x34] sm:$0xf] %v1352
      %1417 = vst [vmem:[%s376 + $0x38] sm:$0xf] %v1353
      %1418 = vst [vmem:[%s376 + $0x3c] sm:$0xf] %v1354
      %1419 = vst [vmem:[%s376 + $0x40] sm:$0xf] %v1355
      %1420 = vst [vmem:[%s376 + $0x44] sm:$0xf] %v1356
      %1421 = vst [vmem:[%s376 + $0x48] sm:$0xf] %v1357
      %1422 = vst [vmem:[%s376 + $0x4c] sm:$0xf] %v1358
      %1423 = vst [vmem:[%s376 + $0x50] sm:$0xf] %v1359
      %1424 = vst [vmem:[%s376 + $0x54] sm:$0xf] %v1360
      %1425 = vst [vmem:[%s376 + $0x58] sm:$0xf] %v1361
      %1426 = vst [vmem:[%s376 + $0x5c] sm:$0xf] %v1362
      %1427 = vst [vmem:[%s376 + $0x60] sm:$0xf] %v1363
      %1428 = vst [vmem:[%s376 + $0x64] sm:$0xf] %v1364
      %1429 = vst [vmem:[%s376 + $0x68] sm:$0xf] %v1365
      %1430 = vst [vmem:[%s376 + $0x6c] sm:$0xf] %v1366
      %1431 = vst [vmem:[%s376 + $0x70] sm:$0xf] %v1367
      %1432 = vst [vmem:[%s376 + $0x74] sm:$0xf] %v1368
      %1433 = vst [vmem:[%s376 + $0x78] sm:$0xf] %v1369
      %1434 = vst [vmem:[%s376 + $0x7c] sm:$0xf] %v1370
      %s1435 = smul.u32 32, %s24
      %p1436 = scmp.lt.s32.totalorder %s23, 1
      %s1437 = scalar_select %p1436, %s23, 1
      %p1438 = scmp.lt.s32.totalorder %s1435, 63
      %s1439 = scalar_select %p1438, %s1435, 63
      %s1440 = smul.addr %s1437, 64
      %s1441 = sadd.s32 %s1439, %s1440
      %s1442 = smul.addr %s1441, 4
      %s1443 = scalar_lea.vmem %s6, %s1442
      %s1444 = smul.u32 32, %s24
      %p1445 = scmp.lt.s32.totalorder %s23, 1
      %s1446 = scalar_select %p1445, %s23, 1
      %p1447 = scmp.lt.s32.totalorder %s1444, 63
      %s1448 = scalar_select %p1447, %s1444, 63
      %s1449 = smul.addr %s1446, 64
      %s1450 = sadd.s32 %s1448, %s1449
      %s1451 = smul.addr %s1450, 4
      %s1452 = scalar_lea.vmem %s7, %s1451
      // Predicated region
      $region45: #{make_encoder_forward.6} parent=43 // pred_check
        %p1453 = pneg %p191
      $region46: #{make_encoder_forward.6} parent=43 // pred_check_branch
        %1455 = sbr.rel (%p1453) target = $region48
      $region47: #{make_encoder_forward.6} parent=43 // pred_region
        %s1456 = smul.u32 32, %s24
      $region48: #{make_encoder_forward.6} parent=43 // pred_fallthru
        _
      // Predicated region
      $region49: #{make_encoder_forward.6} parent=43 // pred_check
        %p1457 = pneg %p219
      $region50: #{make_encoder_forward.6} parent=43 // pred_check_branch
        %1459 = sbr.rel (%p1457) target = $region52
      $region51: #{make_encoder_forward.6} parent=43 // pred_region
        %s1460 = smul.u32 32, %s24
      $region52: #{make_encoder_forward.6} parent=43 // pred_fallthru
        _
    $region44: #{make_encoder_forward.6} parent=5 // pred_fallthru
      _
    %p1461 = scmp.le.s32.totalorder 2, %s14
    // Predicated region
    $region53: #{make_encoder_forward.6} parent=5 // pred_check
      %p1462 = pneg %p1461
    $region54: #{make_encoder_forward.6} parent=5 // pred_check_branch
      %1464 = sbr.rel (%p1462) target = $region56
    $region55: #{make_encoder_forward.6} parent=5 // pred_region
      %s1465 = ssub.s32 %s14, 2
      // Predicated region
      $region57: #{make_encoder_forward.6} parent=55 // pred_check
        %p1466 = pneg %p197
      $region58: #{make_encoder_forward.6} parent=55 // pred_check_branch
        %1468 = sbr.rel (%p1466) target = $region60
      $region59: #{make_encoder_forward.6} parent=55 // pred_region
        %s1469 = smul.u32 32, %s26
        %p1470 = scmp.lt.s32.totalorder %s25, 1
        %s1471 = scalar_select %p1470, %s25, 1
        %p1472 = scmp.lt.s32.totalorder %s1469, 63
        %s1473 = scalar_select %p1472, %s1469, 63
        %s1474 = smul.addr %s1471, 64
        %s1475 = sadd.s32 %s1473, %s1474
        %s1476 = smul.addr %s1475, 4
        %s1477 = scalar_lea.vmem %s6, %s1476
      $region60: #{make_encoder_forward.6} parent=55 // pred_fallthru
        _
      // Predicated region
      $region61: #{make_encoder_forward.6} parent=55 // pred_check
        %p1478 = pneg %p225
      $region62: #{make_encoder_forward.6} parent=55 // pred_check_branch
        %1480 = sbr.rel (%p1478) target = $region64
      $region63: #{make_encoder_forward.6} parent=55 // pred_region
        %s1481 = smul.u32 32, %s26
        %p1482 = scmp.lt.s32.totalorder %s25, 1
        %s1483 = scalar_select %p1482, %s25, 1
        %p1484 = scmp.lt.s32.totalorder %s1481, 63
        %s1485 = scalar_select %p1484, %s1481, 63
        %s1486 = smul.addr %s1483, 64
        %s1487 = sadd.s32 %s1485, %s1486
        %s1488 = smul.addr %s1487, 4
        %s1489 = scalar_lea.vmem %s7, %s1488
      $region64: #{make_encoder_forward.6} parent=55 // pred_fallthru
        _
    $region56: #{make_encoder_forward.6} parent=5 // pred_fallthru
      _
  $region6: #{make_encoder_forward.6} parent=0 // loop_footer
    %s18 = sadd.s32 1, %s14
  $region7: #{make_encoder_forward.6} parent=0 // loop_footer_branch
    %13 = sbr.rel target = $region3
  $region8: #{make_encoder_forward.6} parent=0 // loop_exit
    _

// kernel: make_encoder_forward.5
$region0: #{make_encoder_forward.5}
  #allocation0 [shape = 'u32[]', space=smem, size = 0x4, offset = 0x4, fixed_abs, tag = 'smem constant byte address 0x4 - core index']
  #allocation1 [shape = 'u32[144,128]{1,0:T(1,128)}', space=vmem, size = 0x12000, scoped, tag = 'internal scratch']
  %s0 = inlined_call_operand.vmem [shape: f32[2,384], index: 0, kind: input, shape index: {}]
  %s1 = inlined_call_operand.vmem [shape: f32[2,2,384], index: 1, kind: input, shape index: {}]
  %s2 = inlined_call_operand.vmem [shape: f32[2,4,1], index: 2, kind: input, shape index: {}]
  %s3 = inlined_call_operand.vmem [shape: f32[2,4,384], index: 3, kind: output, shape index: {}]
  %s4 = sld [smem:[#allocation0]]
  $region45: #{make_encoder_forward.5} parent=0
    _
  %s6 = ssub.s32 1, %s4
  %s7 = scalar_select 0, %s6, %s4
  loop: start=0, step=1, limit=4
  $region2: #{make_encoder_forward.5} parent=0 // loop_pre_header
    _
  $region3: #{make_encoder_forward.5} parent=0 // loop_header
    %s9 = sphi 0, %s13
    %p10 = scmp.ge.s32.totalorder %s9, 4
    %s17 = sphi 0, %s17
    %s19 = sphi 0, %s17
    %s20 = sphi 0, %s19
    %s34 = sphi 0, %s20
    %s40 = sphi 0, %s42
    %s43 = sphi 0, %s40
    %s44 = sphi 0, %s43
    %s60 = sphi 0, %s44
    %s66 = sphi 0, %s68
    %s69 = sphi 0, %s66
    %s70 = sphi 0, %s69
    %s86 = sphi 0, %s70
    %s92 = sphi 0, %s94
    %s95 = sphi 0, %s92
    %s96 = sphi 0, %s95
    %s112 = sphi 0, %s96
  $region4: #{make_encoder_forward.5} parent=0 // loop_header_branch
    %12 = sbr.rel (%p10) target = $region8
  $region5: #{make_encoder_forward.5} parent=0 // loop_body
    %s14 = ssub.s32 %s9, 1
    %s15 = ssub.s32 %s9, 2
    %s16 = sadd.s32 %s9, 1
    %s18 = sadd.s32 %s17, 1
    %p21 = scmp.eq.s32.totalorder %s9, 1
    %p22 = scmp.ne.s32.totalorder %s17, %s19
    %p23 = scmp.eq.s32.totalorder %s9, 0
    %p24 = por %p22, %p23
    %p25 = scmp.ne.s32.totalorder %s17, %s19
    %p26 = scmp.eq.s32.totalorder %s14, 1
    %p27 = por %p25, %p26
    %p28 = scmp.ne.s32.totalorder %s19, %s20
    %p29 = scmp.eq.s32.totalorder %s14, 0
    %p30 = por %p28, %p29
    %p31 = scmp.ne.s32.totalorder %s19, %s20
    %p32 = scmp.eq.s32.totalorder %s15, 1
    %p33 = por %p31, %p32
    %p35 = scmp.ne.s32.totalorder %s20, %s34
    %p36 = scmp.eq.s32.totalorder %s15, 0
    %p37 = por %p35, %p36
    %s38 = ssub.s32 %s9, %s16
    %p39 = scmp.eq.s32.totalorder %s38, 0
    %s41 = sadd.s32 %s40, 1
    %s42 = scalar_select %p39, %s40, %s41
    %p45 = pneg %p39
    %p46 = scmp.eq.s32.totalorder %s9, 1
    %p47 = por %p45, %p46
    %p48 = scmp.ne.s32.totalorder %s40, %s43
    %p49 = scmp.eq.s32.totalorder %s9, 0
    %p50 = por %p48, %p49
    %p51 = scmp.ne.s32.totalorder %s40, %s43
    %p52 = scmp.eq.s32.totalorder %s14, 1
    %p53 = por %p51, %p52
    %p54 = scmp.ne.s32.totalorder %s43, %s44
    %p55 = scmp.eq.s32.totalorder %s14, 0
    %p56 = por %p54, %p55
    %p57 = scmp.ne.s32.totalorder %s43, %s44
    %p58 = scmp.eq.s32.totalorder %s15, 1
    %p59 = por %p57, %p58
    %p61 = scmp.ne.s32.totalorder %s44, %s60
    %p62 = scmp.eq.s32.totalorder %s15, 0
    %p63 = por %p61, %p62
    %s64 = ssub.s32 %s9, %s16
    %p65 = scmp.eq.s32.totalorder %s64, 0
    %s67 = sadd.s32 %s66, 1
    %s68 = scalar_select %p65, %s66, %s67
    %p71 = pneg %p65
    %p72 = scmp.eq.s32.totalorder %s9, 1
    %p73 = por %p71, %p72
    %p74 = scmp.ne.s32.totalorder %s66, %s69
    %p75 = scmp.eq.s32.totalorder %s9, 0
    %p76 = por %p74, %p75
    %p77 = scmp.ne.s32.totalorder %s66, %s69
    %p78 = scmp.eq.s32.totalorder %s14, 1
    %p79 = por %p77, %p78
    %p80 = scmp.ne.s32.totalorder %s69, %s70
    %p81 = scmp.eq.s32.totalorder %s14, 0
    %p82 = por %p80, %p81
    %p83 = scmp.ne.s32.totalorder %s69, %s70
    %p84 = scmp.eq.s32.totalorder %s15, 1
    %p85 = por %p83, %p84
    %p87 = scmp.ne.s32.totalorder %s70, %s86
    %p88 = scmp.eq.s32.totalorder %s15, 0
    %p89 = por %p87, %p88
    %s90 = ssub.s32 %s9, %s16
    %p91 = scmp.eq.s32.totalorder %s90, 0
    %s93 = sadd.s32 %s92, 1
    %s94 = scalar_select %p91, %s92, %s93
    %p97 = pneg %p91
    %p98 = scmp.eq.s32.totalorder %s9, 1
    %p99 = por %p97, %p98
    %p100 = scmp.ne.s32.totalorder %s92, %s95
    %p101 = scmp.eq.s32.totalorder %s9, 0
    %p102 = por %p100, %p101
    %p103 = scmp.ne.s32.totalorder %s92, %s95
    %p104 = scmp.eq.s32.totalorder %s14, 1
    %p105 = por %p103, %p104
    %p106 = scmp.ne.s32.totalorder %s95, %s96
    %p107 = scmp.eq.s32.totalorder %s14, 0
    %p108 = por %p106, %p107
    %p109 = scmp.ne.s32.totalorder %s95, %s96
    %p110 = scmp.eq.s32.totalorder %s15, 1
    %p111 = por %p109, %p110
    %p113 = scmp.ne.s32.totalorder %s96, %s112
    %p114 = scmp.eq.s32.totalorder %s15, 0
    %p115 = por %p113, %p114
    %p116 = scmp.le.s32.totalorder 1, %s9
    %p117 = scmp.lt.s32.totalorder %s9, 3
    %p118 = pnand %p116, %p117
    %p119 = pneg %p118
    // Predicated region
    $region9: #{make_encoder_forward.5} parent=5 // pred_check
      _
    $region10: #{make_encoder_forward.5} parent=5 // pred_check_branch
      %121 = sbr.rel (%p118) target = $region12
    $region11: #{make_encoder_forward.5} parent=5 // pred_region
      %s122 = ssub.s32 %s9, 1
      // Predicated region
      $region13: #{make_encoder_forward.5} parent=11 // pred_check
        %p123 = pneg %p30
      $region14: #{make_encoder_forward.5} parent=11 // pred_check_branch
        %125 = sbr.rel (%p123) target = $region16
      $region15: #{make_encoder_forward.5} parent=11 // pred_region
        _
      $region16: #{make_encoder_forward.5} parent=11 // pred_fallthru
        _
    $region12: #{make_encoder_forward.5} parent=5 // pred_fallthru
      _
    %p126 = scmp.lt.s32.totalorder %s9, 2
    // Predicated region
    $region17: #{make_encoder_forward.5} parent=5 // pred_check
      %p127 = pneg %p126
    $region18: #{make_encoder_forward.5} parent=5 // pred_check_branch
      %129 = sbr.rel (%p127) target = $region20
    $region19: #{make_encoder_forward.5} parent=5 // pred_region
      // Predicated region
      $region21: #{make_encoder_forward.5} parent=19 // pred_check
        %p130 = pneg %p50
      $region22: #{make_encoder_forward.5} parent=19 // pred_check_branch
        %132 = sbr.rel (%p130) target = $region24
      $region23: #{make_encoder_forward.5} parent=19 // pred_region
        %p133 = scmp.lt.s32.totalorder %s9, 1
        %s134 = scalar_select %p133, %s9, 1
        %s135 = smul.addr %s134, 3
        %s136 = smul.addr %s135, 2
        %s137 = scalar_lea.vmem %s1, %s136
      $region24: #{make_encoder_forward.5} parent=19 // pred_fallthru
        _
      // Predicated region
      $region25: #{make_encoder_forward.5} parent=19 // pred_check
        %p138 = pneg %p76
      $region26: #{make_encoder_forward.5} parent=19 // pred_check_branch
        %140 = sbr.rel (%p138) target = $region28
      $region27: #{make_encoder_forward.5} parent=19 // pred_region
        %p141 = scmp.lt.s32.totalorder %s9, 1
        %s142 = scalar_select %p141, %s9, 1
        %s143 = smul.addr %s142, 4
        %s144 = scalar_lea.vmem %s2, %s143
      $region28: #{make_encoder_forward.5} parent=19 // pred_fallthru
        _
    $region20: #{make_encoder_forward.5} parent=5 // pred_fallthru
      _
    %p145 = scmp.le.s32.totalorder 1, %s9
    %p146 = scmp.lt.s32.totalorder %s9, 3
    %p147 = pnand %p145, %p146
    %p148 = pneg %p147
    // Predicated region
    $region29: #{make_encoder_forward.5} parent=5 // pred_check
      _
    $region30: #{make_encoder_forward.5} parent=5 // pred_check_branch
      %150 = sbr.rel (%p147) target = $region32
    $region31: #{make_encoder_forward.5} parent=5 // pred_region
      %s151 = ssub.s32 %s9, 1
      %p152 = pneg %p30
      %p153 = pneg %p27
      %p154 = scmp.lt.s32.totalorder %s14, 1
      %s155 = scalar_select %p154, %s14, 1
      %s156 = smul.addr %s155, 3
      %s157 = smul.addr %s156, 2
      %s158 = scalar_lea.vmem %s1, %s157
      %p159 = pneg %p56
      %p160 = pneg %p53
      %p161 = scmp.lt.s32.totalorder %s14, 1
      %s162 = scalar_select %p161, %s14, 1
      %s163 = smul.addr %s162, 4
      %s164 = scalar_lea.vmem %s2, %s163
      %p165 = pneg %p82
      %p166 = pneg %p79
      %p167 = pneg %p108
      %p168 = pneg %p105
      %p169 = scmp.lt.s32.totalorder %s14, 1
      %s170 = scalar_select %p169, %s14, 1
      %s171 = smul.addr %s170, 3
      %s172 = smul.addr %s171, 4
      %s173 = scalar_lea.vmem %s3, %s172
      %p174 = scmp.lt.s32.totalorder %s14, 1
      %s175 = scalar_select %p174, %s14, 1
      %s176 = smul.addr %s175, 3
      %s177 = smul.addr %s176, 2
      %s178 = scalar_lea.vmem %s1, %s177
      %p179 = scmp.lt.s32.totalorder %s14, 1
      %s180 = scalar_select %p179, %s14, 1
      %s181 = smul.addr %s180, 4
      %s182 = scalar_lea.vmem %s2, %s181
      %p183 = scmp.lt.s32.totalorder %s14, 1
      %s184 = scalar_select %p183, %s14, 1
      %s185 = smul.addr %s184, 3
      %s186 = smul.addr %s185, 4
      %s187 = scalar_lea.vmem %s3, %s186
      %v188 = vld [vmem:[%s0] sm:$0x3f]
      %v189 = vld [vmem:[%s178] sm:$0x3f]
      %v190 = vrcp.pop %v189
      %v191 = vmul.f32 %v188, %v190
      %v193 = vcombine.high %v191, %v191
      %v195 = vunpack.c.l.s4 1983009808
      %v196 = vunpack.c.0.s8 %v195
      %v197 = vlaneseq
      %v198 = vshrl.u32 %v197, 7
      %v199 = vsub.s32 %v196, %v198
      %v200 = vrot.slane %v191, %v199
      %v202 = vunpack.c.l.s4 1983009808
      %v203 = vunpack.c.0.s8 %v202
      %v204 = vlaneseq
      %v205 = vshrl.u32 %v204, 7
      %v206 = vsub.s32 %v203, %v205
      %v207 = vrot.slane %v193, %v206
      %v208 = vcombine.high %v200, %v200
      %v212 = vcombine.low %v191, %v191
      %v214 = vunpack.c.l.s4 1983009808
      %v215 = vunpack.c.0.s8 %v214
      %v216 = vlaneseq
      %v217 = vshrl.u32 %v216, 7
      %v218 = vsub.s32 %v215, %v217
      %v219 = vrot.slane %v212, %v218
      %v220 = vcombine.high %v219, %v219
      %vm223 = vcmask 1041408
      %v224 = vsel %vm223, %v200, %v219
      %v225 = vsel %vm223, %v208, %v220
      %v226 = vsel %vm223, %v207, %v200
      %v227 = vld [vmem:[%s182] sm:$0xf]
      %229 = vset.pattern.permute.xlu0 0
      %230 = vperm.xlu0 %229, %v227
      %v231 = vpop.permute.xlu0 %230
      %v233 = vmul.f32 %v224, %v231
      %v234 = vmul.f32 %v225, %v231
      %v235 = vmul.f32 %v226, %v231
      %v238 = vcombine.low %v233, %v234
      %240 = vst [vmem:[%s187] sm:$0xff] %v238
      %241 = vst [vmem:[%s187 + $0x8] sm:$0xf] %v235
      %p242 = scmp.lt.s32.totalorder %s14, 1
      %s243 = scalar_select %p242, %s14, 1
      %s244 = smul.addr %s243, 3
      %s245 = smul.addr %s244, 4
      %s246 = scalar_lea.vmem %s3, %s245
      // Predicated region
      $region33: #{make_encoder_forward.5} parent=31 // pred_check
        %p247 = pneg %p105
      $region34: #{make_encoder_forward.5} parent=31 // pred_check_branch
        %249 = sbr.rel (%p247) target = $region36
      $region35: #{make_encoder_forward.5} parent=31 // pred_region
        _
      $region36: #{make_encoder_forward.5} parent=31 // pred_fallthru
        _
    $region32: #{make_encoder_forward.5} parent=5 // pred_fallthru
      _
    %p250 = scmp.le.s32.totalorder 2, %s9
    // Predicated region
    $region37: #{make_encoder_forward.5} parent=5 // pred_check
      %p251 = pneg %p250
    $region38: #{make_encoder_forward.5} parent=5 // pred_check_branch
      %253 = sbr.rel (%p251) target = $region40
    $region39: #{make_encoder_forward.5} parent=5 // pred_region
      %s254 = ssub.s32 %s9, 2
      // Predicated region
      $region41: #{make_encoder_forward.5} parent=39 // pred_check
        %p255 = pneg %p111
      $region42: #{make_encoder_forward.5} parent=39 // pred_check_branch
        %257 = sbr.rel (%p255) target = $region44
      $region43: #{make_encoder_forward.5} parent=39 // pred_region
        %p258 = scmp.lt.s32.totalorder %s15, 1
        %s259 = scalar_select %p258, %s15, 1
        %s260 = smul.addr %s259, 3
        %s261 = smul.addr %s260, 4
        %s262 = scalar_lea.vmem %s3, %s261
      $region44: #{make_encoder_forward.5} parent=39 // pred_fallthru
        _
    $region40: #{make_encoder_forward.5} parent=5 // pred_fallthru
      _
  $region6: #{make_encoder_forward.5} parent=0 // loop_footer
    %s13 = sadd.s32 1, %s9
  $region7: #{make_encoder_forward.5} parent=0 // loop_footer_branch
    %8 = sbr.rel target = $region3
  $region8: #{make_encoder_forward.5} parent=0 // loop_exit
    _

// kernel: make_encoder_forward.7
$region0: #{make_encoder_forward.7}
  #allocation0 [shape = 'u32[]', space=smem, size = 0x4, offset = 0x4, fixed_abs, tag = 'smem constant byte address 0x4 - core index']
  #allocation1 [shape = 'u32[144,128]{1,0:T(1,128)}', space=vmem, size = 0x12000, scoped, tag = 'internal scratch']
  #allocation2 [shape = 'bf16[256,128]{1,0:T(16,128)(2,1)}', space=vmem, size = 0x10000, scoped, tag = 'scratch operand']
  #allocation3 [shape = 'f32[256,1]{1,0:T(8,128)}', space=vmem, size = 0x20000, scoped, tag = 'scratch operand']
  #allocation4 [shape = 'f32[256,1]{1,0:T(8,128)}', space=vmem, size = 0x20000, scoped, tag = 'scratch operand']
  #allocation5 [shape = 'f32[256,128]{1,0:T(8,128)}', space=vmem, size = 0x20000, scoped, tag = 'scratch operand']
  %s0 = inlined_call_operand.vmem [shape: bf16[2,512,128], index: 0, kind: input, shape index: {}, may-alias: {0,11}]
  %s1 = inlined_call_operand.vmem [shape: bf16[2,512,128], index: 1, kind: input, shape index: {}]
  %s2 = inlined_call_operand.vmem [shape: bf16[2,512,128], index: 2, kind: input, shape index: {}]
  %s3 = inlined_call_operand.vmem [shape: bf16[2,512,128], index: 3, kind: input, shape index: {}]
  %s4 = inlined_call_operand.vmem [shape: bf16[128,128], index: 4, kind: input, shape index: {}]
  %s5 = inlined_call_operand.vmem [shape: f32[1,128], index: 5, kind: input, shape index: {}]
  %s6 = inlined_call_operand.vmem [shape: bf16[128,128], index: 6, kind: input, shape index: {}]
  %s7 = inlined_call_operand.vmem [shape: bf16[128,256], index: 7, kind: input, shape index: {}]
  %s8 = inlined_call_operand.vmem [shape: bf16[256,128], index: 8, kind: input, shape index: {}]
  %s9 = inlined_call_operand.vmem [shape: f32[8,128], index: 9, kind: input, shape index: {}]
  %s10 = inlined_call_operand.vmem [shape: f32[1,256], index: 10, kind: input, shape index: {}]
  %s11 = inlined_call_operand.vmem [shape: bf16[2,512,128], index: 11, kind: output, shape index: {}, may-alias: {0,11}]
  %s12 = sld [smem:[#allocation0]]
  $region85: #{make_encoder_forward.7} parent=0
    _
  %s14 = ssub.s32 1, %s12
  %s15 = scalar_select 0, %s14, %s12
  loop: start=0, step=1, limit=10
  $region2: #{make_encoder_forward.7} parent=0 // loop_pre_header
    _
  $region3: #{make_encoder_forward.7} parent=0 // loop_header
    %s17 = sphi 0, %s21
    %p18 = scmp.ge.s32.totalorder %s17, 10
    %s24 = sphi 0, %s43
    %s25 = sphi 0, %s39
    %s26 = sphi 0, %s35
    %s27 = sphi 0, %s24
    %s28 = sphi 0, %s25
    %s29 = sphi 0, %s26
    %s30 = sphi 0, %s27
    %s31 = sphi 0, %s28
    %s32 = sphi 0, %s29
    %s48 = sphi 0, %s50
    %s51 = sphi 0, %s48
    %s52 = sphi 0, %s51
    %s68 = sphi 0, %s52
    %s76 = sphi 0, %s78
    %s79 = sphi 0, %s76
    %s80 = sphi 0, %s79
    %s96 = sphi 0, %s80
    %s104 = sphi 0, %s106
    %s107 = sphi 0, %s104
    %s108 = sphi 0, %s107
    %s124 = sphi 0, %s108
    %s132 = sphi 0, %s134
    %s135 = sphi 0, %s132
    %s136 = sphi 0, %s135
    %s152 = sphi 0, %s136
    %s156 = sphi 0, %s156
    %s158 = sphi 0, %s156
    %s159 = sphi 0, %s158
    %s173 = sphi 0, %s159
    %s177 = sphi 0, %s177
    %s179 = sphi 0, %s177
    %s180 = sphi 0, %s179
    %s194 = sphi 0, %s180
    %s198 = sphi 0, %s198
    %s200 = sphi 0, %s198
    %s201 = sphi 0, %s200
    %s215 = sphi 0, %s201
    %s219 = sphi 0, %s219
    %s221 = sphi 0, %s219
    %s222 = sphi 0, %s221
    %s236 = sphi 0, %s222
    %s240 = sphi 0, %s240
    %s242 = sphi 0, %s240
    %s243 = sphi 0, %s242
    %s257 = sphi 0, %s243
    %s261 = sphi 0, %s261
    %s263 = sphi 0, %s261
    %s264 = sphi 0, %s263
    %s278 = sphi 0, %s264
    %s282 = sphi 0, %s282
    %s284 = sphi 0, %s282
    %s285 = sphi 0, %s284
    %s299 = sphi 0, %s285
    %s307 = sphi 0, %s309
    %s310 = sphi 0, %s307
    %s311 = sphi 0, %s310
    %s327 = sphi 0, %s311
  $region4: #{make_encoder_forward.7} parent=0 // loop_header_branch
    %20 = sbr.rel (%p18) target = $region8
  $region5: #{make_encoder_forward.7} parent=0 // loop_body
    %s22 = ssub.s32 %s17, 1
    %s23 = ssub.s32 %s17, 2
    %s33 = sadd.s32 1, %s26
    %p34 = scmp.ge.s32.totalorder %s33, 2
    %s35 = scalar_select %p34, 0, %s33
    %s36 = sadd.s32 1, %s25
    %s37 = scalar_select %p34, %s36, %s25
    %p38 = scmp.ge.s32.totalorder %s37, 2
    %s39 = scalar_select %p38, 0, %s37
    %s40 = sadd.s32 1, %s24
    %s41 = scalar_select %p38, %s40, %s24
    %p42 = scmp.ge.s32.totalorder %s41, 2
    %s43 = scalar_select %p42, 0, %s41
    %s44 = ssub.s32 %s24, %s43
    %s45 = ssub.s32 %s25, %s39
    %s46 = sor.u32 %s44, %s45
    %p47 = scmp.eq.s32.totalorder %s46, 0
    %s49 = sadd.s32 %s48, 1
    %s50 = scalar_select %p47, %s48, %s49
    %p53 = pneg %p47
    %p54 = scmp.eq.s32.totalorder %s17, 7
    %p55 = por %p53, %p54
    %p56 = scmp.ne.s32.totalorder %s48, %s51
    %p57 = scmp.eq.s32.totalorder %s17, 0
    %p58 = por %p56, %p57
    %p59 = scmp.ne.s32.totalorder %s48, %s51
    %p60 = scmp.eq.s32.totalorder %s22, 7
    %p61 = por %p59, %p60
    %p62 = scmp.ne.s32.totalorder %s51, %s52
    %p63 = scmp.eq.s32.totalorder %s22, 0
    %p64 = por %p62, %p63
    %p65 = scmp.ne.s32.totalorder %s51, %s52
    %p66 = scmp.eq.s32.totalorder %s23, 7
    %p67 = por %p65, %p66
    %p69 = scmp.ne.s32.totalorder %s52, %s68
    %p70 = scmp.eq.s32.totalorder %s23, 0
    %p71 = por %p69, %p70
    %s72 = ssub.s32 %s24, %s43
    %s73 = ssub.s32 %s25, %s39
    %s74 = sor.u32 %s72, %s73
    %p75 = scmp.eq.s32.totalorder %s74, 0
    %s77 = sadd.s32 %s76, 1
    %s78 = scalar_select %p75, %s76, %s77
    %p81 = pneg %p75
    %p82 = scmp.eq.s32.totalorder %s17, 7
    %p83 = por %p81, %p82
    %p84 = scmp.ne.s32.totalorder %s76, %s79
    %p85 = scmp.eq.s32.totalorder %s17, 0
    %p86 = por %p84, %p85
    %p87 = scmp.ne.s32.totalorder %s76, %s79
    %p88 = scmp.eq.s32.totalorder %s22, 7
    %p89 = por %p87, %p88
    %p90 = scmp.ne.s32.totalorder %s79, %s80
    %p91 = scmp.eq.s32.totalorder %s22, 0
    %p92 = por %p90, %p91
    %p93 = scmp.ne.s32.totalorder %s79, %s80
    %p94 = scmp.eq.s32.totalorder %s23, 7
    %p95 = por %p93, %p94
    %p97 = scmp.ne.s32.totalorder %s80, %s96
    %p98 = scmp.eq.s32.totalorder %s23, 0
    %p99 = por %p97, %p98
    %s100 = ssub.s32 %s24, %s43
    %s101 = ssub.s32 %s26, %s35
    %s102 = sor.u32 %s100, %s101
    %p103 = scmp.eq.s32.totalorder %s102, 0
    %s105 = sadd.s32 %s104, 1
    %s106 = scalar_select %p103, %s104, %s105
    %p109 = pneg %p103
    %p110 = scmp.eq.s32.totalorder %s17, 7
    %p111 = por %p109, %p110
    %p112 = scmp.ne.s32.totalorder %s104, %s107
    %p113 = scmp.eq.s32.totalorder %s17, 0
    %p114 = por %p112, %p113
    %p115 = scmp.ne.s32.totalorder %s104, %s107
    %p116 = scmp.eq.s32.totalorder %s22, 7
    %p117 = por %p115, %p116
    %p118 = scmp.ne.s32.totalorder %s107, %s108
    %p119 = scmp.eq.s32.totalorder %s22, 0
    %p120 = por %p118, %p119
    %p121 = scmp.ne.s32.totalorder %s107, %s108
    %p122 = scmp.eq.s32.totalorder %s23, 7
    %p123 = por %p121, %p122
    %p125 = scmp.ne.s32.totalorder %s108, %s124
    %p126 = scmp.eq.s32.totalorder %s23, 0
    %p127 = por %p125, %p126
    %s128 = ssub.s32 %s24, %s43
    %s129 = ssub.s32 %s26, %s35
    %s130 = sor.u32 %s128, %s129
    %p131 = scmp.eq.s32.totalorder %s130, 0
    %s133 = sadd.s32 %s132, 1
    %s134 = scalar_select %p131, %s132, %s133
    %p137 = pneg %p131
    %p138 = scmp.eq.s32.totalorder %s17, 7
    %p139 = por %p137, %p138
    %p140 = scmp.ne.s32.totalorder %s132, %s135
    %p141 = scmp.eq.s32.totalorder %s17, 0
    %p142 = por %p140, %p141
    %p143 = scmp.ne.s32.totalorder %s132, %s135
    %p144 = scmp.eq.s32.totalorder %s22, 7
    %p145 = por %p143, %p144
    %p146 = scmp.ne.s32.totalorder %s135, %s136
    %p147 = scmp.eq.s32.totalorder %s22, 0
    %p148 = por %p146, %p147
    %p149 = scmp.ne.s32.totalorder %s135, %s136
    %p150 = scmp.eq.s32.totalorder %s23, 7
    %p151 = por %p149, %p150
    %p153 = scmp.ne.s32.totalorder %s136, %s152
    %p154 = scmp.eq.s32.totalorder %s23, 0
    %p155 = por %p153, %p154
    %s157 = sadd.s32 %s156, 1
    %p160 = scmp.eq.s32.totalorder %s17, 7
    %p161 = scmp.ne.s32.totalorder %s156, %s158
    %p162 = scmp.eq.s32.totalorder %s17, 0
    %p163 = por %p161, %p162
    %p164 = scmp.ne.s32.totalorder %s156, %s158
    %p165 = scmp.eq.s32.totalorder %s22, 7
    %p166 = por %p164, %p165
    %p167 = scmp.ne.s32.totalorder %s158, %s159
    %p168 = scmp.eq.s32.totalorder %s22, 0
    %p169 = por %p167, %p168
    %p170 = scmp.ne.s32.totalorder %s158, %s159
    %p171 = scmp.eq.s32.totalorder %s23, 7
    %p172 = por %p170, %p171
    %p174 = scmp.ne.s32.totalorder %s159, %s173
    %p175 = scmp.eq.s32.totalorder %s23, 0
    %p176 = por %p174, %p175
    %s178 = sadd.s32 %s177, 1
    %p181 = scmp.eq.s32.totalorder %s17, 7
    %p182 = scmp.ne.s32.totalorder %s177, %s179
    %p183 = scmp.eq.s32.totalorder %s17, 0
    %p184 = por %p182, %p183
    %p185 = scmp.ne.s32.totalorder %s177, %s179
    %p186 = scmp.eq.s32.totalorder %s22, 7
    %p187 = por %p185, %p186
    %p188 = scmp.ne.s32.totalorder %s179, %s180
    %p189 = scmp.eq.s32.totalorder %s22, 0
    %p190 = por %p188, %p189
    %p191 = scmp.ne.s32.totalorder %s179, %s180
    %p192 = scmp.eq.s32.totalorder %s23, 7
    %p193 = por %p191, %p192
    %p195 = scmp.ne.s32.totalorder %s180, %s194
    %p196 = scmp.eq.s32.totalorder %s23, 0
    %p197 = por %p195, %p196
    %s199 = sadd.s32 %s198, 1
    %p202 = scmp.eq.s32.totalorder %s17, 7
    %p203 = scmp.ne.s32.totalorder %s198, %s200
    %p204 = scmp.eq.s32.totalorder %s17, 0
    %p205 = por %p203, %p204
    %p206 = scmp.ne.s32.totalorder %s198, %s200
    %p207 = scmp.eq.s32.totalorder %s22, 7
    %p208 = por %p206, %p207
    %p209 = scmp.ne.s32.totalorder %s200, %s201
    %p210 = scmp.eq.s32.totalorder %s22, 0
    %p211 = por %p209, %p210
    %p212 = scmp.ne.s32.totalorder %s200, %s201
    %p213 = scmp.eq.s32.totalorder %s23, 7
    %p214 = por %p212, %p213
    %p216 = scmp.ne.s32.totalorder %s201, %s215
    %p217 = scmp.eq.s32.totalorder %s23, 0
    %p218 = por %p216, %p217
    %s220 = sadd.s32 %s219, 1
    %p223 = scmp.eq.s32.totalorder %s17, 7
    %p224 = scmp.ne.s32.totalorder %s219, %s221
    %p225 = scmp.eq.s32.totalorder %s17, 0
    %p226 = por %p224, %p225
    %p227 = scmp.ne.s32.totalorder %s219, %s221
    %p228 = scmp.eq.s32.totalorder %s22, 7
    %p229 = por %p227, %p228
    %p230 = scmp.ne.s32.totalorder %s221, %s222
    %p231 = scmp.eq.s32.totalorder %s22, 0
    %p232 = por %p230, %p231
    %p233 = scmp.ne.s32.totalorder %s221, %s222
    %p234 = scmp.eq.s32.totalorder %s23, 7
    %p235 = por %p233, %p234
    %p237 = scmp.ne.s32.totalorder %s222, %s236
    %p238 = scmp.eq.s32.totalorder %s23, 0
    %p239 = por %p237, %p238
    %s241 = sadd.s32 %s240, 1
    %p244 = scmp.eq.s32.totalorder %s17, 7
    %p245 = scmp.ne.s32.totalorder %s240, %s242
    %p246 = scmp.eq.s32.totalorder %s17, 0
    %p247 = por %p245, %p246
    %p248 = scmp.ne.s32.totalorder %s240, %s242
    %p249 = scmp.eq.s32.totalorder %s22, 7
    %p250 = por %p248, %p249
    %p251 = scmp.ne.s32.totalorder %s242, %s243
    %p252 = scmp.eq.s32.totalorder %s22, 0
    %p253 = por %p251, %p252
    %p254 = scmp.ne.s32.totalorder %s242, %s243
    %p255 = scmp.eq.s32.totalorder %s23, 7
    %p256 = por %p254, %p255
    %p258 = scmp.ne.s32.totalorder %s243, %s257
    %p259 = scmp.eq.s32.totalorder %s23, 0
    %p260 = por %p258, %p259
    %s262 = sadd.s32 %s261, 1
    %p265 = scmp.eq.s32.totalorder %s17, 7
    %p266 = scmp.ne.s32.totalorder %s261, %s263
    %p267 = scmp.eq.s32.totalorder %s17, 0
    %p268 = por %p266, %p267
    %p269 = scmp.ne.s32.totalorder %s261, %s263
    %p270 = scmp.eq.s32.totalorder %s22, 7
    %p271 = por %p269, %p270
    %p272 = scmp.ne.s32.totalorder %s263, %s264
    %p273 = scmp.eq.s32.totalorder %s22, 0
    %p274 = por %p272, %p273
    %p275 = scmp.ne.s32.totalorder %s263, %s264
    %p276 = scmp.eq.s32.totalorder %s23, 7
    %p277 = por %p275, %p276
    %p279 = scmp.ne.s32.totalorder %s264, %s278
    %p280 = scmp.eq.s32.totalorder %s23, 0
    %p281 = por %p279, %p280
    %s283 = sadd.s32 %s282, 1
    %p286 = scmp.eq.s32.totalorder %s17, 7
    %p287 = scmp.ne.s32.totalorder %s282, %s284
    %p288 = scmp.eq.s32.totalorder %s17, 0
    %p289 = por %p287, %p288
    %p290 = scmp.ne.s32.totalorder %s282, %s284
    %p291 = scmp.eq.s32.totalorder %s22, 7
    %p292 = por %p290, %p291
    %p293 = scmp.ne.s32.totalorder %s284, %s285
    %p294 = scmp.eq.s32.totalorder %s22, 0
    %p295 = por %p293, %p294
    %p296 = scmp.ne.s32.totalorder %s284, %s285
    %p297 = scmp.eq.s32.totalorder %s23, 7
    %p298 = por %p296, %p297
    %p300 = scmp.ne.s32.totalorder %s285, %s299
    %p301 = scmp.eq.s32.totalorder %s23, 0
    %p302 = por %p300, %p301
    %s303 = ssub.s32 %s24, %s43
    %s304 = ssub.s32 %s25, %s39
    %s305 = sor.u32 %s303, %s304
    %p306 = scmp.eq.s32.totalorder %s305, 0
    %s308 = sadd.s32 %s307, 1
    %s309 = scalar_select %p306, %s307, %s308
    %p312 = pneg %p306
    %p313 = scmp.eq.s32.totalorder %s17, 7
    %p314 = por %p312, %p313
    %p315 = scmp.ne.s32.totalorder %s307, %s310
    %p316 = scmp.eq.s32.totalorder %s17, 0
    %p317 = por %p315, %p316
    %p318 = scmp.ne.s32.totalorder %s307, %s310
    %p319 = scmp.eq.s32.totalorder %s22, 7
    %p320 = por %p318, %p319
    %p321 = scmp.ne.s32.totalorder %s310, %s311
    %p322 = scmp.eq.s32.totalorder %s22, 0
    %p323 = por %p321, %p322
    %p324 = scmp.ne.s32.totalorder %s310, %s311
    %p325 = scmp.eq.s32.totalorder %s23, 7
    %p326 = por %p324, %p325
    %p328 = scmp.ne.s32.totalorder %s311, %s327
    %p329 = scmp.eq.s32.totalorder %s23, 0
    %p330 = por %p328, %p329
    %p331 = scmp.le.s32.totalorder 1, %s17
    %p332 = scmp.lt.s32.totalorder %s17, 9
    %p333 = pnand %p331, %p332
    %p334 = pneg %p333
    // Predicated region
    $region9: #{make_encoder_forward.7} parent=5 // pred_check
      _
    $region10: #{make_encoder_forward.7} parent=5 // pred_check_branch
      %336 = sbr.rel (%p333) target = $region12
    $region11: #{make_encoder_forward.7} parent=5 // pred_region
      %s337 = ssub.s32 %s17, 1
      // Predicated region
      $region13: #{make_encoder_forward.7} parent=11 // pred_check
        %p338 = pneg %p169
      $region14: #{make_encoder_forward.7} parent=11 // pred_check_branch
        %340 = sbr.rel (%p338) target = $region16
      $region15: #{make_encoder_forward.7} parent=11 // pred_region
        _
      $region16: #{make_encoder_forward.7} parent=11 // pred_fallthru
        _
      // Predicated region
      $region17: #{make_encoder_forward.7} parent=11 // pred_check
        %p341 = pneg %p190
      $region18: #{make_encoder_forward.7} parent=11 // pred_check_branch
        %343 = sbr.rel (%p341) target = $region20
      $region19: #{make_encoder_forward.7} parent=11 // pred_region
        _
      $region20: #{make_encoder_forward.7} parent=11 // pred_fallthru
        _
      // Predicated region
      $region21: #{make_encoder_forward.7} parent=11 // pred_check
        %p344 = pneg %p211
      $region22: #{make_encoder_forward.7} parent=11 // pred_check_branch
        %346 = sbr.rel (%p344) target = $region24
      $region23: #{make_encoder_forward.7} parent=11 // pred_region
        _
      $region24: #{make_encoder_forward.7} parent=11 // pred_fallthru
        _
      // Predicated region
      $region25: #{make_encoder_forward.7} parent=11 // pred_check
        %p347 = pneg %p232
      $region26: #{make_encoder_forward.7} parent=11 // pred_check_branch
        %349 = sbr.rel (%p347) target = $region28
      $region27: #{make_encoder_forward.7} parent=11 // pred_region
        _
      $region28: #{make_encoder_forward.7} parent=11 // pred_fallthru
        _
      // Predicated region
      $region29: #{make_encoder_forward.7} parent=11 // pred_check
        %p350 = pneg %p253
      $region30: #{make_encoder_forward.7} parent=11 // pred_check_branch
        %352 = sbr.rel (%p350) target = $region32
      $region31: #{make_encoder_forward.7} parent=11 // pred_region
        _
      $region32: #{make_encoder_forward.7} parent=11 // pred_fallthru
        _
      // Predicated region
      $region33: #{make_encoder_forward.7} parent=11 // pred_check
        %p353 = pneg %p274
      $region34: #{make_encoder_forward.7} parent=11 // pred_check_branch
        %355 = sbr.rel (%p353) target = $region36
      $region35: #{make_encoder_forward.7} parent=11 // pred_region
        _
      $region36: #{make_encoder_forward.7} parent=11 // pred_fallthru
        _
      // Predicated region
      $region37: #{make_encoder_forward.7} parent=11 // pred_check
        %p356 = pneg %p295
      $region38: #{make_encoder_forward.7} parent=11 // pred_check_branch
        %358 = sbr.rel (%p356) target = $region40
      $region39: #{make_encoder_forward.7} parent=11 // pred_region
        _
      $region40: #{make_encoder_forward.7} parent=11 // pred_fallthru
        _
    $region12: #{make_encoder_forward.7} parent=5 // pred_fallthru
      _
    %p359 = scmp.lt.s32.totalorder %s17, 8
    // Predicated region
    $region41: #{make_encoder_forward.7} parent=5 // pred_check
      %p360 = pneg %p359
    $region42: #{make_encoder_forward.7} parent=5 // pred_check_branch
      %362 = sbr.rel (%p360) target = $region44
    $region43: #{make_encoder_forward.7} parent=5 // pred_region
      // Predicated region
      $region45: #{make_encoder_forward.7} parent=43 // pred_check
        %p363 = pneg %p58
      $region46: #{make_encoder_forward.7} parent=43 // pred_check_branch
        %365 = sbr.rel (%p363) target = $region48
      $region47: #{make_encoder_forward.7} parent=43 // pred_region
        %s366 = smul.u32 32, %s25
        %p367 = scmp.lt.s32.totalorder %s24, 1
        %s368 = scalar_select %p367, %s24, 1
        %p369 = scmp.lt.s32.totalorder %s366, 63
        %s370 = scalar_select %p369, %s366, 63
        %s371 = smul.addr %s368, 64
        %s372 = sadd.s32 %s370, %s371
        %s373 = smul.addr %s372, 4
        %s374 = scalar_lea.vmem %s0, %s373
        %s375 = smul.u32 32, %s25
      $region48: #{make_encoder_forward.7} parent=43 // pred_fallthru
        _
      // Predicated region
      $region49: #{make_encoder_forward.7} parent=43 // pred_check
        %p376 = pneg %p86
      $region50: #{make_encoder_forward.7} parent=43 // pred_check_branch
        %378 = sbr.rel (%p376) target = $region52
      $region51: #{make_encoder_forward.7} parent=43 // pred_region
        %s379 = smul.u32 32, %s25
        %p380 = scmp.lt.s32.totalorder %s24, 1
        %s381 = scalar_select %p380, %s24, 1
        %p382 = scmp.lt.s32.totalorder %s379, 63
        %s383 = scalar_select %p382, %s379, 63
        %s384 = smul.addr %s381, 64
        %s385 = sadd.s32 %s383, %s384
        %s386 = smul.addr %s385, 4
        %s387 = scalar_lea.vmem %s1, %s386
        %s388 = smul.u32 32, %s25
      $region52: #{make_encoder_forward.7} parent=43 // pred_fallthru
        _
      // Predicated region
      $region53: #{make_encoder_forward.7} parent=43 // pred_check
        %p389 = pneg %p114
      $region54: #{make_encoder_forward.7} parent=43 // pred_check_branch
        %391 = sbr.rel (%p389) target = $region56
      $region55: #{make_encoder_forward.7} parent=43 // pred_region
        %s392 = smul.u32 32, %s26
        %p393 = scmp.lt.s32.totalorder %s24, 1
        %s394 = scalar_select %p393, %s24, 1
        %p395 = scmp.lt.s32.totalorder %s392, 63
        %s396 = scalar_select %p395, %s392, 63
        %s397 = smul.addr %s394, 64
        %s398 = sadd.s32 %s396, %s397
        %s399 = smul.addr %s398, 4
        %s400 = scalar_lea.vmem %s2, %s399
        %s401 = smul.u32 32, %s26
      $region56: #{make_encoder_forward.7} parent=43 // pred_fallthru
        _
      // Predicated region
      $region57: #{make_encoder_forward.7} parent=43 // pred_check
        %p402 = pneg %p142
      $region58: #{make_encoder_forward.7} parent=43 // pred_check_branch
        %404 = sbr.rel (%p402) target = $region60
      $region59: #{make_encoder_forward.7} parent=43 // pred_region
        %s405 = smul.u32 32, %s26
        %p406 = scmp.lt.s32.totalorder %s24, 1
        %s407 = scalar_select %p406, %s24, 1
        %p408 = scmp.lt.s32.totalorder %s405, 63
        %s409 = scalar_select %p408, %s405, 63
        %s410 = smul.addr %s407, 64
        %s411 = sadd.s32 %s409, %s410
        %s412 = smul.addr %s411, 4
        %s413 = scalar_lea.vmem %s3, %s412
        %s414 = smul.u32 32, %s26
      $region60: #{make_encoder_forward.7} parent=43 // pred_fallthru
        _
    $region44: #{make_encoder_forward.7} parent=5 // pred_fallthru
      _
    %p415 = scmp.le.s32.totalorder 1, %s17
    %p416 = scmp.lt.s32.totalorder %s17, 9
    %p417 = pnand %p415, %p416
    %p418 = pneg %p417
    // Predicated region
    $region61: #{make_encoder_forward.7} parent=5 // pred_check
      _
    $region62: #{make_encoder_forward.7} parent=5 // pred_check_branch
      %420 = sbr.rel (%p417) target = $region64
    $region63: #{make_encoder_forward.7} parent=5 // pred_region
      %s421 = ssub.s32 %s17, 1
      %s422 = smul.u32 32, %s28
      %p423 = scmp.lt.s32.totalorder %s27, 1
      %s424 = scalar_select %p423, %s27, 1
      %p425 = scmp.lt.s32.totalorder %s422, 63
      %s426 = scalar_select %p425, %s422, 63
      %s427 = smul.addr %s424, 64
      %s428 = sadd.s32 %s426, %s427
      %s429 = smul.addr %s428, 4
      %s430 = scalar_lea.vmem %s0, %s429
      %p431 = pneg %p64
      %p432 = pneg %p61
      %s433 = smul.u32 32, %s28
      %p434 = scmp.lt.s32.totalorder %s27, 1
      %s435 = scalar_select %p434, %s27, 1
      %p436 = scmp.lt.s32.totalorder %s433, 63
      %s437 = scalar_select %p436, %s433, 63
      %s438 = smul.addr %s435, 64
      %s439 = sadd.s32 %s437, %s438
      %s440 = smul.addr %s439, 4
      %s441 = scalar_lea.vmem %s1, %s440
      %p442 = pneg %p92
      %p443 = pneg %p89
      %s444 = smul.u32 32, %s29
      %p445 = scmp.lt.s32.totalorder %s27, 1
      %s446 = scalar_select %p445, %s27, 1
      %p447 = scmp.lt.s32.totalorder %s444, 63
      %s448 = scalar_select %p447, %s444, 63
      %s449 = smul.addr %s446, 64
      %s450 = sadd.s32 %s448, %s449
      %s451 = smul.addr %s450, 4
      %s452 = scalar_lea.vmem %s2, %s451
      %p453 = pneg %p120
      %p454 = pneg %p117
      %s455 = smul.u32 32, %s29
      %p456 = scmp.lt.s32.totalorder %s27, 1
      %s457 = scalar_select %p456, %s27, 1
      %p458 = scmp.lt.s32.totalorder %s455, 63
      %s459 = scalar_select %p458, %s455, 63
      %s460 = smul.addr %s457, 64
      %s461 = sadd.s32 %s459, %s460
      %s462 = smul.addr %s461, 4
      %s463 = scalar_lea.vmem %s3, %s462
      %p464 = pneg %p148
      %p465 = pneg %p145
      %p466 = pneg %p169
      %p467 = pneg %p166
      %p468 = pneg %p190
      %p469 = pneg %p187
      %p470 = pneg %p211
      %p471 = pneg %p208
      %p472 = pneg %p232
      %p473 = pneg %p229
      %p474 = pneg %p253
      %p475 = pneg %p250
      %p476 = pneg %p274
      %p477 = pneg %p271
      %p478 = pneg %p295
      %p479 = pneg %p292
      %p480 = pneg %p323
      %p481 = pneg %p320
      %s482 = smul.u32 32, %s28
      %p483 = scmp.lt.s32.totalorder %s27, 1
      %s484 = scalar_select %p483, %s27, 1
      %p485 = scmp.lt.s32.totalorder %s482, 63
      %s486 = scalar_select %p485, %s482, 63
      %s487 = smul.addr %s484, 64
      %s488 = sadd.s32 %s486, %s487
      %s489 = smul.addr %s488, 4
      %s490 = scalar_lea.vmem %s11, %s489
      %s491 = smul.u32 32, %s28
      %p492 = scmp.lt.s32.totalorder %s27, 1
      %s493 = scalar_select %p492, %s27, 1
      %p494 = scmp.lt.s32.totalorder %s491, 63
      %s495 = scalar_select %p494, %s491, 63
      %s496 = smul.addr %s493, 64
      %s497 = sadd.s32 %s495, %s496
      %s498 = smul.addr %s497, 4
      %s499 = scalar_lea.vmem %s0, %s498
      %s500 = smul.u32 32, %s28
      %s501 = smul.u32 32, %s28
      %p502 = scmp.lt.s32.totalorder %s27, 1
      %s503 = scalar_select %p502, %s27, 1
      %p504 = scmp.lt.s32.totalorder %s501, 63
      %s505 = scalar_select %p504, %s501, 63
      %s506 = smul.addr %s503, 64
      %s507 = sadd.s32 %s505, %s506
      %s508 = smul.addr %s507, 4
      %s509 = scalar_lea.vmem %s1, %s508
      %s510 = smul.u32 32, %s28
      %s511 = smul.u32 32, %s29
      %p512 = scmp.lt.s32.totalorder %s27, 1
      %s513 = scalar_select %p512, %s27, 1
      %p514 = scmp.lt.s32.totalorder %s511, 63
      %s515 = scalar_select %p514, %s511, 63
      %s516 = smul.addr %s513, 64
      %s517 = sadd.s32 %s515, %s516
      %s518 = smul.addr %s517, 4
      %s519 = scalar_lea.vmem %s2, %s518
      %s520 = smul.u32 32, %s29
      %s521 = smul.u32 32, %s29
      %p522 = scmp.lt.s32.totalorder %s27, 1
      %s523 = scalar_select %p522, %s27, 1
      %p524 = scmp.lt.s32.totalorder %s521, 63
      %s525 = scalar_select %p524, %s521, 63
      %s526 = smul.addr %s523, 64
      %s527 = sadd.s32 %s525, %s526
      %s528 = smul.addr %s527, 4
      %s529 = scalar_lea.vmem %s3, %s528
      %s530 = smul.u32 32, %s29
      %s531 = smul.u32 32, %s28
      %p532 = scmp.lt.s32.totalorder %s27, 1
      %s533 = scalar_select %p532, %s27, 1
      %p534 = scmp.lt.s32.totalorder %s531, 63
      %s535 = scalar_select %p534, %s531, 63
      %s536 = smul.addr %s533, 64
      %s537 = sadd.s32 %s535, %s536
      %s538 = smul.addr %s537, 4
      %s539 = scalar_lea.vmem %s11, %s538
      %s540 = smul.u32 32, %s28
      %p542 = scmp.eq.s32.totalorder %s29, 0
      // Predicated region
      $region65: #{make_encoder_forward.7} parent=63 // pred_check
        %p543 = pneg %p542
      $region66: #{make_encoder_forward.7} parent=63 // pred_check_branch
        %545 = sbr.rel (%p543) target = $region68
      $region67: #{make_encoder_forward.7} parent=63 // pred_region
        %v546 = vld [vmem:[%s499] sm:$0xf]
        %v547 = vld [vmem:[%s499 + $0x4] sm:$0xf]
        %v548 = vld [vmem:[%s499 + $0x8] sm:$0xf]
        %v549 = vld [vmem:[%s499 + $0xc] sm:$0xf]
        %v550 = vld [vmem:[%s499 + $0x10] sm:$0xf]
        %v551 = vld [vmem:[%s499 + $0x14] sm:$0xf]
        %v552 = vld [vmem:[%s499 + $0x18] sm:$0xf]
        %v553 = vld [vmem:[%s499 + $0x1c] sm:$0xf]
        %v554 = vld [vmem:[%s499 + $0x20] sm:$0xf]
        %v555 = vld [vmem:[%s499 + $0x24] sm:$0xf]
        %v556 = vld [vmem:[%s499 + $0x28] sm:$0xf]
        %v557 = vld [vmem:[%s499 + $0x2c] sm:$0xf]
        %v558 = vld [vmem:[%s499 + $0x30] sm:$0xf]
        %v559 = vld [vmem:[%s499 + $0x34] sm:$0xf]
        %v560 = vld [vmem:[%s499 + $0x38] sm:$0xf]
        %v561 = vld [vmem:[%s499 + $0x3c] sm:$0xf]
        %v562 = vld [vmem:[%s499 + $0x40] sm:$0xf]
        %v563 = vld [vmem:[%s499 + $0x44] sm:$0xf]
        %v564 = vld [vmem:[%s499 + $0x48] sm:$0xf]
        %v565 = vld [vmem:[%s499 + $0x4c] sm:$0xf]
        %v566 = vld [vmem:[%s499 + $0x50] sm:$0xf]
        %v567 = vld [vmem:[%s499 + $0x54] sm:$0xf]
        %v568 = vld [vmem:[%s499 + $0x58] sm:$0xf]
        %v569 = vld [vmem:[%s499 + $0x5c] sm:$0xf]
        %v570 = vld [vmem:[%s499 + $0x60] sm:$0xf]
        %v571 = vld [vmem:[%s499 + $0x64] sm:$0xf]
        %v572 = vld [vmem:[%s499 + $0x68] sm:$0xf]
        %v573 = vld [vmem:[%s499 + $0x6c] sm:$0xf]
        %v574 = vld [vmem:[%s499 + $0x70] sm:$0xf]
        %v575 = vld [vmem:[%s499 + $0x74] sm:$0xf]
        %v576 = vld [vmem:[%s499 + $0x78] sm:$0xf]
        %v577 = vld [vmem:[%s499 + $0x7c] sm:$0xf]
        %v578 = vunpack.c.l.bf16 %v546
        %v579 = vunpack.c.l.bf16 %v547
        %v580 = vunpack.c.l.bf16 %v548
        %v581 = vunpack.c.l.bf16 %v549
        %v582 = vunpack.c.l.bf16 %v550
        %v583 = vunpack.c.l.bf16 %v551
        %v584 = vunpack.c.l.bf16 %v552
        %v585 = vunpack.c.l.bf16 %v553
        %v586 = vunpack.c.l.bf16 %v554
        %v587 = vunpack.c.l.bf16 %v555
        %v588 = vunpack.c.l.bf16 %v556
        %v589 = vunpack.c.l.bf16 %v557
        %v590 = vunpack.c.l.bf16 %v558
        %v591 = vunpack.c.l.bf16 %v559
        %v592 = vunpack.c.l.bf16 %v560
        %v593 = vunpack.c.l.bf16 %v561
        %v594 = vunpack.c.l.bf16 %v562
        %v595 = vunpack.c.l.bf16 %v563
        %v596 = vunpack.c.l.bf16 %v564
        %v597 = vunpack.c.l.bf16 %v565
        %v598 = vunpack.c.l.bf16 %v566
        %v599 = vunpack.c.l.bf16 %v567
        %v600 = vunpack.c.l.bf16 %v568
        %v601 = vunpack.c.l.bf16 %v569
        %v602 = vunpack.c.l.bf16 %v570
        %v603 = vunpack.c.l.bf16 %v571
        %v604 = vunpack.c.l.bf16 %v572
        %v605 = vunpack.c.l.bf16 %v573
        %v606 = vunpack.c.l.bf16 %v574
        %v607 = vunpack.c.l.bf16 %v575
        %v608 = vunpack.c.l.bf16 %v576
        %v609 = vunpack.c.l.bf16 %v577
        %v610 = vld [vmem:[%s509] sm:$0xf]
        %v611 = vld [vmem:[%s509 + $0x4] sm:$0xf]
        %v612 = vld [vmem:[%s509 + $0x8] sm:$0xf]
        %v613 = vld [vmem:[%s509 + $0xc] sm:$0xf]
        %v614 = vld [vmem:[%s509 + $0x10] sm:$0xf]
        %v615 = vld [vmem:[%s509 + $0x14] sm:$0xf]
        %v616 = vld [vmem:[%s509 + $0x18] sm:$0xf]
        %v617 = vld [vmem:[%s509 + $0x1c] sm:$0xf]
        %v618 = vld [vmem:[%s509 + $0x20] sm:$0xf]
        %v619 = vld [vmem:[%s509 + $0x24] sm:$0xf]
        %v620 = vld [vmem:[%s509 + $0x28] sm:$0xf]
        %v621 = vld [vmem:[%s509 + $0x2c] sm:$0xf]
        %v622 = vld [vmem:[%s509 + $0x30] sm:$0xf]
        %v623 = vld [vmem:[%s509 + $0x34] sm:$0xf]
        %v624 = vld [vmem:[%s509 + $0x38] sm:$0xf]
        %v625 = vld [vmem:[%s509 + $0x3c] sm:$0xf]
        %v626 = vld [vmem:[%s509 + $0x40] sm:$0xf]
        %v627 = vld [vmem:[%s509 + $0x44] sm:$0xf]
        %v628 = vld [vmem:[%s509 + $0x48] sm:$0xf]
        %v629 = vld [vmem:[%s509 + $0x4c] sm:$0xf]
        %v630 = vld [vmem:[%s509 + $0x50] sm:$0xf]
        %v631 = vld [vmem:[%s509 + $0x54] sm:$0xf]
        %v632 = vld [vmem:[%s509 + $0x58] sm:$0xf]
        %v633 = vld [vmem:[%s509 + $0x5c] sm:$0xf]
        %v634 = vld [vmem:[%s509 + $0x60] sm:$0xf]
        %v635 = vld [vmem:[%s509 + $0x64] sm:$0xf]
        %v636 = vld [vmem:[%s509 + $0x68] sm:$0xf]
        %v637 = vld [vmem:[%s509 + $0x6c] sm:$0xf]
        %v638 = vld [vmem:[%s509 + $0x70] sm:$0xf]
        %v639 = vld [vmem:[%s509 + $0x74] sm:$0xf]
        %v640 = vld [vmem:[%s509 + $0x78] sm:$0xf]
        %v641 = vld [vmem:[%s509 + $0x7c] sm:$0xf]
        %v642 = vunpack.c.l.bf16 %v610
        %v643 = vunpack.c.l.bf16 %v611
        %v644 = vunpack.c.l.bf16 %v612
        %v645 = vunpack.c.l.bf16 %v613
        %v646 = vunpack.c.l.bf16 %v614
        %v647 = vunpack.c.l.bf16 %v615
        %v648 = vunpack.c.l.bf16 %v616
        %v649 = vunpack.c.l.bf16 %v617
        %v650 = vunpack.c.l.bf16 %v618
        %v651 = vunpack.c.l.bf16 %v619
        %v652 = vunpack.c.l.bf16 %v620
        %v653 = vunpack.c.l.bf16 %v621
        %v654 = vunpack.c.l.bf16 %v622
        %v655 = vunpack.c.l.bf16 %v623
        %v656 = vunpack.c.l.bf16 %v624
        %v657 = vunpack.c.l.bf16 %v625
        %v658 = vunpack.c.l.bf16 %v626
        %v659 = vunpack.c.l.bf16 %v627
        %v660 = vunpack.c.l.bf16 %v628
        %v661 = vunpack.c.l.bf16 %v629
        %v662 = vunpack.c.l.bf16 %v630
        %v663 = vunpack.c.l.bf16 %v631
        %v664 = vunpack.c.l.bf16 %v632
        %v665 = vunpack.c.l.bf16 %v633
        %v666 = vunpack.c.l.bf16 %v634
        %v667 = vunpack.c.l.bf16 %v635
        %v668 = vunpack.c.l.bf16 %v636
        %v669 = vunpack.c.l.bf16 %v637
        %v670 = vunpack.c.l.bf16 %v638
        %v671 = vunpack.c.l.bf16 %v639
        %v672 = vunpack.c.l.bf16 %v640
        %v673 = vunpack.c.l.bf16 %v641
        %v674 = vadd.f32 %v578, %v642
        %v675 = vadd.f32 %v579, %v643
        %v676 = vadd.f32 %v580, %v644
        %v677 = vadd.f32 %v581, %v645
        %v678 = vadd.f32 %v582, %v646
        %v679 = vadd.f32 %v583, %v647
        %v680 = vadd.f32 %v584, %v648
        %v681 = vadd.f32 %v585, %v649
        %v682 = vadd.f32 %v586, %v650
        %v683 = vadd.f32 %v587, %v651
        %v684 = vadd.f32 %v588, %v652
        %v685 = vadd.f32 %v589, %v653
        %v686 = vadd.f32 %v590, %v654
        %v687 = vadd.f32 %v591, %v655
        %v688 = vadd.f32 %v592, %v656
        %v689 = vadd.f32 %v593, %v657
        %v690 = vadd.f32 %v594, %v658
        %v691 = vadd.f32 %v595, %v659
        %v692 = vadd.f32 %v596, %v660
        %v693 = vadd.f32 %v597, %v661
        %v694 = vadd.f32 %v598, %v662
        %v695 = vadd.f32 %v599, %v663
        %v696 = vadd.f32 %v600, %v664
        %v697 = vadd.f32 %v601, %v665
        %v698 = vadd.f32 %v602, %v666
        %v699 = vadd.f32 %v603, %v667
        %v700 = vadd.f32 %v604, %v668
        %v701 = vadd.f32 %v605, %v669
        %v702 = vadd.f32 %v606, %v670
        %v703 = vadd.f32 %v607, %v671
        %v704 = vadd.f32 %v608, %v672
        %v705 = vadd.f32 %v609, %v673
        %v706 = vpack.c.bf16 %v675, %v674
        %v707 = vpack.c.bf16 %v677, %v676
        %v708 = vpack.c.bf16 %v679, %v678
        %v709 = vpack.c.bf16 %v681, %v680
        %v710 = vpack.c.bf16 %v683, %v682
        %v711 = vpack.c.bf16 %v685, %v684
        %v712 = vpack.c.bf16 %v687, %v686
        %v713 = vpack.c.bf16 %v689, %v688
        %v714 = vpack.c.bf16 %v691, %v690
        %v715 = vpack.c.bf16 %v693, %v692
        %v716 = vpack.c.bf16 %v695, %v694
        %v717 = vpack.c.bf16 %v697, %v696
        %v718 = vpack.c.bf16 %v699, %v698
        %v719 = vpack.c.bf16 %v701, %v700
        %v720 = vpack.c.bf16 %v703, %v702
        %v721 = vpack.c.bf16 %v705, %v704
        %v722 = vld [vmem:[%s4] sm:$0xf]
        %v723 = vld [vmem:[%s4 + $0x4] sm:$0xf]
        %v724 = vld [vmem:[%s4 + $0x8] sm:$0xf]
        %v725 = vld [vmem:[%s4 + $0xc] sm:$0xf]
        %v726 = vld [vmem:[%s4 + $0x10] sm:$0xf]
        %v727 = vld [vmem:[%s4 + $0x14] sm:$0xf]
        %v728 = vld [vmem:[%s4 + $0x18] sm:$0xf]
        %v729 = vld [vmem:[%s4 + $0x1c] sm:$0xf]
        %v730 = vld [vmem:[%s4 + $0x20] sm:$0xf]
        %v731 = vld [vmem:[%s4 + $0x24] sm:$0xf]
        %v732 = vld [vmem:[%s4 + $0x28] sm:$0xf]
        %v733 = vld [vmem:[%s4 + $0x2c] sm:$0xf]
        %v734 = vld [vmem:[%s4 + $0x30] sm:$0xf]
        %v735 = vld [vmem:[%s4 + $0x34] sm:$0xf]
        %v736 = vld [vmem:[%s4 + $0x38] sm:$0xf]
        %v737 = vld [vmem:[%s4 + $0x3c] sm:$0xf]
        %v738 = vld [vmem:[%s5] sm:$0x1]
        %v740 = vlaneseq
        %v741 = vshrl.u32 %v740, 7
        %v742 = vsub.s32 0, %v741
        %v743 = vrot.slane %v738, %v742
        %v761 = vunpack.c.l.b16 %v722
        %v762 = vunpack.c.l.b16 %v723
        %v763 = vunpack.c.l.b16 %v724
        %v764 = vunpack.c.l.b16 %v725
        %v765 = vunpack.c.l.b16 %v726
        %v766 = vunpack.c.l.b16 %v727
        %v767 = vunpack.c.l.b16 %v728
        %v768 = vunpack.c.l.b16 %v729
        %v769 = vunpack.c.l.b16 %v730
        %v770 = vunpack.c.l.b16 %v731
        %v771 = vunpack.c.l.b16 %v732
        %v772 = vunpack.c.l.b16 %v733
        %v773 = vunpack.c.l.b16 %v734
        %v774 = vunpack.c.l.b16 %v735
        %v775 = vunpack.c.l.b16 %v736
        %v776 = vunpack.c.l.b16 %v737
        %v777 = vpack.c.b16 %v762, %v761
        %v778 = vpack.c.b16 %v764, %v763
        %v779 = vpack.c.b16 %v766, %v765
        %v780 = vpack.c.b16 %v768, %v767
        %v781 = vpack.c.b16 %v770, %v769
        %v782 = vpack.c.b16 %v772, %v771
        %v783 = vpack.c.b16 %v774, %v773
        %v784 = vpack.c.b16 %v776, %v775
        %793 = vmatprep.subr.bf16.mxu0 0
        %794 = vmatpush1.bf16.msra.mxu0 %v777
        %795 = vmatprep.subr.bf16.mxu0 0
        %796 = vmatpush1.bf16.msra.mxu0 %v778
        %797 = vmatprep.subr.bf16.mxu0 0
        %798 = vmatpush1.bf16.msra.mxu0 %v779
        %799 = vmatprep.subr.bf16.mxu0 0
        %800 = vmatpush1.bf16.msra.mxu0 %v780
        %801 = vmatprep.subr.bf16.mxu0 0
        %802 = vmatpush1.bf16.msra.mxu0 %v781
        %803 = vmatprep.subr.bf16.mxu0 0
        %804 = vmatpush1.bf16.msra.mxu0 %v782
        %805 = vmatprep.subr.bf16.mxu0 0
        %806 = vmatpush1.bf16.msra.mxu0 %v783
        %807 = vmatprep.subr.bf16.mxu0 0
        %808 = vmatpush1.bf16.msra.mxu0 %v784
        %809 = vmatprep.subr.bf16.mxu0 0
        %810 = vmatpush1.bf16.msra.mxu0 0
        %811 = vmatprep.subr.bf16.mxu0 0
        %812 = vmatpush1.bf16.msra.mxu0 0
        %813 = vmatprep.subr.bf16.mxu0 0
        %814 = vmatpush1.bf16.msra.mxu0 0
        %815 = vmatprep.subr.bf16.mxu0 0
        %816 = vmatpush1.bf16.msra.mxu0 0
        %817 = vmatprep.subr.bf16.mxu0 0
        %818 = vmatpush1.bf16.msra.mxu0 0
        %819 = vmatprep.subr.bf16.mxu0 0
        %820 = vmatpush1.bf16.msra.mxu0 0
        %821 = vmatprep.subr.bf16.mxu0 0
        %822 = vmatpush1.bf16.msra.mxu0 0
        %823 = vmatprep.subr.bf16.mxu0 0
        %824 = vmatpush1.bf16.msra.mxu0 0
        %825 = vmatprep.mubr.bf16.mxu0 0
        %826 = vmatmul.mubr.bf16.gmra.mrb[0].mxu0 %v706
        %v827 = vpop.f32.mrb[0].mxu0
        %v828 = vadd.f32 %v743, %v827
        %v829 = vpop.f32.mrb[0].mxu0
        %v830 = vpop.f32.mrb[0].mxu0
        %v831 = vadd.f32 %v743, %v830
        %v832 = vpop.f32.mrb[0].mxu0
        %833 = vmatprep.mubr.bf16.mxu0 0
        %834 = vmatmul.mubr.bf16.gmra.mrb[0].mxu0 %v707
        %v835 = vpop.f32.mrb[0].mxu0
        %v836 = vadd.f32 %v743, %v835
        %v837 = vpop.f32.mrb[0].mxu0
        %v838 = vpop.f32.mrb[0].mxu0
        %v839 = vadd.f32 %v743, %v838
        %v840 = vpop.f32.mrb[0].mxu0
        %841 = vmatprep.mubr.bf16.mxu0 0
        %842 = vmatmul.mubr.bf16.gmra.mrb[0].mxu0 %v708
        %v843 = vpop.f32.mrb[0].mxu0
        %v844 = vadd.f32 %v743, %v843
        %v845 = vpop.f32.mrb[0].mxu0
        %v846 = vpop.f32.mrb[0].mxu0
        %v847 = vadd.f32 %v743, %v846
        %v848 = vpop.f32.mrb[0].mxu0
        %849 = vmatprep.mubr.bf16.mxu0 0
        %850 = vmatmul.mubr.bf16.gmra.mrb[0].mxu0 %v709
        %v851 = vpop.f32.mrb[0].mxu0
        %v852 = vadd.f32 %v743, %v851
        %v853 = vpop.f32.mrb[0].mxu0
        %v854 = vpop.f32.mrb[0].mxu0
        %v855 = vadd.f32 %v743, %v854
        %v856 = vpop.f32.mrb[0].mxu0
        %857 = vmatprep.mubr.bf16.mxu0 0
        %858 = vmatmul.mubr.bf16.gmra.mrb[0].mxu0 %v710
        %v859 = vpop.f32.mrb[0].mxu0
        %v860 = vadd.f32 %v743, %v859
        %v861 = vpop.f32.mrb[0].mxu0
        %v862 = vpop.f32.mrb[0].mxu0
        %v863 = vadd.f32 %v743, %v862
        %v864 = vpop.f32.mrb[0].mxu0
        %865 = vmatprep.mubr.bf16.mxu0 0
        %866 = vmatmul.mubr.bf16.gmra.mrb[0].mxu0 %v711
        %v867 = vpop.f32.mrb[0].mxu0
        %v868 = vadd.f32 %v743, %v867
        %v869 = vpop.f32.mrb[0].mxu0
        %v870 = vpop.f32.mrb[0].mxu0
        %v871 = vadd.f32 %v743, %v870
        %v872 = vpop.f32.mrb[0].mxu0
        %873 = vmatprep.mubr.bf16.mxu0 0
        %874 = vmatmul.mubr.bf16.gmra.mrb[0].mxu0 %v712
        %v875 = vpop.f32.mrb[0].mxu0
        %v876 = vadd.f32 %v743, %v875
        %v877 = vpop.f32.mrb[0].mxu0
        %v878 = vpop.f32.mrb[0].mxu0
        %v879 = vadd.f32 %v743, %v878
        %v880 = vpop.f32.mrb[0].mxu0
        %881 = vmatprep.mubr.bf16.mxu0 0
        %882 = vmatmul.mubr.bf16.gmra.mrb[0].mxu0 %v713
        %v883 = vpop.f32.mrb[0].mxu0
        %v884 = vadd.f32 %v743, %v883
        %v885 = vpop.f32.mrb[0].mxu0
        %v886 = vpop.f32.mrb[0].mxu0
        %v887 = vadd.f32 %v743, %v886
        %v888 = vpop.f32.mrb[0].mxu0
        %889 = vmatprep.mubr.bf16.mxu0 0
        %890 = vmatmul.mubr.bf16.gmra.mrb[0].mxu0 %v714
        %v891 = vpop.f32.mrb[0].mxu0
        %v892 = vadd.f32 %v743, %v891
        %v893 = vpop.f32.mrb[0].mxu0
        %v894 = vpop.f32.mrb[0].mxu0
        %v895 = vadd.f32 %v743, %v894
        %v896 = vpop.f32.mrb[0].mxu0
        %897 = vmatprep.mubr.bf16.mxu0 0
        %898 = vmatmul.mubr.bf16.gmra.mrb[0].mxu0 %v715
        %v899 = vpop.f32.mrb[0].mxu0
        %v900 = vadd.f32 %v743, %v899
        %v901 = vpop.f32.mrb[0].mxu0
        %v902 = vpop.f32.mrb[0].mxu0
        %v903 = vadd.f32 %v743, %v902
        %v904 = vpop.f32.mrb[0].mxu0
        %905 = vmatprep.mubr.bf16.mxu0 0
        %906 = vmatmul.mubr.bf16.gmra.mrb[0].mxu0 %v716
        %v907 = vpop.f32.mrb[0].mxu0
        %v908 = vadd.f32 %v743, %v907
        %v909 = vpop.f32.mrb[0].mxu0
        %v910 = vpop.f32.mrb[0].mxu0
        %v911 = vadd.f32 %v743, %v910
        %v912 = vpop.f32.mrb[0].mxu0
        %913 = vmatprep.mubr.bf16.mxu0 0
        %914 = vmatmul.mubr.bf16.gmra.mrb[0].mxu0 %v717
        %v915 = vpop.f32.mrb[0].mxu0
        %v916 = vadd.f32 %v743, %v915
        %v917 = vpop.f32.mrb[0].mxu0
        %v918 = vpop.f32.mrb[0].mxu0
        %v919 = vadd.f32 %v743, %v918
        %v920 = vpop.f32.mrb[0].mxu0
        %921 = vmatprep.mubr.bf16.mxu0 0
        %922 = vmatmul.mubr.bf16.gmra.mrb[0].mxu0 %v718
        %v923 = vpop.f32.mrb[0].mxu0
        %v924 = vadd.f32 %v743, %v923
        %v925 = vpop.f32.mrb[0].mxu0
        %v926 = vpop.f32.mrb[0].mxu0
        %v927 = vadd.f32 %v743, %v926
        %v928 = vpop.f32.mrb[0].mxu0
        %929 = vmatprep.mubr.bf16.mxu0 0
        %930 = vmatmul.mubr.bf16.gmra.mrb[0].mxu0 %v719
        %v931 = vpop.f32.mrb[0].mxu0
        %v932 = vadd.f32 %v743, %v931
        %v933 = vpop.f32.mrb[0].mxu0
        %v934 = vpop.f32.mrb[0].mxu0
        %v935 = vadd.f32 %v743, %v934
        %v936 = vpop.f32.mrb[0].mxu0
        %937 = vmatprep.mubr.bf16.mxu0 0
        %938 = vmatmul.mubr.bf16.gmra.mrb[0].mxu0 %v720
        %v939 = vpop.f32.mrb[0].mxu0
        %v940 = vadd.f32 %v743, %v939
        %v941 = vpop.f32.mrb[0].mxu0
        %v942 = vpop.f32.mrb[0].mxu0
        %v943 = vadd.f32 %v743, %v942
        %v944 = vpop.f32.mrb[0].mxu0
        %945 = vmatprep.mubr.bf16.mxu0 0
        %946 = vmatmul.mubr.bf16.gmra.mrb[0].mxu0 %v721
        %v947 = vpop.f32.mrb[0].mxu0
        %v948 = vadd.f32 %v743, %v947
        %v949 = vpop.f32.mrb[0].mxu0
        %v950 = vpop.f32.mrb[0].mxu0
        %v951 = vadd.f32 %v743, %v950
        %v952 = vpop.f32.mrb[0].mxu0
        %953 = vdwg.mxu0
        %v954 = vpack.c.bf16 %v831, %v828
        %v955 = vpack.c.bf16 %v839, %v836
        %v956 = vpack.c.bf16 %v847, %v844
        %v957 = vpack.c.bf16 %v855, %v852
        %v958 = vpack.c.bf16 %v863, %v860
        %v959 = vpack.c.bf16 %v871, %v868
        %v960 = vpack.c.bf16 %v879, %v876
        %v961 = vpack.c.bf16 %v887, %v884
        %v962 = vpack.c.bf16 %v895, %v892
        %v963 = vpack.c.bf16 %v903, %v900
        %v964 = vpack.c.bf16 %v911, %v908
        %v965 = vpack.c.bf16 %v919, %v916
        %v966 = vpack.c.bf16 %v927, %v924
        %v967 = vpack.c.bf16 %v935, %v932
        %v968 = vpack.c.bf16 %v943, %v940
        %v969 = vpack.c.bf16 %v951, %v948
        %970 = vst [vmem:[#allocation2] sm:$0xff] %v954
        %971 = vst [vmem:[#allocation2 + $0x8] sm:$0xff] %v955
        %972 = vst [vmem:[#allocation2 + $0x10] sm:$0xff] %v956
        %973 = vst [vmem:[#allocation2 + $0x18] sm:$0xff] %v957
        %974 = vst [vmem:[#allocation2 + $0x20] sm:$0xff] %v958
        %975 = vst [vmem:[#allocation2 + $0x28] sm:$0xff] %v959
        %976 = vst [vmem:[#allocation2 + $0x30] sm:$0xff] %v960
        %977 = vst [vmem:[#allocation2 + $0x38] sm:$0xff] %v961
        %978 = vst [vmem:[#allocation2 + $0x40] sm:$0xff] %v962
        %979 = vst [vmem:[#allocation2 + $0x48] sm:$0xff] %v963
        %980 = vst [vmem:[#allocation2 + $0x50] sm:$0xff] %v964
        %981 = vst [vmem:[#allocation2 + $0x58] sm:$0xff] %v965
        %982 = vst [vmem:[#allocation2 + $0x60] sm:$0xff] %v966
        %983 = vst [vmem:[#allocation2 + $0x68] sm:$0xff] %v967
        %984 = vst [vmem:[#allocation2 + $0x70] sm:$0xff] %v968
        %985 = vst [vmem:[#allocation2 + $0x78] sm:$0xff] %v969
        %vm986 = vcmask 7168
        %987 = vst.msk [vmem:[#allocation3] sm:$0xff] %vm986, -inf
        %988 = vst.msk [vmem:[#allocation3 + $0x8] sm:$0xff] %vm986, -inf
        %989 = vst.msk [vmem:[#allocation3 + $0x10] sm:$0xff] %vm986, -inf
        %990 = vst.msk [vmem:[#allocation3 + $0x18] sm:$0xff] %vm986, -inf
        %991 = vst.msk [vmem:[#allocation3 + $0x20] sm:$0xff] %vm986, -inf
        %992 = vst.msk [vmem:[#allocation3 + $0x28] sm:$0xff] %vm986, -inf
        %993 = vst.msk [vmem:[#allocation3 + $0x30] sm:$0xff] %vm986, -inf
        %994 = vst.msk [vmem:[#allocation3 + $0x38] sm:$0xff] %vm986, -inf
        %995 = vst.msk [vmem:[#allocation3 + $0x40] sm:$0xff] %vm986, -inf
        %996 = vst.msk [vmem:[#allocation3 + $0x48] sm:$0xff] %vm986, -inf
        %997 = vst.msk [vmem:[#allocation3 + $0x50] sm:$0xff] %vm986, -inf
        %998 = vst.msk [vmem:[#allocation3 + $0x58] sm:$0xff] %vm986, -inf
        %999 = vst.msk [vmem:[#allocation3 + $0x60] sm:$0xff] %vm986, -inf
        %1000 = vst.msk [vmem:[#allocation3 + $0x68] sm:$0xff] %vm986, -inf
        %1001 = vst.msk [vmem:[#allocation3 + $0x70] sm:$0xff] %vm986, -inf
        %1002 = vst.msk [vmem:[#allocation3 + $0x78] sm:$0xff] %vm986, -inf
        %1003 = vst.msk [vmem:[#allocation3 + $0x80] sm:$0xff] %vm986, -inf
        %1004 = vst.msk [vmem:[#allocation3 + $0x88] sm:$0xff] %vm986, -inf
        %1005 = vst.msk [vmem:[#allocation3 + $0x90] sm:$0xff] %vm986, -inf
        %1006 = vst.msk [vmem:[#allocation3 + $0x98] sm:$0xff] %vm986, -inf
        %1007 = vst.msk [vmem:[#allocation3 + $0xa0] sm:$0xff] %vm986, -inf
        %1008 = vst.msk [vmem:[#allocation3 + $0xa8] sm:$0xff] %vm986, -inf
        %1009 = vst.msk [vmem:[#allocation3 + $0xb0] sm:$0xff] %vm986, -inf
        %1010 = vst.msk [vmem:[#allocation3 + $0xb8] sm:$0xff] %vm986, -inf
        %1011 = vst.msk [vmem:[#allocation3 + $0xc0] sm:$0xff] %vm986, -inf
        %1012 = vst.msk [vmem:[#allocation3 + $0xc8] sm:$0xff] %vm986, -inf
        %1013 = vst.msk [vmem:[#allocation3 + $0xd0] sm:$0xff] %vm986, -inf
        %1014 = vst.msk [vmem:[#allocation3 + $0xd8] sm:$0xff] %vm986, -inf
        %1015 = vst.msk [vmem:[#allocation3 + $0xe0] sm:$0xff] %vm986, -inf
        %1016 = vst.msk [vmem:[#allocation3 + $0xe8] sm:$0xff] %vm986, -inf
        %1017 = vst.msk [vmem:[#allocation3 + $0xf0] sm:$0xff] %vm986, -inf
        %1018 = vst.msk [vmem:[#allocation3 + $0xf8] sm:$0xff] %vm986, -inf
        %1019 = vst.msk [vmem:[#allocation4] sm:$0xff] %vm986, 0.0
        %1020 = vst.msk [vmem:[#allocation4 + $0x8] sm:$0xff] %vm986, 0.0
        %1021 = vst.msk [vmem:[#allocation4 + $0x10] sm:$0xff] %vm986, 0.0
        %1022 = vst.msk [vmem:[#allocation4 + $0x18] sm:$0xff] %vm986, 0.0
        %1023 = vst.msk [vmem:[#allocation4 + $0x20] sm:$0xff] %vm986, 0.0
        %1024 = vst.msk [vmem:[#allocation4 + $0x28] sm:$0xff] %vm986, 0.0
        %1025 = vst.msk [vmem:[#allocation4 + $0x30] sm:$0xff] %vm986, 0.0
        %1026 = vst.msk [vmem:[#allocation4 + $0x38] sm:$0xff] %vm986, 0.0
        %1027 = vst.msk [vmem:[#allocation4 + $0x40] sm:$0xff] %vm986, 0.0
        %1028 = vst.msk [vmem:[#allocation4 + $0x48] sm:$0xff] %vm986, 0.0
        %1029 = vst.msk [vmem:[#allocation4 + $0x50] sm:$0xff] %vm986, 0.0
        %1030 = vst.msk [vmem:[#allocation4 + $0x58] sm:$0xff] %vm986, 0.0
        %1031 = vst.msk [vmem:[#allocation4 + $0x60] sm:$0xff] %vm986, 0.0
        %1032 = vst.msk [vmem:[#allocation4 + $0x68] sm:$0xff] %vm986, 0.0
        %1033 = vst.msk [vmem:[#allocation4 + $0x70] sm:$0xff] %vm986, 0.0
        %1034 = vst.msk [vmem:[#allocation4 + $0x78] sm:$0xff] %vm986, 0.0
        %1035 = vst.msk [vmem:[#allocation4 + $0x80] sm:$0xff] %vm986, 0.0
        %1036 = vst.msk [vmem:[#allocation4 + $0x88] sm:$0xff] %vm986, 0.0
        %1037 = vst.msk [vmem:[#allocation4 + $0x90] sm:$0xff] %vm986, 0.0
        %1038 = vst.msk [vmem:[#allocation4 + $0x98] sm:$0xff] %vm986, 0.0
        %1039 = vst.msk [vmem:[#allocation4 + $0xa0] sm:$0xff] %vm986, 0.0
        %1040 = vst.msk [vmem:[#allocation4 + $0xa8] sm:$0xff] %vm986, 0.0
        %1041 = vst.msk [vmem:[#allocation4 + $0xb0] sm:$0xff] %vm986, 0.0
        %1042 = vst.msk [vmem:[#allocation4 + $0xb8] sm:$0xff] %vm986, 0.0
        %1043 = vst.msk [vmem:[#allocation4 + $0xc0] sm:$0xff] %vm986, 0.0
        %1044 = vst.msk [vmem:[#allocation4 + $0xc8] sm:$0xff] %vm986, 0.0
        %1045 = vst.msk [vmem:[#allocation4 + $0xd0] sm:$0xff] %vm986, 0.0
        %1046 = vst.msk [vmem:[#allocation4 + $0xd8] sm:$0xff] %vm986, 0.0
        %1047 = vst.msk [vmem:[#allocation4 + $0xe0] sm:$0xff] %vm986, 0.0
        %1048 = vst.msk [vmem:[#allocation4 + $0xe8] sm:$0xff] %vm986, 0.0
        %1049 = vst.msk [vmem:[#allocation4 + $0xf0] sm:$0xff] %vm986, 0.0
        %1050 = vst.msk [vmem:[#allocation4 + $0xf8] sm:$0xff] %vm986, 0.0
        %1051 = vst [vmem:[#allocation5] sm:$0xff] 0.0
        %1052 = vst [vmem:[#allocation5 + $0x8] sm:$0xff] 0.0
        %1053 = vst [vmem:[#allocation5 + $0x10] sm:$0xff] 0.0
        %1054 = vst [vmem:[#allocation5 + $0x18] sm:$0xff] 0.0
        %1055 = vst [vmem:[#allocation5 + $0x20] sm:$0xff] 0.0
        %1056 = vst [vmem:[#allocation5 + $0x28] sm:$0xff] 0.0
        %1057 = vst [vmem:[#allocation5 + $0x30] sm:$0xff] 0.0
        %1058 = vst [vmem:[#allocation5 + $0x38] sm:$0xff] 0.0
        %1059 = vst [vmem:[#allocation5 + $0x40] sm:$0xff] 0.0
        %1060 = vst [vmem:[#allocation5 + $0x48] sm:$0xff] 0.0
        %1061 = vst [vmem:[#allocation5 + $0x50] sm:$0xff] 0.0
        %1062 = vst [vmem:[#allocation5 + $0x58] sm:$0xff] 0.0
        %1063 = vst [vmem:[#allocation5 + $0x60] sm:$0xff] 0.0
        %1064 = vst [vmem:[#allocation5 + $0x68] sm:$0xff] 0.0
        %1065 = vst [vmem:[#allocation5 + $0x70] sm:$0xff] 0.0
        %1066 = vst [vmem:[#allocation5 + $0x78] sm:$0xff] 0.0
        %1067 = vst [vmem:[#allocation5 + $0x80] sm:$0xff] 0.0
        %1068 = vst [vmem:[#allocation5 + $0x88] sm:$0xff] 0.0
        %1069 = vst [vmem:[#allocation5 + $0x90] sm:$0xff] 0.0
        %1070 = vst [vmem:[#allocation5 + $0x98] sm:$0xff] 0.0
        %1071 = vst [vmem:[#allocation5 + $0xa0] sm:$0xff] 0.0
        %1072 = vst [vmem:[#allocation5 + $0xa8] sm:$0xff] 0.0
        %1073 = vst [vmem:[#allocation5 + $0xb0] sm:$0xff] 0.0
        %1074 = vst [vmem:[#allocation5 + $0xb8] sm:$0xff] 0.0
        %1075 = vst [vmem:[#allocation5 + $0xc0] sm:$0xff] 0.0
        %1076 = vst [vmem:[#allocation5 + $0xc8] sm:$0xff] 0.0
        %1077 = vst [vmem:[#allocation5 + $0xd0] sm:$0xff] 0.0
        %1078 = vst [vmem:[#allocation5 + $0xd8] sm:$0xff] 0.0
        %1079 = vst [vmem:[#allocation5 + $0xe0] sm:$0xff] 0.0
        %1080 = vst [vmem:[#allocation5 + $0xe8] sm:$0xff] 0.0
        %1081 = vst [vmem:[#allocation5 + $0xf0] sm:$0xff] 0.0
        %1082 = vst [vmem:[#allocation5 + $0xf8] sm:$0xff] 0.0
      $region68: #{make_encoder_forward.7} parent=63 // pred_fallthru
        _
      %v1083 = vld [vmem:[%s519] sm:$0xf]
      %v1084 = vld [vmem:[%s519 + $0x4] sm:$0xf]
      %v1085 = vld [vmem:[%s519 + $0x8] sm:$0xf]
      %v1086 = vld [vmem:[%s519 + $0xc] sm:$0xf]
      %v1087 = vld [vmem:[%s519 + $0x10] sm:$0xf]
      %v1088 = vld [vmem:[%s519 + $0x14] sm:$0xf]
      %v1089 = vld [vmem:[%s519 + $0x18] sm:$0xf]
      %v1090 = vld [vmem:[%s519 + $0x1c] sm:$0xf]
      %v1091 = vld [vmem:[%s519 + $0x20] sm:$0xf]
      %v1092 = vld [vmem:[%s519 + $0x24] sm:$0xf]
      %v1093 = vld [vmem:[%s519 + $0x28] sm:$0xf]
      %v1094 = vld [vmem:[%s519 + $0x2c] sm:$0xf]
      %v1095 = vld [vmem:[%s519 + $0x30] sm:$0xf]
      %v1096 = vld [vmem:[%s519 + $0x34] sm:$0xf]
      %v1097 = vld [vmem:[%s519 + $0x38] sm:$0xf]
      %v1098 = vld [vmem:[%s519 + $0x3c] sm:$0xf]
      %v1099 = vld [vmem:[%s519 + $0x40] sm:$0xf]
      %v1100 = vld [vmem:[%s519 + $0x44] sm:$0xf]
      %v1101 = vld [vmem:[%s519 + $0x48] sm:$0xf]
      %v1102 = vld [vmem:[%s519 + $0x4c] sm:$0xf]
      %v1103 = vld [vmem:[%s519 + $0x50] sm:$0xf]
      %v1104 = vld [vmem:[%s519 + $0x54] sm:$0xf]
      %v1105 = vld [vmem:[%s519 + $0x58] sm:$0xf]
      %v1106 = vld [vmem:[%s519 + $0x5c] sm:$0xf]
      %v1107 = vld [vmem:[%s519 + $0x60] sm:$0xf]
      %v1108 = vld [vmem:[%s519 + $0x64] sm:$0xf]
      %v1109 = vld [vmem:[%s519 + $0x68] sm:$0xf]
      %v1110 = vld [vmem:[%s519 + $0x6c] sm:$0xf]
      %v1111 = vld [vmem:[%s519 + $0x70] sm:$0xf]
      %v1112 = vld [vmem:[%s519 + $0x74] sm:$0xf]
      %v1113 = vld [vmem:[%s519 + $0x78] sm:$0xf]
      %v1114 = vld [vmem:[%s519 + $0x7c] sm:$0xf]
      %v1115 = vld [vmem:[%s529] sm:$0xf]
      %v1116 = vld [vmem:[%s529 + $0x4] sm:$0xf]
      %v1117 = vld [vmem:[%s529 + $0x8] sm:$0xf]
      %v1118 = vld [vmem:[%s529 + $0xc] sm:$0xf]
      %v1119 = vld [vmem:[%s529 + $0x10] sm:$0xf]
      %v1120 = vld [vmem:[%s529 + $0x14] sm:$0xf]
      %v1121 = vld [vmem:[%s529 + $0x18] sm:$0xf]
      %v1122 = vld [vmem:[%s529 + $0x1c] sm:$0xf]
      %v1123 = vld [vmem:[%s529 + $0x20] sm:$0xf]
      %v1124 = vld [vmem:[%s529 + $0x24] sm:$0xf]
      %v1125 = vld [vmem:[%s529 + $0x28] sm:$0xf]
      %v1126 = vld [vmem:[%s529 + $0x2c] sm:$0xf]
      %v1127 = vld [vmem:[%s529 + $0x30] sm:$0xf]
      %v1128 = vld [vmem:[%s529 + $0x34] sm:$0xf]
      %v1129 = vld [vmem:[%s529 + $0x38] sm:$0xf]
      %v1130 = vld [vmem:[%s529 + $0x3c] sm:$0xf]
      %v1131 = vld [vmem:[%s529 + $0x40] sm:$0xf]
      %v1132 = vld [vmem:[%s529 + $0x44] sm:$0xf]
      %v1133 = vld [vmem:[%s529 + $0x48] sm:$0xf]
      %v1134 = vld [vmem:[%s529 + $0x4c] sm:$0xf]
      %v1135 = vld [vmem:[%s529 + $0x50] sm:$0xf]
      %v1136 = vld [vmem:[%s529 + $0x54] sm:$0xf]
      %v1137 = vld [vmem:[%s529 + $0x58] sm:$0xf]
      %v1138 = vld [vmem:[%s529 + $0x5c] sm:$0xf]
      %v1139 = vld [vmem:[%s529 + $0x60] sm:$0xf]
      %v1140 = vld [vmem:[%s529 + $0x64] sm:$0xf]
      %v1141 = vld [vmem:[%s529 + $0x68] sm:$0xf]
      %v1142 = vld [vmem:[%s529 + $0x6c] sm:$0xf]
      %v1143 = vld [vmem:[%s529 + $0x70] sm:$0xf]
      %v1144 = vld [vmem:[%s529 + $0x74] sm:$0xf]
      %v1145 = vld [vmem:[%s529 + $0x78] sm:$0xf]
      %v1146 = vld [vmem:[%s529 + $0x7c] sm:$0xf]
      %v1147 = vld [vmem:[#allocation2] sm:$0xff]
      %v1148 = vld [vmem:[#allocation2 + $0x8] sm:$0xff]
      %v1149 = vld [vmem:[#allocation2 + $0x10] sm:$0xff]
      %v1150 = vld [vmem:[#allocation2 + $0x18] sm:$0xff]
      %v1151 = vld [vmem:[#allocation2 + $0x20] sm:$0xff]
      %v1152 = vld [vmem:[#allocation2 + $0x28] sm:$0xff]
      %v1153 = vld [vmem:[#allocation2 + $0x30] sm:$0xff]
      %v1154 = vld [vmem:[#allocation2 + $0x38] sm:$0xff]
      %v1155 = vld [vmem:[#allocation2 + $0x40] sm:$0xff]
      %v1156 = vld [vmem:[#allocation2 + $0x48] sm:$0xff]
      %v1157 = vld [vmem:[#allocation2 + $0x50] sm:$0xff]
      %v1158 = vld [vmem:[#allocation2 + $0x58] sm:$0xff]
      %v1159 = vld [vmem:[#allocation2 + $0x60] sm:$0xff]
      %v1160 = vld [vmem:[#allocation2 + $0x68] sm:$0xff]
      %v1161 = vld [vmem:[#allocation2 + $0x70] sm:$0xff]
      %v1162 = vld [vmem:[#allocation2 + $0x78] sm:$0xff]
      %v1195 = vunpack.c.l.b16 %v1083
      %v1196 = vunpack.c.l.b16 %v1084
      %v1197 = vunpack.c.l.b16 %v1085
      %v1198 = vunpack.c.l.b16 %v1086
      %v1199 = vunpack.c.l.b16 %v1087
      %v1200 = vunpack.c.l.b16 %v1088
      %v1201 = vunpack.c.l.b16 %v1089
      %v1202 = vunpack.c.l.b16 %v1090
      %v1203 = vunpack.c.l.b16 %v1091
      %v1204 = vunpack.c.l.b16 %v1092
      %v1205 = vunpack.c.l.b16 %v1093
      %v1206 = vunpack.c.l.b16 %v1094
      %v1207 = vunpack.c.l.b16 %v1095
      %v1208 = vunpack.c.l.b16 %v1096
      %v1209 = vunpack.c.l.b16 %v1097
      %v1210 = vunpack.c.l.b16 %v1098
      %v1211 = vunpack.c.l.b16 %v1099
      %v1212 = vunpack.c.l.b16 %v1100
      %v1213 = vunpack.c.l.b16 %v1101
      %v1214 = vunpack.c.l.b16 %v1102
      %v1215 = vunpack.c.l.b16 %v1103
      %v1216 = vunpack.c.l.b16 %v1104
      %v1217 = vunpack.c.l.b16 %v1105
      %v1218 = vunpack.c.l.b16 %v1106
      %v1219 = vunpack.c.l.b16 %v1107
      %v1220 = vunpack.c.l.b16 %v1108
      %v1221 = vunpack.c.l.b16 %v1109
      %v1222 = vunpack.c.l.b16 %v1110
      %v1223 = vunpack.c.l.b16 %v1111
      %v1224 = vunpack.c.l.b16 %v1112
      %v1225 = vunpack.c.l.b16 %v1113
      %v1226 = vunpack.c.l.b16 %v1114
      %v1227 = vpack.c.b16 %v1196, %v1195
      %v1228 = vpack.c.b16 %v1198, %v1197
      %v1229 = vpack.c.b16 %v1200, %v1199
      %v1230 = vpack.c.b16 %v1202, %v1201
      %v1231 = vpack.c.b16 %v1204, %v1203
      %v1232 = vpack.c.b16 %v1206, %v1205
      %v1233 = vpack.c.b16 %v1208, %v1207
      %v1234 = vpack.c.b16 %v1210, %v1209
      %v1235 = vpack.c.b16 %v1212, %v1211
      %v1236 = vpack.c.b16 %v1214, %v1213
      %v1237 = vpack.c.b16 %v1216, %v1215
      %v1238 = vpack.c.b16 %v1218, %v1217
      %v1239 = vpack.c.b16 %v1220, %v1219
      %v1240 = vpack.c.b16 %v1222, %v1221
      %v1241 = vpack.c.b16 %v1224, %v1223
      %v1242 = vpack.c.b16 %v1226, %v1225
      %1259 = vmatprep.subr.bf16.mxu0 0
      %1260 = vmatpush1.bf16.xpose.msra.mxu0 %v1227
      %1261 = vmatprep.subr.bf16.mxu0 0
      %1262 = vmatpush1.bf16.xpose.msra.mxu0 %v1228
      %1263 = vmatprep.subr.bf16.mxu0 0
      %1264 = vmatpush1.bf16.xpose.msra.mxu0 %v1229
      %1265 = vmatprep.subr.bf16.mxu0 0
      %1266 = vmatpush1.bf16.xpose.msra.mxu0 %v1230
      %1267 = vmatprep.subr.bf16.mxu0 0
      %1268 = vmatpush1.bf16.xpose.msra.mxu0 %v1231
      %1269 = vmatprep.subr.bf16.mxu0 0
      %1270 = vmatpush1.bf16.xpose.msra.mxu0 %v1232
      %1271 = vmatprep.subr.bf16.mxu0 0
      %1272 = vmatpush1.bf16.xpose.msra.mxu0 %v1233
      %1273 = vmatprep.subr.bf16.mxu0 0
      %1274 = vmatpush1.bf16.xpose.msra.mxu0 %v1234
      %1275 = vmatprep.subr.bf16.mxu0 0
      %1276 = vmatpush1.bf16.xpose.msra.mxu0 %v1235
      %1277 = vmatprep.subr.bf16.mxu0 0
      %1278 = vmatpush1.bf16.xpose.msra.mxu0 %v1236
      %1279 = vmatprep.subr.bf16.mxu0 0
      %1280 = vmatpush1.bf16.xpose.msra.mxu0 %v1237
      %1281 = vmatprep.subr.bf16.mxu0 0
      %1282 = vmatpush1.bf16.xpose.msra.mxu0 %v1238
      %1283 = vmatprep.subr.bf16.mxu0 0
      %1284 = vmatpush1.bf16.xpose.msra.mxu0 %v1239
      %1285 = vmatprep.subr.bf16.mxu0 0
      %1286 = vmatpush1.bf16.xpose.msra.mxu0 %v1240
      %1287 = vmatprep.subr.bf16.mxu0 0
      %1288 = vmatpush1.bf16.xpose.msra.mxu0 %v1241
      %1289 = vmatprep.subr.bf16.mxu0 0
      %1290 = vmatpush1.bf16.xpose.msra.mxu0 %v1242
      %1291 = vmatprep.mubr.bf16.mxu0 0
      %1292 = vmatmul.mubr.bf16.gmra.mrb[0].mxu0 %v1147
      %v1293 = vpop.f32.mrb[0].mxu0
      %v1294 = vadd.f32 0.0, %v1293
      %v1295 = vpop.f32.mrb[0].mxu0
      %v1296 = vadd.f32 0.0, %v1295
      %v1297 = vpop.f32.mrb[0].mxu0
      %v1298 = vadd.f32 0.0, %v1297
      %v1299 = vpop.f32.mrb[0].mxu0
      %v1300 = vadd.f32 0.0, %v1299
      %1301 = vmatprep.mubr.bf16.mxu0 0
      %1302 = vmatmul.mubr.bf16.gmra.mrb[0].mxu0 %v1148
      %v1303 = vpop.f32.mrb[0].mxu0
      %v1304 = vadd.f32 0.0, %v1303
      %v1305 = vpop.f32.mrb[0].mxu0
      %v1306 = vadd.f32 0.0, %v1305
      %v1307 = vpop.f32.mrb[0].mxu0
      %v1308 = vadd.f32 0.0, %v1307
      %v1309 = vpop.f32.mrb[0].mxu0
      %v1310 = vadd.f32 0.0, %v1309
      %1311 = vmatprep.mubr.bf16.mxu0 0
      %1312 = vmatmul.mubr.bf16.gmra.mrb[0].mxu0 %v1149
      %v1313 = vpop.f32.mrb[0].mxu0
      %v1314 = vadd.f32 0.0, %v1313
      %v1315 = vpop.f32.mrb[0].mxu0
      %v1316 = vadd.f32 0.0, %v1315
      %v1317 = vpop.f32.mrb[0].mxu0
      %v1318 = vadd.f32 0.0, %v1317
      %v1319 = vpop.f32.mrb[0].mxu0
      %v1320 = vadd.f32 0.0, %v1319
      %1321 = vmatprep.mubr.bf16.mxu0 0
      %1322 = vmatmul.mubr.bf16.gmra.mrb[0].mxu0 %v1150
      %v1323 = vpop.f32.mrb[0].mxu0
      %v1324 = vadd.f32 0.0, %v1323
      %v1325 = vpop.f32.mrb[0].mxu0
      %v1326 = vadd.f32 0.0, %v1325
      %v1327 = vpop.f32.mrb[0].mxu0
      %v1328 = vadd.f32 0.0, %v1327
      %v1329 = vpop.f32.mrb[0].mxu0
      %v1330 = vadd.f32 0.0, %v1329
      %1331 = vmatprep.mubr.bf16.mxu0 0
      %1332 = vmatmul.mubr.bf16.gmra.mrb[0].mxu0 %v1151
      %v1333 = vpop.f32.mrb[0].mxu0
      %v1334 = vadd.f32 0.0, %v1333
      %v1335 = vpop.f32.mrb[0].mxu0
      %v1336 = vadd.f32 0.0, %v1335
      %v1337 = vpop.f32.mrb[0].mxu0
      %v1338 = vadd.f32 0.0, %v1337
      %v1339 = vpop.f32.mrb[0].mxu0
      %v1340 = vadd.f32 0.0, %v1339
      %1341 = vmatprep.mubr.bf16.mxu0 0
      %1342 = vmatmul.mubr.bf16.gmra.mrb[0].mxu0 %v1152
      %v1343 = vpop.f32.mrb[0].mxu0
      %v1344 = vadd.f32 0.0, %v1343
      %v1345 = vpop.f32.mrb[0].mxu0
      %v1346 = vadd.f32 0.0, %v1345
      %v1347 = vpop.f32.mrb[0].mxu0
      %v1348 = vadd.f32 0.0, %v1347
      %v1349 = vpop.f32.mrb[0].mxu0
      %v1350 = vadd.f32 0.0, %v1349
      %1351 = vmatprep.mubr.bf16.mxu0 0
      %1352 = vmatmul.mubr.bf16.gmra.mrb[0].mxu0 %v1153
      %v1353 = vpop.f32.mrb[0].mxu0
      %v1354 = vadd.f32 0.0, %v1353
      %v1355 = vpop.f32.mrb[0].mxu0
      %v1356 = vadd.f32 0.0, %v1355
      %v1357 = vpop.f32.mrb[0].mxu0
      %v1358 = vadd.f32 0.0, %v1357
      %v1359 = vpop.f32.mrb[0].mxu0
      %v1360 = vadd.f32 0.0, %v1359
      %1361 = vmatprep.mubr.bf16.mxu0 0
      %1362 = vmatmul.mubr.bf16.gmra.mrb[0].mxu0 %v1154
      %v1363 = vpop.f32.mrb[0].mxu0
      %v1364 = vadd.f32 0.0, %v1363
      %v1365 = vpop.f32.mrb[0].mxu0
      %v1366 = vadd.f32 0.0, %v1365
      %v1367 = vpop.f32.mrb[0].mxu0
      %v1368 = vadd.f32 0.0, %v1367
      %v1369 = vpop.f32.mrb[0].mxu0
      %v1370 = vadd.f32 0.0, %v1369
      %1371 = vmatprep.mubr.bf16.mxu0 0
      %1372 = vmatmul.mubr.bf16.gmra.mrb[0].mxu0 %v1155
      %v1373 = vpop.f32.mrb[0].mxu0
      %v1374 = vadd.f32 0.0, %v1373
      %v1375 = vpop.f32.mrb[0].mxu0
      %v1376 = vadd.f32 0.0, %v1375
      %v1377 = vpop.f32.mrb[0].mxu0
      %v1378 = vadd.f32 0.0, %v1377
      %v1379 = vpop.f32.mrb[0].mxu0
      %v1380 = vadd.f32 0.0, %v1379
      %1381 = vmatprep.mubr.bf16.mxu0 0
      %1382 = vmatmul.mubr.bf16.gmra.mrb[0].mxu0 %v1156
      %v1383 = vpop.f32.mrb[0].mxu0
      %v1384 = vadd.f32 0.0, %v1383
      %v1385 = vpop.f32.mrb[0].mxu0
      %v1386 = vadd.f32 0.0, %v1385
      %v1387 = vpop.f32.mrb[0].mxu0
      %v1388 = vadd.f32 0.0, %v1387
      %v1389 = vpop.f32.mrb[0].mxu0
      %v1390 = vadd.f32 0.0, %v1389
      %1391 = vmatprep.mubr.bf16.mxu0 0
      %1392 = vmatmul.mubr.bf16.gmra.mrb[0].mxu0 %v1157
      %v1393 = vpop.f32.mrb[0].mxu0
      %v1394 = vadd.f32 0.0, %v1393
      %v1395 = vpop.f32.mrb[0].mxu0
      %v1396 = vadd.f32 0.0, %v1395
      %v1397 = vpop.f32.mrb[0].mxu0
      %v1398 = vadd.f32 0.0, %v1397
      %v1399 = vpop.f32.mrb[0].mxu0
      %v1400 = vadd.f32 0.0, %v1399
      %1401 = vmatprep.mubr.bf16.mxu0 0
      %1402 = vmatmul.mubr.bf16.gmra.mrb[0].mxu0 %v1158
      %v1403 = vpop.f32.mrb[0].mxu0
      %v1404 = vadd.f32 0.0, %v1403
      %v1405 = vpop.f32.mrb[0].mxu0
      %v1406 = vadd.f32 0.0, %v1405
      %v1407 = vpop.f32.mrb[0].mxu0
      %v1408 = vadd.f32 0.0, %v1407
      %v1409 = vpop.f32.mrb[0].mxu0
      %v1410 = vadd.f32 0.0, %v1409
      %1411 = vmatprep.mubr.bf16.mxu0 0
      %1412 = vmatmul.mubr.bf16.gmra.mrb[0].mxu0 %v1159
      %v1413 = vpop.f32.mrb[0].mxu0
      %v1414 = vadd.f32 0.0, %v1413
      %v1415 = vpop.f32.mrb[0].mxu0
      %v1416 = vadd.f32 0.0, %v1415
      %v1417 = vpop.f32.mrb[0].mxu0
      %v1418 = vadd.f32 0.0, %v1417
      %v1419 = vpop.f32.mrb[0].mxu0
      %v1420 = vadd.f32 0.0, %v1419
      %1421 = vmatprep.mubr.bf16.mxu0 0
      %1422 = vmatmul.mubr.bf16.gmra.mrb[0].mxu0 %v1160
      %v1423 = vpop.f32.mrb[0].mxu0
      %v1424 = vadd.f32 0.0, %v1423
      %v1425 = vpop.f32.mrb[0].mxu0
      %v1426 = vadd.f32 0.0, %v1425
      %v1427 = vpop.f32.mrb[0].mxu0
      %v1428 = vadd.f32 0.0, %v1427
      %v1429 = vpop.f32.mrb[0].mxu0
      %v1430 = vadd.f32 0.0, %v1429
      %1431 = vmatprep.mubr.bf16.mxu0 0
      %1432 = vmatmul.mubr.bf16.gmra.mrb[0].mxu0 %v1161
      %v1433 = vpop.f32.mrb[0].mxu0
      %v1434 = vadd.f32 0.0, %v1433
      %v1435 = vpop.f32.mrb[0].mxu0
      %v1436 = vadd.f32 0.0, %v1435
      %v1437 = vpop.f32.mrb[0].mxu0
      %v1438 = vadd.f32 0.0, %v1437
      %v1439 = vpop.f32.mrb[0].mxu0
      %v1440 = vadd.f32 0.0, %v1439
      %1441 = vmatprep.mubr.bf16.mxu0 0
      %1442 = vmatmul.mubr.bf16.gmra.mrb[0].mxu0 %v1162
      %v1443 = vpop.f32.mrb[0].mxu0
      %v1444 = vadd.f32 0.0, %v1443
      %v1445 = vpop.f32.mrb[0].mxu0
      %v1446 = vadd.f32 0.0, %v1445
      %v1447 = vpop.f32.mrb[0].mxu0
      %v1448 = vadd.f32 0.0, %v1447
      %v1449 = vpop.f32.mrb[0].mxu0
      %v1450 = vadd.f32 0.0, %v1449
      %1451 = vdwg.mxu0
      %s1452 = smul.u32 %s29, 256
      %v1453 = vlaneseq
      %v1454 = vand.u32 %v1453, 127
      %v1455 = vadd.s32 %v1454, 128
      %v1456 = vstv %s1452
      %v1457 = vadd.s32 %v1456, %v1454
      %v1458 = vadd.s32 %v1456, %v1455
      %vm1459 = vcmp.lt.s32.totalorder %v1457, 384
      %vm1460 = vcmp.lt.s32.totalorder %v1458, 384
      %v1461 = vsel %vm1459, %v1294, -inf
      %v1462 = vsel %vm1460, %v1296, -inf
      %v1463 = vsel %vm1459, %v1298, -inf
      %v1464 = vsel %vm1460, %v1300, -inf
      %v1465 = vsel %vm1459, %v1304, -inf
      %v1466 = vsel %vm1460, %v1306, -inf
      %v1467 = vsel %vm1459, %v1308, -inf
      %v1468 = vsel %vm1460, %v1310, -inf
      %v1469 = vsel %vm1459, %v1314, -inf
      %v1470 = vsel %vm1460, %v1316, -inf
      %v1471 = vsel %vm1459, %v1318, -inf
      %v1472 = vsel %vm1460, %v1320, -inf
      %v1473 = vsel %vm1459, %v1324, -inf
      %v1474 = vsel %vm1460, %v1326, -inf
      %v1475 = vsel %vm1459, %v1328, -inf
      %v1476 = vsel %vm1460, %v1330, -inf
      %v1477 = vsel %vm1459, %v1334, -inf
      %v1478 = vsel %vm1460, %v1336, -inf
      %v1479 = vsel %vm1459, %v1338, -inf
      %v1480 = vsel %vm1460, %v1340, -inf
      %v1481 = vsel %vm1459, %v1344, -inf
      %v1482 = vsel %vm1460, %v1346, -inf
      %v1483 = vsel %vm1459, %v1348, -inf
      %v1484 = vsel %vm1460, %v1350, -inf
      %v1485 = vsel %vm1459, %v1354, -inf
      %v1486 = vsel %vm1460, %v1356, -inf
      %v1487 = vsel %vm1459, %v1358, -inf
      %v1488 = vsel %vm1460, %v1360, -inf
      %v1489 = vsel %vm1459, %v1364, -inf
      %v1490 = vsel %vm1460, %v1366, -inf
      %v1491 = vsel %vm1459, %v1368, -inf
      %v1492 = vsel %vm1460, %v1370, -inf
      %v1493 = vsel %vm1459, %v1374, -inf
      %v1494 = vsel %vm1460, %v1376, -inf
      %v1495 = vsel %vm1459, %v1378, -inf
      %v1496 = vsel %vm1460, %v1380, -inf
      %v1497 = vsel %vm1459, %v1384, -inf
      %v1498 = vsel %vm1460, %v1386, -inf
      %v1499 = vsel %vm1459, %v1388, -inf
      %v1500 = vsel %vm1460, %v1390, -inf
      %v1501 = vsel %vm1459, %v1394, -inf
      %v1502 = vsel %vm1460, %v1396, -inf
      %v1503 = vsel %vm1459, %v1398, -inf
      %v1504 = vsel %vm1460, %v1400, -inf
      %v1505 = vsel %vm1459, %v1404, -inf
      %v1506 = vsel %vm1460, %v1406, -inf
      %v1507 = vsel %vm1459, %v1408, -inf
      %v1508 = vsel %vm1460, %v1410, -inf
      %v1509 = vsel %vm1459, %v1414, -inf
      %v1510 = vsel %vm1460, %v1416, -inf
      %v1511 = vsel %vm1459, %v1418, -inf
      %v1512 = vsel %vm1460, %v1420, -inf
      %v1513 = vsel %vm1459, %v1424, -inf
      %v1514 = vsel %vm1460, %v1426, -inf
      %v1515 = vsel %vm1459, %v1428, -inf
      %v1516 = vsel %vm1460, %v1430, -inf
      %v1517 = vsel %vm1459, %v1434, -inf
      %v1518 = vsel %vm1460, %v1436, -inf
      %v1519 = vsel %vm1459, %v1438, -inf
      %v1520 = vsel %vm1460, %v1440, -inf
      %v1521 = vsel %vm1459, %v1444, -inf
      %v1522 = vsel %vm1460, %v1446, -inf
      %v1523 = vsel %vm1459, %v1448, -inf
      %v1524 = vsel %vm1460, %v1450, -inf
      %v1525 = vld [vmem:[#allocation3] sm:$0xff]
      %v1526 = vld [vmem:[#allocation3 + $0x8] sm:$0xff]
      %v1527 = vld [vmem:[#allocation3 + $0x10] sm:$0xff]
      %v1528 = vld [vmem:[#allocation3 + $0x18] sm:$0xff]
      %v1529 = vld [vmem:[#allocation3 + $0x20] sm:$0xff]
      %v1530 = vld [vmem:[#allocation3 + $0x28] sm:$0xff]
      %v1531 = vld [vmem:[#allocation3 + $0x30] sm:$0xff]
      %v1532 = vld [vmem:[#allocation3 + $0x38] sm:$0xff]
      %v1533 = vld [vmem:[#allocation3 + $0x40] sm:$0xff]
      %v1534 = vld [vmem:[#allocation3 + $0x48] sm:$0xff]
      %v1535 = vld [vmem:[#allocation3 + $0x50] sm:$0xff]
      %v1536 = vld [vmem:[#allocation3 + $0x58] sm:$0xff]
      %v1537 = vld [vmem:[#allocation3 + $0x60] sm:$0xff]
      %v1538 = vld [vmem:[#allocation3 + $0x68] sm:$0xff]
      %v1539 = vld [vmem:[#allocation3 + $0x70] sm:$0xff]
      %v1540 = vld [vmem:[#allocation3 + $0x78] sm:$0xff]
      %v1541 = vld [vmem:[#allocation3 + $0x80] sm:$0xff]
      %v1542 = vld [vmem:[#allocation3 + $0x88] sm:$0xff]
      %v1543 = vld [vmem:[#allocation3 + $0x90] sm:$0xff]
      %v1544 = vld [vmem:[#allocation3 + $0x98] sm:$0xff]
      %v1545 = vld [vmem:[#allocation3 + $0xa0] sm:$0xff]
      %v1546 = vld [vmem:[#allocation3 + $0xa8] sm:$0xff]
      %v1547 = vld [vmem:[#allocation3 + $0xb0] sm:$0xff]
      %v1548 = vld [vmem:[#allocation3 + $0xb8] sm:$0xff]
      %v1549 = vld [vmem:[#allocation3 + $0xc0] sm:$0xff]
      %v1550 = vld [vmem:[#allocation3 + $0xc8] sm:$0xff]
      %v1551 = vld [vmem:[#allocation3 + $0xd0] sm:$0xff]
      %v1552 = vld [vmem:[#allocation3 + $0xd8] sm:$0xff]
      %v1553 = vld [vmem:[#allocation3 + $0xe0] sm:$0xff]
      %v1554 = vld [vmem:[#allocation3 + $0xe8] sm:$0xff]
      %v1555 = vld [vmem:[#allocation3 + $0xf0] sm:$0xff]
      %v1556 = vld [vmem:[#allocation3 + $0xf8] sm:$0xff]
      %v1557 = vmax.f32 %v1461, %v1462
      %1558 = vmax.xlane.f32.xlu0 %v1557
      %v1559 = vpop.xlane.xlu0 %1558
      %v1560 = vmax.f32 %v1463, %v1464
      %1561 = vmax.xlane.f32.xlu0 %v1560
      %v1562 = vpop.xlane.xlu0 %1561
      %v1563 = vmax.f32 %v1465, %v1466
      %1564 = vmax.xlane.f32.xlu0 %v1563
      %v1565 = vpop.xlane.xlu0 %1564
      %v1566 = vmax.f32 %v1467, %v1468
      %1567 = vmax.xlane.f32.xlu0 %v1566
      %v1568 = vpop.xlane.xlu0 %1567
      %v1569 = vmax.f32 %v1469, %v1470
      %1570 = vmax.xlane.f32.xlu0 %v1569
      %v1571 = vpop.xlane.xlu0 %1570
      %v1572 = vmax.f32 %v1471, %v1472
      %1573 = vmax.xlane.f32.xlu0 %v1572
      %v1574 = vpop.xlane.xlu0 %1573
      %v1575 = vmax.f32 %v1473, %v1474
      %1576 = vmax.xlane.f32.xlu0 %v1575
      %v1577 = vpop.xlane.xlu0 %1576
      %v1578 = vmax.f32 %v1475, %v1476
      %1579 = vmax.xlane.f32.xlu0 %v1578
      %v1580 = vpop.xlane.xlu0 %1579
      %v1581 = vmax.f32 %v1477, %v1478
      %1582 = vmax.xlane.f32.xlu0 %v1581
      %v1583 = vpop.xlane.xlu0 %1582
      %v1584 = vmax.f32 %v1479, %v1480
      %1585 = vmax.xlane.f32.xlu0 %v1584
      %v1586 = vpop.xlane.xlu0 %1585
      %v1587 = vmax.f32 %v1481, %v1482
      %1588 = vmax.xlane.f32.xlu0 %v1587
      %v1589 = vpop.xlane.xlu0 %1588
      %v1590 = vmax.f32 %v1483, %v1484
      %1591 = vmax.xlane.f32.xlu0 %v1590
      %v1592 = vpop.xlane.xlu0 %1591
      %v1593 = vmax.f32 %v1485, %v1486
      %1594 = vmax.xlane.f32.xlu0 %v1593
      %v1595 = vpop.xlane.xlu0 %1594
      %v1596 = vmax.f32 %v1487, %v1488
      %1597 = vmax.xlane.f32.xlu0 %v1596
      %v1598 = vpop.xlane.xlu0 %1597
      %v1599 = vmax.f32 %v1489, %v1490
      %1600 = vmax.xlane.f32.xlu0 %v1599
      %v1601 = vpop.xlane.xlu0 %1600
      %v1602 = vmax.f32 %v1491, %v1492
      %1603 = vmax.xlane.f32.xlu0 %v1602
      %v1604 = vpop.xlane.xlu0 %1603
      %v1605 = vmax.f32 %v1493, %v1494
      %1606 = vmax.xlane.f32.xlu0 %v1605
      %v1607 = vpop.xlane.xlu0 %1606
      %v1608 = vmax.f32 %v1495, %v1496
      %1609 = vmax.xlane.f32.xlu0 %v1608
      %v1610 = vpop.xlane.xlu0 %1609
      %v1611 = vmax.f32 %v1497, %v1498
      %1612 = vmax.xlane.f32.xlu0 %v1611
      %v1613 = vpop.xlane.xlu0 %1612
      %v1614 = vmax.f32 %v1499, %v1500
      %1615 = vmax.xlane.f32.xlu0 %v1614
      %v1616 = vpop.xlane.xlu0 %1615
      %v1617 = vmax.f32 %v1501, %v1502
      %1618 = vmax.xlane.f32.xlu0 %v1617
      %v1619 = vpop.xlane.xlu0 %1618
      %v1620 = vmax.f32 %v1503, %v1504
      %1621 = vmax.xlane.f32.xlu0 %v1620
      %v1622 = vpop.xlane.xlu0 %1621
      %v1623 = vmax.f32 %v1505, %v1506
      %1624 = vmax.xlane.f32.xlu0 %v1623
      %v1625 = vpop.xlane.xlu0 %1624
      %v1626 = vmax.f32 %v1507, %v1508
      %1627 = vmax.xlane.f32.xlu0 %v1626
      %v1628 = vpop.xlane.xlu0 %1627
      %v1629 = vmax.f32 %v1509, %v1510
      %1630 = vmax.xlane.f32.xlu0 %v1629
      %v1631 = vpop.xlane.xlu0 %1630
      %v1632 = vmax.f32 %v1511, %v1512
      %1633 = vmax.xlane.f32.xlu0 %v1632
      %v1634 = vpop.xlane.xlu0 %1633
      %v1635 = vmax.f32 %v1513, %v1514
      %1636 = vmax.xlane.f32.xlu0 %v1635
      %v1637 = vpop.xlane.xlu0 %1636
      %v1638 = vmax.f32 %v1515, %v1516
      %1639 = vmax.xlane.f32.xlu0 %v1638
      %v1640 = vpop.xlane.xlu0 %1639
      %v1641 = vmax.f32 %v1517, %v1518
      %1642 = vmax.xlane.f32.xlu0 %v1641
      %v1643 = vpop.xlane.xlu0 %1642
      %v1644 = vmax.f32 %v1519, %v1520
      %1645 = vmax.xlane.f32.xlu0 %v1644
      %v1646 = vpop.xlane.xlu0 %1645
      %v1647 = vmax.f32 %v1521, %v1522
      %1648 = vmax.xlane.f32.xlu0 %v1647
      %v1649 = vpop.xlane.xlu0 %1648
      %v1650 = vmax.f32 %v1523, %v1524
      %1651 = vmax.xlane.f32.xlu0 %v1650
      %v1652 = vpop.xlane.xlu0 %1651
      %v1653 = vmax.f32 %v1525, %v1559
      %v1654 = vmax.f32 %v1526, %v1562
      %v1655 = vmax.f32 %v1527, %v1565
      %v1656 = vmax.f32 %v1528, %v1568
      %v1657 = vmax.f32 %v1529, %v1571
      %v1658 = vmax.f32 %v1530, %v1574
      %v1659 = vmax.f32 %v1531, %v1577
      %v1660 = vmax.f32 %v1532, %v1580
      %v1661 = vmax.f32 %v1533, %v1583
      %v1662 = vmax.f32 %v1534, %v1586
      %v1663 = vmax.f32 %v1535, %v1589
      %v1664 = vmax.f32 %v1536, %v1592
      %v1665 = vmax.f32 %v1537, %v1595
      %v1666 = vmax.f32 %v1538, %v1598
      %v1667 = vmax.f32 %v1539, %v1601
      %v1668 = vmax.f32 %v1540, %v1604
      %v1669 = vmax.f32 %v1541, %v1607
      %v1670 = vmax.f32 %v1542, %v1610
      %v1671 = vmax.f32 %v1543, %v1613
      %v1672 = vmax.f32 %v1544, %v1616
      %v1673 = vmax.f32 %v1545, %v1619
      %v1674 = vmax.f32 %v1546, %v1622
      %v1675 = vmax.f32 %v1547, %v1625
      %v1676 = vmax.f32 %v1548, %v1628
      %v1677 = vmax.f32 %v1549, %v1631
      %v1678 = vmax.f32 %v1550, %v1634
      %v1679 = vmax.f32 %v1551, %v1637
      %v1680 = vmax.f32 %v1552, %v1640
      %v1681 = vmax.f32 %v1553, %v1643
      %v1682 = vmax.f32 %v1554, %v1646
      %v1683 = vmax.f32 %v1555, %v1649
      %v1684 = vmax.f32 %v1556, %v1652
      %v1685 = vsub.f32 %v1525, %v1653
      %v1686 = vsub.f32 %v1526, %v1654
      %v1687 = vsub.f32 %v1527, %v1655
      %v1688 = vsub.f32 %v1528, %v1656
      %v1689 = vsub.f32 %v1529, %v1657
      %v1690 = vsub.f32 %v1530, %v1658
      %v1691 = vsub.f32 %v1531, %v1659
      %v1692 = vsub.f32 %v1532, %v1660
      %v1693 = vsub.f32 %v1533, %v1661
      %v1694 = vsub.f32 %v1534, %v1662
      %v1695 = vsub.f32 %v1535, %v1663
      %v1696 = vsub.f32 %v1536, %v1664
      %v1697 = vsub.f32 %v1537, %v1665
      %v1698 = vsub.f32 %v1538, %v1666
      %v1699 = vsub.f32 %v1539, %v1667
      %v1700 = vsub.f32 %v1540, %v1668
      %v1701 = vsub.f32 %v1541, %v1669
      %v1702 = vsub.f32 %v1542, %v1670
      %v1703 = vsub.f32 %v1543, %v1671
      %v1704 = vsub.f32 %v1544, %v1672
      %v1705 = vsub.f32 %v1545, %v1673
      %v1706 = vsub.f32 %v1546, %v1674
      %v1707 = vsub.f32 %v1547, %v1675
      %v1708 = vsub.f32 %v1548, %v1676
      %v1709 = vsub.f32 %v1549, %v1677
      %v1710 = vsub.f32 %v1550, %v1678
      %v1711 = vsub.f32 %v1551, %v1679
      %v1712 = vsub.f32 %v1552, %v1680
      %v1713 = vsub.f32 %v1553, %v1681
      %v1714 = vsub.f32 %v1554, %v1682
      %v1715 = vsub.f32 %v1555, %v1683
      %v1716 = vsub.f32 %v1556, %v1684
      %v1717 = vmul.f32 %v1685, 1.442695
      %v1718 = vpow.pop %v1717
      %v1719 = vmul.f32 %v1686, 1.442695
      %v1720 = vpow.pop %v1719
      %v1721 = vmul.f32 %v1687, 1.442695
      %v1722 = vpow.pop %v1721
      %v1723 = vmul.f32 %v1688, 1.442695
      %v1724 = vpow.pop %v1723
      %v1725 = vmul.f32 %v1689, 1.442695
      %v1726 = vpow.pop %v1725
      %v1727 = vmul.f32 %v1690, 1.442695
      %v1728 = vpow.pop %v1727
      %v1729 = vmul.f32 %v1691, 1.442695
      %v1730 = vpow.pop %v1729
      %v1731 = vmul.f32 %v1692, 1.442695
      %v1732 = vpow.pop %v1731
      %v1733 = vmul.f32 %v1693, 1.442695
      %v1734 = vpow.pop %v1733
      %v1735 = vmul.f32 %v1694, 1.442695
      %v1736 = vpow.pop %v1735
      %v1737 = vmul.f32 %v1695, 1.442695
      %v1738 = vpow.pop %v1737
      %v1739 = vmul.f32 %v1696, 1.442695
      %v1740 = vpow.pop %v1739
      %v1741 = vmul.f32 %v1697, 1.442695
      %v1742 = vpow.pop %v1741
      %v1743 = vmul.f32 %v1698, 1.442695
      %v1744 = vpow.pop %v1743
      %v1745 = vmul.f32 %v1699, 1.442695
      %v1746 = vpow.pop %v1745
      %v1747 = vmul.f32 %v1700, 1.442695
      %v1748 = vpow.pop %v1747
      %v1749 = vmul.f32 %v1701, 1.442695
      %v1750 = vpow.pop %v1749
      %v1751 = vmul.f32 %v1702, 1.442695
      %v1752 = vpow.pop %v1751
      %v1753 = vmul.f32 %v1703, 1.442695
      %v1754 = vpow.pop %v1753
      %v1755 = vmul.f32 %v1704, 1.442695
      %v1756 = vpow.pop %v1755
      %v1757 = vmul.f32 %v1705, 1.442695
      %v1758 = vpow.pop %v1757
      %v1759 = vmul.f32 %v1706, 1.442695
      %v1760 = vpow.pop %v1759
      %v1761 = vmul.f32 %v1707, 1.442695
      %v1762 = vpow.pop %v1761
      %v1763 = vmul.f32 %v1708, 1.442695
      %v1764 = vpow.pop %v1763
      %v1765 = vmul.f32 %v1709, 1.442695
      %v1766 = vpow.pop %v1765
      %v1767 = vmul.f32 %v1710, 1.442695
      %v1768 = vpow.pop %v1767
      %v1769 = vmul.f32 %v1711, 1.442695
      %v1770 = vpow.pop %v1769
      %v1771 = vmul.f32 %v1712, 1.442695
      %v1772 = vpow.pop %v1771
      %v1773 = vmul.f32 %v1713, 1.442695
      %v1774 = vpow.pop %v1773
      %v1775 = vmul.f32 %v1714, 1.442695
      %v1776 = vpow.pop %v1775
      %v1777 = vmul.f32 %v1715, 1.442695
      %v1778 = vpow.pop %v1777
      %v1779 = vmul.f32 %v1716, 1.442695
      %v1780 = vpow.pop %v1779
      %1782 = vset.pattern.permute.xlu0 0
      %1783 = vperm.xlu0 %1782, %v1653
      %v1784 = vpop.permute.xlu0 %1783
      %1787 = vset.pattern.permute.xlu0 0
      %1788 = vperm.xlu0 %1787, %v1654
      %v1789 = vpop.permute.xlu0 %1788
      %1792 = vset.pattern.permute.xlu0 0
      %1793 = vperm.xlu0 %1792, %v1655
      %v1794 = vpop.permute.xlu0 %1793
      %1797 = vset.pattern.permute.xlu0 0
      %1798 = vperm.xlu0 %1797, %v1656
      %v1799 = vpop.permute.xlu0 %1798
      %1802 = vset.pattern.permute.xlu0 0
      %1803 = vperm.xlu0 %1802, %v1657
      %v1804 = vpop.permute.xlu0 %1803
      %1807 = vset.pattern.permute.xlu0 0
      %1808 = vperm.xlu0 %1807, %v1658
      %v1809 = vpop.permute.xlu0 %1808
      %1812 = vset.pattern.permute.xlu0 0
      %1813 = vperm.xlu0 %1812, %v1659
      %v1814 = vpop.permute.xlu0 %1813
      %1817 = vset.pattern.permute.xlu0 0
      %1818 = vperm.xlu0 %1817, %v1660
      %v1819 = vpop.permute.xlu0 %1818
      %1822 = vset.pattern.permute.xlu0 0
      %1823 = vperm.xlu0 %1822, %v1661
      %v1824 = vpop.permute.xlu0 %1823
      %1827 = vset.pattern.permute.xlu0 0
      %1828 = vperm.xlu0 %1827, %v1662
      %v1829 = vpop.permute.xlu0 %1828
      %1832 = vset.pattern.permute.xlu0 0
      %1833 = vperm.xlu0 %1832, %v1663
      %v1834 = vpop.permute.xlu0 %1833
      %1837 = vset.pattern.permute.xlu0 0
      %1838 = vperm.xlu0 %1837, %v1664
      %v1839 = vpop.permute.xlu0 %1838
      %1842 = vset.pattern.permute.xlu0 0
      %1843 = vperm.xlu0 %1842, %v1665
      %v1844 = vpop.permute.xlu0 %1843
      %1847 = vset.pattern.permute.xlu0 0
      %1848 = vperm.xlu0 %1847, %v1666
      %v1849 = vpop.permute.xlu0 %1848
      %1852 = vset.pattern.permute.xlu0 0
      %1853 = vperm.xlu0 %1852, %v1667
      %v1854 = vpop.permute.xlu0 %1853
      %1857 = vset.pattern.permute.xlu0 0
      %1858 = vperm.xlu0 %1857, %v1668
      %v1859 = vpop.permute.xlu0 %1858
      %1862 = vset.pattern.permute.xlu0 0
      %1863 = vperm.xlu0 %1862, %v1669
      %v1864 = vpop.permute.xlu0 %1863
      %1867 = vset.pattern.permute.xlu0 0
      %1868 = vperm.xlu0 %1867, %v1670
      %v1869 = vpop.permute.xlu0 %1868
      %1872 = vset.pattern.permute.xlu0 0
      %1873 = vperm.xlu0 %1872, %v1671
      %v1874 = vpop.permute.xlu0 %1873
      %1877 = vset.pattern.permute.xlu0 0
      %1878 = vperm.xlu0 %1877, %v1672
      %v1879 = vpop.permute.xlu0 %1878
      %1882 = vset.pattern.permute.xlu0 0
      %1883 = vperm.xlu0 %1882, %v1673
      %v1884 = vpop.permute.xlu0 %1883
      %1887 = vset.pattern.permute.xlu0 0
      %1888 = vperm.xlu0 %1887, %v1674
      %v1889 = vpop.permute.xlu0 %1888
      %1892 = vset.pattern.permute.xlu0 0
      %1893 = vperm.xlu0 %1892, %v1675
      %v1894 = vpop.permute.xlu0 %1893
      %1897 = vset.pattern.permute.xlu0 0
      %1898 = vperm.xlu0 %1897, %v1676
      %v1899 = vpop.permute.xlu0 %1898
      %1902 = vset.pattern.permute.xlu0 0
      %1903 = vperm.xlu0 %1902, %v1677
      %v1904 = vpop.permute.xlu0 %1903
      %1907 = vset.pattern.permute.xlu0 0
      %1908 = vperm.xlu0 %1907, %v1678
      %v1909 = vpop.permute.xlu0 %1908
      %1912 = vset.pattern.permute.xlu0 0
      %1913 = vperm.xlu0 %1912, %v1679
      %v1914 = vpop.permute.xlu0 %1913
      %1917 = vset.pattern.permute.xlu0 0
      %1918 = vperm.xlu0 %1917, %v1680
      %v1919 = vpop.permute.xlu0 %1918
      %1922 = vset.pattern.permute.xlu0 0
      %1923 = vperm.xlu0 %1922, %v1681
      %v1924 = vpop.permute.xlu0 %1923
      %1927 = vset.pattern.permute.xlu0 0
      %1928 = vperm.xlu0 %1927, %v1682
      %v1929 = vpop.permute.xlu0 %1928
      %1932 = vset.pattern.permute.xlu0 0
      %1933 = vperm.xlu0 %1932, %v1683
      %v1934 = vpop.permute.xlu0 %1933
      %1937 = vset.pattern.permute.xlu0 0
      %1938 = vperm.xlu0 %1937, %v1684
      %v1939 = vpop.permute.xlu0 %1938
      %v1941 = vsub.f32 %v1461, %v1784
      %v1942 = vsub.f32 %v1462, %v1784
      %v1943 = vsub.f32 %v1463, %v1789
      %v1944 = vsub.f32 %v1464, %v1789
      %v1945 = vsub.f32 %v1465, %v1794
      %v1946 = vsub.f32 %v1466, %v1794
      %v1947 = vsub.f32 %v1467, %v1799
      %v1948 = vsub.f32 %v1468, %v1799
      %v1949 = vsub.f32 %v1469, %v1804
      %v1950 = vsub.f32 %v1470, %v1804
      %v1951 = vsub.f32 %v1471, %v1809
      %v1952 = vsub.f32 %v1472, %v1809
      %v1953 = vsub.f32 %v1473, %v1814
      %v1954 = vsub.f32 %v1474, %v1814
      %v1955 = vsub.f32 %v1475, %v1819
      %v1956 = vsub.f32 %v1476, %v1819
      %v1957 = vsub.f32 %v1477, %v1824
      %v1958 = vsub.f32 %v1478, %v1824
      %v1959 = vsub.f32 %v1479, %v1829
      %v1960 = vsub.f32 %v1480, %v1829
      %v1961 = vsub.f32 %v1481, %v1834
      %v1962 = vsub.f32 %v1482, %v1834
      %v1963 = vsub.f32 %v1483, %v1839
      %v1964 = vsub.f32 %v1484, %v1839
      %v1965 = vsub.f32 %v1485, %v1844
      %v1966 = vsub.f32 %v1486, %v1844
      %v1967 = vsub.f32 %v1487, %v1849
      %v1968 = vsub.f32 %v1488, %v1849
      %v1969 = vsub.f32 %v1489, %v1854
      %v1970 = vsub.f32 %v1490, %v1854
      %v1971 = vsub.f32 %v1491, %v1859
      %v1972 = vsub.f32 %v1492, %v1859
      %v1973 = vsub.f32 %v1493, %v1864
      %v1974 = vsub.f32 %v1494, %v1864
      %v1975 = vsub.f32 %v1495, %v1869
      %v1976 = vsub.f32 %v1496, %v1869
      %v1977 = vsub.f32 %v1497, %v1874
      %v1978 = vsub.f32 %v1498, %v1874
      %v1979 = vsub.f32 %v1499, %v1879
      %v1980 = vsub.f32 %v1500, %v1879
      %v1981 = vsub.f32 %v1501, %v1884
      %v1982 = vsub.f32 %v1502, %v1884
      %v1983 = vsub.f32 %v1503, %v1889
      %v1984 = vsub.f32 %v1504, %v1889
      %v1985 = vsub.f32 %v1505, %v1894
      %v1986 = vsub.f32 %v1506, %v1894
      %v1987 = vsub.f32 %v1507, %v1899
      %v1988 = vsub.f32 %v1508, %v1899
      %v1989 = vsub.f32 %v1509, %v1904
      %v1990 = vsub.f32 %v1510, %v1904
      %v1991 = vsub.f32 %v1511, %v1909
      %v1992 = vsub.f32 %v1512, %v1909
      %v1993 = vsub.f32 %v1513, %v1914
      %v1994 = vsub.f32 %v1514, %v1914
      %v1995 = vsub.f32 %v1515, %v1919
      %v1996 = vsub.f32 %v1516, %v1919
      %v1997 = vsub.f32 %v1517, %v1924
      %v1998 = vsub.f32 %v1518, %v1924
      %v1999 = vsub.f32 %v1519, %v1929
      %v2000 = vsub.f32 %v1520, %v1929
      %v2001 = vsub.f32 %v1521, %v1934
      %v2002 = vsub.f32 %v1522, %v1934
      %v2003 = vsub.f32 %v1523, %v1939
      %v2004 = vsub.f32 %v1524, %v1939
      %v2005 = vmul.f32 %v1941, 1.442695
      %v2006 = vpow.pop %v2005
      %v2007 = vmul.f32 %v1942, 1.442695
      %v2008 = vpow.pop %v2007
      %v2009 = vmul.f32 %v1943, 1.442695
      %v2010 = vpow.pop %v2009
      %v2011 = vmul.f32 %v1944, 1.442695
      %v2012 = vpow.pop %v2011
      %v2013 = vmul.f32 %v1945, 1.442695
      %v2014 = vpow.pop %v2013
      %v2015 = vmul.f32 %v1946, 1.442695
      %v2016 = vpow.pop %v2015
      %v2017 = vmul.f32 %v1947, 1.442695
      %v2018 = vpow.pop %v2017
      %v2019 = vmul.f32 %v1948, 1.442695
      %v2020 = vpow.pop %v2019
      %v2021 = vmul.f32 %v1949, 1.442695
      %v2022 = vpow.pop %v2021
      %v2023 = vmul.f32 %v1950, 1.442695
      %v2024 = vpow.pop %v2023
      %v2025 = vmul.f32 %v1951, 1.442695
      %v2026 = vpow.pop %v2025
      %v2027 = vmul.f32 %v1952, 1.442695
      %v2028 = vpow.pop %v2027
      %v2029 = vmul.f32 %v1953, 1.442695
      %v2030 = vpow.pop %v2029
      %v2031 = vmul.f32 %v1954, 1.442695
      %v2032 = vpow.pop %v2031
      %v2033 = vmul.f32 %v1955, 1.442695
      %v2034 = vpow.pop %v2033
      %v2035 = vmul.f32 %v1956, 1.442695
      %v2036 = vpow.pop %v2035
      %v2037 = vmul.f32 %v1957, 1.442695
      %v2038 = vpow.pop %v2037
      %v2039 = vmul.f32 %v1958, 1.442695
      %v2040 = vpow.pop %v2039
      %v2041 = vmul.f32 %v1959, 1.442695
      %v2042 = vpow.pop %v2041
      %v2043 = vmul.f32 %v1960, 1.442695
      %v2044 = vpow.pop %v2043
      %v2045 = vmul.f32 %v1961, 1.442695
      %v2046 = vpow.pop %v2045
      %v2047 = vmul.f32 %v1962, 1.442695
      %v2048 = vpow.pop %v2047
      %v2049 = vmul.f32 %v1963, 1.442695
      %v2050 = vpow.pop %v2049
      %v2051 = vmul.f32 %v1964, 1.442695
      %v2052 = vpow.pop %v2051
      %v2053 = vmul.f32 %v1965, 1.442695
      %v2054 = vpow.pop %v2053
      %v2055 = vmul.f32 %v1966, 1.442695
      %v2056 = vpow.pop %v2055
      %v2057 = vmul.f32 %v1967, 1.442695
      %v2058 = vpow.pop %v2057
      %v2059 = vmul.f32 %v1968, 1.442695
      %v2060 = vpow.pop %v2059
      %v2061 = vmul.f32 %v1969, 1.442695
      %v2062 = vpow.pop %v2061
      %v2063 = vmul.f32 %v1970, 1.442695
      %v2064 = vpow.pop %v2063
      %v2065 = vmul.f32 %v1971, 1.442695
      %v2066 = vpow.pop %v2065
      %v2067 = vmul.f32 %v1972, 1.442695
      %v2068 = vpow.pop %v2067
      %v2069 = vmul.f32 %v1973, 1.442695
      %v2070 = vpow.pop %v2069
      %v2071 = vmul.f32 %v1974, 1.442695
      %v2072 = vpow.pop %v2071
      %v2073 = vmul.f32 %v1975, 1.442695
      %v2074 = vpow.pop %v2073
      %v2075 = vmul.f32 %v1976, 1.442695
      %v2076 = vpow.pop %v2075
      %v2077 = vmul.f32 %v1977, 1.442695
      %v2078 = vpow.pop %v2077
      %v2079 = vmul.f32 %v1978, 1.442695
      %v2080 = vpow.pop %v2079
      %v2081 = vmul.f32 %v1979, 1.442695
      %v2082 = vpow.pop %v2081
      %v2083 = vmul.f32 %v1980, 1.442695
      %v2084 = vpow.pop %v2083
      %v2085 = vmul.f32 %v1981, 1.442695
      %v2086 = vpow.pop %v2085
      %v2087 = vmul.f32 %v1982, 1.442695
      %v2088 = vpow.pop %v2087
      %v2089 = vmul.f32 %v1983, 1.442695
      %v2090 = vpow.pop %v2089
      %v2091 = vmul.f32 %v1984, 1.442695
      %v2092 = vpow.pop %v2091
      %v2093 = vmul.f32 %v1985, 1.442695
      %v2094 = vpow.pop %v2093
      %v2095 = vmul.f32 %v1986, 1.442695
      %v2096 = vpow.pop %v2095
      %v2097 = vmul.f32 %v1987, 1.442695
      %v2098 = vpow.pop %v2097
      %v2099 = vmul.f32 %v1988, 1.442695
      %v2100 = vpow.pop %v2099
      %v2101 = vmul.f32 %v1989, 1.442695
      %v2102 = vpow.pop %v2101
      %v2103 = vmul.f32 %v1990, 1.442695
      %v2104 = vpow.pop %v2103
      %v2105 = vmul.f32 %v1991, 1.442695
      %v2106 = vpow.pop %v2105
      %v2107 = vmul.f32 %v1992, 1.442695
      %v2108 = vpow.pop %v2107
      %v2109 = vmul.f32 %v1993, 1.442695
      %v2110 = vpow.pop %v2109
      %v2111 = vmul.f32 %v1994, 1.442695
      %v2112 = vpow.pop %v2111
      %v2113 = vmul.f32 %v1995, 1.442695
      %v2114 = vpow.pop %v2113
      %v2115 = vmul.f32 %v1996, 1.442695
      %v2116 = vpow.pop %v2115
      %v2117 = vmul.f32 %v1997, 1.442695
      %v2118 = vpow.pop %v2117
      %v2119 = vmul.f32 %v1998, 1.442695
      %v2120 = vpow.pop %v2119
      %v2121 = vmul.f32 %v1999, 1.442695
      %v2122 = vpow.pop %v2121
      %v2123 = vmul.f32 %v2000, 1.442695
      %v2124 = vpow.pop %v2123
      %v2125 = vmul.f32 %v2001, 1.442695
      %v2126 = vpow.pop %v2125
      %v2127 = vmul.f32 %v2002, 1.442695
      %v2128 = vpow.pop %v2127
      %v2129 = vmul.f32 %v2003, 1.442695
      %v2130 = vpow.pop %v2129
      %v2131 = vmul.f32 %v2004, 1.442695
      %v2132 = vpow.pop %v2131
      %v2133 = vld [vmem:[#allocation4] sm:$0xff]
      %v2134 = vld [vmem:[#allocation4 + $0x8] sm:$0xff]
      %v2135 = vld [vmem:[#allocation4 + $0x10] sm:$0xff]
      %v2136 = vld [vmem:[#allocation4 + $0x18] sm:$0xff]
      %v2137 = vld [vmem:[#allocation4 + $0x20] sm:$0xff]
      %v2138 = vld [vmem:[#allocation4 + $0x28] sm:$0xff]
      %v2139 = vld [vmem:[#allocation4 + $0x30] sm:$0xff]
      %v2140 = vld [vmem:[#allocation4 + $0x38] sm:$0xff]
      %v2141 = vld [vmem:[#allocation4 + $0x40] sm:$0xff]
      %v2142 = vld [vmem:[#allocation4 + $0x48] sm:$0xff]
      %v2143 = vld [vmem:[#allocation4 + $0x50] sm:$0xff]
      %v2144 = vld [vmem:[#allocation4 + $0x58] sm:$0xff]
      %v2145 = vld [vmem:[#allocation4 + $0x60] sm:$0xff]
      %v2146 = vld [vmem:[#allocation4 + $0x68] sm:$0xff]
      %v2147 = vld [vmem:[#allocation4 + $0x70] sm:$0xff]
      %v2148 = vld [vmem:[#allocation4 + $0x78] sm:$0xff]
      %v2149 = vld [vmem:[#allocation4 + $0x80] sm:$0xff]
      %v2150 = vld [vmem:[#allocation4 + $0x88] sm:$0xff]
      %v2151 = vld [vmem:[#allocation4 + $0x90] sm:$0xff]
      %v2152 = vld [vmem:[#allocation4 + $0x98] sm:$0xff]
      %v2153 = vld [vmem:[#allocation4 + $0xa0] sm:$0xff]
      %v2154 = vld [vmem:[#allocation4 + $0xa8] sm:$0xff]
      %v2155 = vld [vmem:[#allocation4 + $0xb0] sm:$0xff]
      %v2156 = vld [vmem:[#allocation4 + $0xb8] sm:$0xff]
      %v2157 = vld [vmem:[#allocation4 + $0xc0] sm:$0xff]
      %v2158 = vld [vmem:[#allocation4 + $0xc8] sm:$0xff]
      %v2159 = vld [vmem:[#allocation4 + $0xd0] sm:$0xff]
      %v2160 = vld [vmem:[#allocation4 + $0xd8] sm:$0xff]
      %v2161 = vld [vmem:[#allocation4 + $0xe0] sm:$0xff]
      %v2162 = vld [vmem:[#allocation4 + $0xe8] sm:$0xff]
      %v2163 = vld [vmem:[#allocation4 + $0xf0] sm:$0xff]
      %v2164 = vld [vmem:[#allocation4 + $0xf8] sm:$0xff]
      %v2165 = vmul.f32 %v1718, %v2133
      %v2166 = vmul.f32 %v1720, %v2134
      %v2167 = vmul.f32 %v1722, %v2135
      %v2168 = vmul.f32 %v1724, %v2136
      %v2169 = vmul.f32 %v1726, %v2137
      %v2170 = vmul.f32 %v1728, %v2138
      %v2171 = vmul.f32 %v1730, %v2139
      %v2172 = vmul.f32 %v1732, %v2140
      %v2173 = vmul.f32 %v1734, %v2141
      %v2174 = vmul.f32 %v1736, %v2142
      %v2175 = vmul.f32 %v1738, %v2143
      %v2176 = vmul.f32 %v1740, %v2144
      %v2177 = vmul.f32 %v1742, %v2145
      %v2178 = vmul.f32 %v1744, %v2146
      %v2179 = vmul.f32 %v1746, %v2147
      %v2180 = vmul.f32 %v1748, %v2148
      %v2181 = vmul.f32 %v1750, %v2149
      %v2182 = vmul.f32 %v1752, %v2150
      %v2183 = vmul.f32 %v1754, %v2151
      %v2184 = vmul.f32 %v1756, %v2152
      %v2185 = vmul.f32 %v1758, %v2153
      %v2186 = vmul.f32 %v1760, %v2154
      %v2187 = vmul.f32 %v1762, %v2155
      %v2188 = vmul.f32 %v1764, %v2156
      %v2189 = vmul.f32 %v1766, %v2157
      %v2190 = vmul.f32 %v1768, %v2158
      %v2191 = vmul.f32 %v1770, %v2159
      %v2192 = vmul.f32 %v1772, %v2160
      %v2193 = vmul.f32 %v1774, %v2161
      %v2194 = vmul.f32 %v1776, %v2162
      %v2195 = vmul.f32 %v1778, %v2163
      %v2196 = vmul.f32 %v1780, %v2164
      %v2197 = vadd.f32 %v2006, %v2008
      %2198 = vadd.xlane.f32.xlu0 %v2197
      %v2199 = vpop.xlane.xlu0 %2198
      %v2200 = vadd.f32 %v2010, %v2012
      %2201 = vadd.xlane.f32.xlu0 %v2200
      %v2202 = vpop.xlane.xlu0 %2201
      %v2203 = vadd.f32 %v2014, %v2016
      %2204 = vadd.xlane.f32.xlu0 %v2203
      %v2205 = vpop.xlane.xlu0 %2204
      %v2206 = vadd.f32 %v2018, %v2020
      %2207 = vadd.xlane.f32.xlu0 %v2206
      %v2208 = vpop.xlane.xlu0 %2207
      %v2209 = vadd.f32 %v2022, %v2024
      %2210 = vadd.xlane.f32.xlu0 %v2209
      %v2211 = vpop.xlane.xlu0 %2210
      %v2212 = vadd.f32 %v2026, %v2028
      %2213 = vadd.xlane.f32.xlu0 %v2212
      %v2214 = vpop.xlane.xlu0 %2213
      %v2215 = vadd.f32 %v2030, %v2032
      %2216 = vadd.xlane.f32.xlu0 %v2215
      %v2217 = vpop.xlane.xlu0 %2216
      %v2218 = vadd.f32 %v2034, %v2036
      %2219 = vadd.xlane.f32.xlu0 %v2218
      %v2220 = vpop.xlane.xlu0 %2219
      %v2221 = vadd.f32 %v2038, %v2040
      %2222 = vadd.xlane.f32.xlu0 %v2221
      %v2223 = vpop.xlane.xlu0 %2222
      %v2224 = vadd.f32 %v2042, %v2044
      %2225 = vadd.xlane.f32.xlu0 %v2224
      %v2226 = vpop.xlane.xlu0 %2225
      %v2227 = vadd.f32 %v2046, %v2048
      %2228 = vadd.xlane.f32.xlu0 %v2227
      %v2229 = vpop.xlane.xlu0 %2228
      %v2230 = vadd.f32 %v2050, %v2052
      %2231 = vadd.xlane.f32.xlu0 %v2230
      %v2232 = vpop.xlane.xlu0 %2231
      %v2233 = vadd.f32 %v2054, %v2056
      %2234 = vadd.xlane.f32.xlu0 %v2233
      %v2235 = vpop.xlane.xlu0 %2234
      %v2236 = vadd.f32 %v2058, %v2060
      %2237 = vadd.xlane.f32.xlu0 %v2236
      %v2238 = vpop.xlane.xlu0 %2237
      %v2239 = vadd.f32 %v2062, %v2064
      %2240 = vadd.xlane.f32.xlu0 %v2239
      %v2241 = vpop.xlane.xlu0 %2240
      %v2242 = vadd.f32 %v2066, %v2068
      %2243 = vadd.xlane.f32.xlu0 %v2242
      %v2244 = vpop.xlane.xlu0 %2243
      %v2245 = vadd.f32 %v2070, %v2072
      %2246 = vadd.xlane.f32.xlu0 %v2245
      %v2247 = vpop.xlane.xlu0 %2246
      %v2248 = vadd.f32 %v2074, %v2076
      %2249 = vadd.xlane.f32.xlu0 %v2248
      %v2250 = vpop.xlane.xlu0 %2249
      %v2251 = vadd.f32 %v2078, %v2080
      %2252 = vadd.xlane.f32.xlu0 %v2251
      %v2253 = vpop.xlane.xlu0 %2252
      %v2254 = vadd.f32 %v2082, %v2084
      %2255 = vadd.xlane.f32.xlu0 %v2254
      %v2256 = vpop.xlane.xlu0 %2255
      %v2257 = vadd.f32 %v2086, %v2088
      %2258 = vadd.xlane.f32.xlu0 %v2257
      %v2259 = vpop.xlane.xlu0 %2258
      %v2260 = vadd.f32 %v2090, %v2092
      %2261 = vadd.xlane.f32.xlu0 %v2260
      %v2262 = vpop.xlane.xlu0 %2261
      %v2263 = vadd.f32 %v2094, %v2096
      %2264 = vadd.xlane.f32.xlu0 %v2263
      %v2265 = vpop.xlane.xlu0 %2264
      %v2266 = vadd.f32 %v2098, %v2100
      %2267 = vadd.xlane.f32.xlu0 %v2266
      %v2268 = vpop.xlane.xlu0 %2267
      %v2269 = vadd.f32 %v2102, %v2104
      %2270 = vadd.xlane.f32.xlu0 %v2269
      %v2271 = vpop.xlane.xlu0 %2270
      %v2272 = vadd.f32 %v2106, %v2108
      %2273 = vadd.xlane.f32.xlu0 %v2272
      %v2274 = vpop.xlane.xlu0 %2273
      %v2275 = vadd.f32 %v2110, %v2112
      %2276 = vadd.xlane.f32.xlu0 %v2275
      %v2277 = vpop.xlane.xlu0 %2276
      %v2278 = vadd.f32 %v2114, %v2116
      %2279 = vadd.xlane.f32.xlu0 %v2278
      %v2280 = vpop.xlane.xlu0 %2279
      %v2281 = vadd.f32 %v2118, %v2120
      %2282 = vadd.xlane.f32.xlu0 %v2281
      %v2283 = vpop.xlane.xlu0 %2282
      %v2284 = vadd.f32 %v2122, %v2124
      %2285 = vadd.xlane.f32.xlu0 %v2284
      %v2286 = vpop.xlane.xlu0 %2285
      %v2287 = vadd.f32 %v2126, %v2128
      %2288 = vadd.xlane.f32.xlu0 %v2287
      %v2289 = vpop.xlane.xlu0 %2288
      %v2290 = vadd.f32 %v2130, %v2132
      %2291 = vadd.xlane.f32.xlu0 %v2290
      %v2292 = vpop.xlane.xlu0 %2291
      %v2293 = vadd.f32 %v2165, %v2199
      %v2294 = vadd.f32 %v2166, %v2202
      %v2295 = vadd.f32 %v2167, %v2205
      %v2296 = vadd.f32 %v2168, %v2208
      %v2297 = vadd.f32 %v2169, %v2211
      %v2298 = vadd.f32 %v2170, %v2214
      %v2299 = vadd.f32 %v2171, %v2217
      %v2300 = vadd.f32 %v2172, %v2220
      %v2301 = vadd.f32 %v2173, %v2223
      %v2302 = vadd.f32 %v2174, %v2226
      %v2303 = vadd.f32 %v2175, %v2229
      %v2304 = vadd.f32 %v2176, %v2232
      %v2305 = vadd.f32 %v2177, %v2235
      %v2306 = vadd.f32 %v2178, %v2238
      %v2307 = vadd.f32 %v2179, %v2241
      %v2308 = vadd.f32 %v2180, %v2244
      %v2309 = vadd.f32 %v2181, %v2247
      %v2310 = vadd.f32 %v2182, %v2250
      %v2311 = vadd.f32 %v2183, %v2253
      %v2312 = vadd.f32 %v2184, %v2256
      %v2313 = vadd.f32 %v2185, %v2259
      %v2314 = vadd.f32 %v2186, %v2262
      %v2315 = vadd.f32 %v2187, %v2265
      %v2316 = vadd.f32 %v2188, %v2268
      %v2317 = vadd.f32 %v2189, %v2271
      %v2318 = vadd.f32 %v2190, %v2274
      %v2319 = vadd.f32 %v2191, %v2277
      %v2320 = vadd.f32 %v2192, %v2280
      %v2321 = vadd.f32 %v2193, %v2283
      %v2322 = vadd.f32 %v2194, %v2286
      %v2323 = vadd.f32 %v2195, %v2289
      %v2324 = vadd.f32 %v2196, %v2292
      %vm2325 = vcmask 7168
      %2326 = vst.msk [vmem:[#allocation4] sm:$0xff] %vm2325, %v2293
      %2327 = vst.msk [vmem:[#allocation4 + $0x8] sm:$0xff] %vm2325, %v2294
      %2328 = vst.msk [vmem:[#allocation4 + $0x10] sm:$0xff] %vm2325, %v2295
      %2329 = vst.msk [vmem:[#allocation4 + $0x18] sm:$0xff] %vm2325, %v2296
      %2330 = vst.msk [vmem:[#allocation4 + $0x20] sm:$0xff] %vm2325, %v2297
      %2331 = vst.msk [vmem:[#allocation4 + $0x28] sm:$0xff] %vm2325, %v2298
      %2332 = vst.msk [vmem:[#allocation4 + $0x30] sm:$0xff] %vm2325, %v2299
      %2333 = vst.msk [vmem:[#allocation4 + $0x38] sm:$0xff] %vm2325, %v2300
      %2334 = vst.msk [vmem:[#allocation4 + $0x40] sm:$0xff] %vm2325, %v2301
      %2335 = vst.msk [vmem:[#allocation4 + $0x48] sm:$0xff] %vm2325, %v2302
      %2336 = vst.msk [vmem:[#allocation4 + $0x50] sm:$0xff] %vm2325, %v2303
      %2337 = vst.msk [vmem:[#allocation4 + $0x58] sm:$0xff] %vm2325, %v2304
      %2338 = vst.msk [vmem:[#allocation4 + $0x60] sm:$0xff] %vm2325, %v2305
      %2339 = vst.msk [vmem:[#allocation4 + $0x68] sm:$0xff] %vm2325, %v2306
      %2340 = vst.msk [vmem:[#allocation4 + $0x70] sm:$0xff] %vm2325, %v2307
      %2341 = vst.msk [vmem:[#allocation4 + $0x78] sm:$0xff] %vm2325, %v2308
      %2342 = vst.msk [vmem:[#allocation4 + $0x80] sm:$0xff] %vm2325, %v2309
      %2343 = vst.msk [vmem:[#allocation4 + $0x88] sm:$0xff] %vm2325, %v2310
      %2344 = vst.msk [vmem:[#allocation4 + $0x90] sm:$0xff] %vm2325, %v2311
      %2345 = vst.msk [vmem:[#allocation4 + $0x98] sm:$0xff] %vm2325, %v2312
      %2346 = vst.msk [vmem:[#allocation4 + $0xa0] sm:$0xff] %vm2325, %v2313
      %2347 = vst.msk [vmem:[#allocation4 + $0xa8] sm:$0xff] %vm2325, %v2314
      %2348 = vst.msk [vmem:[#allocation4 + $0xb0] sm:$0xff] %vm2325, %v2315
      %2349 = vst.msk [vmem:[#allocation4 + $0xb8] sm:$0xff] %vm2325, %v2316
      %2350 = vst.msk [vmem:[#allocation4 + $0xc0] sm:$0xff] %vm2325, %v2317
      %2351 = vst.msk [vmem:[#allocation4 + $0xc8] sm:$0xff] %vm2325, %v2318
      %2352 = vst.msk [vmem:[#allocation4 + $0xd0] sm:$0xff] %vm2325, %v2319
      %2353 = vst.msk [vmem:[#allocation4 + $0xd8] sm:$0xff] %vm2325, %v2320
      %2354 = vst.msk [vmem:[#allocation4 + $0xe0] sm:$0xff] %vm2325, %v2321
      %2355 = vst.msk [vmem:[#allocation4 + $0xe8] sm:$0xff] %vm2325, %v2322
      %2356 = vst.msk [vmem:[#allocation4 + $0xf0] sm:$0xff] %vm2325, %v2323
      %2357 = vst.msk [vmem:[#allocation4 + $0xf8] sm:$0xff] %vm2325, %v2324
      %v2358 = vld [vmem:[#allocation5] sm:$0xff]
      %v2359 = vld [vmem:[#allocation5 + $0x8] sm:$0xff]
      %v2360 = vld [vmem:[#allocation5 + $0x10] sm:$0xff]
      %v2361 = vld [vmem:[#allocation5 + $0x18] sm:$0xff]
      %v2362 = vld [vmem:[#allocation5 + $0x20] sm:$0xff]
      %v2363 = vld [vmem:[#allocation5 + $0x28] sm:$0xff]
      %v2364 = vld [vmem:[#allocation5 + $0x30] sm:$0xff]
      %v2365 = vld [vmem:[#allocation5 + $0x38] sm:$0xff]
      %v2366 = vld [vmem:[#allocation5 + $0x40] sm:$0xff]
      %v2367 = vld [vmem:[#allocation5 + $0x48] sm:$0xff]
      %v2368 = vld [vmem:[#allocation5 + $0x50] sm:$0xff]
      %v2369 = vld [vmem:[#allocation5 + $0x58] sm:$0xff]
      %v2370 = vld [vmem:[#allocation5 + $0x60] sm:$0xff]
      %v2371 = vld [vmem:[#allocation5 + $0x68] sm:$0xff]
      %v2372 = vld [vmem:[#allocation5 + $0x70] sm:$0xff]
      %v2373 = vld [vmem:[#allocation5 + $0x78] sm:$0xff]
      %v2374 = vld [vmem:[#allocation5 + $0x80] sm:$0xff]
      %v2375 = vld [vmem:[#allocation5 + $0x88] sm:$0xff]
      %v2376 = vld [vmem:[#allocation5 + $0x90] sm:$0xff]
      %v2377 = vld [vmem:[#allocation5 + $0x98] sm:$0xff]
      %v2378 = vld [vmem:[#allocation5 + $0xa0] sm:$0xff]
      %v2379 = vld [vmem:[#allocation5 + $0xa8] sm:$0xff]
      %v2380 = vld [vmem:[#allocation5 + $0xb0] sm:$0xff]
      %v2381 = vld [vmem:[#allocation5 + $0xb8] sm:$0xff]
      %v2382 = vld [vmem:[#allocation5 + $0xc0] sm:$0xff]
      %v2383 = vld [vmem:[#allocation5 + $0xc8] sm:$0xff]
      %v2384 = vld [vmem:[#allocation5 + $0xd0] sm:$0xff]
      %v2385 = vld [vmem:[#allocation5 + $0xd8] sm:$0xff]
      %v2386 = vld [vmem:[#allocation5 + $0xe0] sm:$0xff]
      %v2387 = vld [vmem:[#allocation5 + $0xe8] sm:$0xff]
      %v2388 = vld [vmem:[#allocation5 + $0xf0] sm:$0xff]
      %v2389 = vld [vmem:[#allocation5 + $0xf8] sm:$0xff]
      %2391 = vset.pattern.permute.xlu0 0
      %2392 = vperm.xlu0 %2391, %v1718
      %v2393 = vpop.permute.xlu0 %2392
      %2396 = vset.pattern.permute.xlu0 0
      %2397 = vperm.xlu0 %2396, %v1720
      %v2398 = vpop.permute.xlu0 %2397
      %2401 = vset.pattern.permute.xlu0 0
      %2402 = vperm.xlu0 %2401, %v1722
      %v2403 = vpop.permute.xlu0 %2402
      %2406 = vset.pattern.permute.xlu0 0
      %2407 = vperm.xlu0 %2406, %v1724
      %v2408 = vpop.permute.xlu0 %2407
      %2411 = vset.pattern.permute.xlu0 0
      %2412 = vperm.xlu0 %2411, %v1726
      %v2413 = vpop.permute.xlu0 %2412
      %2416 = vset.pattern.permute.xlu0 0
      %2417 = vperm.xlu0 %2416, %v1728
      %v2418 = vpop.permute.xlu0 %2417
      %2421 = vset.pattern.permute.xlu0 0
      %2422 = vperm.xlu0 %2421, %v1730
      %v2423 = vpop.permute.xlu0 %2422
      %2426 = vset.pattern.permute.xlu0 0
      %2427 = vperm.xlu0 %2426, %v1732
      %v2428 = vpop.permute.xlu0 %2427
      %2431 = vset.pattern.permute.xlu0 0
      %2432 = vperm.xlu0 %2431, %v1734
      %v2433 = vpop.permute.xlu0 %2432
      %2436 = vset.pattern.permute.xlu0 0
      %2437 = vperm.xlu0 %2436, %v1736
      %v2438 = vpop.permute.xlu0 %2437
      %2441 = vset.pattern.permute.xlu0 0
      %2442 = vperm.xlu0 %2441, %v1738
      %v2443 = vpop.permute.xlu0 %2442
      %2446 = vset.pattern.permute.xlu0 0
      %2447 = vperm.xlu0 %2446, %v1740
      %v2448 = vpop.permute.xlu0 %2447
      %2451 = vset.pattern.permute.xlu0 0
      %2452 = vperm.xlu0 %2451, %v1742
      %v2453 = vpop.permute.xlu0 %2452
      %2456 = vset.pattern.permute.xlu0 0
      %2457 = vperm.xlu0 %2456, %v1744
      %v2458 = vpop.permute.xlu0 %2457
      %2461 = vset.pattern.permute.xlu0 0
      %2462 = vperm.xlu0 %2461, %v1746
      %v2463 = vpop.permute.xlu0 %2462
      %2466 = vset.pattern.permute.xlu0 0
      %2467 = vperm.xlu0 %2466, %v1748
      %v2468 = vpop.permute.xlu0 %2467
      %2471 = vset.pattern.permute.xlu0 0
      %2472 = vperm.xlu0 %2471, %v1750
      %v2473 = vpop.permute.xlu0 %2472
      %2476 = vset.pattern.permute.xlu0 0
      %2477 = vperm.xlu0 %2476, %v1752
      %v2478 = vpop.permute.xlu0 %2477
      %2481 = vset.pattern.permute.xlu0 0
      %2482 = vperm.xlu0 %2481, %v1754
      %v2483 = vpop.permute.xlu0 %2482
      %2486 = vset.pattern.permute.xlu0 0
      %2487 = vperm.xlu0 %2486, %v1756
      %v2488 = vpop.permute.xlu0 %2487
      %2491 = vset.pattern.permute.xlu0 0
      %2492 = vperm.xlu0 %2491, %v1758
      %v2493 = vpop.permute.xlu0 %2492
      %2496 = vset.pattern.permute.xlu0 0
      %2497 = vperm.xlu0 %2496, %v1760
      %v2498 = vpop.permute.xlu0 %2497
      %2501 = vset.pattern.permute.xlu0 0
      %2502 = vperm.xlu0 %2501, %v1762
      %v2503 = vpop.permute.xlu0 %2502
      %2506 = vset.pattern.permute.xlu0 0
      %2507 = vperm.xlu0 %2506, %v1764
      %v2508 = vpop.permute.xlu0 %2507
      %2511 = vset.pattern.permute.xlu0 0
      %2512 = vperm.xlu0 %2511, %v1766
      %v2513 = vpop.permute.xlu0 %2512
      %2516 = vset.pattern.permute.xlu0 0
      %2517 = vperm.xlu0 %2516, %v1768
      %v2518 = vpop.permute.xlu0 %2517
      %2521 = vset.pattern.permute.xlu0 0
      %2522 = vperm.xlu0 %2521, %v1770
      %v2523 = vpop.permute.xlu0 %2522
      %2526 = vset.pattern.permute.xlu0 0
      %2527 = vperm.xlu0 %2526, %v1772
      %v2528 = vpop.permute.xlu0 %2527
      %2531 = vset.pattern.permute.xlu0 0
      %2532 = vperm.xlu0 %2531, %v1774
      %v2533 = vpop.permute.xlu0 %2532
      %2536 = vset.pattern.permute.xlu0 0
      %2537 = vperm.xlu0 %2536, %v1776
      %v2538 = vpop.permute.xlu0 %2537
      %2541 = vset.pattern.permute.xlu0 0
      %2542 = vperm.xlu0 %2541, %v1778
      %v2543 = vpop.permute.xlu0 %2542
      %2546 = vset.pattern.permute.xlu0 0
      %2547 = vperm.xlu0 %2546, %v1780
      %v2548 = vpop.permute.xlu0 %2547
      %v2550 = vmul.f32 %v2393, %v2358
      %v2551 = vmul.f32 %v2398, %v2359
      %v2552 = vmul.f32 %v2403, %v2360
      %v2553 = vmul.f32 %v2408, %v2361
      %v2554 = vmul.f32 %v2413, %v2362
      %v2555 = vmul.f32 %v2418, %v2363
      %v2556 = vmul.f32 %v2423, %v2364
      %v2557 = vmul.f32 %v2428, %v2365
      %v2558 = vmul.f32 %v2433, %v2366
      %v2559 = vmul.f32 %v2438, %v2367
      %v2560 = vmul.f32 %v2443, %v2368
      %v2561 = vmul.f32 %v2448, %v2369
      %v2562 = vmul.f32 %v2453, %v2370
      %v2563 = vmul.f32 %v2458, %v2371
      %v2564 = vmul.f32 %v2463, %v2372
      %v2565 = vmul.f32 %v2468, %v2373
      %v2566 = vmul.f32 %v2473, %v2374
      %v2567 = vmul.f32 %v2478, %v2375
      %v2568 = vmul.f32 %v2483, %v2376
      %v2569 = vmul.f32 %v2488, %v2377
      %v2570 = vmul.f32 %v2493, %v2378
      %v2571 = vmul.f32 %v2498, %v2379
      %v2572 = vmul.f32 %v2503, %v2380
      %v2573 = vmul.f32 %v2508, %v2381
      %v2574 = vmul.f32 %v2513, %v2382
      %v2575 = vmul.f32 %v2518, %v2383
      %v2576 = vmul.f32 %v2523, %v2384
      %v2577 = vmul.f32 %v2528, %v2385
      %v2578 = vmul.f32 %v2533, %v2386
      %v2579 = vmul.f32 %v2538, %v2387
      %v2580 = vmul.f32 %v2543, %v2388
      %v2581 = vmul.f32 %v2548, %v2389
      %v2582 = vpack.c.bf16 %v2010, %v2006
      %v2583 = vpack.c.bf16 %v2012, %v2008
      %v2584 = vpack.c.bf16 %v2018, %v2014
      %v2585 = vpack.c.bf16 %v2020, %v2016
      %v2586 = vpack.c.bf16 %v2026, %v2022
      %v2587 = vpack.c.bf16 %v2028, %v2024
      %v2588 = vpack.c.bf16 %v2034, %v2030
      %v2589 = vpack.c.bf16 %v2036, %v2032
      %v2590 = vpack.c.bf16 %v2042, %v2038
      %v2591 = vpack.c.bf16 %v2044, %v2040
      %v2592 = vpack.c.bf16 %v2050, %v2046
      %v2593 = vpack.c.bf16 %v2052, %v2048
      %v2594 = vpack.c.bf16 %v2058, %v2054
      %v2595 = vpack.c.bf16 %v2060, %v2056
      %v2596 = vpack.c.bf16 %v2066, %v2062
      %v2597 = vpack.c.bf16 %v2068, %v2064
      %v2598 = vpack.c.bf16 %v2074, %v2070
      %v2599 = vpack.c.bf16 %v2076, %v2072
      %v2600 = vpack.c.bf16 %v2082, %v2078
      %v2601 = vpack.c.bf16 %v2084, %v2080
      %v2602 = vpack.c.bf16 %v2090, %v2086
      %v2603 = vpack.c.bf16 %v2092, %v2088
      %v2604 = vpack.c.bf16 %v2098, %v2094
      %v2605 = vpack.c.bf16 %v2100, %v2096
      %v2606 = vpack.c.bf16 %v2106, %v2102
      %v2607 = vpack.c.bf16 %v2108, %v2104
      %v2608 = vpack.c.bf16 %v2114, %v2110
      %v2609 = vpack.c.bf16 %v2116, %v2112
      %v2610 = vpack.c.bf16 %v2122, %v2118
      %v2611 = vpack.c.bf16 %v2124, %v2120
      %v2612 = vpack.c.bf16 %v2130, %v2126
      %v2613 = vpack.c.bf16 %v2132, %v2128
      %v2646 = vunpack.c.l.b16 %v1115
      %v2647 = vunpack.c.l.b16 %v1116
      %v2648 = vunpack.c.l.b16 %v1117
      %v2649 = vunpack.c.l.b16 %v1118
      %v2650 = vunpack.c.l.b16 %v1119
      %v2651 = vunpack.c.l.b16 %v1120
      %v2652 = vunpack.c.l.b16 %v1121
      %v2653 = vunpack.c.l.b16 %v1122
      %v2654 = vunpack.c.l.b16 %v1123
      %v2655 = vunpack.c.l.b16 %v1124
      %v2656 = vunpack.c.l.b16 %v1125
      %v2657 = vunpack.c.l.b16 %v1126
      %v2658 = vunpack.c.l.b16 %v1127
      %v2659 = vunpack.c.l.b16 %v1128
      %v2660 = vunpack.c.l.b16 %v1129
      %v2661 = vunpack.c.l.b16 %v1130
      %v2662 = vunpack.c.l.b16 %v1131
      %v2663 = vunpack.c.l.b16 %v1132
      %v2664 = vunpack.c.l.b16 %v1133
      %v2665 = vunpack.c.l.b16 %v1134
      %v2666 = vunpack.c.l.b16 %v1135
      %v2667 = vunpack.c.l.b16 %v1136
      %v2668 = vunpack.c.l.b16 %v1137
      %v2669 = vunpack.c.l.b16 %v1138
      %v2670 = vunpack.c.l.b16 %v1139
      %v2671 = vunpack.c.l.b16 %v1140
      %v2672 = vunpack.c.l.b16 %v1141
      %v2673 = vunpack.c.l.b16 %v1142
      %v2674 = vunpack.c.l.b16 %v1143
      %v2675 = vunpack.c.l.b16 %v1144
      %v2676 = vunpack.c.l.b16 %v1145
      %v2677 = vunpack.c.l.b16 %v1146
      %v2678 = vpack.c.b16 %v2647, %v2646
      %v2679 = vpack.c.b16 %v2649, %v2648
      %v2680 = vpack.c.b16 %v2651, %v2650
      %v2681 = vpack.c.b16 %v2653, %v2652
      %v2682 = vpack.c.b16 %v2655, %v2654
      %v2683 = vpack.c.b16 %v2657, %v2656
      %v2684 = vpack.c.b16 %v2659, %v2658
      %v2685 = vpack.c.b16 %v2661, %v2660
      %v2686 = vpack.c.b16 %v2663, %v2662
      %v2687 = vpack.c.b16 %v2665, %v2664
      %v2688 = vpack.c.b16 %v2667, %v2666
      %v2689 = vpack.c.b16 %v2669, %v2668
      %v2690 = vpack.c.b16 %v2671, %v2670
      %v2691 = vpack.c.b16 %v2673, %v2672
      %v2692 = vpack.c.b16 %v2675, %v2674
      %v2693 = vpack.c.b16 %v2677, %v2676
      %2710 = vmatprep.subr.bf16.mxu0 0
      %2711 = vmatpush1.bf16.msra.mxu0 %v2678
      %2712 = vmatprep.subr.bf16.mxu0 0
      %2713 = vmatpush1.bf16.msra.mxu0 %v2679
      %2714 = vmatprep.subr.bf16.mxu0 0
      %2715 = vmatpush1.bf16.msra.mxu0 %v2680
      %2716 = vmatprep.subr.bf16.mxu0 0
      %2717 = vmatpush1.bf16.msra.mxu0 %v2681
      %2718 = vmatprep.subr.bf16.mxu0 0
      %2719 = vmatpush1.bf16.msra.mxu0 %v2682
      %2720 = vmatprep.subr.bf16.mxu0 0
      %2721 = vmatpush1.bf16.msra.mxu0 %v2683
      %2722 = vmatprep.subr.bf16.mxu0 0
      %2723 = vmatpush1.bf16.msra.mxu0 %v2684
      %2724 = vmatprep.subr.bf16.mxu0 0
      %2725 = vmatpush1.bf16.msra.mxu0 %v2685
      %2726 = vmatprep.subr.bf16.mxu0 0
      %2727 = vmatpush1.bf16.msra.mxu0 %v2686
      %2728 = vmatprep.subr.bf16.mxu0 0
      %2729 = vmatpush1.bf16.msra.mxu0 %v2687
      %2730 = vmatprep.subr.bf16.mxu0 0
      %2731 = vmatpush1.bf16.msra.mxu0 %v2688
      %2732 = vmatprep.subr.bf16.mxu0 0
      %2733 = vmatpush1.bf16.msra.mxu0 %v2689
      %2734 = vmatprep.subr.bf16.mxu0 0
      %2735 = vmatpush1.bf16.msra.mxu0 %v2690
      %2736 = vmatprep.subr.bf16.mxu0 0
      %2737 = vmatpush1.bf16.msra.mxu0 %v2691
      %2738 = vmatprep.subr.bf16.mxu0 0
      %2739 = vmatpush1.bf16.msra.mxu0 %v2692
      %2740 = vmatprep.subr.bf16.mxu0 0
      %2741 = vmatpush1.bf16.msra.mxu0 %v2693
      %2742 = vmatprep.mubr.bf16.mxu0 %v2583
      %2743 = vmatmul.mubr.bf16.gmra.mrb[0].mxu0 %v2582
      %v2744 = vpop.f32.mrb[0].mxu0
      %v2745 = vadd.f32 0.0, %v2744
      %v2746 = vpop.f32.mrb[0].mxu0
      %v2747 = vpop.f32.mrb[0].mxu0
      %v2748 = vadd.f32 0.0, %v2747
      %v2749 = vpop.f32.mrb[0].mxu0
      %2750 = vmatprep.mubr.bf16.mxu0 %v2585
      %2751 = vmatmul.mubr.bf16.gmra.mrb[0].mxu0 %v2584
      %v2752 = vpop.f32.mrb[0].mxu0
      %v2753 = vadd.f32 0.0, %v2752
      %v2754 = vpop.f32.mrb[0].mxu0
      %v2755 = vpop.f32.mrb[0].mxu0
      %v2756 = vadd.f32 0.0, %v2755
      %v2757 = vpop.f32.mrb[0].mxu0
      %2758 = vmatprep.mubr.bf16.mxu0 %v2587
      %2759 = vmatmul.mubr.bf16.gmra.mrb[0].mxu0 %v2586
      %v2760 = vpop.f32.mrb[0].mxu0
      %v2761 = vadd.f32 0.0, %v2760
      %v2762 = vpop.f32.mrb[0].mxu0
      %v2763 = vpop.f32.mrb[0].mxu0
      %v2764 = vadd.f32 0.0, %v2763
      %v2765 = vpop.f32.mrb[0].mxu0
      %2766 = vmatprep.mubr.bf16.mxu0 %v2589
      %2767 = vmatmul.mubr.bf16.gmra.mrb[0].mxu0 %v2588
      %v2768 = vpop.f32.mrb[0].mxu0
      %v2769 = vadd.f32 0.0, %v2768
      %v2770 = vpop.f32.mrb[0].mxu0
      %v2771 = vpop.f32.mrb[0].mxu0
      %v2772 = vadd.f32 0.0, %v2771
      %v2773 = vpop.f32.mrb[0].mxu0
      %2774 = vmatprep.mubr.bf16.mxu0 %v2591
      %2775 = vmatmul.mubr.bf16.gmra.mrb[0].mxu0 %v2590
      %v2776 = vpop.f32.mrb[0].mxu0
      %v2777 = vadd.f32 0.0, %v2776
      %v2778 = vpop.f32.mrb[0].mxu0
      %v2779 = vpop.f32.mrb[0].mxu0
      %v2780 = vadd.f32 0.0, %v2779
      %v2781 = vpop.f32.mrb[0].mxu0
      %2782 = vmatprep.mubr.bf16.mxu0 %v2593
      %2783 = vmatmul.mubr.bf16.gmra.mrb[0].mxu0 %v2592
      %v2784 = vpop.f32.mrb[0].mxu0
      %v2785 = vadd.f32 0.0, %v2784
      %v2786 = vpop.f32.mrb[0].mxu0
      %v2787 = vpop.f32.mrb[0].mxu0
      %v2788 = vadd.f32 0.0, %v2787
      %v2789 = vpop.f32.mrb[0].mxu0
      %2790 = vmatprep.mubr.bf16.mxu0 %v2595
      %2791 = vmatmul.mubr.bf16.gmra.mrb[0].mxu0 %v2594
      %v2792 = vpop.f32.mrb[0].mxu0
      %v2793 = vadd.f32 0.0, %v2792
      %v2794 = vpop.f32.mrb[0].mxu0
      %v2795 = vpop.f32.mrb[0].mxu0
      %v2796 = vadd.f32 0.0, %v2795
      %v2797 = vpop.f32.mrb[0].mxu0
      %2798 = vmatprep.mubr.bf16.mxu0 %v2597
      %2799 = vmatmul.mubr.bf16.gmra.mrb[0].mxu0 %v2596
      %v2800 = vpop.f32.mrb[0].mxu0
      %v2801 = vadd.f32 0.0, %v2800
      %v2802 = vpop.f32.mrb[0].mxu0
      %v2803 = vpop.f32.mrb[0].mxu0
      %v2804 = vadd.f32 0.0, %v2803
      %v2805 = vpop.f32.mrb[0].mxu0
      %2806 = vmatprep.mubr.bf16.mxu0 %v2599
      %2807 = vmatmul.mubr.bf16.gmra.mrb[0].mxu0 %v2598
      %v2808 = vpop.f32.mrb[0].mxu0
      %v2809 = vadd.f32 0.0, %v2808
      %v2810 = vpop.f32.mrb[0].mxu0
      %v2811 = vpop.f32.mrb[0].mxu0
      %v2812 = vadd.f32 0.0, %v2811
      %v2813 = vpop.f32.mrb[0].mxu0
      %2814 = vmatprep.mubr.bf16.mxu0 %v2601
      %2815 = vmatmul.mubr.bf16.gmra.mrb[0].mxu0 %v2600
      %v2816 = vpop.f32.mrb[0].mxu0
      %v2817 = vadd.f32 0.0, %v2816
      %v2818 = vpop.f32.mrb[0].mxu0
      %v2819 = vpop.f32.mrb[0].mxu0
      %v2820 = vadd.f32 0.0, %v2819
      %v2821 = vpop.f32.mrb[0].mxu0
      %2822 = vmatprep.mubr.bf16.mxu0 %v2603
      %2823 = vmatmul.mubr.bf16.gmra.mrb[0].mxu0 %v2602
      %v2824 = vpop.f32.mrb[0].mxu0
      %v2825 = vadd.f32 0.0, %v2824
      %v2826 = vpop.f32.mrb[0].mxu0
      %v2827 = vpop.f32.mrb[0].mxu0
      %v2828 = vadd.f32 0.0, %v2827
      %v2829 = vpop.f32.mrb[0].mxu0
      %2830 = vmatprep.mubr.bf16.mxu0 %v2605
      %2831 = vmatmul.mubr.bf16.gmra.mrb[0].mxu0 %v2604
      %v2832 = vpop.f32.mrb[0].mxu0
      %v2833 = vadd.f32 0.0, %v2832
      %v2834 = vpop.f32.mrb[0].mxu0
      %v2835 = vpop.f32.mrb[0].mxu0
      %v2836 = vadd.f32 0.0, %v2835
      %v2837 = vpop.f32.mrb[0].mxu0
      %2838 = vmatprep.mubr.bf16.mxu0 %v2607
      %2839 = vmatmul.mubr.bf16.gmra.mrb[0].mxu0 %v2606
      %v2840 = vpop.f32.mrb[0].mxu0
      %v2841 = vadd.f32 0.0, %v2840
      %v2842 = vpop.f32.mrb[0].mxu0
      %v2843 = vpop.f32.mrb[0].mxu0
      %v2844 = vadd.f32 0.0, %v2843
      %v2845 = vpop.f32.mrb[0].mxu0
      %2846 = vmatprep.mubr.bf16.mxu0 %v2609
      %2847 = vmatmul.mubr.bf16.gmra.mrb[0].mxu0 %v2608
      %v2848 = vpop.f32.mrb[0].mxu0
      %v2849 = vadd.f32 0.0, %v2848
      %v2850 = vpop.f32.mrb[0].mxu0
      %v2851 = vpop.f32.mrb[0].mxu0
      %v2852 = vadd.f32 0.0, %v2851
      %v2853 = vpop.f32.mrb[0].mxu0
      %2854 = vmatprep.mubr.bf16.mxu0 %v2611
      %2855 = vmatmul.mubr.bf16.gmra.mrb[0].mxu0 %v2610
      %v2856 = vpop.f32.mrb[0].mxu0
      %v2857 = vadd.f32 0.0, %v2856
      %v2858 = vpop.f32.mrb[0].mxu0
      %v2859 = vpop.f32.mrb[0].mxu0
      %v2860 = vadd.f32 0.0, %v2859
      %v2861 = vpop.f32.mrb[0].mxu0
      %2862 = vmatprep.mubr.bf16.mxu0 %v2613
      %2863 = vmatmul.mubr.bf16.gmra.mrb[0].mxu0 %v2612
      %v2864 = vpop.f32.mrb[0].mxu0
      %v2865 = vadd.f32 0.0, %v2864
      %v2866 = vpop.f32.mrb[0].mxu0
      %v2867 = vpop.f32.mrb[0].mxu0
      %v2868 = vadd.f32 0.0, %v2867
      %v2869 = vpop.f32.mrb[0].mxu0
      %2870 = vdwg.mxu0
      %v2871 = vadd.f32 %v2550, %v2745
      %v2872 = vadd.f32 %v2551, %v2748
      %v2873 = vadd.f32 %v2552, %v2753
      %v2874 = vadd.f32 %v2553, %v2756
      %v2875 = vadd.f32 %v2554, %v2761
      %v2876 = vadd.f32 %v2555, %v2764
      %v2877 = vadd.f32 %v2556, %v2769
      %v2878 = vadd.f32 %v2557, %v2772
      %v2879 = vadd.f32 %v2558, %v2777
      %v2880 = vadd.f32 %v2559, %v2780
      %v2881 = vadd.f32 %v2560, %v2785
      %v2882 = vadd.f32 %v2561, %v2788
      %v2883 = vadd.f32 %v2562, %v2793
      %v2884 = vadd.f32 %v2563, %v2796
      %v2885 = vadd.f32 %v2564, %v2801
      %v2886 = vadd.f32 %v2565, %v2804
      %v2887 = vadd.f32 %v2566, %v2809
      %v2888 = vadd.f32 %v2567, %v2812
      %v2889 = vadd.f32 %v2568, %v2817
      %v2890 = vadd.f32 %v2569, %v2820
      %v2891 = vadd.f32 %v2570, %v2825
      %v2892 = vadd.f32 %v2571, %v2828
      %v2893 = vadd.f32 %v2572, %v2833
      %v2894 = vadd.f32 %v2573, %v2836
      %v2895 = vadd.f32 %v2574, %v2841
      %v2896 = vadd.f32 %v2575, %v2844
      %v2897 = vadd.f32 %v2576, %v2849
      %v2898 = vadd.f32 %v2577, %v2852
      %v2899 = vadd.f32 %v2578, %v2857
      %v2900 = vadd.f32 %v2579, %v2860
      %v2901 = vadd.f32 %v2580, %v2865
      %v2902 = vadd.f32 %v2581, %v2868
      %2903 = vst [vmem:[#allocation5] sm:$0xff] %v2871
      %2904 = vst [vmem:[#allocation5 + $0x8] sm:$0xff] %v2872
      %2905 = vst [vmem:[#allocation5 + $0x10] sm:$0xff] %v2873
      %2906 = vst [vmem:[#allocation5 + $0x18] sm:$0xff] %v2874
      %2907 = vst [vmem:[#allocation5 + $0x20] sm:$0xff] %v2875
      %2908 = vst [vmem:[#allocation5 + $0x28] sm:$0xff] %v2876
      %2909 = vst [vmem:[#allocation5 + $0x30] sm:$0xff] %v2877
      %2910 = vst [vmem:[#allocation5 + $0x38] sm:$0xff] %v2878
      %2911 = vst [vmem:[#allocation5 + $0x40] sm:$0xff] %v2879
      %2912 = vst [vmem:[#allocation5 + $0x48] sm:$0xff] %v2880
      %2913 = vst [vmem:[#allocation5 + $0x50] sm:$0xff] %v2881
      %2914 = vst [vmem:[#allocation5 + $0x58] sm:$0xff] %v2882
      %2915 = vst [vmem:[#allocation5 + $0x60] sm:$0xff] %v2883
      %2916 = vst [vmem:[#allocation5 + $0x68] sm:$0xff] %v2884
      %2917 = vst [vmem:[#allocation5 + $0x70] sm:$0xff] %v2885
      %2918 = vst [vmem:[#allocation5 + $0x78] sm:$0xff] %v2886
      %2919 = vst [vmem:[#allocation5 + $0x80] sm:$0xff] %v2887
      %2920 = vst [vmem:[#allocation5 + $0x88] sm:$0xff] %v2888
      %2921 = vst [vmem:[#allocation5 + $0x90] sm:$0xff] %v2889
      %2922 = vst [vmem:[#allocation5 + $0x98] sm:$0xff] %v2890
      %2923 = vst [vmem:[#allocation5 + $0xa0] sm:$0xff] %v2891
      %2924 = vst [vmem:[#allocation5 + $0xa8] sm:$0xff] %v2892
      %2925 = vst [vmem:[#allocation5 + $0xb0] sm:$0xff] %v2893
      %2926 = vst [vmem:[#allocation5 + $0xb8] sm:$0xff] %v2894
      %2927 = vst [vmem:[#allocation5 + $0xc0] sm:$0xff] %v2895
      %2928 = vst [vmem:[#allocation5 + $0xc8] sm:$0xff] %v2896
      %2929 = vst [vmem:[#allocation5 + $0xd0] sm:$0xff] %v2897
      %2930 = vst [vmem:[#allocation5 + $0xd8] sm:$0xff] %v2898
      %2931 = vst [vmem:[#allocation5 + $0xe0] sm:$0xff] %v2899
      %2932 = vst [vmem:[#allocation5 + $0xe8] sm:$0xff] %v2900
      %2933 = vst [vmem:[#allocation5 + $0xf0] sm:$0xff] %v2901
      %2934 = vst [vmem:[#allocation5 + $0xf8] sm:$0xff] %v2902
      %2935 = vst.msk [vmem:[#allocation3] sm:$0xff] %vm2325, %v1653
      %2936 = vst.msk [vmem:[#allocation3 + $0x8] sm:$0xff] %vm2325, %v1654
      %2937 = vst.msk [vmem:[#allocation3 + $0x10] sm:$0xff] %vm2325, %v1655
      %2938 = vst.msk [vmem:[#allocation3 + $0x18] sm:$0xff] %vm2325, %v1656
      %2939 = vst.msk [vmem:[#allocation3 + $0x20] sm:$0xff] %vm2325, %v1657
      %2940 = vst.msk [vmem:[#allocation3 + $0x28] sm:$0xff] %vm2325, %v1658
      %2941 = vst.msk [vmem:[#allocation3 + $0x30] sm:$0xff] %vm2325, %v1659
      %2942 = vst.msk [vmem:[#allocation3 + $0x38] sm:$0xff] %vm2325, %v1660
      %2943 = vst.msk [vmem:[#allocation3 + $0x40] sm:$0xff] %vm2325, %v1661
      %2944 = vst.msk [vmem:[#allocation3 + $0x48] sm:$0xff] %vm2325, %v1662
      %2945 = vst.msk [vmem:[#allocation3 + $0x50] sm:$0xff] %vm2325, %v1663
      %2946 = vst.msk [vmem:[#allocation3 + $0x58] sm:$0xff] %vm2325, %v1664
      %2947 = vst.msk [vmem:[#allocation3 + $0x60] sm:$0xff] %vm2325, %v1665
      %2948 = vst.msk [vmem:[#allocation3 + $0x68] sm:$0xff] %vm2325, %v1666
      %2949 = vst.msk [vmem:[#allocation3 + $0x70] sm:$0xff] %vm2325, %v1667
      %2950 = vst.msk [vmem:[#allocation3 + $0x78] sm:$0xff] %vm2325, %v1668
      %2951 = vst.msk [vmem:[#allocation3 + $0x80] sm:$0xff] %vm2325, %v1669
      %2952 = vst.msk [vmem:[#allocation3 + $0x88] sm:$0xff] %vm2325, %v1670
      %2953 = vst.msk [vmem:[#allocation3 + $0x90] sm:$0xff] %vm2325, %v1671
      %2954 = vst.msk [vmem:[#allocation3 + $0x98] sm:$0xff] %vm2325, %v1672
      %2955 = vst.msk [vmem:[#allocation3 + $0xa0] sm:$0xff] %vm2325, %v1673
      %2956 = vst.msk [vmem:[#allocation3 + $0xa8] sm:$0xff] %vm2325, %v1674
      %2957 = vst.msk [vmem:[#allocation3 + $0xb0] sm:$0xff] %vm2325, %v1675
      %2958 = vst.msk [vmem:[#allocation3 + $0xb8] sm:$0xff] %vm2325, %v1676
      %2959 = vst.msk [vmem:[#allocation3 + $0xc0] sm:$0xff] %vm2325, %v1677
      %2960 = vst.msk [vmem:[#allocation3 + $0xc8] sm:$0xff] %vm2325, %v1678
      %2961 = vst.msk [vmem:[#allocation3 + $0xd0] sm:$0xff] %vm2325, %v1679
      %2962 = vst.msk [vmem:[#allocation3 + $0xd8] sm:$0xff] %vm2325, %v1680
      %2963 = vst.msk [vmem:[#allocation3 + $0xe0] sm:$0xff] %vm2325, %v1681
      %2964 = vst.msk [vmem:[#allocation3 + $0xe8] sm:$0xff] %vm2325, %v1682
      %2965 = vst.msk [vmem:[#allocation3 + $0xf0] sm:$0xff] %vm2325, %v1683
      %2966 = vst.msk [vmem:[#allocation3 + $0xf8] sm:$0xff] %vm2325, %v1684
      %p2967 = scmp.eq.s32.totalorder %s29, 1
      // Predicated region
      $region69: #{make_encoder_forward.7} parent=63 // pred_check
        %p2968 = pneg %p2967
      $region70: #{make_encoder_forward.7} parent=63 // pred_check_branch
        %2970 = sbr.rel (%p2968) target = $region72
      $region71: #{make_encoder_forward.7} parent=63 // pred_region
        %v2971 = vld [vmem:[%s9] sm:$0xff]
        %v2972 = vld [vmem:[%s499] sm:$0xf]
        %v2973 = vld [vmem:[%s499 + $0x4] sm:$0xf]
        %v2974 = vld [vmem:[%s499 + $0x8] sm:$0xf]
        %v2975 = vld [vmem:[%s499 + $0xc] sm:$0xf]
        %v2976 = vld [vmem:[%s499 + $0x10] sm:$0xf]
        %v2977 = vld [vmem:[%s499 + $0x14] sm:$0xf]
        %v2978 = vld [vmem:[%s499 + $0x18] sm:$0xf]
        %v2979 = vld [vmem:[%s499 + $0x1c] sm:$0xf]
        %v2980 = vld [vmem:[%s499 + $0x20] sm:$0xf]
        %v2981 = vld [vmem:[%s499 + $0x24] sm:$0xf]
        %v2982 = vld [vmem:[%s499 + $0x28] sm:$0xf]
        %v2983 = vld [vmem:[%s499 + $0x2c] sm:$0xf]
        %v2984 = vld [vmem:[%s499 + $0x30] sm:$0xf]
        %v2985 = vld [vmem:[%s499 + $0x34] sm:$0xf]
        %v2986 = vld [vmem:[%s499 + $0x38] sm:$0xf]
        %v2987 = vld [vmem:[%s499 + $0x3c] sm:$0xf]
        %v2988 = vld [vmem:[%s499 + $0x40] sm:$0xf]
        %v2989 = vld [vmem:[%s499 + $0x44] sm:$0xf]
        %v2990 = vld [vmem:[%s499 + $0x48] sm:$0xf]
        %v2991 = vld [vmem:[%s499 + $0x4c] sm:$0xf]
        %v2992 = vld [vmem:[%s499 + $0x50] sm:$0xf]
        %v2993 = vld [vmem:[%s499 + $0x54] sm:$0xf]
        %v2994 = vld [vmem:[%s499 + $0x58] sm:$0xf]
        %v2995 = vld [vmem:[%s499 + $0x5c] sm:$0xf]
        %v2996 = vld [vmem:[%s499 + $0x60] sm:$0xf]
        %v2997 = vld [vmem:[%s499 + $0x64] sm:$0xf]
        %v2998 = vld [vmem:[%s499 + $0x68] sm:$0xf]
        %v2999 = vld [vmem:[%s499 + $0x6c] sm:$0xf]
        %v3000 = vld [vmem:[%s499 + $0x70] sm:$0xf]
        %v3001 = vld [vmem:[%s499 + $0x74] sm:$0xf]
        %v3002 = vld [vmem:[%s499 + $0x78] sm:$0xf]
        %v3003 = vld [vmem:[%s499 + $0x7c] sm:$0xf]
        %v3004 = vunpack.c.l.bf16 %v2972
        %v3005 = vunpack.c.l.bf16 %v2973
        %v3006 = vunpack.c.l.bf16 %v2974
        %v3007 = vunpack.c.l.bf16 %v2975
        %v3008 = vunpack.c.l.bf16 %v2976
        %v3009 = vunpack.c.l.bf16 %v2977
        %v3010 = vunpack.c.l.bf16 %v2978
        %v3011 = vunpack.c.l.bf16 %v2979
        %v3012 = vunpack.c.l.bf16 %v2980
        %v3013 = vunpack.c.l.bf16 %v2981
        %v3014 = vunpack.c.l.bf16 %v2982
        %v3015 = vunpack.c.l.bf16 %v2983
        %v3016 = vunpack.c.l.bf16 %v2984
        %v3017 = vunpack.c.l.bf16 %v2985
        %v3018 = vunpack.c.l.bf16 %v2986
        %v3019 = vunpack.c.l.bf16 %v2987
        %v3020 = vunpack.c.l.bf16 %v2988
        %v3021 = vunpack.c.l.bf16 %v2989
        %v3022 = vunpack.c.l.bf16 %v2990
        %v3023 = vunpack.c.l.bf16 %v2991
        %v3024 = vunpack.c.l.bf16 %v2992
        %v3025 = vunpack.c.l.bf16 %v2993
        %v3026 = vunpack.c.l.bf16 %v2994
        %v3027 = vunpack.c.l.bf16 %v2995
        %v3028 = vunpack.c.l.bf16 %v2996
        %v3029 = vunpack.c.l.bf16 %v2997
        %v3030 = vunpack.c.l.bf16 %v2998
        %v3031 = vunpack.c.l.bf16 %v2999
        %v3032 = vunpack.c.l.bf16 %v3000
        %v3033 = vunpack.c.l.bf16 %v3001
        %v3034 = vunpack.c.l.bf16 %v3002
        %v3035 = vunpack.c.l.bf16 %v3003
        %v3036 = vld [vmem:[#allocation5] sm:$0xff]
        %v3037 = vld [vmem:[#allocation5 + $0x8] sm:$0xff]
        %v3038 = vld [vmem:[#allocation5 + $0x10] sm:$0xff]
        %v3039 = vld [vmem:[#allocation5 + $0x18] sm:$0xff]
        %v3040 = vld [vmem:[#allocation5 + $0x20] sm:$0xff]
        %v3041 = vld [vmem:[#allocation5 + $0x28] sm:$0xff]
        %v3042 = vld [vmem:[#allocation5 + $0x30] sm:$0xff]
        %v3043 = vld [vmem:[#allocation5 + $0x38] sm:$0xff]
        %v3044 = vld [vmem:[#allocation5 + $0x40] sm:$0xff]
        %v3045 = vld [vmem:[#allocation5 + $0x48] sm:$0xff]
        %v3046 = vld [vmem:[#allocation5 + $0x50] sm:$0xff]
        %v3047 = vld [vmem:[#allocation5 + $0x58] sm:$0xff]
        %v3048 = vld [vmem:[#allocation5 + $0x60] sm:$0xff]
        %v3049 = vld [vmem:[#allocation5 + $0x68] sm:$0xff]
        %v3050 = vld [vmem:[#allocation5 + $0x70] sm:$0xff]
        %v3051 = vld [vmem:[#allocation5 + $0x78] sm:$0xff]
        %v3052 = vld [vmem:[#allocation5 + $0x80] sm:$0xff]
        %v3053 = vld [vmem:[#allocation5 + $0x88] sm:$0xff]
        %v3054 = vld [vmem:[#allocation5 + $0x90] sm:$0xff]
        %v3055 = vld [vmem:[#allocation5 + $0x98] sm:$0xff]
        %v3056 = vld [vmem:[#allocation5 + $0xa0] sm:$0xff]
        %v3057 = vld [vmem:[#allocation5 + $0xa8] sm:$0xff]
        %v3058 = vld [vmem:[#allocation5 + $0xb0] sm:$0xff]
        %v3059 = vld [vmem:[#allocation5 + $0xb8] sm:$0xff]
        %v3060 = vld [vmem:[#allocation5 + $0xc0] sm:$0xff]
        %v3061 = vld [vmem:[#allocation5 + $0xc8] sm:$0xff]
        %v3062 = vld [vmem:[#allocation5 + $0xd0] sm:$0xff]
        %v3063 = vld [vmem:[#allocation5 + $0xd8] sm:$0xff]
        %v3064 = vld [vmem:[#allocation5 + $0xe0] sm:$0xff]
        %v3065 = vld [vmem:[#allocation5 + $0xe8] sm:$0xff]
        %v3066 = vld [vmem:[#allocation5 + $0xf0] sm:$0xff]
        %v3067 = vld [vmem:[#allocation5 + $0xf8] sm:$0xff]
        %v3068 = vld [vmem:[#allocation4] sm:$0xff]
        %v3069 = vld [vmem:[#allocation4 + $0x8] sm:$0xff]
        %v3070 = vld [vmem:[#allocation4 + $0x10] sm:$0xff]
        %v3071 = vld [vmem:[#allocation4 + $0x18] sm:$0xff]
        %v3072 = vld [vmem:[#allocation4 + $0x20] sm:$0xff]
        %v3073 = vld [vmem:[#allocation4 + $0x28] sm:$0xff]
        %v3074 = vld [vmem:[#allocation4 + $0x30] sm:$0xff]
        %v3075 = vld [vmem:[#allocation4 + $0x38] sm:$0xff]
        %v3076 = vld [vmem:[#allocation4 + $0x40] sm:$0xff]
        %v3077 = vld [vmem:[#allocation4 + $0x48] sm:$0xff]
        %v3078 = vld [vmem:[#allocation4 + $0x50] sm:$0xff]
        %v3079 = vld [vmem:[#allocation4 + $0x58] sm:$0xff]
        %v3080 = vld [vmem:[#allocation4 + $0x60] sm:$0xff]
        %v3081 = vld [vmem:[#allocation4 + $0x68] sm:$0xff]
        %v3082 = vld [vmem:[#allocation4 + $0x70] sm:$0xff]
        %v3083 = vld [vmem:[#allocation4 + $0x78] sm:$0xff]
        %v3084 = vld [vmem:[#allocation4 + $0x80] sm:$0xff]
        %v3085 = vld [vmem:[#allocation4 + $0x88] sm:$0xff]
        %v3086 = vld [vmem:[#allocation4 + $0x90] sm:$0xff]
        %v3087 = vld [vmem:[#allocation4 + $0x98] sm:$0xff]
        %v3088 = vld [vmem:[#allocation4 + $0xa0] sm:$0xff]
        %v3089 = vld [vmem:[#allocation4 + $0xa8] sm:$0xff]
        %v3090 = vld [vmem:[#allocation4 + $0xb0] sm:$0xff]
        %v3091 = vld [vmem:[#allocation4 + $0xb8] sm:$0xff]
        %v3092 = vld [vmem:[#allocation4 + $0xc0] sm:$0xff]
        %v3093 = vld [vmem:[#allocation4 + $0xc8] sm:$0xff]
        %v3094 = vld [vmem:[#allocation4 + $0xd0] sm:$0xff]
        %v3095 = vld [vmem:[#allocation4 + $0xd8] sm:$0xff]
        %v3096 = vld [vmem:[#allocation4 + $0xe0] sm:$0xff]
        %v3097 = vld [vmem:[#allocation4 + $0xe8] sm:$0xff]
        %v3098 = vld [vmem:[#allocation4 + $0xf0] sm:$0xff]
        %v3099 = vld [vmem:[#allocation4 + $0xf8] sm:$0xff]
        %v3100 = vrcp.pop %v3068
        %v3101 = vrcp.pop %v3069
        %v3102 = vrcp.pop %v3070
        %v3103 = vrcp.pop %v3071
        %v3104 = vrcp.pop %v3072
        %v3105 = vrcp.pop %v3073
        %v3106 = vrcp.pop %v3074
        %v3107 = vrcp.pop %v3075
        %v3108 = vrcp.pop %v3076
        %v3109 = vrcp.pop %v3077
        %v3110 = vrcp.pop %v3078
        %v3111 = vrcp.pop %v3079
        %v3112 = vrcp.pop %v3080
        %v3113 = vrcp.pop %v3081
        %v3114 = vrcp.pop %v3082
        %v3115 = vrcp.pop %v3083
        %v3116 = vrcp.pop %v3084
        %v3117 = vrcp.pop %v3085
        %v3118 = vrcp.pop %v3086
        %v3119 = vrcp.pop %v3087
        %v3120 = vrcp.pop %v3088
        %v3121 = vrcp.pop %v3089
        %v3122 = vrcp.pop %v3090
        %v3123 = vrcp.pop %v3091
        %v3124 = vrcp.pop %v3092
        %v3125 = vrcp.pop %v3093
        %v3126 = vrcp.pop %v3094
        %v3127 = vrcp.pop %v3095
        %v3128 = vrcp.pop %v3096
        %v3129 = vrcp.pop %v3097
        %v3130 = vrcp.pop %v3098
        %v3131 = vrcp.pop %v3099
        %3133 = vset.pattern.permute.xlu0 0
        %3134 = vperm.xlu0 %3133, %v3100
        %v3135 = vpop.permute.xlu0 %3134
        %3138 = vset.pattern.permute.xlu0 0
        %3139 = vperm.xlu0 %3138, %v3101
        %v3140 = vpop.permute.xlu0 %3139
        %3143 = vset.pattern.permute.xlu0 0
        %3144 = vperm.xlu0 %3143, %v3102
        %v3145 = vpop.permute.xlu0 %3144
        %3148 = vset.pattern.permute.xlu0 0
        %3149 = vperm.xlu0 %3148, %v3103
        %v3150 = vpop.permute.xlu0 %3149
        %3153 = vset.pattern.permute.xlu0 0
        %3154 = vperm.xlu0 %3153, %v3104
        %v3155 = vpop.permute.xlu0 %3154
        %3158 = vset.pattern.permute.xlu0 0
        %3159 = vperm.xlu0 %3158, %v3105
        %v3160 = vpop.permute.xlu0 %3159
        %3163 = vset.pattern.permute.xlu0 0
        %3164 = vperm.xlu0 %3163, %v3106
        %v3165 = vpop.permute.xlu0 %3164
        %3168 = vset.pattern.permute.xlu0 0
        %3169 = vperm.xlu0 %3168, %v3107
        %v3170 = vpop.permute.xlu0 %3169
        %3173 = vset.pattern.permute.xlu0 0
        %3174 = vperm.xlu0 %3173, %v3108
        %v3175 = vpop.permute.xlu0 %3174
        %3178 = vset.pattern.permute.xlu0 0
        %3179 = vperm.xlu0 %3178, %v3109
        %v3180 = vpop.permute.xlu0 %3179
        %3183 = vset.pattern.permute.xlu0 0
        %3184 = vperm.xlu0 %3183, %v3110
        %v3185 = vpop.permute.xlu0 %3184
        %3188 = vset.pattern.permute.xlu0 0
        %3189 = vperm.xlu0 %3188, %v3111
        %v3190 = vpop.permute.xlu0 %3189
        %3193 = vset.pattern.permute.xlu0 0
        %3194 = vperm.xlu0 %3193, %v3112
        %v3195 = vpop.permute.xlu0 %3194
        %3198 = vset.pattern.permute.xlu0 0
        %3199 = vperm.xlu0 %3198, %v3113
        %v3200 = vpop.permute.xlu0 %3199
        %3203 = vset.pattern.permute.xlu0 0
        %3204 = vperm.xlu0 %3203, %v3114
        %v3205 = vpop.permute.xlu0 %3204
        %3208 = vset.pattern.permute.xlu0 0
        %3209 = vperm.xlu0 %3208, %v3115
        %v3210 = vpop.permute.xlu0 %3209
        %3213 = vset.pattern.permute.xlu0 0
        %3214 = vperm.xlu0 %3213, %v3116
        %v3215 = vpop.permute.xlu0 %3214
        %3218 = vset.pattern.permute.xlu0 0
        %3219 = vperm.xlu0 %3218, %v3117
        %v3220 = vpop.permute.xlu0 %3219
        %3223 = vset.pattern.permute.xlu0 0
        %3224 = vperm.xlu0 %3223, %v3118
        %v3225 = vpop.permute.xlu0 %3224
        %3228 = vset.pattern.permute.xlu0 0
        %3229 = vperm.xlu0 %3228, %v3119
        %v3230 = vpop.permute.xlu0 %3229
        %3233 = vset.pattern.permute.xlu0 0
        %3234 = vperm.xlu0 %3233, %v3120
        %v3235 = vpop.permute.xlu0 %3234
        %3238 = vset.pattern.permute.xlu0 0
        %3239 = vperm.xlu0 %3238, %v3121
        %v3240 = vpop.permute.xlu0 %3239
        %3243 = vset.pattern.permute.xlu0 0
        %3244 = vperm.xlu0 %3243, %v3122
        %v3245 = vpop.permute.xlu0 %3244
        %3248 = vset.pattern.permute.xlu0 0
        %3249 = vperm.xlu0 %3248, %v3123
        %v3250 = vpop.permute.xlu0 %3249
        %3253 = vset.pattern.permute.xlu0 0
        %3254 = vperm.xlu0 %3253, %v3124
        %v3255 = vpop.permute.xlu0 %3254
        %3258 = vset.pattern.permute.xlu0 0
        %3259 = vperm.xlu0 %3258, %v3125
        %v3260 = vpop.permute.xlu0 %3259
        %3263 = vset.pattern.permute.xlu0 0
        %3264 = vperm.xlu0 %3263, %v3126
        %v3265 = vpop.permute.xlu0 %3264
        %3268 = vset.pattern.permute.xlu0 0
        %3269 = vperm.xlu0 %3268, %v3127
        %v3270 = vpop.permute.xlu0 %3269
        %3273 = vset.pattern.permute.xlu0 0
        %3274 = vperm.xlu0 %3273, %v3128
        %v3275 = vpop.permute.xlu0 %3274
        %3278 = vset.pattern.permute.xlu0 0
        %3279 = vperm.xlu0 %3278, %v3129
        %v3280 = vpop.permute.xlu0 %3279
        %3283 = vset.pattern.permute.xlu0 0
        %3284 = vperm.xlu0 %3283, %v3130
        %v3285 = vpop.permute.xlu0 %3284
        %3288 = vset.pattern.permute.xlu0 0
        %3289 = vperm.xlu0 %3288, %v3131
        %v3290 = vpop.permute.xlu0 %3289
        %v3292 = vmul.f32 %v3036, %v3135
        %v3293 = vmul.f32 %v3037, %v3140
        %v3294 = vmul.f32 %v3038, %v3145
        %v3295 = vmul.f32 %v3039, %v3150
        %v3296 = vmul.f32 %v3040, %v3155
        %v3297 = vmul.f32 %v3041, %v3160
        %v3298 = vmul.f32 %v3042, %v3165
        %v3299 = vmul.f32 %v3043, %v3170
        %v3300 = vmul.f32 %v3044, %v3175
        %v3301 = vmul.f32 %v3045, %v3180
        %v3302 = vmul.f32 %v3046, %v3185
        %v3303 = vmul.f32 %v3047, %v3190
        %v3304 = vmul.f32 %v3048, %v3195
        %v3305 = vmul.f32 %v3049, %v3200
        %v3306 = vmul.f32 %v3050, %v3205
        %v3307 = vmul.f32 %v3051, %v3210
        %v3308 = vmul.f32 %v3052, %v3215
        %v3309 = vmul.f32 %v3053, %v3220
        %v3310 = vmul.f32 %v3054, %v3225
        %v3311 = vmul.f32 %v3055, %v3230
        %v3312 = vmul.f32 %v3056, %v3235
        %v3313 = vmul.f32 %v3057, %v3240
        %v3314 = vmul.f32 %v3058, %v3245
        %v3315 = vmul.f32 %v3059, %v3250
        %v3316 = vmul.f32 %v3060, %v3255
        %v3317 = vmul.f32 %v3061, %v3260
        %v3318 = vmul.f32 %v3062, %v3265
        %v3319 = vmul.f32 %v3063, %v3270
        %v3320 = vmul.f32 %v3064, %v3275
        %v3321 = vmul.f32 %v3065, %v3280
        %v3322 = vmul.f32 %v3066, %v3285
        %v3323 = vmul.f32 %v3067, %v3290
        %v3324 = vpack.c.bf16 %v3293, %v3292
        %v3325 = vpack.c.bf16 %v3295, %v3294
        %v3326 = vpack.c.bf16 %v3297, %v3296
        %v3327 = vpack.c.bf16 %v3299, %v3298
        %v3328 = vpack.c.bf16 %v3301, %v3300
        %v3329 = vpack.c.bf16 %v3303, %v3302
        %v3330 = vpack.c.bf16 %v3305, %v3304
        %v3331 = vpack.c.bf16 %v3307, %v3306
        %v3332 = vpack.c.bf16 %v3309, %v3308
        %v3333 = vpack.c.bf16 %v3311, %v3310
        %v3334 = vpack.c.bf16 %v3313, %v3312
        %v3335 = vpack.c.bf16 %v3315, %v3314
        %v3336 = vpack.c.bf16 %v3317, %v3316
        %v3337 = vpack.c.bf16 %v3319, %v3318
        %v3338 = vpack.c.bf16 %v3321, %v3320
        %v3339 = vpack.c.bf16 %v3323, %v3322
        %v3340 = vld [vmem:[%s6] sm:$0xf]
        %v3341 = vld [vmem:[%s6 + $0x4] sm:$0xf]
        %v3342 = vld [vmem:[%s6 + $0x8] sm:$0xf]
        %v3343 = vld [vmem:[%s6 + $0xc] sm:$0xf]
        %v3344 = vld [vmem:[%s6 + $0x10] sm:$0xf]
        %v3345 = vld [vmem:[%s6 + $0x14] sm:$0xf]
        %v3346 = vld [vmem:[%s6 + $0x18] sm:$0xf]
        %v3347 = vld [vmem:[%s6 + $0x1c] sm:$0xf]
        %v3348 = vld [vmem:[%s6 + $0x20] sm:$0xf]
        %v3349 = vld [vmem:[%s6 + $0x24] sm:$0xf]
        %v3350 = vld [vmem:[%s6 + $0x28] sm:$0xf]
        %v3351 = vld [vmem:[%s6 + $0x2c] sm:$0xf]
        %v3352 = vld [vmem:[%s6 + $0x30] sm:$0xf]
        %v3353 = vld [vmem:[%s6 + $0x34] sm:$0xf]
        %v3354 = vld [vmem:[%s6 + $0x38] sm:$0xf]
        %v3355 = vld [vmem:[%s6 + $0x3c] sm:$0xf]
        %v3356 = vlaneseq
        %v3357 = vshrl.u32 %v3356, 7
        %v3358 = vsub.s32 0, %v3357
        %v3359 = vrot.slane %v2971, %v3358
        %v3376 = vunpack.c.l.b16 %v3340
        %v3377 = vunpack.c.l.b16 %v3341
        %v3378 = vunpack.c.l.b16 %v3342
        %v3379 = vunpack.c.l.b16 %v3343
        %v3380 = vunpack.c.l.b16 %v3344
        %v3381 = vunpack.c.l.b16 %v3345
        %v3382 = vunpack.c.l.b16 %v3346
        %v3383 = vunpack.c.l.b16 %v3347
        %v3384 = vunpack.c.l.b16 %v3348
        %v3385 = vunpack.c.l.b16 %v3349
        %v3386 = vunpack.c.l.b16 %v3350
        %v3387 = vunpack.c.l.b16 %v3351
        %v3388 = vunpack.c.l.b16 %v3352
        %v3389 = vunpack.c.l.b16 %v3353
        %v3390 = vunpack.c.l.b16 %v3354
        %v3391 = vunpack.c.l.b16 %v3355
        %v3392 = vpack.c.b16 %v3377, %v3376
        %v3393 = vpack.c.b16 %v3379, %v3378
        %v3394 = vpack.c.b16 %v3381, %v3380
        %v3395 = vpack.c.b16 %v3383, %v3382
        %v3396 = vpack.c.b16 %v3385, %v3384
        %v3397 = vpack.c.b16 %v3387, %v3386
        %v3398 = vpack.c.b16 %v3389, %v3388
        %v3399 = vpack.c.b16 %v3391, %v3390
        %3408 = vmatprep.subr.bf16.mxu0 0
        %3409 = vmatpush1.bf16.msra.mxu0 %v3392
        %3410 = vmatprep.subr.bf16.mxu0 0
        %3411 = vmatpush1.bf16.msra.mxu0 %v3393
        %3412 = vmatprep.subr.bf16.mxu0 0
        %3413 = vmatpush1.bf16.msra.mxu0 %v3394
        %3414 = vmatprep.subr.bf16.mxu0 0
        %3415 = vmatpush1.bf16.msra.mxu0 %v3395
        %3416 = vmatprep.subr.bf16.mxu0 0
        %3417 = vmatpush1.bf16.msra.mxu0 %v3396
        %3418 = vmatprep.subr.bf16.mxu0 0
        %3419 = vmatpush1.bf16.msra.mxu0 %v3397
        %3420 = vmatprep.subr.bf16.mxu0 0
        %3421 = vmatpush1.bf16.msra.mxu0 %v3398
        %3422 = vmatprep.subr.bf16.mxu0 0
        %3423 = vmatpush1.bf16.msra.mxu0 %v3399
        %3424 = vmatprep.subr.bf16.mxu0 0
        %3425 = vmatpush1.bf16.msra.mxu0 0
        %3426 = vmatprep.subr.bf16.mxu0 0
        %3427 = vmatpush1.bf16.msra.mxu0 0
        %3428 = vmatprep.subr.bf16.mxu0 0
        %3429 = vmatpush1.bf16.msra.mxu0 0
        %3430 = vmatprep.subr.bf16.mxu0 0
        %3431 = vmatpush1.bf16.msra.mxu0 0
        %3432 = vmatprep.subr.bf16.mxu0 0
        %3433 = vmatpush1.bf16.msra.mxu0 0
        %3434 = vmatprep.subr.bf16.mxu0 0
        %3435 = vmatpush1.bf16.msra.mxu0 0
        %3436 = vmatprep.subr.bf16.mxu0 0
        %3437 = vmatpush1.bf16.msra.mxu0 0
        %3438 = vmatprep.subr.bf16.mxu0 0
        %3439 = vmatpush1.bf16.msra.mxu0 0
        %3440 = vmatprep.mubr.bf16.mxu0 0
        %3441 = vmatmul.mubr.bf16.gmra.mrb[0].mxu0 %v3324
        %v3442 = vpop.f32.mrb[0].mxu0
        %v3443 = vadd.f32 %v3359, %v3442
        %v3444 = vpop.f32.mrb[0].mxu0
        %v3445 = vpop.f32.mrb[0].mxu0
        %v3446 = vadd.f32 %v3359, %v3445
        %v3447 = vpop.f32.mrb[0].mxu0
        %3448 = vmatprep.mubr.bf16.mxu0 0
        %3449 = vmatmul.mubr.bf16.gmra.mrb[0].mxu0 %v3325
        %v3450 = vpop.f32.mrb[0].mxu0
        %v3451 = vadd.f32 %v3359, %v3450
        %v3452 = vpop.f32.mrb[0].mxu0
        %v3453 = vpop.f32.mrb[0].mxu0
        %v3454 = vadd.f32 %v3359, %v3453
        %v3455 = vpop.f32.mrb[0].mxu0
        %3456 = vmatprep.mubr.bf16.mxu0 0
        %3457 = vmatmul.mubr.bf16.gmra.mrb[0].mxu0 %v3326
        %v3458 = vpop.f32.mrb[0].mxu0
        %v3459 = vadd.f32 %v3359, %v3458
        %v3460 = vpop.f32.mrb[0].mxu0
        %v3461 = vpop.f32.mrb[0].mxu0
        %v3462 = vadd.f32 %v3359, %v3461
        %v3463 = vpop.f32.mrb[0].mxu0
        %3464 = vmatprep.mubr.bf16.mxu0 0
        %3465 = vmatmul.mubr.bf16.gmra.mrb[0].mxu0 %v3327
        %v3466 = vpop.f32.mrb[0].mxu0
        %v3467 = vadd.f32 %v3359, %v3466
        %v3468 = vpop.f32.mrb[0].mxu0
        %v3469 = vpop.f32.mrb[0].mxu0
        %v3470 = vadd.f32 %v3359, %v3469
        %v3471 = vpop.f32.mrb[0].mxu0
        %3472 = vmatprep.mubr.bf16.mxu0 0
        %3473 = vmatmul.mubr.bf16.gmra.mrb[0].mxu0 %v3328
        %v3474 = vpop.f32.mrb[0].mxu0
        %v3475 = vadd.f32 %v3359, %v3474
        %v3476 = vpop.f32.mrb[0].mxu0
        %v3477 = vpop.f32.mrb[0].mxu0
        %v3478 = vadd.f32 %v3359, %v3477
        %v3479 = vpop.f32.mrb[0].mxu0
        %3480 = vmatprep.mubr.bf16.mxu0 0
        %3481 = vmatmul.mubr.bf16.gmra.mrb[0].mxu0 %v3329
        %v3482 = vpop.f32.mrb[0].mxu0
        %v3483 = vadd.f32 %v3359, %v3482
        %v3484 = vpop.f32.mrb[0].mxu0
        %v3485 = vpop.f32.mrb[0].mxu0
        %v3486 = vadd.f32 %v3359, %v3485
        %v3487 = vpop.f32.mrb[0].mxu0
        %3488 = vmatprep.mubr.bf16.mxu0 0
        %3489 = vmatmul.mubr.bf16.gmra.mrb[0].mxu0 %v3330
        %v3490 = vpop.f32.mrb[0].mxu0
        %v3491 = vadd.f32 %v3359, %v3490
        %v3492 = vpop.f32.mrb[0].mxu0
        %v3493 = vpop.f32.mrb[0].mxu0
        %v3494 = vadd.f32 %v3359, %v3493
        %v3495 = vpop.f32.mrb[0].mxu0
        %3496 = vmatprep.mubr.bf16.mxu0 0
        %3497 = vmatmul.mubr.bf16.gmra.mrb[0].mxu0 %v3331
        %v3498 = vpop.f32.mrb[0].mxu0
        %v3499 = vadd.f32 %v3359, %v3498
        %v3500 = vpop.f32.mrb[0].mxu0
        %v3501 = vpop.f32.mrb[0].mxu0
        %v3502 = vadd.f32 %v3359, %v3501
        %v3503 = vpop.f32.mrb[0].mxu0
        %3504 = vmatprep.mubr.bf16.mxu0 0
        %3505 = vmatmul.mubr.bf16.gmra.mrb[0].mxu0 %v3332
        %v3506 = vpop.f32.mrb[0].mxu0
        %v3507 = vadd.f32 %v3359, %v3506
        %v3508 = vpop.f32.mrb[0].mxu0
        %v3509 = vpop.f32.mrb[0].mxu0
        %v3510 = vadd.f32 %v3359, %v3509
        %v3511 = vpop.f32.mrb[0].mxu0
        %3512 = vmatprep.mubr.bf16.mxu0 0
        %3513 = vmatmul.mubr.bf16.gmra.mrb[0].mxu0 %v3333
        %v3514 = vpop.f32.mrb[0].mxu0
        %v3515 = vadd.f32 %v3359, %v3514
        %v3516 = vpop.f32.mrb[0].mxu0
        %v3517 = vpop.f32.mrb[0].mxu0
        %v3518 = vadd.f32 %v3359, %v3517
        %v3519 = vpop.f32.mrb[0].mxu0
        %3520 = vmatprep.mubr.bf16.mxu0 0
        %3521 = vmatmul.mubr.bf16.gmra.mrb[0].mxu0 %v3334
        %v3522 = vpop.f32.mrb[0].mxu0
        %v3523 = vadd.f32 %v3359, %v3522
        %v3524 = vpop.f32.mrb[0].mxu0
        %v3525 = vpop.f32.mrb[0].mxu0
        %v3526 = vadd.f32 %v3359, %v3525
        %v3527 = vpop.f32.mrb[0].mxu0
        %3528 = vmatprep.mubr.bf16.mxu0 0
        %3529 = vmatmul.mubr.bf16.gmra.mrb[0].mxu0 %v3335
        %v3530 = vpop.f32.mrb[0].mxu0
        %v3531 = vadd.f32 %v3359, %v3530
        %v3532 = vpop.f32.mrb[0].mxu0
        %v3533 = vpop.f32.mrb[0].mxu0
        %v3534 = vadd.f32 %v3359, %v3533
        %v3535 = vpop.f32.mrb[0].mxu0
        %3536 = vmatprep.mubr.bf16.mxu0 0
        %3537 = vmatmul.mubr.bf16.gmra.mrb[0].mxu0 %v3336
        %v3538 = vpop.f32.mrb[0].mxu0
        %v3539 = vadd.f32 %v3359, %v3538
        %v3540 = vpop.f32.mrb[0].mxu0
        %v3541 = vpop.f32.mrb[0].mxu0
        %v3542 = vadd.f32 %v3359, %v3541
        %v3543 = vpop.f32.mrb[0].mxu0
        %3544 = vmatprep.mubr.bf16.mxu0 0
        %3545 = vmatmul.mubr.bf16.gmra.mrb[0].mxu0 %v3337
        %v3546 = vpop.f32.mrb[0].mxu0
        %v3547 = vadd.f32 %v3359, %v3546
        %v3548 = vpop.f32.mrb[0].mxu0
        %v3549 = vpop.f32.mrb[0].mxu0
        %v3550 = vadd.f32 %v3359, %v3549
        %v3551 = vpop.f32.mrb[0].mxu0
        %3552 = vmatprep.mubr.bf16.mxu0 0
        %3553 = vmatmul.mubr.bf16.gmra.mrb[0].mxu0 %v3338
        %v3554 = vpop.f32.mrb[0].mxu0
        %v3555 = vadd.f32 %v3359, %v3554
        %v3556 = vpop.f32.mrb[0].mxu0
        %v3557 = vpop.f32.mrb[0].mxu0
        %v3558 = vadd.f32 %v3359, %v3557
        %v3559 = vpop.f32.mrb[0].mxu0
        %3560 = vmatprep.mubr.bf16.mxu0 0
        %3561 = vmatmul.mubr.bf16.gmra.mrb[0].mxu0 %v3339
        %v3562 = vpop.f32.mrb[0].mxu0
        %v3563 = vadd.f32 %v3359, %v3562
        %v3564 = vpop.f32.mrb[0].mxu0
        %v3565 = vpop.f32.mrb[0].mxu0
        %v3566 = vadd.f32 %v3359, %v3565
        %v3567 = vpop.f32.mrb[0].mxu0
        %3568 = vdwg.mxu0
        %v3569 = vadd.f32 %v3004, %v3443
        %v3570 = vadd.f32 %v3005, %v3446
        %v3571 = vadd.f32 %v3006, %v3451
        %v3572 = vadd.f32 %v3007, %v3454
        %v3573 = vadd.f32 %v3008, %v3459
        %v3574 = vadd.f32 %v3009, %v3462
        %v3575 = vadd.f32 %v3010, %v3467
        %v3576 = vadd.f32 %v3011, %v3470
        %v3577 = vadd.f32 %v3012, %v3475
        %v3578 = vadd.f32 %v3013, %v3478
        %v3579 = vadd.f32 %v3014, %v3483
        %v3580 = vadd.f32 %v3015, %v3486
        %v3581 = vadd.f32 %v3016, %v3491
        %v3582 = vadd.f32 %v3017, %v3494
        %v3583 = vadd.f32 %v3018, %v3499
        %v3584 = vadd.f32 %v3019, %v3502
        %v3585 = vadd.f32 %v3020, %v3507
        %v3586 = vadd.f32 %v3021, %v3510
        %v3587 = vadd.f32 %v3022, %v3515
        %v3588 = vadd.f32 %v3023, %v3518
        %v3589 = vadd.f32 %v3024, %v3523
        %v3590 = vadd.f32 %v3025, %v3526
        %v3591 = vadd.f32 %v3026, %v3531
        %v3592 = vadd.f32 %v3027, %v3534
        %v3593 = vadd.f32 %v3028, %v3539
        %v3594 = vadd.f32 %v3029, %v3542
        %v3595 = vadd.f32 %v3030, %v3547
        %v3596 = vadd.f32 %v3031, %v3550
        %v3597 = vadd.f32 %v3032, %v3555
        %v3598 = vadd.f32 %v3033, %v3558
        %v3599 = vadd.f32 %v3034, %v3563
        %v3600 = vadd.f32 %v3035, %v3566
        %3601 = vadd.xlane.f32.xlu0 %v3569
        %v3602 = vpop.xlane.xlu0 %3601
        %3603 = vadd.xlane.f32.xlu0 %v3570
        %v3604 = vpop.xlane.xlu0 %3603
        %3605 = vadd.xlane.f32.xlu0 %v3571
        %v3606 = vpop.xlane.xlu0 %3605
        %3607 = vadd.xlane.f32.xlu0 %v3572
        %v3608 = vpop.xlane.xlu0 %3607
        %3609 = vadd.xlane.f32.xlu0 %v3573
        %v3610 = vpop.xlane.xlu0 %3609
        %3611 = vadd.xlane.f32.xlu0 %v3574
        %v3612 = vpop.xlane.xlu0 %3611
        %3613 = vadd.xlane.f32.xlu0 %v3575
        %v3614 = vpop.xlane.xlu0 %3613
        %3615 = vadd.xlane.f32.xlu0 %v3576
        %v3616 = vpop.xlane.xlu0 %3615
        %3617 = vadd.xlane.f32.xlu0 %v3577
        %v3618 = vpop.xlane.xlu0 %3617
        %3619 = vadd.xlane.f32.xlu0 %v3578
        %v3620 = vpop.xlane.xlu0 %3619
        %3621 = vadd.xlane.f32.xlu0 %v3579
        %v3622 = vpop.xlane.xlu0 %3621
        %3623 = vadd.xlane.f32.xlu0 %v3580
        %v3624 = vpop.xlane.xlu0 %3623
        %3625 = vadd.xlane.f32.xlu0 %v3581
        %v3626 = vpop.xlane.xlu0 %3625
        %3627 = vadd.xlane.f32.xlu0 %v3582
        %v3628 = vpop.xlane.xlu0 %3627
        %3629 = vadd.xlane.f32.xlu0 %v3583
        %v3630 = vpop.xlane.xlu0 %3629
        %3631 = vadd.xlane.f32.xlu0 %v3584
        %v3632 = vpop.xlane.xlu0 %3631
        %3633 = vadd.xlane.f32.xlu0 %v3585
        %v3634 = vpop.xlane.xlu0 %3633
        %3635 = vadd.xlane.f32.xlu0 %v3586
        %v3636 = vpop.xlane.xlu0 %3635
        %3637 = vadd.xlane.f32.xlu0 %v3587
        %v3638 = vpop.xlane.xlu0 %3637
        %3639 = vadd.xlane.f32.xlu0 %v3588
        %v3640 = vpop.xlane.xlu0 %3639
        %3641 = vadd.xlane.f32.xlu0 %v3589
        %v3642 = vpop.xlane.xlu0 %3641
        %3643 = vadd.xlane.f32.xlu0 %v3590
        %v3644 = vpop.xlane.xlu0 %3643
        %3645 = vadd.xlane.f32.xlu0 %v3591
        %v3646 = vpop.xlane.xlu0 %3645
        %3647 = vadd.xlane.f32.xlu0 %v3592
        %v3648 = vpop.xlane.xlu0 %3647
        %3649 = vadd.xlane.f32.xlu0 %v3593
        %v3650 = vpop.xlane.xlu0 %3649
        %3651 = vadd.xlane.f32.xlu0 %v3594
        %v3652 = vpop.xlane.xlu0 %3651
        %3653 = vadd.xlane.f32.xlu0 %v3595
        %v3654 = vpop.xlane.xlu0 %3653
        %3655 = vadd.xlane.f32.xlu0 %v3596
        %v3656 = vpop.xlane.xlu0 %3655
        %3657 = vadd.xlane.f32.xlu0 %v3597
        %v3658 = vpop.xlane.xlu0 %3657
        %3659 = vadd.xlane.f32.xlu0 %v3598
        %v3660 = vpop.xlane.xlu0 %3659
        %3661 = vadd.xlane.f32.xlu0 %v3599
        %v3662 = vpop.xlane.xlu0 %3661
        %3663 = vadd.xlane.f32.xlu0 %v3600
        %v3664 = vpop.xlane.xlu0 %3663
        %v3665 = vrcp.pop 128.0
        %v3666 = vmul.f32 %v3602, %v3665
        %v3667 = vmul.f32 %v3604, %v3665
        %v3668 = vmul.f32 %v3606, %v3665
        %v3669 = vmul.f32 %v3608, %v3665
        %v3670 = vmul.f32 %v3610, %v3665
        %v3671 = vmul.f32 %v3612, %v3665
        %v3672 = vmul.f32 %v3614, %v3665
        %v3673 = vmul.f32 %v3616, %v3665
        %v3674 = vmul.f32 %v3618, %v3665
        %v3675 = vmul.f32 %v3620, %v3665
        %v3676 = vmul.f32 %v3622, %v3665
        %v3677 = vmul.f32 %v3624, %v3665
        %v3678 = vmul.f32 %v3626, %v3665
        %v3679 = vmul.f32 %v3628, %v3665
        %v3680 = vmul.f32 %v3630, %v3665
        %v3681 = vmul.f32 %v3632, %v3665
        %v3682 = vmul.f32 %v3634, %v3665
        %v3683 = vmul.f32 %v3636, %v3665
        %v3684 = vmul.f32 %v3638, %v3665
        %v3685 = vmul.f32 %v3640, %v3665
        %v3686 = vmul.f32 %v3642, %v3665
        %v3687 = vmul.f32 %v3644, %v3665
        %v3688 = vmul.f32 %v3646, %v3665
        %v3689 = vmul.f32 %v3648, %v3665
        %v3690 = vmul.f32 %v3650, %v3665
        %v3691 = vmul.f32 %v3652, %v3665
        %v3692 = vmul.f32 %v3654, %v3665
        %v3693 = vmul.f32 %v3656, %v3665
        %v3694 = vmul.f32 %v3658, %v3665
        %v3695 = vmul.f32 %v3660, %v3665
        %v3696 = vmul.f32 %v3662, %v3665
        %v3697 = vmul.f32 %v3664, %v3665
        %v3698 = vsub.f32 %v3569, %v3666
        %v3699 = vsub.f32 %v3570, %v3667
        %v3700 = vsub.f32 %v3571, %v3668
        %v3701 = vsub.f32 %v3572, %v3669
        %v3702 = vsub.f32 %v3573, %v3670
        %v3703 = vsub.f32 %v3574, %v3671
        %v3704 = vsub.f32 %v3575, %v3672
        %v3705 = vsub.f32 %v3576, %v3673
        %v3706 = vsub.f32 %v3577, %v3674
        %v3707 = vsub.f32 %v3578, %v3675
        %v3708 = vsub.f32 %v3579, %v3676
        %v3709 = vsub.f32 %v3580, %v3677
        %v3710 = vsub.f32 %v3581, %v3678
        %v3711 = vsub.f32 %v3582, %v3679
        %v3712 = vsub.f32 %v3583, %v3680
        %v3713 = vsub.f32 %v3584, %v3681
        %v3714 = vsub.f32 %v3585, %v3682
        %v3715 = vsub.f32 %v3586, %v3683
        %v3716 = vsub.f32 %v3587, %v3684
        %v3717 = vsub.f32 %v3588, %v3685
        %v3718 = vsub.f32 %v3589, %v3686
        %v3719 = vsub.f32 %v3590, %v3687
        %v3720 = vsub.f32 %v3591, %v3688
        %v3721 = vsub.f32 %v3592, %v3689
        %v3722 = vsub.f32 %v3593, %v3690
        %v3723 = vsub.f32 %v3594, %v3691
        %v3724 = vsub.f32 %v3595, %v3692
        %v3725 = vsub.f32 %v3596, %v3693
        %v3726 = vsub.f32 %v3597, %v3694
        %v3727 = vsub.f32 %v3598, %v3695
        %v3728 = vsub.f32 %v3599, %v3696
        %v3729 = vsub.f32 %v3600, %v3697
        %v3730 = vmul.f32 %v3698, %v3698
        %v3731 = vmul.f32 %v3699, %v3699
        %v3732 = vmul.f32 %v3700, %v3700
        %v3733 = vmul.f32 %v3701, %v3701
        %v3734 = vmul.f32 %v3702, %v3702
        %v3735 = vmul.f32 %v3703, %v3703
        %v3736 = vmul.f32 %v3704, %v3704
        %v3737 = vmul.f32 %v3705, %v3705
        %v3738 = vmul.f32 %v3706, %v3706
        %v3739 = vmul.f32 %v3707, %v3707
        %v3740 = vmul.f32 %v3708, %v3708
        %v3741 = vmul.f32 %v3709, %v3709
        %v3742 = vmul.f32 %v3710, %v3710
        %v3743 = vmul.f32 %v3711, %v3711
        %v3744 = vmul.f32 %v3712, %v3712
        %v3745 = vmul.f32 %v3713, %v3713
        %v3746 = vmul.f32 %v3714, %v3714
        %v3747 = vmul.f32 %v3715, %v3715
        %v3748 = vmul.f32 %v3716, %v3716
        %v3749 = vmul.f32 %v3717, %v3717
        %v3750 = vmul.f32 %v3718, %v3718
        %v3751 = vmul.f32 %v3719, %v3719
        %v3752 = vmul.f32 %v3720, %v3720
        %v3753 = vmul.f32 %v3721, %v3721
        %v3754 = vmul.f32 %v3722, %v3722
        %v3755 = vmul.f32 %v3723, %v3723
        %v3756 = vmul.f32 %v3724, %v3724
        %v3757 = vmul.f32 %v3725, %v3725
        %v3758 = vmul.f32 %v3726, %v3726
        %v3759 = vmul.f32 %v3727, %v3727
        %v3760 = vmul.f32 %v3728, %v3728
        %v3761 = vmul.f32 %v3729, %v3729
        %3762 = vadd.xlane.f32.xlu0 %v3730
        %v3763 = vpop.xlane.xlu0 %3762
        %3764 = vadd.xlane.f32.xlu0 %v3731
        %v3765 = vpop.xlane.xlu0 %3764
        %3766 = vadd.xlane.f32.xlu0 %v3732
        %v3767 = vpop.xlane.xlu0 %3766
        %3768 = vadd.xlane.f32.xlu0 %v3733
        %v3769 = vpop.xlane.xlu0 %3768
        %3770 = vadd.xlane.f32.xlu0 %v3734
        %v3771 = vpop.xlane.xlu0 %3770
        %3772 = vadd.xlane.f32.xlu0 %v3735
        %v3773 = vpop.xlane.xlu0 %3772
        %3774 = vadd.xlane.f32.xlu0 %v3736
        %v3775 = vpop.xlane.xlu0 %3774
        %3776 = vadd.xlane.f32.xlu0 %v3737
        %v3777 = vpop.xlane.xlu0 %3776
        %3778 = vadd.xlane.f32.xlu0 %v3738
        %v3779 = vpop.xlane.xlu0 %3778
        %3780 = vadd.xlane.f32.xlu0 %v3739
        %v3781 = vpop.xlane.xlu0 %3780
        %3782 = vadd.xlane.f32.xlu0 %v3740
        %v3783 = vpop.xlane.xlu0 %3782
        %3784 = vadd.xlane.f32.xlu0 %v3741
        %v3785 = vpop.xlane.xlu0 %3784
        %3786 = vadd.xlane.f32.xlu0 %v3742
        %v3787 = vpop.xlane.xlu0 %3786
        %3788 = vadd.xlane.f32.xlu0 %v3743
        %v3789 = vpop.xlane.xlu0 %3788
        %3790 = vadd.xlane.f32.xlu0 %v3744
        %v3791 = vpop.xlane.xlu0 %3790
        %3792 = vadd.xlane.f32.xlu0 %v3745
        %v3793 = vpop.xlane.xlu0 %3792
        %3794 = vadd.xlane.f32.xlu0 %v3746
        %v3795 = vpop.xlane.xlu0 %3794
        %3796 = vadd.xlane.f32.xlu0 %v3747
        %v3797 = vpop.xlane.xlu0 %3796
        %3798 = vadd.xlane.f32.xlu0 %v3748
        %v3799 = vpop.xlane.xlu0 %3798
        %3800 = vadd.xlane.f32.xlu0 %v3749
        %v3801 = vpop.xlane.xlu0 %3800
        %3802 = vadd.xlane.f32.xlu0 %v3750
        %v3803 = vpop.xlane.xlu0 %3802
        %3804 = vadd.xlane.f32.xlu0 %v3751
        %v3805 = vpop.xlane.xlu0 %3804
        %3806 = vadd.xlane.f32.xlu0 %v3752
        %v3807 = vpop.xlane.xlu0 %3806
        %3808 = vadd.xlane.f32.xlu0 %v3753
        %v3809 = vpop.xlane.xlu0 %3808
        %3810 = vadd.xlane.f32.xlu0 %v3754
        %v3811 = vpop.xlane.xlu0 %3810
        %3812 = vadd.xlane.f32.xlu0 %v3755
        %v3813 = vpop.xlane.xlu0 %3812
        %3814 = vadd.xlane.f32.xlu0 %v3756
        %v3815 = vpop.xlane.xlu0 %3814
        %3816 = vadd.xlane.f32.xlu0 %v3757
        %v3817 = vpop.xlane.xlu0 %3816
        %3818 = vadd.xlane.f32.xlu0 %v3758
        %v3819 = vpop.xlane.xlu0 %3818
        %3820 = vadd.xlane.f32.xlu0 %v3759
        %v3821 = vpop.xlane.xlu0 %3820
        %3822 = vadd.xlane.f32.xlu0 %v3760
        %v3823 = vpop.xlane.xlu0 %3822
        %3824 = vadd.xlane.f32.xlu0 %v3761
        %v3825 = vpop.xlane.xlu0 %3824
        %v3826 = vmul.f32 %v3763, %v3665
        %v3827 = vmul.f32 %v3765, %v3665
        %v3828 = vmul.f32 %v3767, %v3665
        %v3829 = vmul.f32 %v3769, %v3665
        %v3830 = vmul.f32 %v3771, %v3665
        %v3831 = vmul.f32 %v3773, %v3665
        %v3832 = vmul.f32 %v3775, %v3665
        %v3833 = vmul.f32 %v3777, %v3665
        %v3834 = vmul.f32 %v3779, %v3665
        %v3835 = vmul.f32 %v3781, %v3665
        %v3836 = vmul.f32 %v3783, %v3665
        %v3837 = vmul.f32 %v3785, %v3665
        %v3838 = vmul.f32 %v3787, %v3665
        %v3839 = vmul.f32 %v3789, %v3665
        %v3840 = vmul.f32 %v3791, %v3665
        %v3841 = vmul.f32 %v3793, %v3665
        %v3842 = vmul.f32 %v3795, %v3665
        %v3843 = vmul.f32 %v3797, %v3665
        %v3844 = vmul.f32 %v3799, %v3665
        %v3845 = vmul.f32 %v3801, %v3665
        %v3846 = vmul.f32 %v3803, %v3665
        %v3847 = vmul.f32 %v3805, %v3665
        %v3848 = vmul.f32 %v3807, %v3665
        %v3849 = vmul.f32 %v3809, %v3665
        %v3850 = vmul.f32 %v3811, %v3665
        %v3851 = vmul.f32 %v3813, %v3665
        %v3852 = vmul.f32 %v3815, %v3665
        %v3853 = vmul.f32 %v3817, %v3665
        %v3854 = vmul.f32 %v3819, %v3665
        %v3855 = vmul.f32 %v3821, %v3665
        %v3856 = vmul.f32 %v3823, %v3665
        %v3857 = vmul.f32 %v3825, %v3665
        %v3858 = vadd.f32 %v3826, 1e-05
        %v3859 = vadd.f32 %v3827, 1e-05
        %v3860 = vadd.f32 %v3828, 1e-05
        %v3861 = vadd.f32 %v3829, 1e-05
        %v3862 = vadd.f32 %v3830, 1e-05
        %v3863 = vadd.f32 %v3831, 1e-05
        %v3864 = vadd.f32 %v3832, 1e-05
        %v3865 = vadd.f32 %v3833, 1e-05
        %v3866 = vadd.f32 %v3834, 1e-05
        %v3867 = vadd.f32 %v3835, 1e-05
        %v3868 = vadd.f32 %v3836, 1e-05
        %v3869 = vadd.f32 %v3837, 1e-05
        %v3870 = vadd.f32 %v3838, 1e-05
        %v3871 = vadd.f32 %v3839, 1e-05
        %v3872 = vadd.f32 %v3840, 1e-05
        %v3873 = vadd.f32 %v3841, 1e-05
        %v3874 = vadd.f32 %v3842, 1e-05
        %v3875 = vadd.f32 %v3843, 1e-05
        %v3876 = vadd.f32 %v3844, 1e-05
        %v3877 = vadd.f32 %v3845, 1e-05
        %v3878 = vadd.f32 %v3846, 1e-05
        %v3879 = vadd.f32 %v3847, 1e-05
        %v3880 = vadd.f32 %v3848, 1e-05
        %v3881 = vadd.f32 %v3849, 1e-05
        %v3882 = vadd.f32 %v3850, 1e-05
        %v3883 = vadd.f32 %v3851, 1e-05
        %v3884 = vadd.f32 %v3852, 1e-05
        %v3885 = vadd.f32 %v3853, 1e-05
        %v3886 = vadd.f32 %v3854, 1e-05
        %v3887 = vadd.f32 %v3855, 1e-05
        %v3888 = vadd.f32 %v3856, 1e-05
        %v3889 = vadd.f32 %v3857, 1e-05
        %v3890 = vrsqrt.pop %v3858
        %v3891 = vrsqrt.pop %v3859
        %v3892 = vrsqrt.pop %v3860
        %v3893 = vrsqrt.pop %v3861
        %v3894 = vrsqrt.pop %v3862
        %v3895 = vrsqrt.pop %v3863
        %v3896 = vrsqrt.pop %v3864
        %v3897 = vrsqrt.pop %v3865
        %v3898 = vrsqrt.pop %v3866
        %v3899 = vrsqrt.pop %v3867
        %v3900 = vrsqrt.pop %v3868
        %v3901 = vrsqrt.pop %v3869
        %v3902 = vrsqrt.pop %v3870
        %v3903 = vrsqrt.pop %v3871
        %v3904 = vrsqrt.pop %v3872
        %v3905 = vrsqrt.pop %v3873
        %v3906 = vrsqrt.pop %v3874
        %v3907 = vrsqrt.pop %v3875
        %v3908 = vrsqrt.pop %v3876
        %v3909 = vrsqrt.pop %v3877
        %v3910 = vrsqrt.pop %v3878
        %v3911 = vrsqrt.pop %v3879
        %v3912 = vrsqrt.pop %v3880
        %v3913 = vrsqrt.pop %v3881
        %v3914 = vrsqrt.pop %v3882
        %v3915 = vrsqrt.pop %v3883
        %v3916 = vrsqrt.pop %v3884
        %v3917 = vrsqrt.pop %v3885
        %v3918 = vrsqrt.pop %v3886
        %v3919 = vrsqrt.pop %v3887
        %v3920 = vrsqrt.pop %v3888
        %v3921 = vrsqrt.pop %v3889
        %v3922 = vmul.f32 %v3698, %v3890
        %v3923 = vmul.f32 %v3699, %v3891
        %v3924 = vmul.f32 %v3700, %v3892
        %v3925 = vmul.f32 %v3701, %v3893
        %v3926 = vmul.f32 %v3702, %v3894
        %v3927 = vmul.f32 %v3703, %v3895
        %v3928 = vmul.f32 %v3704, %v3896
        %v3929 = vmul.f32 %v3705, %v3897
        %v3930 = vmul.f32 %v3706, %v3898
        %v3931 = vmul.f32 %v3707, %v3899
        %v3932 = vmul.f32 %v3708, %v3900
        %v3933 = vmul.f32 %v3709, %v3901
        %v3934 = vmul.f32 %v3710, %v3902
        %v3935 = vmul.f32 %v3711, %v3903
        %v3936 = vmul.f32 %v3712, %v3904
        %v3937 = vmul.f32 %v3713, %v3905
        %v3938 = vmul.f32 %v3714, %v3906
        %v3939 = vmul.f32 %v3715, %v3907
        %v3940 = vmul.f32 %v3716, %v3908
        %v3941 = vmul.f32 %v3717, %v3909
        %v3942 = vmul.f32 %v3718, %v3910
        %v3943 = vmul.f32 %v3719, %v3911
        %v3944 = vmul.f32 %v3720, %v3912
        %v3945 = vmul.f32 %v3721, %v3913
        %v3946 = vmul.f32 %v3722, %v3914
        %v3947 = vmul.f32 %v3723, %v3915
        %v3948 = vmul.f32 %v3724, %v3916
        %v3949 = vmul.f32 %v3725, %v3917
        %v3950 = vmul.f32 %v3726, %v3918
        %v3951 = vmul.f32 %v3727, %v3919
        %v3952 = vmul.f32 %v3728, %v3920
        %v3953 = vmul.f32 %v3729, %v3921
        %v3954 = vlaneseq
        %v3955 = vshrl.u32 %v3954, 7
        %v3956 = vsub.s32 2, %v3955
        %v3957 = vrot.slane %v2971, %v3956
        %v3958 = vmul.f32 %v3922, %v3957
        %v3959 = vmul.f32 %v3923, %v3957
        %v3960 = vmul.f32 %v3924, %v3957
        %v3961 = vmul.f32 %v3925, %v3957
        %v3962 = vmul.f32 %v3926, %v3957
        %v3963 = vmul.f32 %v3927, %v3957
        %v3964 = vmul.f32 %v3928, %v3957
        %v3965 = vmul.f32 %v3929, %v3957
        %v3966 = vmul.f32 %v3930, %v3957
        %v3967 = vmul.f32 %v3931, %v3957
        %v3968 = vmul.f32 %v3932, %v3957
        %v3969 = vmul.f32 %v3933, %v3957
        %v3970 = vmul.f32 %v3934, %v3957
        %v3971 = vmul.f32 %v3935, %v3957
        %v3972 = vmul.f32 %v3936, %v3957
        %v3973 = vmul.f32 %v3937, %v3957
        %v3974 = vmul.f32 %v3938, %v3957
        %v3975 = vmul.f32 %v3939, %v3957
        %v3976 = vmul.f32 %v3940, %v3957
        %v3977 = vmul.f32 %v3941, %v3957
        %v3978 = vmul.f32 %v3942, %v3957
        %v3979 = vmul.f32 %v3943, %v3957
        %v3980 = vmul.f32 %v3944, %v3957
        %v3981 = vmul.f32 %v3945, %v3957
        %v3982 = vmul.f32 %v3946, %v3957
        %v3983 = vmul.f32 %v3947, %v3957
        %v3984 = vmul.f32 %v3948, %v3957
        %v3985 = vmul.f32 %v3949, %v3957
        %v3986 = vmul.f32 %v3950, %v3957
        %v3987 = vmul.f32 %v3951, %v3957
        %v3988 = vmul.f32 %v3952, %v3957
        %v3989 = vmul.f32 %v3953, %v3957
        %v3990 = vlaneseq
        %v3991 = vshrl.u32 %v3990, 7
        %v3992 = vsub.s32 3, %v3991
        %v3993 = vrot.slane %v2971, %v3992
        %v3994 = vadd.f32 %v3958, %v3993
        %v3995 = vadd.f32 %v3959, %v3993
        %v3996 = vadd.f32 %v3960, %v3993
        %v3997 = vadd.f32 %v3961, %v3993
        %v3998 = vadd.f32 %v3962, %v3993
        %v3999 = vadd.f32 %v3963, %v3993
        %v4000 = vadd.f32 %v3964, %v3993
        %v4001 = vadd.f32 %v3965, %v3993
        %v4002 = vadd.f32 %v3966, %v3993
        %v4003 = vadd.f32 %v3967, %v3993
        %v4004 = vadd.f32 %v3968, %v3993
        %v4005 = vadd.f32 %v3969, %v3993
        %v4006 = vadd.f32 %v3970, %v3993
        %v4007 = vadd.f32 %v3971, %v3993
        %v4008 = vadd.f32 %v3972, %v3993
        %v4009 = vadd.f32 %v3973, %v3993
        %v4010 = vadd.f32 %v3974, %v3993
        %v4011 = vadd.f32 %v3975, %v3993
        %v4012 = vadd.f32 %v3976, %v3993
        %v4013 = vadd.f32 %v3977, %v3993
        %v4014 = vadd.f32 %v3978, %v3993
        %v4015 = vadd.f32 %v3979, %v3993
        %v4016 = vadd.f32 %v3980, %v3993
        %v4017 = vadd.f32 %v3981, %v3993
        %v4018 = vadd.f32 %v3982, %v3993
        %v4019 = vadd.f32 %v3983, %v3993
        %v4020 = vadd.f32 %v3984, %v3993
        %v4021 = vadd.f32 %v3985, %v3993
        %v4022 = vadd.f32 %v3986, %v3993
        %v4023 = vadd.f32 %v3987, %v3993
        %v4024 = vadd.f32 %v3988, %v3993
        %v4025 = vadd.f32 %v3989, %v3993
        %v4026 = vpack.c.bf16 %v3995, %v3994
        %v4027 = vpack.c.bf16 %v3997, %v3996
        %v4028 = vpack.c.bf16 %v3999, %v3998
        %v4029 = vpack.c.bf16 %v4001, %v4000
        %v4030 = vpack.c.bf16 %v4003, %v4002
        %v4031 = vpack.c.bf16 %v4005, %v4004
        %v4032 = vpack.c.bf16 %v4007, %v4006
        %v4033 = vpack.c.bf16 %v4009, %v4008
        %v4034 = vpack.c.bf16 %v4011, %v4010
        %v4035 = vpack.c.bf16 %v4013, %v4012
        %v4036 = vpack.c.bf16 %v4015, %v4014
        %v4037 = vpack.c.bf16 %v4017, %v4016
        %v4038 = vpack.c.bf16 %v4019, %v4018
        %v4039 = vpack.c.bf16 %v4021, %v4020
        %v4040 = vpack.c.bf16 %v4023, %v4022
        %v4041 = vpack.c.bf16 %v4025, %v4024
        %v4042 = vld [vmem:[%s7] sm:$0xff]
        %v4043 = vld [vmem:[%s7 + $0x8] sm:$0xff]
        %v4044 = vld [vmem:[%s7 + $0x10] sm:$0xff]
        %v4045 = vld [vmem:[%s7 + $0x18] sm:$0xff]
        %v4046 = vld [vmem:[%s7 + $0x20] sm:$0xff]
        %v4047 = vld [vmem:[%s7 + $0x28] sm:$0xff]
        %v4048 = vld [vmem:[%s7 + $0x30] sm:$0xff]
        %v4049 = vld [vmem:[%s7 + $0x38] sm:$0xff]
        %v4050 = vld [vmem:[%s7 + $0x40] sm:$0xff]
        %v4051 = vld [vmem:[%s7 + $0x48] sm:$0xff]
        %v4052 = vld [vmem:[%s7 + $0x50] sm:$0xff]
        %v4053 = vld [vmem:[%s7 + $0x58] sm:$0xff]
        %v4054 = vld [vmem:[%s7 + $0x60] sm:$0xff]
        %v4055 = vld [vmem:[%s7 + $0x68] sm:$0xff]
        %v4056 = vld [vmem:[%s7 + $0x70] sm:$0xff]
        %v4057 = vld [vmem:[%s7 + $0x78] sm:$0xff]
        %v4058 = vld [vmem:[%s10] sm:$0x3]
        %v4060 = vlaneseq
        %v4061 = vshrl.u32 %v4060, 7
        %v4062 = vsub.s32 0, %v4061
        %v4063 = vrot.slane %v4058, %v4062
        %v4064 = vlaneseq
        %v4065 = vshrl.u32 %v4064, 7
        %v4066 = vsub.s32 1, %v4065
        %v4067 = vrot.slane %v4058, %v4066
        %v4086 = vunpack.c.l.b16 %v4042
        %v4087 = vunpack.c.h.b16 %v4042
        %v4088 = vunpack.c.l.b16 %v4043
        %v4089 = vunpack.c.h.b16 %v4043
        %v4090 = vunpack.c.l.b16 %v4044
        %v4091 = vunpack.c.h.b16 %v4044
        %v4092 = vunpack.c.l.b16 %v4045
        %v4093 = vunpack.c.h.b16 %v4045
        %v4094 = vunpack.c.l.b16 %v4046
        %v4095 = vunpack.c.h.b16 %v4046
        %v4096 = vunpack.c.l.b16 %v4047
        %v4097 = vunpack.c.h.b16 %v4047
        %v4098 = vunpack.c.l.b16 %v4048
        %v4099 = vunpack.c.h.b16 %v4048
        %v4100 = vunpack.c.l.b16 %v4049
        %v4101 = vunpack.c.h.b16 %v4049
        %v4102 = vunpack.c.l.b16 %v4050
        %v4103 = vunpack.c.h.b16 %v4050
        %v4104 = vunpack.c.l.b16 %v4051
        %v4105 = vunpack.c.h.b16 %v4051
        %v4106 = vunpack.c.l.b16 %v4052
        %v4107 = vunpack.c.h.b16 %v4052
        %v4108 = vunpack.c.l.b16 %v4053
        %v4109 = vunpack.c.h.b16 %v4053
        %v4110 = vunpack.c.l.b16 %v4054
        %v4111 = vunpack.c.h.b16 %v4054
        %v4112 = vunpack.c.l.b16 %v4055
        %v4113 = vunpack.c.h.b16 %v4055
        %v4114 = vunpack.c.l.b16 %v4056
        %v4115 = vunpack.c.h.b16 %v4056
        %v4116 = vunpack.c.l.b16 %v4057
        %v4117 = vunpack.c.h.b16 %v4057
        %v4118 = vpack.c.b16 %v4088, %v4086
        %v4119 = vpack.c.b16 %v4089, %v4087
        %v4120 = vpack.c.b16 %v4092, %v4090
        %v4121 = vpack.c.b16 %v4093, %v4091
        %v4122 = vpack.c.b16 %v4096, %v4094
        %v4123 = vpack.c.b16 %v4097, %v4095
        %v4124 = vpack.c.b16 %v4100, %v4098
        %v4125 = vpack.c.b16 %v4101, %v4099
        %v4126 = vpack.c.b16 %v4104, %v4102
        %v4127 = vpack.c.b16 %v4105, %v4103
        %v4128 = vpack.c.b16 %v4108, %v4106
        %v4129 = vpack.c.b16 %v4109, %v4107
        %v4130 = vpack.c.b16 %v4112, %v4110
        %v4131 = vpack.c.b16 %v4113, %v4111
        %v4132 = vpack.c.b16 %v4116, %v4114
        %v4133 = vpack.c.b16 %v4117, %v4115
        %4150 = vmatprep.subr.bf16.mxu0 %v4119
        %4151 = vmatpush1.bf16.msra.mxu0 %v4118
        %4152 = vmatprep.subr.bf16.mxu0 %v4121
        %4153 = vmatpush1.bf16.msra.mxu0 %v4120
        %4154 = vmatprep.subr.bf16.mxu0 %v4123
        %4155 = vmatpush1.bf16.msra.mxu0 %v4122
        %4156 = vmatprep.subr.bf16.mxu0 %v4125
        %4157 = vmatpush1.bf16.msra.mxu0 %v4124
        %4158 = vmatprep.subr.bf16.mxu0 %v4127
        %4159 = vmatpush1.bf16.msra.mxu0 %v4126
        %4160 = vmatprep.subr.bf16.mxu0 %v4129
        %4161 = vmatpush1.bf16.msra.mxu0 %v4128
        %4162 = vmatprep.subr.bf16.mxu0 %v4131
        %4163 = vmatpush1.bf16.msra.mxu0 %v4130
        %4164 = vmatprep.subr.bf16.mxu0 %v4133
        %4165 = vmatpush1.bf16.msra.mxu0 %v4132
        %4166 = vmatprep.subr.bf16.mxu0 0
        %4167 = vmatpush1.bf16.msra.mxu0 0
        %4168 = vmatprep.subr.bf16.mxu0 0
        %4169 = vmatpush1.bf16.msra.mxu0 0
        %4170 = vmatprep.subr.bf16.mxu0 0
        %4171 = vmatpush1.bf16.msra.mxu0 0
        %4172 = vmatprep.subr.bf16.mxu0 0
        %4173 = vmatpush1.bf16.msra.mxu0 0
        %4174 = vmatprep.subr.bf16.mxu0 0
        %4175 = vmatpush1.bf16.msra.mxu0 0
        %4176 = vmatprep.subr.bf16.mxu0 0
        %4177 = vmatpush1.bf16.msra.mxu0 0
        %4178 = vmatprep.subr.bf16.mxu0 0
        %4179 = vmatpush1.bf16.msra.mxu0 0
        %4180 = vmatprep.subr.bf16.mxu0 0
        %4181 = vmatpush1.bf16.msra.mxu0 0
        %4182 = vmatprep.mubr.bf16.mxu0 0
        %4183 = vmatmul.mubr.bf16.gmra.mrb[0].mxu0 %v4026
        %v4184 = vpop.f32.mrb[0].mxu0
        %v4185 = vadd.f32 %v4063, %v4184
        %v4186 = vpop.f32.mrb[0].mxu0
        %v4187 = vadd.f32 %v4067, %v4186
        %v4188 = vpop.f32.mrb[0].mxu0
        %v4189 = vadd.f32 %v4063, %v4188
        %v4190 = vpop.f32.mrb[0].mxu0
        %v4191 = vadd.f32 %v4067, %v4190
        %4192 = vmatprep.mubr.bf16.mxu0 0
        %4193 = vmatmul.mubr.bf16.gmra.mrb[0].mxu0 %v4027
        %v4194 = vpop.f32.mrb[0].mxu0
        %v4195 = vadd.f32 %v4063, %v4194
        %v4196 = vpop.f32.mrb[0].mxu0
        %v4197 = vadd.f32 %v4067, %v4196
        %v4198 = vpop.f32.mrb[0].mxu0
        %v4199 = vadd.f32 %v4063, %v4198
        %v4200 = vpop.f32.mrb[0].mxu0
        %v4201 = vadd.f32 %v4067, %v4200
        %4202 = vmatprep.mubr.bf16.mxu0 0
        %4203 = vmatmul.mubr.bf16.gmra.mrb[0].mxu0 %v4028
        %v4204 = vpop.f32.mrb[0].mxu0
        %v4205 = vadd.f32 %v4063, %v4204
        %v4206 = vpop.f32.mrb[0].mxu0
        %v4207 = vadd.f32 %v4067, %v4206
        %v4208 = vpop.f32.mrb[0].mxu0
        %v4209 = vadd.f32 %v4063, %v4208
        %v4210 = vpop.f32.mrb[0].mxu0
        %v4211 = vadd.f32 %v4067, %v4210
        %4212 = vmatprep.mubr.bf16.mxu0 0
        %4213 = vmatmul.mubr.bf16.gmra.mrb[0].mxu0 %v4029
        %v4214 = vpop.f32.mrb[0].mxu0
        %v4215 = vadd.f32 %v4063, %v4214
        %v4216 = vpop.f32.mrb[0].mxu0
        %v4217 = vadd.f32 %v4067, %v4216
        %v4218 = vpop.f32.mrb[0].mxu0
        %v4219 = vadd.f32 %v4063, %v4218
        %v4220 = vpop.f32.mrb[0].mxu0
        %v4221 = vadd.f32 %v4067, %v4220
        %4222 = vmatprep.mubr.bf16.mxu0 0
        %4223 = vmatmul.mubr.bf16.gmra.mrb[0].mxu0 %v4030
        %v4224 = vpop.f32.mrb[0].mxu0
        %v4225 = vadd.f32 %v4063, %v4224
        %v4226 = vpop.f32.mrb[0].mxu0
        %v4227 = vadd.f32 %v4067, %v4226
        %v4228 = vpop.f32.mrb[0].mxu0
        %v4229 = vadd.f32 %v4063, %v4228
        %v4230 = vpop.f32.mrb[0].mxu0
        %v4231 = vadd.f32 %v4067, %v4230
        %4232 = vmatprep.mubr.bf16.mxu0 0
        %4233 = vmatmul.mubr.bf16.gmra.mrb[0].mxu0 %v4031
        %v4234 = vpop.f32.mrb[0].mxu0
        %v4235 = vadd.f32 %v4063, %v4234
        %v4236 = vpop.f32.mrb[0].mxu0
        %v4237 = vadd.f32 %v4067, %v4236
        %v4238 = vpop.f32.mrb[0].mxu0
        %v4239 = vadd.f32 %v4063, %v4238
        %v4240 = vpop.f32.mrb[0].mxu0
        %v4241 = vadd.f32 %v4067, %v4240
        %4242 = vmatprep.mubr.bf16.mxu0 0
        %4243 = vmatmul.mubr.bf16.gmra.mrb[0].mxu0 %v4032
        %v4244 = vpop.f32.mrb[0].mxu0
        %v4245 = vadd.f32 %v4063, %v4244
        %v4246 = vpop.f32.mrb[0].mxu0
        %v4247 = vadd.f32 %v4067, %v4246
        %v4248 = vpop.f32.mrb[0].mxu0
        %v4249 = vadd.f32 %v4063, %v4248
        %v4250 = vpop.f32.mrb[0].mxu0
        %v4251 = vadd.f32 %v4067, %v4250
        %4252 = vmatprep.mubr.bf16.mxu0 0
        %4253 = vmatmul.mubr.bf16.gmra.mrb[0].mxu0 %v4033
        %v4254 = vpop.f32.mrb[0].mxu0
        %v4255 = vadd.f32 %v4063, %v4254
        %v4256 = vpop.f32.mrb[0].mxu0
        %v4257 = vadd.f32 %v4067, %v4256
        %v4258 = vpop.f32.mrb[0].mxu0
        %v4259 = vadd.f32 %v4063, %v4258
        %v4260 = vpop.f32.mrb[0].mxu0
        %v4261 = vadd.f32 %v4067, %v4260
        %4262 = vmatprep.mubr.bf16.mxu0 0
        %4263 = vmatmul.mubr.bf16.gmra.mrb[0].mxu0 %v4034
        %v4264 = vpop.f32.mrb[0].mxu0
        %v4265 = vadd.f32 %v4063, %v4264
        %v4266 = vpop.f32.mrb[0].mxu0
        %v4267 = vadd.f32 %v4067, %v4266
        %v4268 = vpop.f32.mrb[0].mxu0
        %v4269 = vadd.f32 %v4063, %v4268
        %v4270 = vpop.f32.mrb[0].mxu0
        %v4271 = vadd.f32 %v4067, %v4270
        %4272 = vmatprep.mubr.bf16.mxu0 0
        %4273 = vmatmul.mubr.bf16.gmra.mrb[0].mxu0 %v4035
        %v4274 = vpop.f32.mrb[0].mxu0
        %v4275 = vadd.f32 %v4063, %v4274
        %v4276 = vpop.f32.mrb[0].mxu0
        %v4277 = vadd.f32 %v4067, %v4276
        %v4278 = vpop.f32.mrb[0].mxu0
        %v4279 = vadd.f32 %v4063, %v4278
        %v4280 = vpop.f32.mrb[0].mxu0
        %v4281 = vadd.f32 %v4067, %v4280
        %4282 = vmatprep.mubr.bf16.mxu0 0
        %4283 = vmatmul.mubr.bf16.gmra.mrb[0].mxu0 %v4036
        %v4284 = vpop.f32.mrb[0].mxu0
        %v4285 = vadd.f32 %v4063, %v4284
        %v4286 = vpop.f32.mrb[0].mxu0
        %v4287 = vadd.f32 %v4067, %v4286
        %v4288 = vpop.f32.mrb[0].mxu0
        %v4289 = vadd.f32 %v4063, %v4288
        %v4290 = vpop.f32.mrb[0].mxu0
        %v4291 = vadd.f32 %v4067, %v4290
        %4292 = vmatprep.mubr.bf16.mxu0 0
        %4293 = vmatmul.mubr.bf16.gmra.mrb[0].mxu0 %v4037
        %v4294 = vpop.f32.mrb[0].mxu0
        %v4295 = vadd.f32 %v4063, %v4294
        %v4296 = vpop.f32.mrb[0].mxu0
        %v4297 = vadd.f32 %v4067, %v4296
        %v4298 = vpop.f32.mrb[0].mxu0
        %v4299 = vadd.f32 %v4063, %v4298
        %v4300 = vpop.f32.mrb[0].mxu0
        %v4301 = vadd.f32 %v4067, %v4300
        %4302 = vmatprep.mubr.bf16.mxu0 0
        %4303 = vmatmul.mubr.bf16.gmra.mrb[0].mxu0 %v4038
        %v4304 = vpop.f32.mrb[0].mxu0
        %v4305 = vadd.f32 %v4063, %v4304
        %v4306 = vpop.f32.mrb[0].mxu0
        %v4307 = vadd.f32 %v4067, %v4306
        %v4308 = vpop.f32.mrb[0].mxu0
        %v4309 = vadd.f32 %v4063, %v4308
        %v4310 = vpop.f32.mrb[0].mxu0
        %v4311 = vadd.f32 %v4067, %v4310
        %4312 = vmatprep.mubr.bf16.mxu0 0
        %4313 = vmatmul.mubr.bf16.gmra.mrb[0].mxu0 %v4039
        %v4314 = vpop.f32.mrb[0].mxu0
        %v4315 = vadd.f32 %v4063, %v4314
        %v4316 = vpop.f32.mrb[0].mxu0
        %v4317 = vadd.f32 %v4067, %v4316
        %v4318 = vpop.f32.mrb[0].mxu0
        %v4319 = vadd.f32 %v4063, %v4318
        %v4320 = vpop.f32.mrb[0].mxu0
        %v4321 = vadd.f32 %v4067, %v4320
        %4322 = vmatprep.mubr.bf16.mxu0 0
        %4323 = vmatmul.mubr.bf16.gmra.mrb[0].mxu0 %v4040
        %v4324 = vpop.f32.mrb[0].mxu0
        %v4325 = vadd.f32 %v4063, %v4324
        %v4326 = vpop.f32.mrb[0].mxu0
        %v4327 = vadd.f32 %v4067, %v4326
        %v4328 = vpop.f32.mrb[0].mxu0
        %v4329 = vadd.f32 %v4063, %v4328
        %v4330 = vpop.f32.mrb[0].mxu0
        %v4331 = vadd.f32 %v4067, %v4330
        %4332 = vmatprep.mubr.bf16.mxu0 0
        %4333 = vmatmul.mubr.bf16.gmra.mrb[0].mxu0 %v4041
        %v4334 = vpop.f32.mrb[0].mxu0
        %v4335 = vadd.f32 %v4063, %v4334
        %v4336 = vpop.f32.mrb[0].mxu0
        %v4337 = vadd.f32 %v4067, %v4336
        %v4338 = vpop.f32.mrb[0].mxu0
        %v4339 = vadd.f32 %v4063, %v4338
        %v4340 = vpop.f32.mrb[0].mxu0
        %v4341 = vadd.f32 %v4067, %v4340
        %4342 = vdwg.mxu0
        %v4343 = vmax.f32 %v4185, 0.0
        %v4344 = vmax.f32 %v4187, 0.0
        %v4345 = vmax.f32 %v4189, 0.0
        %v4346 = vmax.f32 %v4191, 0.0
        %v4347 = vmax.f32 %v4195, 0.0
        %v4348 = vmax.f32 %v4197, 0.0
        %v4349 = vmax.f32 %v4199, 0.0
        %v4350 = vmax.f32 %v4201, 0.0
        %v4351 = vmax.f32 %v4205, 0.0
        %v4352 = vmax.f32 %v4207, 0.0
        %v4353 = vmax.f32 %v4209, 0.0
        %v4354 = vmax.f32 %v4211, 0.0
        %v4355 = vmax.f32 %v4215, 0.0
        %v4356 = vmax.f32 %v4217, 0.0
        %v4357 = vmax.f32 %v4219, 0.0
        %v4358 = vmax.f32 %v4221, 0.0
        %v4359 = vmax.f32 %v4225, 0.0
        %v4360 = vmax.f32 %v4227, 0.0
        %v4361 = vmax.f32 %v4229, 0.0
        %v4362 = vmax.f32 %v4231, 0.0
        %v4363 = vmax.f32 %v4235, 0.0
        %v4364 = vmax.f32 %v4237, 0.0
        %v4365 = vmax.f32 %v4239, 0.0
        %v4366 = vmax.f32 %v4241, 0.0
        %v4367 = vmax.f32 %v4245, 0.0
        %v4368 = vmax.f32 %v4247, 0.0
        %v4369 = vmax.f32 %v4249, 0.0
        %v4370 = vmax.f32 %v4251, 0.0
        %v4371 = vmax.f32 %v4255, 0.0
        %v4372 = vmax.f32 %v4257, 0.0
        %v4373 = vmax.f32 %v4259, 0.0
        %v4374 = vmax.f32 %v4261, 0.0
        %v4375 = vmax.f32 %v4265, 0.0
        %v4376 = vmax.f32 %v4267, 0.0
        %v4377 = vmax.f32 %v4269, 0.0
        %v4378 = vmax.f32 %v4271, 0.0
        %v4379 = vmax.f32 %v4275, 0.0
        %v4380 = vmax.f32 %v4277, 0.0
        %v4381 = vmax.f32 %v4279, 0.0
        %v4382 = vmax.f32 %v4281, 0.0
        %v4383 = vmax.f32 %v4285, 0.0
        %v4384 = vmax.f32 %v4287, 0.0
        %v4385 = vmax.f32 %v4289, 0.0
        %v4386 = vmax.f32 %v4291, 0.0
        %v4387 = vmax.f32 %v4295, 0.0
        %v4388 = vmax.f32 %v4297, 0.0
        %v4389 = vmax.f32 %v4299, 0.0
        %v4390 = vmax.f32 %v4301, 0.0
        %v4391 = vmax.f32 %v4305, 0.0
        %v4392 = vmax.f32 %v4307, 0.0
        %v4393 = vmax.f32 %v4309, 0.0
        %v4394 = vmax.f32 %v4311, 0.0
        %v4395 = vmax.f32 %v4315, 0.0
        %v4396 = vmax.f32 %v4317, 0.0
        %v4397 = vmax.f32 %v4319, 0.0
        %v4398 = vmax.f32 %v4321, 0.0
        %v4399 = vmax.f32 %v4325, 0.0
        %v4400 = vmax.f32 %v4327, 0.0
        %v4401 = vmax.f32 %v4329, 0.0
        %v4402 = vmax.f32 %v4331, 0.0
        %v4403 = vmax.f32 %v4335, 0.0
        %v4404 = vmax.f32 %v4337, 0.0
        %v4405 = vmax.f32 %v4339, 0.0
        %v4406 = vmax.f32 %v4341, 0.0
        %v4407 = vpack.c.bf16 %v4345, %v4343
        %v4408 = vpack.c.bf16 %v4346, %v4344
        %v4409 = vpack.c.bf16 %v4349, %v4347
        %v4410 = vpack.c.bf16 %v4350, %v4348
        %v4411 = vpack.c.bf16 %v4353, %v4351
        %v4412 = vpack.c.bf16 %v4354, %v4352
        %v4413 = vpack.c.bf16 %v4357, %v4355
        %v4414 = vpack.c.bf16 %v4358, %v4356
        %v4415 = vpack.c.bf16 %v4361, %v4359
        %v4416 = vpack.c.bf16 %v4362, %v4360
        %v4417 = vpack.c.bf16 %v4365, %v4363
        %v4418 = vpack.c.bf16 %v4366, %v4364
        %v4419 = vpack.c.bf16 %v4369, %v4367
        %v4420 = vpack.c.bf16 %v4370, %v4368
        %v4421 = vpack.c.bf16 %v4373, %v4371
        %v4422 = vpack.c.bf16 %v4374, %v4372
        %v4423 = vpack.c.bf16 %v4377, %v4375
        %v4424 = vpack.c.bf16 %v4378, %v4376
        %v4425 = vpack.c.bf16 %v4381, %v4379
        %v4426 = vpack.c.bf16 %v4382, %v4380
        %v4427 = vpack.c.bf16 %v4385, %v4383
        %v4428 = vpack.c.bf16 %v4386, %v4384
        %v4429 = vpack.c.bf16 %v4389, %v4387
        %v4430 = vpack.c.bf16 %v4390, %v4388
        %v4431 = vpack.c.bf16 %v4393, %v4391
        %v4432 = vpack.c.bf16 %v4394, %v4392
        %v4433 = vpack.c.bf16 %v4397, %v4395
        %v4434 = vpack.c.bf16 %v4398, %v4396
        %v4435 = vpack.c.bf16 %v4401, %v4399
        %v4436 = vpack.c.bf16 %v4402, %v4400
        %v4437 = vpack.c.bf16 %v4405, %v4403
        %v4438 = vpack.c.bf16 %v4406, %v4404
        %v4439 = vld [vmem:[%s8] sm:$0xf]
        %v4440 = vld [vmem:[%s8 + $0x4] sm:$0xf]
        %v4441 = vld [vmem:[%s8 + $0x8] sm:$0xf]
        %v4442 = vld [vmem:[%s8 + $0xc] sm:$0xf]
        %v4443 = vld [vmem:[%s8 + $0x10] sm:$0xf]
        %v4444 = vld [vmem:[%s8 + $0x14] sm:$0xf]
        %v4445 = vld [vmem:[%s8 + $0x18] sm:$0xf]
        %v4446 = vld [vmem:[%s8 + $0x1c] sm:$0xf]
        %v4447 = vld [vmem:[%s8 + $0x20] sm:$0xf]
        %v4448 = vld [vmem:[%s8 + $0x24] sm:$0xf]
        %v4449 = vld [vmem:[%s8 + $0x28] sm:$0xf]
        %v4450 = vld [vmem:[%s8 + $0x2c] sm:$0xf]
        %v4451 = vld [vmem:[%s8 + $0x30] sm:$0xf]
        %v4452 = vld [vmem:[%s8 + $0x34] sm:$0xf]
        %v4453 = vld [vmem:[%s8 + $0x38] sm:$0xf]
        %v4454 = vld [vmem:[%s8 + $0x3c] sm:$0xf]
        %v4455 = vld [vmem:[%s8 + $0x40] sm:$0xf]
        %v4456 = vld [vmem:[%s8 + $0x44] sm:$0xf]
        %v4457 = vld [vmem:[%s8 + $0x48] sm:$0xf]
        %v4458 = vld [vmem:[%s8 + $0x4c] sm:$0xf]
        %v4459 = vld [vmem:[%s8 + $0x50] sm:$0xf]
        %v4460 = vld [vmem:[%s8 + $0x54] sm:$0xf]
        %v4461 = vld [vmem:[%s8 + $0x58] sm:$0xf]
        %v4462 = vld [vmem:[%s8 + $0x5c] sm:$0xf]
        %v4463 = vld [vmem:[%s8 + $0x60] sm:$0xf]
        %v4464 = vld [vmem:[%s8 + $0x64] sm:$0xf]
        %v4465 = vld [vmem:[%s8 + $0x68] sm:$0xf]
        %v4466 = vld [vmem:[%s8 + $0x6c] sm:$0xf]
        %v4467 = vld [vmem:[%s8 + $0x70] sm:$0xf]
        %v4468 = vld [vmem:[%s8 + $0x74] sm:$0xf]
        %v4469 = vld [vmem:[%s8 + $0x78] sm:$0xf]
        %v4470 = vld [vmem:[%s8 + $0x7c] sm:$0xf]
        %v4471 = vlaneseq
        %v4472 = vshrl.u32 %v4471, 7
        %v4473 = vsub.s32 1, %v4472
        %v4474 = vrot.slane %v2971, %v4473
        %v4507 = vunpack.c.l.b16 %v4439
        %v4508 = vunpack.c.l.b16 %v4440
        %v4509 = vunpack.c.l.b16 %v4441
        %v4510 = vunpack.c.l.b16 %v4442
        %v4511 = vunpack.c.l.b16 %v4443
        %v4512 = vunpack.c.l.b16 %v4444
        %v4513 = vunpack.c.l.b16 %v4445
        %v4514 = vunpack.c.l.b16 %v4446
        %v4515 = vunpack.c.l.b16 %v4447
        %v4516 = vunpack.c.l.b16 %v4448
        %v4517 = vunpack.c.l.b16 %v4449
        %v4518 = vunpack.c.l.b16 %v4450
        %v4519 = vunpack.c.l.b16 %v4451
        %v4520 = vunpack.c.l.b16 %v4452
        %v4521 = vunpack.c.l.b16 %v4453
        %v4522 = vunpack.c.l.b16 %v4454
        %v4523 = vunpack.c.l.b16 %v4455
        %v4524 = vunpack.c.l.b16 %v4456
        %v4525 = vunpack.c.l.b16 %v4457
        %v4526 = vunpack.c.l.b16 %v4458
        %v4527 = vunpack.c.l.b16 %v4459
        %v4528 = vunpack.c.l.b16 %v4460
        %v4529 = vunpack.c.l.b16 %v4461
        %v4530 = vunpack.c.l.b16 %v4462
        %v4531 = vunpack.c.l.b16 %v4463
        %v4532 = vunpack.c.l.b16 %v4464
        %v4533 = vunpack.c.l.b16 %v4465
        %v4534 = vunpack.c.l.b16 %v4466
        %v4535 = vunpack.c.l.b16 %v4467
        %v4536 = vunpack.c.l.b16 %v4468
        %v4537 = vunpack.c.l.b16 %v4469
        %v4538 = vunpack.c.l.b16 %v4470
        %v4539 = vpack.c.b16 %v4508, %v4507
        %v4540 = vpack.c.b16 %v4510, %v4509
        %v4541 = vpack.c.b16 %v4512, %v4511
        %v4542 = vpack.c.b16 %v4514, %v4513
        %v4543 = vpack.c.b16 %v4516, %v4515
        %v4544 = vpack.c.b16 %v4518, %v4517
        %v4545 = vpack.c.b16 %v4520, %v4519
        %v4546 = vpack.c.b16 %v4522, %v4521
        %v4547 = vpack.c.b16 %v4524, %v4523
        %v4548 = vpack.c.b16 %v4526, %v4525
        %v4549 = vpack.c.b16 %v4528, %v4527
        %v4550 = vpack.c.b16 %v4530, %v4529
        %v4551 = vpack.c.b16 %v4532, %v4531
        %v4552 = vpack.c.b16 %v4534, %v4533
        %v4553 = vpack.c.b16 %v4536, %v4535
        %v4554 = vpack.c.b16 %v4538, %v4537
        %4571 = vmatprep.subr.bf16.mxu0 0
        %4572 = vmatpush1.bf16.msra.mxu0 %v4539
        %4573 = vmatprep.subr.bf16.mxu0 0
        %4574 = vmatpush1.bf16.msra.mxu0 %v4540
        %4575 = vmatprep.subr.bf16.mxu0 0
        %4576 = vmatpush1.bf16.msra.mxu0 %v4541
        %4577 = vmatprep.subr.bf16.mxu0 0
        %4578 = vmatpush1.bf16.msra.mxu0 %v4542
        %4579 = vmatprep.subr.bf16.mxu0 0
        %4580 = vmatpush1.bf16.msra.mxu0 %v4543
        %4581 = vmatprep.subr.bf16.mxu0 0
        %4582 = vmatpush1.bf16.msra.mxu0 %v4544
        %4583 = vmatprep.subr.bf16.mxu0 0
        %4584 = vmatpush1.bf16.msra.mxu0 %v4545
        %4585 = vmatprep.subr.bf16.mxu0 0
        %4586 = vmatpush1.bf16.msra.mxu0 %v4546
        %4587 = vmatprep.subr.bf16.mxu0 0
        %4588 = vmatpush1.bf16.msra.mxu0 %v4547
        %4589 = vmatprep.subr.bf16.mxu0 0
        %4590 = vmatpush1.bf16.msra.mxu0 %v4548
        %4591 = vmatprep.subr.bf16.mxu0 0
        %4592 = vmatpush1.bf16.msra.mxu0 %v4549
        %4593 = vmatprep.subr.bf16.mxu0 0
        %4594 = vmatpush1.bf16.msra.mxu0 %v4550
        %4595 = vmatprep.subr.bf16.mxu0 0
        %4596 = vmatpush1.bf16.msra.mxu0 %v4551
        %4597 = vmatprep.subr.bf16.mxu0 0
        %4598 = vmatpush1.bf16.msra.mxu0 %v4552
        %4599 = vmatprep.subr.bf16.mxu0 0
        %4600 = vmatpush1.bf16.msra.mxu0 %v4553
        %4601 = vmatprep.subr.bf16.mxu0 0
        %4602 = vmatpush1.bf16.msra.mxu0 %v4554
        %4603 = vmatprep.mubr.bf16.mxu0 %v4408
        %4604 = vmatmul.mubr.bf16.gmra.mrb[0].mxu0 %v4407
        %v4605 = vpop.f32.mrb[0].mxu0
        %v4606 = vadd.f32 %v4474, %v4605
        %v4607 = vpop.f32.mrb[0].mxu0
        %v4608 = vpop.f32.mrb[0].mxu0
        %v4609 = vadd.f32 %v4474, %v4608
        %v4610 = vpop.f32.mrb[0].mxu0
        %4611 = vmatprep.mubr.bf16.mxu0 %v4410
        %4612 = vmatmul.mubr.bf16.gmra.mrb[0].mxu0 %v4409
        %v4613 = vpop.f32.mrb[0].mxu0
        %v4614 = vadd.f32 %v4474, %v4613
        %v4615 = vpop.f32.mrb[0].mxu0
        %v4616 = vpop.f32.mrb[0].mxu0
        %v4617 = vadd.f32 %v4474, %v4616
        %v4618 = vpop.f32.mrb[0].mxu0
        %4619 = vmatprep.mubr.bf16.mxu0 %v4412
        %4620 = vmatmul.mubr.bf16.gmra.mrb[0].mxu0 %v4411
        %v4621 = vpop.f32.mrb[0].mxu0
        %v4622 = vadd.f32 %v4474, %v4621
        %v4623 = vpop.f32.mrb[0].mxu0
        %v4624 = vpop.f32.mrb[0].mxu0
        %v4625 = vadd.f32 %v4474, %v4624
        %v4626 = vpop.f32.mrb[0].mxu0
        %4627 = vmatprep.mubr.bf16.mxu0 %v4414
        %4628 = vmatmul.mubr.bf16.gmra.mrb[0].mxu0 %v4413
        %v4629 = vpop.f32.mrb[0].mxu0
        %v4630 = vadd.f32 %v4474, %v4629
        %v4631 = vpop.f32.mrb[0].mxu0
        %v4632 = vpop.f32.mrb[0].mxu0
        %v4633 = vadd.f32 %v4474, %v4632
        %v4634 = vpop.f32.mrb[0].mxu0
        %4635 = vmatprep.mubr.bf16.mxu0 %v4416
        %4636 = vmatmul.mubr.bf16.gmra.mrb[0].mxu0 %v4415
        %v4637 = vpop.f32.mrb[0].mxu0
        %v4638 = vadd.f32 %v4474, %v4637
        %v4639 = vpop.f32.mrb[0].mxu0
        %v4640 = vpop.f32.mrb[0].mxu0
        %v4641 = vadd.f32 %v4474, %v4640
        %v4642 = vpop.f32.mrb[0].mxu0
        %4643 = vmatprep.mubr.bf16.mxu0 %v4418
        %4644 = vmatmul.mubr.bf16.gmra.mrb[0].mxu0 %v4417
        %v4645 = vpop.f32.mrb[0].mxu0
        %v4646 = vadd.f32 %v4474, %v4645
        %v4647 = vpop.f32.mrb[0].mxu0
        %v4648 = vpop.f32.mrb[0].mxu0
        %v4649 = vadd.f32 %v4474, %v4648
        %v4650 = vpop.f32.mrb[0].mxu0
        %4651 = vmatprep.mubr.bf16.mxu0 %v4420
        %4652 = vmatmul.mubr.bf16.gmra.mrb[0].mxu0 %v4419
        %v4653 = vpop.f32.mrb[0].mxu0
        %v4654 = vadd.f32 %v4474, %v4653
        %v4655 = vpop.f32.mrb[0].mxu0
        %v4656 = vpop.f32.mrb[0].mxu0
        %v4657 = vadd.f32 %v4474, %v4656
        %v4658 = vpop.f32.mrb[0].mxu0
        %4659 = vmatprep.mubr.bf16.mxu0 %v4422
        %4660 = vmatmul.mubr.bf16.gmra.mrb[0].mxu0 %v4421
        %v4661 = vpop.f32.mrb[0].mxu0
        %v4662 = vadd.f32 %v4474, %v4661
        %v4663 = vpop.f32.mrb[0].mxu0
        %v4664 = vpop.f32.mrb[0].mxu0
        %v4665 = vadd.f32 %v4474, %v4664
        %v4666 = vpop.f32.mrb[0].mxu0
        %4667 = vmatprep.mubr.bf16.mxu0 %v4424
        %4668 = vmatmul.mubr.bf16.gmra.mrb[0].mxu0 %v4423
        %v4669 = vpop.f32.mrb[0].mxu0
        %v4670 = vadd.f32 %v4474, %v4669
        %v4671 = vpop.f32.mrb[0].mxu0
        %v4672 = vpop.f32.mrb[0].mxu0
        %v4673 = vadd.f32 %v4474, %v4672
        %v4674 = vpop.f32.mrb[0].mxu0
        %4675 = vmatprep.mubr.bf16.mxu0 %v4426
        %4676 = vmatmul.mubr.bf16.gmra.mrb[0].mxu0 %v4425
        %v4677 = vpop.f32.mrb[0].mxu0
        %v4678 = vadd.f32 %v4474, %v4677
        %v4679 = vpop.f32.mrb[0].mxu0
        %v4680 = vpop.f32.mrb[0].mxu0
        %v4681 = vadd.f32 %v4474, %v4680
        %v4682 = vpop.f32.mrb[0].mxu0
        %4683 = vmatprep.mubr.bf16.mxu0 %v4428
        %4684 = vmatmul.mubr.bf16.gmra.mrb[0].mxu0 %v4427
        %v4685 = vpop.f32.mrb[0].mxu0
        %v4686 = vadd.f32 %v4474, %v4685
        %v4687 = vpop.f32.mrb[0].mxu0
        %v4688 = vpop.f32.mrb[0].mxu0
        %v4689 = vadd.f32 %v4474, %v4688
        %v4690 = vpop.f32.mrb[0].mxu0
        %4691 = vmatprep.mubr.bf16.mxu0 %v4430
        %4692 = vmatmul.mubr.bf16.gmra.mrb[0].mxu0 %v4429
        %v4693 = vpop.f32.mrb[0].mxu0
        %v4694 = vadd.f32 %v4474, %v4693
        %v4695 = vpop.f32.mrb[0].mxu0
        %v4696 = vpop.f32.mrb[0].mxu0
        %v4697 = vadd.f32 %v4474, %v4696
        %v4698 = vpop.f32.mrb[0].mxu0
        %4699 = vmatprep.mubr.bf16.mxu0 %v4432
        %4700 = vmatmul.mubr.bf16.gmra.mrb[0].mxu0 %v4431
        %v4701 = vpop.f32.mrb[0].mxu0
        %v4702 = vadd.f32 %v4474, %v4701
        %v4703 = vpop.f32.mrb[0].mxu0
        %v4704 = vpop.f32.mrb[0].mxu0
        %v4705 = vadd.f32 %v4474, %v4704
        %v4706 = vpop.f32.mrb[0].mxu0
        %4707 = vmatprep.mubr.bf16.mxu0 %v4434
        %4708 = vmatmul.mubr.bf16.gmra.mrb[0].mxu0 %v4433
        %v4709 = vpop.f32.mrb[0].mxu0
        %v4710 = vadd.f32 %v4474, %v4709
        %v4711 = vpop.f32.mrb[0].mxu0
        %v4712 = vpop.f32.mrb[0].mxu0
        %v4713 = vadd.f32 %v4474, %v4712
        %v4714 = vpop.f32.mrb[0].mxu0
        %4715 = vmatprep.mubr.bf16.mxu0 %v4436
        %4716 = vmatmul.mubr.bf16.gmra.mrb[0].mxu0 %v4435
        %v4717 = vpop.f32.mrb[0].mxu0
        %v4718 = vadd.f32 %v4474, %v4717
        %v4719 = vpop.f32.mrb[0].mxu0
        %v4720 = vpop.f32.mrb[0].mxu0
        %v4721 = vadd.f32 %v4474, %v4720
        %v4722 = vpop.f32.mrb[0].mxu0
        %4723 = vmatprep.mubr.bf16.mxu0 %v4438
        %4724 = vmatmul.mubr.bf16.gmra.mrb[0].mxu0 %v4437
        %v4725 = vpop.f32.mrb[0].mxu0
        %v4726 = vadd.f32 %v4474, %v4725
        %v4727 = vpop.f32.mrb[0].mxu0
        %v4728 = vpop.f32.mrb[0].mxu0
        %v4729 = vadd.f32 %v4474, %v4728
        %v4730 = vpop.f32.mrb[0].mxu0
        %4731 = vdwg.mxu0
        %v4732 = vadd.f32 %v3994, %v4606
        %v4733 = vadd.f32 %v3995, %v4609
        %v4734 = vadd.f32 %v3996, %v4614
        %v4735 = vadd.f32 %v3997, %v4617
        %v4736 = vadd.f32 %v3998, %v4622
        %v4737 = vadd.f32 %v3999, %v4625
        %v4738 = vadd.f32 %v4000, %v4630
        %v4739 = vadd.f32 %v4001, %v4633
        %v4740 = vadd.f32 %v4002, %v4638
        %v4741 = vadd.f32 %v4003, %v4641
        %v4742 = vadd.f32 %v4004, %v4646
        %v4743 = vadd.f32 %v4005, %v4649
        %v4744 = vadd.f32 %v4006, %v4654
        %v4745 = vadd.f32 %v4007, %v4657
        %v4746 = vadd.f32 %v4008, %v4662
        %v4747 = vadd.f32 %v4009, %v4665
        %v4748 = vadd.f32 %v4010, %v4670
        %v4749 = vadd.f32 %v4011, %v4673
        %v4750 = vadd.f32 %v4012, %v4678
        %v4751 = vadd.f32 %v4013, %v4681
        %v4752 = vadd.f32 %v4014, %v4686
        %v4753 = vadd.f32 %v4015, %v4689
        %v4754 = vadd.f32 %v4016, %v4694
        %v4755 = vadd.f32 %v4017, %v4697
        %v4756 = vadd.f32 %v4018, %v4702
        %v4757 = vadd.f32 %v4019, %v4705
        %v4758 = vadd.f32 %v4020, %v4710
        %v4759 = vadd.f32 %v4021, %v4713
        %v4760 = vadd.f32 %v4022, %v4718
        %v4761 = vadd.f32 %v4023, %v4721
        %v4762 = vadd.f32 %v4024, %v4726
        %v4763 = vadd.f32 %v4025, %v4729
        %4764 = vadd.xlane.f32.xlu0 %v4732
        %v4765 = vpop.xlane.xlu0 %4764
        %4766 = vadd.xlane.f32.xlu0 %v4733
        %v4767 = vpop.xlane.xlu0 %4766
        %4768 = vadd.xlane.f32.xlu0 %v4734
        %v4769 = vpop.xlane.xlu0 %4768
        %4770 = vadd.xlane.f32.xlu0 %v4735
        %v4771 = vpop.xlane.xlu0 %4770
        %4772 = vadd.xlane.f32.xlu0 %v4736
        %v4773 = vpop.xlane.xlu0 %4772
        %4774 = vadd.xlane.f32.xlu0 %v4737
        %v4775 = vpop.xlane.xlu0 %4774
        %4776 = vadd.xlane.f32.xlu0 %v4738
        %v4777 = vpop.xlane.xlu0 %4776
        %4778 = vadd.xlane.f32.xlu0 %v4739
        %v4779 = vpop.xlane.xlu0 %4778
        %4780 = vadd.xlane.f32.xlu0 %v4740
        %v4781 = vpop.xlane.xlu0 %4780
        %4782 = vadd.xlane.f32.xlu0 %v4741
        %v4783 = vpop.xlane.xlu0 %4782
        %4784 = vadd.xlane.f32.xlu0 %v4742
        %v4785 = vpop.xlane.xlu0 %4784
        %4786 = vadd.xlane.f32.xlu0 %v4743
        %v4787 = vpop.xlane.xlu0 %4786
        %4788 = vadd.xlane.f32.xlu0 %v4744
        %v4789 = vpop.xlane.xlu0 %4788
        %4790 = vadd.xlane.f32.xlu0 %v4745
        %v4791 = vpop.xlane.xlu0 %4790
        %4792 = vadd.xlane.f32.xlu0 %v4746
        %v4793 = vpop.xlane.xlu0 %4792
        %4794 = vadd.xlane.f32.xlu0 %v4747
        %v4795 = vpop.xlane.xlu0 %4794
        %4796 = vadd.xlane.f32.xlu0 %v4748
        %v4797 = vpop.xlane.xlu0 %4796
        %4798 = vadd.xlane.f32.xlu0 %v4749
        %v4799 = vpop.xlane.xlu0 %4798
        %4800 = vadd.xlane.f32.xlu0 %v4750
        %v4801 = vpop.xlane.xlu0 %4800
        %4802 = vadd.xlane.f32.xlu0 %v4751
        %v4803 = vpop.xlane.xlu0 %4802
        %4804 = vadd.xlane.f32.xlu0 %v4752
        %v4805 = vpop.xlane.xlu0 %4804
        %4806 = vadd.xlane.f32.xlu0 %v4753
        %v4807 = vpop.xlane.xlu0 %4806
        %4808 = vadd.xlane.f32.xlu0 %v4754
        %v4809 = vpop.xlane.xlu0 %4808
        %4810 = vadd.xlane.f32.xlu0 %v4755
        %v4811 = vpop.xlane.xlu0 %4810
        %4812 = vadd.xlane.f32.xlu0 %v4756
        %v4813 = vpop.xlane.xlu0 %4812
        %4814 = vadd.xlane.f32.xlu0 %v4757
        %v4815 = vpop.xlane.xlu0 %4814
        %4816 = vadd.xlane.f32.xlu0 %v4758
        %v4817 = vpop.xlane.xlu0 %4816
        %4818 = vadd.xlane.f32.xlu0 %v4759
        %v4819 = vpop.xlane.xlu0 %4818
        %4820 = vadd.xlane.f32.xlu0 %v4760
        %v4821 = vpop.xlane.xlu0 %4820
        %4822 = vadd.xlane.f32.xlu0 %v4761
        %v4823 = vpop.xlane.xlu0 %4822
        %4824 = vadd.xlane.f32.xlu0 %v4762
        %v4825 = vpop.xlane.xlu0 %4824
        %4826 = vadd.xlane.f32.xlu0 %v4763
        %v4827 = vpop.xlane.xlu0 %4826
        %v4828 = vmul.f32 %v4765, %v3665
        %v4829 = vmul.f32 %v4767, %v3665
        %v4830 = vmul.f32 %v4769, %v3665
        %v4831 = vmul.f32 %v4771, %v3665
        %v4832 = vmul.f32 %v4773, %v3665
        %v4833 = vmul.f32 %v4775, %v3665
        %v4834 = vmul.f32 %v4777, %v3665
        %v4835 = vmul.f32 %v4779, %v3665
        %v4836 = vmul.f32 %v4781, %v3665
        %v4837 = vmul.f32 %v4783, %v3665
        %v4838 = vmul.f32 %v4785, %v3665
        %v4839 = vmul.f32 %v4787, %v3665
        %v4840 = vmul.f32 %v4789, %v3665
        %v4841 = vmul.f32 %v4791, %v3665
        %v4842 = vmul.f32 %v4793, %v3665
        %v4843 = vmul.f32 %v4795, %v3665
        %v4844 = vmul.f32 %v4797, %v3665
        %v4845 = vmul.f32 %v4799, %v3665
        %v4846 = vmul.f32 %v4801, %v3665
        %v4847 = vmul.f32 %v4803, %v3665
        %v4848 = vmul.f32 %v4805, %v3665
        %v4849 = vmul.f32 %v4807, %v3665
        %v4850 = vmul.f32 %v4809, %v3665
        %v4851 = vmul.f32 %v4811, %v3665
        %v4852 = vmul.f32 %v4813, %v3665
        %v4853 = vmul.f32 %v4815, %v3665
        %v4854 = vmul.f32 %v4817, %v3665
        %v4855 = vmul.f32 %v4819, %v3665
        %v4856 = vmul.f32 %v4821, %v3665
        %v4857 = vmul.f32 %v4823, %v3665
        %v4858 = vmul.f32 %v4825, %v3665
        %v4859 = vmul.f32 %v4827, %v3665
        %v4860 = vsub.f32 %v4732, %v4828
        %v4861 = vsub.f32 %v4733, %v4829
        %v4862 = vsub.f32 %v4734, %v4830
        %v4863 = vsub.f32 %v4735, %v4831
        %v4864 = vsub.f32 %v4736, %v4832
        %v4865 = vsub.f32 %v4737, %v4833
        %v4866 = vsub.f32 %v4738, %v4834
        %v4867 = vsub.f32 %v4739, %v4835
        %v4868 = vsub.f32 %v4740, %v4836
        %v4869 = vsub.f32 %v4741, %v4837
        %v4870 = vsub.f32 %v4742, %v4838
        %v4871 = vsub.f32 %v4743, %v4839
        %v4872 = vsub.f32 %v4744, %v4840
        %v4873 = vsub.f32 %v4745, %v4841
        %v4874 = vsub.f32 %v4746, %v4842
        %v4875 = vsub.f32 %v4747, %v4843
        %v4876 = vsub.f32 %v4748, %v4844
        %v4877 = vsub.f32 %v4749, %v4845
        %v4878 = vsub.f32 %v4750, %v4846
        %v4879 = vsub.f32 %v4751, %v4847
        %v4880 = vsub.f32 %v4752, %v4848
        %v4881 = vsub.f32 %v4753, %v4849
        %v4882 = vsub.f32 %v4754, %v4850
        %v4883 = vsub.f32 %v4755, %v4851
        %v4884 = vsub.f32 %v4756, %v4852
        %v4885 = vsub.f32 %v4757, %v4853
        %v4886 = vsub.f32 %v4758, %v4854
        %v4887 = vsub.f32 %v4759, %v4855
        %v4888 = vsub.f32 %v4760, %v4856
        %v4889 = vsub.f32 %v4761, %v4857
        %v4890 = vsub.f32 %v4762, %v4858
        %v4891 = vsub.f32 %v4763, %v4859
        %v4892 = vmul.f32 %v4860, %v4860
        %v4893 = vmul.f32 %v4861, %v4861
        %v4894 = vmul.f32 %v4862, %v4862
        %v4895 = vmul.f32 %v4863, %v4863
        %v4896 = vmul.f32 %v4864, %v4864
        %v4897 = vmul.f32 %v4865, %v4865
        %v4898 = vmul.f32 %v4866, %v4866
        %v4899 = vmul.f32 %v4867, %v4867
        %v4900 = vmul.f32 %v4868, %v4868
        %v4901 = vmul.f32 %v4869, %v4869
        %v4902 = vmul.f32 %v4870, %v4870
        %v4903 = vmul.f32 %v4871, %v4871
        %v4904 = vmul.f32 %v4872, %v4872
        %v4905 = vmul.f32 %v4873, %v4873
        %v4906 = vmul.f32 %v4874, %v4874
        %v4907 = vmul.f32 %v4875, %v4875
        %v4908 = vmul.f32 %v4876, %v4876
        %v4909 = vmul.f32 %v4877, %v4877
        %v4910 = vmul.f32 %v4878, %v4878
        %v4911 = vmul.f32 %v4879, %v4879
        %v4912 = vmul.f32 %v4880, %v4880
        %v4913 = vmul.f32 %v4881, %v4881
        %v4914 = vmul.f32 %v4882, %v4882
        %v4915 = vmul.f32 %v4883, %v4883
        %v4916 = vmul.f32 %v4884, %v4884
        %v4917 = vmul.f32 %v4885, %v4885
        %v4918 = vmul.f32 %v4886, %v4886
        %v4919 = vmul.f32 %v4887, %v4887
        %v4920 = vmul.f32 %v4888, %v4888
        %v4921 = vmul.f32 %v4889, %v4889
        %v4922 = vmul.f32 %v4890, %v4890
        %v4923 = vmul.f32 %v4891, %v4891
        %4924 = vadd.xlane.f32.xlu0 %v4892
        %v4925 = vpop.xlane.xlu0 %4924
        %4926 = vadd.xlane.f32.xlu0 %v4893
        %v4927 = vpop.xlane.xlu0 %4926
        %4928 = vadd.xlane.f32.xlu0 %v4894
        %v4929 = vpop.xlane.xlu0 %4928
        %4930 = vadd.xlane.f32.xlu0 %v4895
        %v4931 = vpop.xlane.xlu0 %4930
        %4932 = vadd.xlane.f32.xlu0 %v4896
        %v4933 = vpop.xlane.xlu0 %4932
        %4934 = vadd.xlane.f32.xlu0 %v4897
        %v4935 = vpop.xlane.xlu0 %4934
        %4936 = vadd.xlane.f32.xlu0 %v4898
        %v4937 = vpop.xlane.xlu0 %4936
        %4938 = vadd.xlane.f32.xlu0 %v4899
        %v4939 = vpop.xlane.xlu0 %4938
        %4940 = vadd.xlane.f32.xlu0 %v4900
        %v4941 = vpop.xlane.xlu0 %4940
        %4942 = vadd.xlane.f32.xlu0 %v4901
        %v4943 = vpop.xlane.xlu0 %4942
        %4944 = vadd.xlane.f32.xlu0 %v4902
        %v4945 = vpop.xlane.xlu0 %4944
        %4946 = vadd.xlane.f32.xlu0 %v4903
        %v4947 = vpop.xlane.xlu0 %4946
        %4948 = vadd.xlane.f32.xlu0 %v4904
        %v4949 = vpop.xlane.xlu0 %4948
        %4950 = vadd.xlane.f32.xlu0 %v4905
        %v4951 = vpop.xlane.xlu0 %4950
        %4952 = vadd.xlane.f32.xlu0 %v4906
        %v4953 = vpop.xlane.xlu0 %4952
        %4954 = vadd.xlane.f32.xlu0 %v4907
        %v4955 = vpop.xlane.xlu0 %4954
        %4956 = vadd.xlane.f32.xlu0 %v4908
        %v4957 = vpop.xlane.xlu0 %4956
        %4958 = vadd.xlane.f32.xlu0 %v4909
        %v4959 = vpop.xlane.xlu0 %4958
        %4960 = vadd.xlane.f32.xlu0 %v4910
        %v4961 = vpop.xlane.xlu0 %4960
        %4962 = vadd.xlane.f32.xlu0 %v4911
        %v4963 = vpop.xlane.xlu0 %4962
        %4964 = vadd.xlane.f32.xlu0 %v4912
        %v4965 = vpop.xlane.xlu0 %4964
        %4966 = vadd.xlane.f32.xlu0 %v4913
        %v4967 = vpop.xlane.xlu0 %4966
        %4968 = vadd.xlane.f32.xlu0 %v4914
        %v4969 = vpop.xlane.xlu0 %4968
        %4970 = vadd.xlane.f32.xlu0 %v4915
        %v4971 = vpop.xlane.xlu0 %4970
        %4972 = vadd.xlane.f32.xlu0 %v4916
        %v4973 = vpop.xlane.xlu0 %4972
        %4974 = vadd.xlane.f32.xlu0 %v4917
        %v4975 = vpop.xlane.xlu0 %4974
        %4976 = vadd.xlane.f32.xlu0 %v4918
        %v4977 = vpop.xlane.xlu0 %4976
        %4978 = vadd.xlane.f32.xlu0 %v4919
        %v4979 = vpop.xlane.xlu0 %4978
        %4980 = vadd.xlane.f32.xlu0 %v4920
        %v4981 = vpop.xlane.xlu0 %4980
        %4982 = vadd.xlane.f32.xlu0 %v4921
        %v4983 = vpop.xlane.xlu0 %4982
        %4984 = vadd.xlane.f32.xlu0 %v4922
        %v4985 = vpop.xlane.xlu0 %4984
        %4986 = vadd.xlane.f32.xlu0 %v4923
        %v4987 = vpop.xlane.xlu0 %4986
        %v4988 = vmul.f32 %v4925, %v3665
        %v4989 = vmul.f32 %v4927, %v3665
        %v4990 = vmul.f32 %v4929, %v3665
        %v4991 = vmul.f32 %v4931, %v3665
        %v4992 = vmul.f32 %v4933, %v3665
        %v4993 = vmul.f32 %v4935, %v3665
        %v4994 = vmul.f32 %v4937, %v3665
        %v4995 = vmul.f32 %v4939, %v3665
        %v4996 = vmul.f32 %v4941, %v3665
        %v4997 = vmul.f32 %v4943, %v3665
        %v4998 = vmul.f32 %v4945, %v3665
        %v4999 = vmul.f32 %v4947, %v3665
        %v5000 = vmul.f32 %v4949, %v3665
        %v5001 = vmul.f32 %v4951, %v3665
        %v5002 = vmul.f32 %v4953, %v3665
        %v5003 = vmul.f32 %v4955, %v3665
        %v5004 = vmul.f32 %v4957, %v3665
        %v5005 = vmul.f32 %v4959, %v3665
        %v5006 = vmul.f32 %v4961, %v3665
        %v5007 = vmul.f32 %v4963, %v3665
        %v5008 = vmul.f32 %v4965, %v3665
        %v5009 = vmul.f32 %v4967, %v3665
        %v5010 = vmul.f32 %v4969, %v3665
        %v5011 = vmul.f32 %v4971, %v3665
        %v5012 = vmul.f32 %v4973, %v3665
        %v5013 = vmul.f32 %v4975, %v3665
        %v5014 = vmul.f32 %v4977, %v3665
        %v5015 = vmul.f32 %v4979, %v3665
        %v5016 = vmul.f32 %v4981, %v3665
        %v5017 = vmul.f32 %v4983, %v3665
        %v5018 = vmul.f32 %v4985, %v3665
        %v5019 = vmul.f32 %v4987, %v3665
        %v5020 = vadd.f32 %v4988, 1e-05
        %v5021 = vadd.f32 %v4989, 1e-05
        %v5022 = vadd.f32 %v4990, 1e-05
        %v5023 = vadd.f32 %v4991, 1e-05
        %v5024 = vadd.f32 %v4992, 1e-05
        %v5025 = vadd.f32 %v4993, 1e-05
        %v5026 = vadd.f32 %v4994, 1e-05
        %v5027 = vadd.f32 %v4995, 1e-05
        %v5028 = vadd.f32 %v4996, 1e-05
        %v5029 = vadd.f32 %v4997, 1e-05
        %v5030 = vadd.f32 %v4998, 1e-05
        %v5031 = vadd.f32 %v4999, 1e-05
        %v5032 = vadd.f32 %v5000, 1e-05
        %v5033 = vadd.f32 %v5001, 1e-05
        %v5034 = vadd.f32 %v5002, 1e-05
        %v5035 = vadd.f32 %v5003, 1e-05
        %v5036 = vadd.f32 %v5004, 1e-05
        %v5037 = vadd.f32 %v5005, 1e-05
        %v5038 = vadd.f32 %v5006, 1e-05
        %v5039 = vadd.f32 %v5007, 1e-05
        %v5040 = vadd.f32 %v5008, 1e-05
        %v5041 = vadd.f32 %v5009, 1e-05
        %v5042 = vadd.f32 %v5010, 1e-05
        %v5043 = vadd.f32 %v5011, 1e-05
        %v5044 = vadd.f32 %v5012, 1e-05
        %v5045 = vadd.f32 %v5013, 1e-05
        %v5046 = vadd.f32 %v5014, 1e-05
        %v5047 = vadd.f32 %v5015, 1e-05
        %v5048 = vadd.f32 %v5016, 1e-05
        %v5049 = vadd.f32 %v5017, 1e-05
        %v5050 = vadd.f32 %v5018, 1e-05
        %v5051 = vadd.f32 %v5019, 1e-05
        %v5052 = vrsqrt.pop %v5020
        %v5053 = vrsqrt.pop %v5021
        %v5054 = vrsqrt.pop %v5022
        %v5055 = vrsqrt.pop %v5023
        %v5056 = vrsqrt.pop %v5024
        %v5057 = vrsqrt.pop %v5025
        %v5058 = vrsqrt.pop %v5026
        %v5059 = vrsqrt.pop %v5027
        %v5060 = vrsqrt.pop %v5028
        %v5061 = vrsqrt.pop %v5029
        %v5062 = vrsqrt.pop %v5030
        %v5063 = vrsqrt.pop %v5031
        %v5064 = vrsqrt.pop %v5032
        %v5065 = vrsqrt.pop %v5033
        %v5066 = vrsqrt.pop %v5034
        %v5067 = vrsqrt.pop %v5035
        %v5068 = vrsqrt.pop %v5036
        %v5069 = vrsqrt.pop %v5037
        %v5070 = vrsqrt.pop %v5038
        %v5071 = vrsqrt.pop %v5039
        %v5072 = vrsqrt.pop %v5040
        %v5073 = vrsqrt.pop %v5041
        %v5074 = vrsqrt.pop %v5042
        %v5075 = vrsqrt.pop %v5043
        %v5076 = vrsqrt.pop %v5044
        %v5077 = vrsqrt.pop %v5045
        %v5078 = vrsqrt.pop %v5046
        %v5079 = vrsqrt.pop %v5047
        %v5080 = vrsqrt.pop %v5048
        %v5081 = vrsqrt.pop %v5049
        %v5082 = vrsqrt.pop %v5050
        %v5083 = vrsqrt.pop %v5051
        %v5084 = vmul.f32 %v4860, %v5052
        %v5085 = vmul.f32 %v4861, %v5053
        %v5086 = vmul.f32 %v4862, %v5054
        %v5087 = vmul.f32 %v4863, %v5055
        %v5088 = vmul.f32 %v4864, %v5056
        %v5089 = vmul.f32 %v4865, %v5057
        %v5090 = vmul.f32 %v4866, %v5058
        %v5091 = vmul.f32 %v4867, %v5059
        %v5092 = vmul.f32 %v4868, %v5060
        %v5093 = vmul.f32 %v4869, %v5061
        %v5094 = vmul.f32 %v4870, %v5062
        %v5095 = vmul.f32 %v4871, %v5063
        %v5096 = vmul.f32 %v4872, %v5064
        %v5097 = vmul.f32 %v4873, %v5065
        %v5098 = vmul.f32 %v4874, %v5066
        %v5099 = vmul.f32 %v4875, %v5067
        %v5100 = vmul.f32 %v4876, %v5068
        %v5101 = vmul.f32 %v4877, %v5069
        %v5102 = vmul.f32 %v4878, %v5070
        %v5103 = vmul.f32 %v4879, %v5071
        %v5104 = vmul.f32 %v4880, %v5072
        %v5105 = vmul.f32 %v4881, %v5073
        %v5106 = vmul.f32 %v4882, %v5074
        %v5107 = vmul.f32 %v4883, %v5075
        %v5108 = vmul.f32 %v4884, %v5076
        %v5109 = vmul.f32 %v4885, %v5077
        %v5110 = vmul.f32 %v4886, %v5078
        %v5111 = vmul.f32 %v4887, %v5079
        %v5112 = vmul.f32 %v4888, %v5080
        %v5113 = vmul.f32 %v4889, %v5081
        %v5114 = vmul.f32 %v4890, %v5082
        %v5115 = vmul.f32 %v4891, %v5083
        %v5116 = vlaneseq
        %v5117 = vshrl.u32 %v5116, 7
        %v5118 = vsub.s32 4, %v5117
        %v5119 = vrot.slane %v2971, %v5118
        %v5120 = vmul.f32 %v5084, %v5119
        %v5121 = vmul.f32 %v5085, %v5119
        %v5122 = vmul.f32 %v5086, %v5119
        %v5123 = vmul.f32 %v5087, %v5119
        %v5124 = vmul.f32 %v5088, %v5119
        %v5125 = vmul.f32 %v5089, %v5119
        %v5126 = vmul.f32 %v5090, %v5119
        %v5127 = vmul.f32 %v5091, %v5119
        %v5128 = vmul.f32 %v5092, %v5119
        %v5129 = vmul.f32 %v5093, %v5119
        %v5130 = vmul.f32 %v5094, %v5119
        %v5131 = vmul.f32 %v5095, %v5119
        %v5132 = vmul.f32 %v5096, %v5119
        %v5133 = vmul.f32 %v5097, %v5119
        %v5134 = vmul.f32 %v5098, %v5119
        %v5135 = vmul.f32 %v5099, %v5119
        %v5136 = vmul.f32 %v5100, %v5119
        %v5137 = vmul.f32 %v5101, %v5119
        %v5138 = vmul.f32 %v5102, %v5119
        %v5139 = vmul.f32 %v5103, %v5119
        %v5140 = vmul.f32 %v5104, %v5119
        %v5141 = vmul.f32 %v5105, %v5119
        %v5142 = vmul.f32 %v5106, %v5119
        %v5143 = vmul.f32 %v5107, %v5119
        %v5144 = vmul.f32 %v5108, %v5119
        %v5145 = vmul.f32 %v5109, %v5119
        %v5146 = vmul.f32 %v5110, %v5119
        %v5147 = vmul.f32 %v5111, %v5119
        %v5148 = vmul.f32 %v5112, %v5119
        %v5149 = vmul.f32 %v5113, %v5119
        %v5150 = vmul.f32 %v5114, %v5119
        %v5151 = vmul.f32 %v5115, %v5119
        %v5152 = vlaneseq
        %v5153 = vshrl.u32 %v5152, 7
        %v5154 = vsub.s32 5, %v5153
        %v5155 = vrot.slane %v2971, %v5154
        %v5156 = vadd.f32 %v5120, %v5155
        %v5157 = vadd.f32 %v5121, %v5155
        %v5158 = vadd.f32 %v5122, %v5155
        %v5159 = vadd.f32 %v5123, %v5155
        %v5160 = vadd.f32 %v5124, %v5155
        %v5161 = vadd.f32 %v5125, %v5155
        %v5162 = vadd.f32 %v5126, %v5155
        %v5163 = vadd.f32 %v5127, %v5155
        %v5164 = vadd.f32 %v5128, %v5155
        %v5165 = vadd.f32 %v5129, %v5155
        %v5166 = vadd.f32 %v5130, %v5155
        %v5167 = vadd.f32 %v5131, %v5155
        %v5168 = vadd.f32 %v5132, %v5155
        %v5169 = vadd.f32 %v5133, %v5155
        %v5170 = vadd.f32 %v5134, %v5155
        %v5171 = vadd.f32 %v5135, %v5155
        %v5172 = vadd.f32 %v5136, %v5155
        %v5173 = vadd.f32 %v5137, %v5155
        %v5174 = vadd.f32 %v5138, %v5155
        %v5175 = vadd.f32 %v5139, %v5155
        %v5176 = vadd.f32 %v5140, %v5155
        %v5177 = vadd.f32 %v5141, %v5155
        %v5178 = vadd.f32 %v5142, %v5155
        %v5179 = vadd.f32 %v5143, %v5155
        %v5180 = vadd.f32 %v5144, %v5155
        %v5181 = vadd.f32 %v5145, %v5155
        %v5182 = vadd.f32 %v5146, %v5155
        %v5183 = vadd.f32 %v5147, %v5155
        %v5184 = vadd.f32 %v5148, %v5155
        %v5185 = vadd.f32 %v5149, %v5155
        %v5186 = vadd.f32 %v5150, %v5155
        %v5187 = vadd.f32 %v5151, %v5155
        %v5188 = vpack.c.bf16 %v5157, %v5156
        %v5189 = vpack.c.bf16 %v5159, %v5158
        %v5190 = vpack.c.bf16 %v5161, %v5160
        %v5191 = vpack.c.bf16 %v5163, %v5162
        %v5192 = vpack.c.bf16 %v5165, %v5164
        %v5193 = vpack.c.bf16 %v5167, %v5166
        %v5194 = vpack.c.bf16 %v5169, %v5168
        %v5195 = vpack.c.bf16 %v5171, %v5170
        %v5196 = vpack.c.bf16 %v5173, %v5172
        %v5197 = vpack.c.bf16 %v5175, %v5174
        %v5198 = vpack.c.bf16 %v5177, %v5176
        %v5199 = vpack.c.bf16 %v5179, %v5178
        %v5200 = vpack.c.bf16 %v5181, %v5180
        %v5201 = vpack.c.bf16 %v5183, %v5182
        %v5202 = vpack.c.bf16 %v5185, %v5184
        %v5203 = vpack.c.bf16 %v5187, %v5186
        %v5220 = vunpack.c.l.b16 %v5188
        %v5221 = vunpack.c.h.b16 %v5188
        %v5222 = vunpack.c.l.b16 %v5189
        %v5223 = vunpack.c.h.b16 %v5189
        %v5224 = vunpack.c.l.b16 %v5190
        %v5225 = vunpack.c.h.b16 %v5190
        %v5226 = vunpack.c.l.b16 %v5191
        %v5227 = vunpack.c.h.b16 %v5191
        %v5228 = vunpack.c.l.b16 %v5192
        %v5229 = vunpack.c.h.b16 %v5192
        %v5230 = vunpack.c.l.b16 %v5193
        %v5231 = vunpack.c.h.b16 %v5193
        %v5232 = vunpack.c.l.b16 %v5194
        %v5233 = vunpack.c.h.b16 %v5194
        %v5234 = vunpack.c.l.b16 %v5195
        %v5235 = vunpack.c.h.b16 %v5195
        %v5236 = vunpack.c.l.b16 %v5196
        %v5237 = vunpack.c.h.b16 %v5196
        %v5238 = vunpack.c.l.b16 %v5197
        %v5239 = vunpack.c.h.b16 %v5197
        %v5240 = vunpack.c.l.b16 %v5198
        %v5241 = vunpack.c.h.b16 %v5198
        %v5242 = vunpack.c.l.b16 %v5199
        %v5243 = vunpack.c.h.b16 %v5199
        %v5244 = vunpack.c.l.b16 %v5200
        %v5245 = vunpack.c.h.b16 %v5200
        %v5246 = vunpack.c.l.b16 %v5201
        %v5247 = vunpack.c.h.b16 %v5201
        %v5248 = vunpack.c.l.b16 %v5202
        %v5249 = vunpack.c.h.b16 %v5202
        %v5250 = vunpack.c.l.b16 %v5203
        %v5251 = vunpack.c.h.b16 %v5203
        %v5252 = vpack.c.b16 %v5220, %v5220
        %v5253 = vpack.c.b16 %v5221, %v5221
        %v5254 = vpack.c.b16 %v5222, %v5222
        %v5255 = vpack.c.b16 %v5223, %v5223
        %v5256 = vpack.c.b16 %v5224, %v5224
        %v5257 = vpack.c.b16 %v5225, %v5225
        %v5258 = vpack.c.b16 %v5226, %v5226
        %v5259 = vpack.c.b16 %v5227, %v5227
        %v5260 = vpack.c.b16 %v5228, %v5228
        %v5261 = vpack.c.b16 %v5229, %v5229
        %v5262 = vpack.c.b16 %v5230, %v5230
        %v5263 = vpack.c.b16 %v5231, %v5231
        %v5264 = vpack.c.b16 %v5232, %v5232
        %v5265 = vpack.c.b16 %v5233, %v5233
        %v5266 = vpack.c.b16 %v5234, %v5234
        %v5267 = vpack.c.b16 %v5235, %v5235
        %v5268 = vpack.c.b16 %v5236, %v5236
        %v5269 = vpack.c.b16 %v5237, %v5237
        %v5270 = vpack.c.b16 %v5238, %v5238
        %v5271 = vpack.c.b16 %v5239, %v5239
        %v5272 = vpack.c.b16 %v5240, %v5240
        %v5273 = vpack.c.b16 %v5241, %v5241
        %v5274 = vpack.c.b16 %v5242, %v5242
        %v5275 = vpack.c.b16 %v5243, %v5243
        %v5276 = vpack.c.b16 %v5244, %v5244
        %v5277 = vpack.c.b16 %v5245, %v5245
        %v5278 = vpack.c.b16 %v5246, %v5246
        %v5279 = vpack.c.b16 %v5247, %v5247
        %v5280 = vpack.c.b16 %v5248, %v5248
        %v5281 = vpack.c.b16 %v5249, %v5249
        %v5282 = vpack.c.b16 %v5250, %v5250
        %v5283 = vpack.c.b16 %v5251, %v5251
        %5316 = vst [vmem:[%s539] sm:$0xf] %v5252
        %5317 = vst [vmem:[%s539 + $0x4] sm:$0xf] %v5253
        %5318 = vst [vmem:[%s539 + $0x8] sm:$0xf] %v5254
        %5319 = vst [vmem:[%s539 + $0xc] sm:$0xf] %v5255
        %5320 = vst [vmem:[%s539 + $0x10] sm:$0xf] %v5256
        %5321 = vst [vmem:[%s539 + $0x14] sm:$0xf] %v5257
        %5322 = vst [vmem:[%s539 + $0x18] sm:$0xf] %v5258
        %5323 = vst [vmem:[%s539 + $0x1c] sm:$0xf] %v5259
        %5324 = vst [vmem:[%s539 + $0x20] sm:$0xf] %v5260
        %5325 = vst [vmem:[%s539 + $0x24] sm:$0xf] %v5261
        %5326 = vst [vmem:[%s539 + $0x28] sm:$0xf] %v5262
        %5327 = vst [vmem:[%s539 + $0x2c] sm:$0xf] %v5263
        %5328 = vst [vmem:[%s539 + $0x30] sm:$0xf] %v5264
        %5329 = vst [vmem:[%s539 + $0x34] sm:$0xf] %v5265
        %5330 = vst [vmem:[%s539 + $0x38] sm:$0xf] %v5266
        %5331 = vst [vmem:[%s539 + $0x3c] sm:$0xf] %v5267
        %5332 = vst [vmem:[%s539 + $0x40] sm:$0xf] %v5268
        %5333 = vst [vmem:[%s539 + $0x44] sm:$0xf] %v5269
        %5334 = vst [vmem:[%s539 + $0x48] sm:$0xf] %v5270
        %5335 = vst [vmem:[%s539 + $0x4c] sm:$0xf] %v5271
        %5336 = vst [vmem:[%s539 + $0x50] sm:$0xf] %v5272
        %5337 = vst [vmem:[%s539 + $0x54] sm:$0xf] %v5273
        %5338 = vst [vmem:[%s539 + $0x58] sm:$0xf] %v5274
        %5339 = vst [vmem:[%s539 + $0x5c] sm:$0xf] %v5275
        %5340 = vst [vmem:[%s539 + $0x60] sm:$0xf] %v5276
        %5341 = vst [vmem:[%s539 + $0x64] sm:$0xf] %v5277
        %5342 = vst [vmem:[%s539 + $0x68] sm:$0xf] %v5278
        %5343 = vst [vmem:[%s539 + $0x6c] sm:$0xf] %v5279
        %5344 = vst [vmem:[%s539 + $0x70] sm:$0xf] %v5280
        %5345 = vst [vmem:[%s539 + $0x74] sm:$0xf] %v5281
        %5346 = vst [vmem:[%s539 + $0x78] sm:$0xf] %v5282
        %5347 = vst [vmem:[%s539 + $0x7c] sm:$0xf] %v5283
      $region72: #{make_encoder_forward.7} parent=63 // pred_fallthru
        _
      %s5348 = smul.u32 32, %s28
      %p5349 = scmp.lt.s32.totalorder %s27, 1
      %s5350 = scalar_select %p5349, %s27, 1
      %p5351 = scmp.lt.s32.totalorder %s5348, 63
      %s5352 = scalar_select %p5351, %s5348, 63
      %s5353 = smul.addr %s5350, 64
      %s5354 = sadd.s32 %s5352, %s5353
      %s5355 = smul.addr %s5354, 4
      %s5356 = scalar_lea.vmem %s11, %s5355
      // Predicated region
      $region73: #{make_encoder_forward.7} parent=63 // pred_check
        %p5357 = pneg %p320
      $region74: #{make_encoder_forward.7} parent=63 // pred_check_branch
        %5359 = sbr.rel (%p5357) target = $region76
      $region75: #{make_encoder_forward.7} parent=63 // pred_region
        %s5360 = smul.u32 32, %s28
      $region76: #{make_encoder_forward.7} parent=63 // pred_fallthru
        _
    $region64: #{make_encoder_forward.7} parent=5 // pred_fallthru
      _
    %p5361 = scmp.le.s32.totalorder 2, %s17
    // Predicated region
    $region77: #{make_encoder_forward.7} parent=5 // pred_check
      %p5362 = pneg %p5361
    $region78: #{make_encoder_forward.7} parent=5 // pred_check_branch
      %5364 = sbr.rel (%p5362) target = $region80
    $region79: #{make_encoder_forward.7} parent=5 // pred_region
      %s5365 = ssub.s32 %s17, 2
      // Predicated region
      $region81: #{make_encoder_forward.7} parent=79 // pred_check
        %p5366 = pneg %p326
      $region82: #{make_encoder_forward.7} parent=79 // pred_check_branch
        %5368 = sbr.rel (%p5366) target = $region84
      $region83: #{make_encoder_forward.7} parent=79 // pred_region
        %s5369 = smul.u32 32, %s31
        %p5370 = scmp.lt.s32.totalorder %s30, 1
        %s5371 = scalar_select %p5370, %s30, 1
        %p5372 = scmp.lt.s32.totalorder %s5369, 63
        %s5373 = scalar_select %p5372, %s5369, 63
        %s5374 = smul.addr %s5371, 64
        %s5375 = sadd.s32 %s5373, %s5374
        %s5376 = smul.addr %s5375, 4
        %s5377 = scalar_lea.vmem %s11, %s5376
      $region84: #{make_encoder_forward.7} parent=79 // pred_fallthru
        _
    $region80: #{make_encoder_forward.7} parent=5 // pred_fallthru
      _
  $region6: #{make_encoder_forward.7} parent=0 // loop_footer
    %s21 = sadd.s32 1, %s17
  $region7: #{make_encoder_forward.7} parent=0 // loop_footer_branch
    %16 = sbr.rel target = $region3
  $region8: #{make_encoder_forward.7} parent=0 // loop_exit
    _

</llo_original>
